<compile_context>
chip_gen: v7x
topology: tpu7x:2x2x1
jax: 0.10.0
libtpu: 0.0.40
codegen_flags: <defaults>
</compile_context>

<pallas_src>
import functools

import jax
import jax.numpy as jnp
from jax.experimental import pallas as pl
from jax.experimental.pallas import tpu as pltpu

CIN_PAD = 8   # pad the 2 input channels to 8 so im2col sublane pieces stay tile-aligned


# ----------------------------------------------------------------------------
# Fused kernel (one grid step == one batch image)
# ----------------------------------------------------------------------------
def _att_spatial_kernel(alphas_ref, wsp_ref, x_ref, mask_ref,
                        w0_ref, w1_ref, b1_ref, w2_ref, b2_ref,
                        o_ref, pad_sc, *, H, W, n_res):
    Hp, Wp = H + 2, W + 2
    P = Hp * Wp                   # padded-flat length (lane dim of activations)
    Q = (H - 1) * Wp + W          # "corner" layout length: pixel (y,x) at q = y*Wp + x
    SH = Wp + 1                   # corner -> padded-interior lane shift

    mask_q = mask_ref[...]        # (1, Q) f32: 1 where a corner column is a real pixel

    def conv3x3(flat, w_mat):
        """flat: (Cin, P) f32, exact zero-padded flattened image (channel-first).
        w_mat: (Cout, 9*Cin) bf16, columns ordered (ky, kx, cin).
        Returns (Cout, Q) f32 in corner layout."""
        taps = [flat[:, ky * Wp + kx: ky * Wp + kx + Q]
                for ky in range(3) for kx in range(3)]
        im2col = jnp.concatenate(taps, axis=0).astype(jnp.bfloat16)   # (9*Cin, Q)
        return jnp.dot(w_mat, im2col, preferred_element_type=jnp.float32)

    def prelu(v, a):
        return jnp.where(v >= 0.0, v, a * v)

    def repad(corner):
        """corner layout (C, Q) -> exact zero-padded flat layout (C, P)."""
        pad_sc[:, SH:SH + Q] = corner * mask_q   # garbage columns -> 0 (true padding)
        return pad_sc[...]

    pad_sc[...] = jnp.zeros_like(pad_sc)         # zero border once per image

    # ---- ConvBlock(2 -> C): conv3x3 (no bias) + PReLU ------------------------
    flat = repad(prelu(conv3x3(x_ref[0], w0_ref[...]), alphas_ref[0]))   # (C, P)

    # ---- 6 x ResnetBlock(C): conv+bias -> PReLU -> conv+bias -> +residual ----
    for i in range(n_res):
        h = prelu(conv3x3(flat, w1_ref[i]) + b1_ref[i], alphas_ref[1 + i])
        h = conv3x3(repad(h), w2_ref[i]) + b2_ref[i]
        flat = repad(h + flat[:, SH:SH + Q])     # residual = block input

    # ---- spatial attention: channel max/mean -> conv3x3(2->1) -> PReLU -> sigmoid
    cmax = jnp.max(flat, axis=0, keepdims=True)      # (1, P); border stays 0
    cmean = jnp.mean(flat, axis=0, keepdims=True)    # (1, P)
    acc = jnp.zeros((1, Q), jnp.float32)
    for k in range(9):
        off = (k // 3) * Wp + (k % 3)
        acc = acc + wsp_ref[k, 0] * cmax[:, off:off + Q] \
                  + wsp_ref[k, 1] * cmean[:, off:off + Q]
    o_ref[0] = jax.nn.sigmoid(prelu(acc, alphas_ref[1 + n_res]))


# ----------------------------------------------------------------------------
# Wrapper
# ----------------------------------------------------------------------------
def att_spatial_forward(x_nchw, params):
    """x_nchw: (N, 2, H, W) float32  ->  scale: (N, 1, H, W) float32."""
    N, Cin, H, W = x_nchw.shape
    Hp, Wp = H + 2, W + 2
    P, Q = Hp * Wp, (H - 1) * Wp + W
    n_res, C = params["w1"].shape[0], params["w1"].shape[1]

    # Channel pad (dead channels, zero weights) + 1-pixel halo, then flatten to
    # channel-first padded-flat layout. Only done once on the tiny 2-ch input.
    xp = jnp.pad(x_nchw.astype(jnp.float32),
                 ((0, 0), (0, CIN_PAD - Cin), (1, 1), (1, 1))).reshape(N, CIN_PAD, P)

    # corner-layout validity mask: column q is a real pixel iff (q % Wp) < W
    mask_q = (jnp.arange(Q) % Wp < W).astype(jnp.float32).reshape(1, Q)

    kern = functools.partial(_att_spatial_kernel, H=H, W=W, n_res=n_res)
    out = pl.pallas_call(
        kern,
        out_shape=jax.ShapeDtypeStruct((N, 1, Q), jnp.float32),
        grid=(N,),
        in_specs=[
            pl.BlockSpec(memory_space=pltpu.MemorySpace.SMEM),            # alphas
            pl.BlockSpec(memory_space=pltpu.MemorySpace.SMEM),            # wsp
            pl.BlockSpec((1, CIN_PAD, P), lambda n: (n, 0, 0)),           # x (padded flat)
            pl.BlockSpec((1, Q), lambda n: (0, 0)),                       # mask_q
            pl.BlockSpec((C, 9 * CIN_PAD), lambda n: (0, 0)),             # w0
            pl.BlockSpec((n_res, C, 9 * C), lambda n: (0, 0, 0)),         # w1 (all blocks)
            pl.BlockSpec((n_res, C, 1), lambda n: (0, 0, 0)),             # b1
            pl.BlockSpec((n_res, C, 9 * C), lambda n: (0, 0, 0)),         # w2
            pl.BlockSpec((n_res, C, 1), lambda n: (0, 0, 0)),             # b2
        ],
        out_specs=pl.BlockSpec((1, 1, Q), lambda n: (n, 0, 0)),
        scratch_shapes=[pltpu.VMEM((C, P), jnp.float32)],
        compiler_params=pltpu.CompilerParams(dimension_semantics=("parallel",)),
    )(params["alphas"], params["wsp"], xp, mask_q,
      params["w0"], params["w1"], params["b1"], params["w2"], params["b2"])

    # corner layout (pixel (y,x) at q = y*Wp + x) -> (N, 1, H, W)
    out = jnp.pad(out, ((0, 0), (0, 0), (0, H * Wp - Q)))
    return out.reshape(N, 1, H, Wp)[:, :, :, :W]


# ----------------------------------------------------------------------------
# Parameters
# ----------------------------------------------------------------------------
def _to_mat(w_hwio):
    """(3, 3, Cin, Cout) HWIO -> (Cout, 9*Cin) bf16, columns ordered (ky, kx, cin)."""
    kh, kw, ci, co = w_hwio.shape
    return w_hwio.reshape(kh * kw * ci, co).T.astype(jnp.bfloat16)


def init_params(key, *, C=32, n_res=6):
    std = 0.1
    ks = jax.random.split(key, 2 + n_res)
    # first conv: real input channels = 2, zero weights on the padded channels
    w0 = jnp.zeros((3, 3, CIN_PAD, C), jnp.float32)
    w0 = w0.at[:, :, :2, :].set(
        jax.random.normal(ks[0], (3, 3, 2, C), jnp.float32) * std)
    wsp = jax.random.normal(ks[1], (3, 3, 2, 1), jnp.float32) * std
    w1, b1, w2, b2 = [], [], [], []
    for i in range(n_res):
        k1, k2, k3, k4 = jax.random.split(ks[2 + i], 4)
        w1.append(_to_mat(jax.random.normal(k1, (3, 3, C, C), jnp.float32) * std))
        b1.append(jax.random.normal(k2, (C, 1), jnp.float32) * 0.01)
        w2.append(_to_mat(jax.random.normal(k3, (3, 3, C, C), jnp.float32) * std))
        b2.append(jax.random.normal(k4, (C, 1), jnp.float32) * 0.01)
    return {
        "w0": _to_mat(w0),                                    # (C, 9*CIN_PAD) bf16
        "w1": jnp.stack(w1), "b1": jnp.stack(b1),             # (6,C,9C) bf16 / (6,C,1) f32
        "w2": jnp.stack(w2), "b2": jnp.stack(b2),
        "wsp": wsp.reshape(9, 2),                             # (tap, [max_ch, mean_ch]) f32
        "alphas": jnp.full((n_res + 2,), 0.25, jnp.float32),  # PReLU slopes (torch init)
    }


if __name__ == "__main__":
    key = jax.random.PRNGKey(0)
    k_in, k_par = jax.random.split(key)
    N, C_in, H, W = 2, 2, 16, 16
    x = jax.random.normal(k_in, (N, C_in, H, W), jnp.float32)

    params = init_params(k_par)
    fwd = jax.jit(att_spatial_forward)
    scale = jax.block_until_ready(fwd(x, params))

    assert scale.shape == (N, 1, H, W)
    assert bool(jnp.all(jnp.isfinite(scale)))
    assert bool(jnp.all((scale >= 0.0) & (scale <= 1.0)))   # sigmoid output range
    print("KERNEL_OK")
</pallas_src>

<mosaic_0001>
module attributes {stable_mosaic.version = 11 : i64} {
  func.func @_att_spatial_kernel(%arg0: i32, %arg1: memref<8xf32, #tpu.memory_space<smem>>, %arg2: memref<9x2xf32, #tpu.memory_space<smem>>, %arg3: memref<1x8x324xf32, #tpu.memory_space<vmem>>, %arg4: memref<1x286xf32, #tpu.memory_space<vmem>>, %arg5: memref<32x72xbf16, #tpu.memory_space<vmem>>, %arg6: memref<6x32x288xbf16, #tpu.memory_space<vmem>>, %arg7: memref<6x32x1xf32, #tpu.memory_space<vmem>>, %arg8: memref<6x32x288xbf16, #tpu.memory_space<vmem>>, %arg9: memref<6x32x1xf32, #tpu.memory_space<vmem>>, %arg10: memref<1x1x286xf32, #tpu.memory_space<vmem>>, %arg11: memref<32x324xf32, #tpu.memory_space<vmem>>) attributes {dimension_semantics = [#tpu.dimension_semantics<parallel>], iteration_bounds = array<i64: 2>, scalar_prefetch = 0 : i64, scratch_operands = 1 : i64, tpu.core_type = #tpu.core_type<tc>, window_params = [{transform_indices = @transform_0, window_bounds = array<i64: 8>}, {transform_indices = @transform_1, window_bounds = array<i64: 9, 2>}, {transform_indices = @transform_2, window_bounds = array<i64: 1, 8, 324>}, {pipeline_mode = #tpu.pipeline_mode<synchronous>, transform_indices = @transform_3, window_bounds = array<i64: 1, 286>}, {pipeline_mode = #tpu.pipeline_mode<synchronous>, transform_indices = @transform_4, window_bounds = array<i64: 32, 72>}, {pipeline_mode = #tpu.pipeline_mode<synchronous>, transform_indices = @transform_5, window_bounds = array<i64: 6, 32, 288>}, {pipeline_mode = #tpu.pipeline_mode<synchronous>, transform_indices = @transform_6, window_bounds = array<i64: 6, 32, 1>}, {pipeline_mode = #tpu.pipeline_mode<synchronous>, transform_indices = @transform_7, window_bounds = array<i64: 6, 32, 288>}, {pipeline_mode = #tpu.pipeline_mode<synchronous>, transform_indices = @transform_8, window_bounds = array<i64: 6, 32, 1>}, {transform_indices = @transform_9, window_bounds = array<i64: 1, 1, 286>}]} {
    %c0 = arith.constant 0 : index
    %c0_0 = arith.constant 0 : index
    %0 = vector.load %arg4[%c0, %c0_0] : memref<1x286xf32, #tpu.memory_space<vmem>>, vector<1x286xf32>
    %cst = arith.constant 0.000000e+00 : f32
    %1 = vector.broadcast %cst : f32 to vector<32x324xf32>
    %c0_1 = arith.constant 0 : index
    %c0_2 = arith.constant 0 : index
    %2 = vector.load %arg11[%c0_1, %c0_2] : memref<32x324xf32, #tpu.memory_space<vmem>>, vector<32x324xf32>
    tpu.vector_store %arg11[%c0_1, %c0_2], %1 {strides = array<i32>} : memref<32x324xf32, #tpu.memory_space<vmem>>, vector<32x324xf32>,
    %c0_3 = arith.constant 0 : index
    %c0_4 = arith.constant 0 : index
    %c0_5 = arith.constant 0 : index
    %3 = vector.load %arg3[%c0_3, %c0_4, %c0_5] : memref<1x8x324xf32, #tpu.memory_space<vmem>>, vector<1x8x324xf32>
    %4 = vector.shape_cast %3 : vector<1x8x324xf32> to vector<8x324xf32>
    %c0_6 = arith.constant 0 : index
    %c0_7 = arith.constant 0 : index
    %5 = vector.load %arg5[%c0_6, %c0_7] : memref<32x72xbf16, #tpu.memory_space<vmem>>, vector<32x72xbf16>
    %6 = vector.extract_strided_slice %4 {offsets = [0, 0], sizes = [8, 286], strides = [1, 1]} : vector<8x324xf32> to vector<8x286xf32>
    %7 = vector.extract_strided_slice %4 {offsets = [0, 1], sizes = [8, 286], strides = [1, 1]} : vector<8x324xf32> to vector<8x286xf32>
    %8 = vector.extract_strided_slice %4 {offsets = [0, 2], sizes = [8, 286], strides = [1, 1]} : vector<8x324xf32> to vector<8x286xf32>
    %9 = vector.extract_strided_slice %4 {offsets = [0, 18], sizes = [8, 286], strides = [1, 1]} : vector<8x324xf32> to vector<8x286xf32>
    %10 = vector.extract_strided_slice %4 {offsets = [0, 19], sizes = [8, 286], strides = [1, 1]} : vector<8x324xf32> to vector<8x286xf32>
    %11 = vector.extract_strided_slice %4 {offsets = [0, 20], sizes = [8, 286], strides = [1, 1]} : vector<8x324xf32> to vector<8x286xf32>
    %12 = vector.extract_strided_slice %4 {offsets = [0, 36], sizes = [8, 286], strides = [1, 1]} : vector<8x324xf32> to vector<8x286xf32>
    %13 = vector.extract_strided_slice %4 {offsets = [0, 37], sizes = [8, 286], strides = [1, 1]} : vector<8x324xf32> to vector<8x286xf32>
    %14 = vector.extract_strided_slice %4 {offsets = [0, 38], sizes = [8, 286], strides = [1, 1]} : vector<8x324xf32> to vector<8x286xf32>
    %15 = tpu.concatenate %6, %7, %8, %9, %10, %11, %12, %13, %14 in 0 : vector<8x286xf32>, vector<8x286xf32>, vector<8x286xf32>, vector<8x286xf32>, vector<8x286xf32>, vector<8x286xf32>, vector<8x286xf32>, vector<8x286xf32>, vector<8x286xf32> -> vector<72x286xf32>
    %16 = arith.truncf %15 : vector<72x286xf32> to vector<72x286xbf16>
    %cst_8 = arith.constant dense<0.000000e+00> : vector<32x286xf32>
    %17 = tpu.matmul %5, %16, %cst_8 {dimension_numbers = #tpu.dot_dimension_numbers<[1], [0], [0], [1], [0, 0, 1, 1], [], []>} : vector<32x72xbf16>, vector<72x286xbf16>, vector<32x286xf32> -> vector<32x286xf32>
    %c0_9 = arith.constant 0 : index
    %18 = memref.load %arg1[%c0_9] : memref<8xf32, #tpu.memory_space<smem>>
    %cst_10 = arith.constant 0.000000e+00 : f32
    %19 = vector.broadcast %cst_10 : f32 to vector<32x286xf32>
    %20 = arith.cmpf oge, %17, %19 : vector<32x286xf32>
    %21 = vector.broadcast %18 : f32 to vector<32x286xf32>
    %22 = arith.mulf %21, %17 : vector<32x286xf32>
    %23 = arith.select %20, %17, %22 : vector<32x286xi1>, vector<32x286xf32>
    %24 = vector.broadcast %0 : vector<1x286xf32> to vector<32x286xf32>
    %25 = arith.mulf %23, %24 : vector<32x286xf32>
    %c0_11 = arith.constant 0 : index
    %c19 = arith.constant 19 : index
    %26 = vector.load %arg11[%c0_11, %c19] : memref<32x324xf32, #tpu.memory_space<vmem>>, vector<32x286xf32>
    tpu.vector_store %arg11[%c0_11, %c19], %25 {strides = array<i32>} : memref<32x324xf32, #tpu.memory_space<vmem>>, vector<32x286xf32>,
    %c0_12 = arith.constant 0 : index
    %c0_13 = arith.constant 0 : index
    %27 = vector.load %arg11[%c0_12, %c0_13] : memref<32x324xf32, #tpu.memory_space<vmem>>, vector<32x324xf32>
    %c0_14 = arith.constant 0 : index
    %c0_15 = arith.constant 0 : index
    %c0_16 = arith.constant 0 : index
    %28 = vector.load %arg6[%c0_14, %c0_15, %c0_16] : memref<6x32x288xbf16, #tpu.memory_space<vmem>>, vector<1x32x288xbf16>
    %29 = vector.shape_cast %28 : vector<1x32x288xbf16> to vector<32x288xbf16>
    %30 = vector.extract_strided_slice %27 {offsets = [0, 0], sizes = [32, 286], strides = [1, 1]} : vector<32x324xf32> to vector<32x286xf32>
    %31 = vector.extract_strided_slice %27 {offsets = [0, 1], sizes = [32, 286], strides = [1, 1]} : vector<32x324xf32> to vector<32x286xf32>
    %32 = vector.extract_strided_slice %27 {offsets = [0, 2], sizes = [32, 286], strides = [1, 1]} : vector<32x324xf32> to vector<32x286xf32>
    %33 = vector.extract_strided_slice %27 {offsets = [0, 18], sizes = [32, 286], strides = [1, 1]} : vector<32x324xf32> to vector<32x286xf32>
    %34 = vector.extract_strided_slice %27 {offsets = [0, 19], sizes = [32, 286], strides = [1, 1]} : vector<32x324xf32> to vector<32x286xf32>
    %35 = vector.extract_strided_slice %27 {offsets = [0, 20], sizes = [32, 286], strides = [1, 1]} : vector<32x324xf32> to vector<32x286xf32>
    %36 = vector.extract_strided_slice %27 {offsets = [0, 36], sizes = [32, 286], strides = [1, 1]} : vector<32x324xf32> to vector<32x286xf32>
    %37 = vector.extract_strided_slice %27 {offsets = [0, 37], sizes = [32, 286], strides = [1, 1]} : vector<32x324xf32> to vector<32x286xf32>
    %38 = vector.extract_strided_slice %27 {offsets = [0, 38], sizes = [32, 286], strides = [1, 1]} : vector<32x324xf32> to vector<32x286xf32>
    %39 = tpu.concatenate %30, %31, %32, %33, %34, %35, %36, %37, %38 in 0 : vector<32x286xf32>, vector<32x286xf32>, vector<32x286xf32>, vector<32x286xf32>, vector<32x286xf32>, vector<32x286xf32>, vector<32x286xf32>, vector<32x286xf32>, vector<32x286xf32> -> vector<288x286xf32>
    %40 = arith.truncf %39 : vector<288x286xf32> to vector<288x286xbf16>
    %cst_17 = arith.constant dense<0.000000e+00> : vector<32x286xf32>
    %41 = tpu.matmul %29, %40, %cst_17 {dimension_numbers = #tpu.dot_dimension_numbers<[1], [0], [0], [1], [0, 0, 1, 1], [], []>} : vector<32x288xbf16>, vector<288x286xbf16>, vector<32x286xf32> -> vector<32x286xf32>
    %c0_18 = arith.constant 0 : index
    %c0_19 = arith.constant 0 : index
    %c0_20 = arith.constant 0 : index
    %42 = vector.load %arg7[%c0_18, %c0_19, %c0_20] : memref<6x32x1xf32, #tpu.memory_space<vmem>>, vector<1x32x1xf32>
    %43 = vector.shape_cast %42 : vector<1x32x1xf32> to vector<32x1xf32>
    %44 = vector.broadcast %43 : vector<32x1xf32> to vector<32x286xf32>
    %45 = arith.addf %41, %44 : vector<32x286xf32>
    %c1 = arith.constant 1 : index
    %46 = memref.load %arg1[%c1] : memref<8xf32, #tpu.memory_space<smem>>
    %cst_21 = arith.constant 0.000000e+00 : f32
    %47 = vector.broadcast %cst_21 : f32 to vector<32x286xf32>
    %48 = arith.cmpf oge, %45, %47 : vector<32x286xf32>
    %49 = vector.broadcast %46 : f32 to vector<32x286xf32>
    %50 = arith.mulf %49, %45 : vector<32x286xf32>
    %51 = arith.select %48, %45, %50 : vector<32x286xi1>, vector<32x286xf32>
    %52 = vector.broadcast %0 : vector<1x286xf32> to vector<32x286xf32>
    %53 = arith.mulf %51, %52 : vector<32x286xf32>
    %c0_22 = arith.constant 0 : index
    %c19_23 = arith.constant 19 : index
    %54 = vector.load %arg11[%c0_22, %c19_23] : memref<32x324xf32, #tpu.memory_space<vmem>>, vector<32x286xf32>
    tpu.vector_store %arg11[%c0_22, %c19_23], %53 {strides = array<i32>} : memref<32x324xf32, #tpu.memory_space<vmem>>, vector<32x286xf32>,
    %c0_24 = arith.constant 0 : index
    %c0_25 = arith.constant 0 : index
    %55 = vector.load %arg11[%c0_24, %c0_25] : memref<32x324xf32, #tpu.memory_space<vmem>>, vector<32x324xf32>
    %c0_26 = arith.constant 0 : index
    %c0_27 = arith.constant 0 : index
    %c0_28 = arith.constant 0 : index
    %56 = vector.load %arg8[%c0_26, %c0_27, %c0_28] : memref<6x32x288xbf16, #tpu.memory_space<vmem>>, vector<1x32x288xbf16>
    %57 = vector.shape_cast %56 : vector<1x32x288xbf16> to vector<32x288xbf16>
    %58 = vector.extract_strided_slice %55 {offsets = [0, 0], sizes = [32, 286], strides = [1, 1]} : vector<32x324xf32> to vector<32x286xf32>
    %59 = vector.extract_strided_slice %55 {offsets = [0, 1], sizes = [32, 286], strides = [1, 1]} : vector<32x324xf32> to vector<32x286xf32>
    %60 = vector.extract_strided_slice %55 {offsets = [0, 2], sizes = [32, 286], strides = [1, 1]} : vector<32x324xf32> to vector<32x286xf32>
    %61 = vector.extract_strided_slice %55 {offsets = [0, 18], sizes = [32, 286], strides = [1, 1]} : vector<32x324xf32> to vector<32x286xf32>
    %62 = vector.extract_strided_slice %55 {offsets = [0, 19], sizes = [32, 286], strides = [1, 1]} : vector<32x324xf32> to vector<32x286xf32>
    %63 = vector.extract_strided_slice %55 {offsets = [0, 20], sizes = [32, 286], strides = [1, 1]} : vector<32x324xf32> to vector<32x286xf32>
    %64 = vector.extract_strided_slice %55 {offsets = [0, 36], sizes = [32, 286], strides = [1, 1]} : vector<32x324xf32> to vector<32x286xf32>
    %65 = vector.extract_strided_slice %55 {offsets = [0, 37], sizes = [32, 286], strides = [1, 1]} : vector<32x324xf32> to vector<32x286xf32>
    %66 = vector.extract_strided_slice %55 {offsets = [0, 38], sizes = [32, 286], strides = [1, 1]} : vector<32x324xf32> to vector<32x286xf32>
    %67 = tpu.concatenate %58, %59, %60, %61, %62, %63, %64, %65, %66 in 0 : vector<32x286xf32>, vector<32x286xf32>, vector<32x286xf32>, vector<32x286xf32>, vector<32x286xf32>, vector<32x286xf32>, vector<32x286xf32>, vector<32x286xf32>, vector<32x286xf32> -> vector<288x286xf32>
    %68 = arith.truncf %67 : vector<288x286xf32> to vector<288x286xbf16>
    %cst_29 = arith.constant dense<0.000000e+00> : vector<32x286xf32>
    %69 = tpu.matmul %57, %68, %cst_29 {dimension_numbers = #tpu.dot_dimension_numbers<[1], [0], [0], [1], [0, 0, 1, 1], [], []>} : vector<32x288xbf16>, vector<288x286xbf16>, vector<32x286xf32> -> vector<32x286xf32>
    %c0_30 = arith.constant 0 : index
    %c0_31 = arith.constant 0 : index
    %c0_32 = arith.constant 0 : index
    %70 = vector.load %arg9[%c0_30, %c0_31, %c0_32] : memref<6x32x1xf32, #tpu.memory_space<vmem>>, vector<1x32x1xf32>
    %71 = vector.shape_cast %70 : vector<1x32x1xf32> to vector<32x1xf32>
    %72 = vector.broadcast %71 : vector<32x1xf32> to vector<32x286xf32>
    %73 = arith.addf %69, %72 : vector<32x286xf32>
    %74 = vector.extract_strided_slice %27 {offsets = [0, 19], sizes = [32, 286], strides = [1, 1]} : vector<32x324xf32> to vector<32x286xf32>
    %75 = arith.addf %73, %74 : vector<32x286xf32>
    %76 = vector.broadcast %0 : vector<1x286xf32> to vector<32x286xf32>
    %77 = arith.mulf %75, %76 : vector<32x286xf32>
    %c0_33 = arith.constant 0 : index
    %c19_34 = arith.constant 19 : index
    %78 = vector.load %arg11[%c0_33, %c19_34] : memref<32x324xf32, #tpu.memory_space<vmem>>, vector<32x286xf32>
    tpu.vector_store %arg11[%c0_33, %c19_34], %77 {strides = array<i32>} : memref<32x324xf32, #tpu.memory_space<vmem>>, vector<32x286xf32>,
    %c0_35 = arith.constant 0 : index
    %c0_36 = arith.constant 0 : index
    %79 = vector.load %arg11[%c0_35, %c0_36] : memref<32x324xf32, #tpu.memory_space<vmem>>, vector<32x324xf32>
    %c1_37 = arith.constant 1 : index
    %c0_38 = arith.constant 0 : index
    %c0_39 = arith.constant 0 : index
    %80 = vector.load %arg6[%c1_37, %c0_38, %c0_39] : memref<6x32x288xbf16, #tpu.memory_space<vmem>>, vector<1x32x288xbf16>
    %81 = vector.shape_cast %80 : vector<1x32x288xbf16> to vector<32x288xbf16>
    %82 = vector.extract_strided_slice %79 {offsets = [0, 0], sizes = [32, 286], strides = [1, 1]} : vector<32x324xf32> to vector<32x286xf32>
    %83 = vector.extract_strided_slice %79 {offsets = [0, 1], sizes = [32, 286], strides = [1, 1]} : vector<32x324xf32> to vector<32x286xf32>
    %84 = vector.extract_strided_slice %79 {offsets = [0, 2], sizes = [32, 286], strides = [1, 1]} : vector<32x324xf32> to vector<32x286xf32>
    %85 = vector.extract_strided_slice %79 {offsets = [0, 18], sizes = [32, 286], strides = [1, 1]} : vector<32x324xf32> to vector<32x286xf32>
    %86 = vector.extract_strided_slice %79 {offsets = [0, 19], sizes = [32, 286], strides = [1, 1]} : vector<32x324xf32> to vector<32x286xf32>
    %87 = vector.extract_strided_slice %79 {offsets = [0, 20], sizes = [32, 286], strides = [1, 1]} : vector<32x324xf32> to vector<32x286xf32>
    %88 = vector.extract_strided_slice %79 {offsets = [0, 36], sizes = [32, 286], strides = [1, 1]} : vector<32x324xf32> to vector<32x286xf32>
    %89 = vector.extract_strided_slice %79 {offsets = [0, 37], sizes = [32, 286], strides = [1, 1]} : vector<32x324xf32> to vector<32x286xf32>
    %90 = vector.extract_strided_slice %79 {offsets = [0, 38], sizes = [32, 286], strides = [1, 1]} : vector<32x324xf32> to vector<32x286xf32>
    %91 = tpu.concatenate %82, %83, %84, %85, %86, %87, %88, %89, %90 in 0 : vector<32x286xf32>, vector<32x286xf32>, vector<32x286xf32>, vector<32x286xf32>, vector<32x286xf32>, vector<32x286xf32>, vector<32x286xf32>, vector<32x286xf32>, vector<32x286xf32> -> vector<288x286xf32>
    %92 = arith.truncf %91 : vector<288x286xf32> to vector<288x286xbf16>
    %cst_40 = arith.constant dense<0.000000e+00> : vector<32x286xf32>
    %93 = tpu.matmul %81, %92, %cst_40 {dimension_numbers = #tpu.dot_dimension_numbers<[1], [0], [0], [1], [0, 0, 1, 1], [], []>} : vector<32x288xbf16>, vector<288x286xbf16>, vector<32x286xf32> -> vector<32x286xf32>
    %c1_41 = arith.constant 1 : index
    %c0_42 = arith.constant 0 : index
    %c0_43 = arith.constant 0 : index
    %94 = vector.load %arg7[%c1_41, %c0_42, %c0_43] : memref<6x32x1xf32, #tpu.memory_space<vmem>>, vector<1x32x1xf32>
    %95 = vector.shape_cast %94 : vector<1x32x1xf32> to vector<32x1xf32>
    %96 = vector.broadcast %95 : vector<32x1xf32> to vector<32x286xf32>
    %97 = arith.addf %93, %96 : vector<32x286xf32>
    %c2 = arith.constant 2 : index
    %98 = memref.load %arg1[%c2] : memref<8xf32, #tpu.memory_space<smem>>
    %cst_44 = arith.constant 0.000000e+00 : f32
    %99 = vector.broadcast %cst_44 : f32 to vector<32x286xf32>
    %100 = arith.cmpf oge, %97, %99 : vector<32x286xf32>
    %101 = vector.broadcast %98 : f32 to vector<32x286xf32>
    %102 = arith.mulf %101, %97 : vector<32x286xf32>
    %103 = arith.select %100, %97, %102 : vector<32x286xi1>, vector<32x286xf32>
    %104 = vector.broadcast %0 : vector<1x286xf32> to vector<32x286xf32>
    %105 = arith.mulf %103, %104 : vector<32x286xf32>
    %c0_45 = arith.constant 0 : index
    %c19_46 = arith.constant 19 : index
    %106 = vector.load %arg11[%c0_45, %c19_46] : memref<32x324xf32, #tpu.memory_space<vmem>>, vector<32x286xf32>
    tpu.vector_store %arg11[%c0_45, %c19_46], %105 {strides = array<i32>} : memref<32x324xf32, #tpu.memory_space<vmem>>, vector<32x286xf32>,
    %c0_47 = arith.constant 0 : index
    %c0_48 = arith.constant 0 : index
    %107 = vector.load %arg11[%c0_47, %c0_48] : memref<32x324xf32, #tpu.memory_space<vmem>>, vector<32x324xf32>
    %c1_49 = arith.constant 1 : index
    %c0_50 = arith.constant 0 : index
    %c0_51 = arith.constant 0 : index
    %108 = vector.load %arg8[%c1_49, %c0_50, %c0_51] : memref<6x32x288xbf16, #tpu.memory_space<vmem>>, vector<1x32x288xbf16>
    %109 = vector.shape_cast %108 : vector<1x32x288xbf16> to vector<32x288xbf16>
    %110 = vector.extract_strided_slice %107 {offsets = [0, 0], sizes = [32, 286], strides = [1, 1]} : vector<32x324xf32> to vector<32x286xf32>
    %111 = vector.extract_strided_slice %107 {offsets = [0, 1], sizes = [32, 286], strides = [1, 1]} : vector<32x324xf32> to vector<32x286xf32>
    %112 = vector.extract_strided_slice %107 {offsets = [0, 2], sizes = [32, 286], strides = [1, 1]} : vector<32x324xf32> to vector<32x286xf32>
    %113 = vector.extract_strided_slice %107 {offsets = [0, 18], sizes = [32, 286], strides = [1, 1]} : vector<32x324xf32> to vector<32x286xf32>
    %114 = vector.extract_strided_slice %107 {offsets = [0, 19], sizes = [32, 286], strides = [1, 1]} : vector<32x324xf32> to vector<32x286xf32>
    %115 = vector.extract_strided_slice %107 {offsets = [0, 20], sizes = [32, 286], strides = [1, 1]} : vector<32x324xf32> to vector<32x286xf32>
    %116 = vector.extract_strided_slice %107 {offsets = [0, 36], sizes = [32, 286], strides = [1, 1]} : vector<32x324xf32> to vector<32x286xf32>
    %117 = vector.extract_strided_slice %107 {offsets = [0, 37], sizes = [32, 286], strides = [1, 1]} : vector<32x324xf32> to vector<32x286xf32>
    %118 = vector.extract_strided_slice %107 {offsets = [0, 38], sizes = [32, 286], strides = [1, 1]} : vector<32x324xf32> to vector<32x286xf32>
    %119 = tpu.concatenate %110, %111, %112, %113, %114, %115, %116, %117, %118 in 0 : vector<32x286xf32>, vector<32x286xf32>, vector<32x286xf32>, vector<32x286xf32>, vector<32x286xf32>, vector<32x286xf32>, vector<32x286xf32>, vector<32x286xf32>, vector<32x286xf32> -> vector<288x286xf32>
    %120 = arith.truncf %119 : vector<288x286xf32> to vector<288x286xbf16>
    %cst_52 = arith.constant dense<0.000000e+00> : vector<32x286xf32>
    %121 = tpu.matmul %109, %120, %cst_52 {dimension_numbers = #tpu.dot_dimension_numbers<[1], [0], [0], [1], [0, 0, 1, 1], [], []>} : vector<32x288xbf16>, vector<288x286xbf16>, vector<32x286xf32> -> vector<32x286xf32>
    %c1_53 = arith.constant 1 : index
    %c0_54 = arith.constant 0 : index
    %c0_55 = arith.constant 0 : index
    %122 = vector.load %arg9[%c1_53, %c0_54, %c0_55] : memref<6x32x1xf32, #tpu.memory_space<vmem>>, vector<1x32x1xf32>
    %123 = vector.shape_cast %122 : vector<1x32x1xf32> to vector<32x1xf32>
    %124 = vector.broadcast %123 : vector<32x1xf32> to vector<32x286xf32>
    %125 = arith.addf %121, %124 : vector<32x286xf32>
    %126 = vector.extract_strided_slice %79 {offsets = [0, 19], sizes = [32, 286], strides = [1, 1]} : vector<32x324xf32> to vector<32x286xf32>
    %127 = arith.addf %125, %126 : vector<32x286xf32>
    %128 = vector.broadcast %0 : vector<1x286xf32> to vector<32x286xf32>
    %129 = arith.mulf %127, %128 : vector<32x286xf32>
    %c0_56 = arith.constant 0 : index
    %c19_57 = arith.constant 19 : index
    %130 = vector.load %arg11[%c0_56, %c19_57] : memref<32x324xf32, #tpu.memory_space<vmem>>, vector<32x286xf32>
    tpu.vector_store %arg11[%c0_56, %c19_57], %129 {strides = array<i32>} : memref<32x324xf32, #tpu.memory_space<vmem>>, vector<32x286xf32>,
    %c0_58 = arith.constant 0 : index
    %c0_59 = arith.constant 0 : index
    %131 = vector.load %arg11[%c0_58, %c0_59] : memref<32x324xf32, #tpu.memory_space<vmem>>, vector<32x324xf32>
    %c2_60 = arith.constant 2 : index
    %c0_61 = arith.constant 0 : index
    %c0_62 = arith.constant 0 : index
    %132 = vector.load %arg6[%c2_60, %c0_61, %c0_62] : memref<6x32x288xbf16, #tpu.memory_space<vmem>>, vector<1x32x288xbf16>
    %133 = vector.shape_cast %132 : vector<1x32x288xbf16> to vector<32x288xbf16>
    %134 = vector.extract_strided_slice %131 {offsets = [0, 0], sizes = [32, 286], strides = [1, 1]} : vector<32x324xf32> to vector<32x286xf32>
    %135 = vector.extract_strided_slice %131 {offsets = [0, 1], sizes = [32, 286], strides = [1, 1]} : vector<32x324xf32> to vector<32x286xf32>
    %136 = vector.extract_strided_slice %131 {offsets = [0, 2], sizes = [32, 286], strides = [1, 1]} : vector<32x324xf32> to vector<32x286xf32>
    %137 = vector.extract_strided_slice %131 {offsets = [0, 18], sizes = [32, 286], strides = [1, 1]} : vector<32x324xf32> to vector<32x286xf32>
    %138 = vector.extract_strided_slice %131 {offsets = [0, 19], sizes = [32, 286], strides = [1, 1]} : vector<32x324xf32> to vector<32x286xf32>
    %139 = vector.extract_strided_slice %131 {offsets = [0, 20], sizes = [32, 286], strides = [1, 1]} : vector<32x324xf32> to vector<32x286xf32>
    %140 = vector.extract_strided_slice %131 {offsets = [0, 36], sizes = [32, 286], strides = [1, 1]} : vector<32x324xf32> to vector<32x286xf32>
    %141 = vector.extract_strided_slice %131 {offsets = [0, 37], sizes = [32, 286], strides = [1, 1]} : vector<32x324xf32> to vector<32x286xf32>
    %142 = vector.extract_strided_slice %131 {offsets = [0, 38], sizes = [32, 286], strides = [1, 1]} : vector<32x324xf32> to vector<32x286xf32>
    %143 = tpu.concatenate %134, %135, %136, %137, %138, %139, %140, %141, %142 in 0 : vector<32x286xf32>, vector<32x286xf32>, vector<32x286xf32>, vector<32x286xf32>, vector<32x286xf32>, vector<32x286xf32>, vector<32x286xf32>, vector<32x286xf32>, vector<32x286xf32> -> vector<288x286xf32>
    %144 = arith.truncf %143 : vector<288x286xf32> to vector<288x286xbf16>
    %cst_63 = arith.constant dense<0.000000e+00> : vector<32x286xf32>
    %145 = tpu.matmul %133, %144, %cst_63 {dimension_numbers = #tpu.dot_dimension_numbers<[1], [0], [0], [1], [0, 0, 1, 1], [], []>} : vector<32x288xbf16>, vector<288x286xbf16>, vector<32x286xf32> -> vector<32x286xf32>
    %c2_64 = arith.constant 2 : index
    %c0_65 = arith.constant 0 : index
    %c0_66 = arith.constant 0 : index
    %146 = vector.load %arg7[%c2_64, %c0_65, %c0_66] : memref<6x32x1xf32, #tpu.memory_space<vmem>>, vector<1x32x1xf32>
    %147 = vector.shape_cast %146 : vector<1x32x1xf32> to vector<32x1xf32>
    %148 = vector.broadcast %147 : vector<32x1xf32> to vector<32x286xf32>
    %149 = arith.addf %145, %148 : vector<32x286xf32>
    %c3 = arith.constant 3 : index
    %150 = memref.load %arg1[%c3] : memref<8xf32, #tpu.memory_space<smem>>
    %cst_67 = arith.constant 0.000000e+00 : f32
    %151 = vector.broadcast %cst_67 : f32 to vector<32x286xf32>
    %152 = arith.cmpf oge, %149, %151 : vector<32x286xf32>
    %153 = vector.broadcast %150 : f32 to vector<32x286xf32>
    %154 = arith.mulf %153, %149 : vector<32x286xf32>
    %155 = arith.select %152, %149, %154 : vector<32x286xi1>, vector<32x286xf32>
    %156 = vector.broadcast %0 : vector<1x286xf32> to vector<32x286xf32>
    %157 = arith.mulf %155, %156 : vector<32x286xf32>
    %c0_68 = arith.constant 0 : index
    %c19_69 = arith.constant 19 : index
    %158 = vector.load %arg11[%c0_68, %c19_69] : memref<32x324xf32, #tpu.memory_space<vmem>>, vector<32x286xf32>
    tpu.vector_store %arg11[%c0_68, %c19_69], %157 {strides = array<i32>} : memref<32x324xf32, #tpu.memory_space<vmem>>, vector<32x286xf32>,
    %c0_70 = arith.constant 0 : index
    %c0_71 = arith.constant 0 : index
    %159 = vector.load %arg11[%c0_70, %c0_71] : memref<32x324xf32, #tpu.memory_space<vmem>>, vector<32x324xf32>
    %c2_72 = arith.constant 2 : index
    %c0_73 = arith.constant 0 : index
    %c0_74 = arith.constant 0 : index
    %160 = vector.load %arg8[%c2_72, %c0_73, %c0_74] : memref<6x32x288xbf16, #tpu.memory_space<vmem>>, vector<1x32x288xbf16>
    %161 = vector.shape_cast %160 : vector<1x32x288xbf16> to vector<32x288xbf16>
    %162 = vector.extract_strided_slice %159 {offsets = [0, 0], sizes = [32, 286], strides = [1, 1]} : vector<32x324xf32> to vector<32x286xf32>
    %163 = vector.extract_strided_slice %159 {offsets = [0, 1], sizes = [32, 286], strides = [1, 1]} : vector<32x324xf32> to vector<32x286xf32>
    %164 = vector.extract_strided_slice %159 {offsets = [0, 2], sizes = [32, 286], strides = [1, 1]} : vector<32x324xf32> to vector<32x286xf32>
    %165 = vector.extract_strided_slice %159 {offsets = [0, 18], sizes = [32, 286], strides = [1, 1]} : vector<32x324xf32> to vector<32x286xf32>
    %166 = vector.extract_strided_slice %159 {offsets = [0, 19], sizes = [32, 286], strides = [1, 1]} : vector<32x324xf32> to vector<32x286xf32>
    %167 = vector.extract_strided_slice %159 {offsets = [0, 20], sizes = [32, 286], strides = [1, 1]} : vector<32x324xf32> to vector<32x286xf32>
    %168 = vector.extract_strided_slice %159 {offsets = [0, 36], sizes = [32, 286], strides = [1, 1]} : vector<32x324xf32> to vector<32x286xf32>
    %169 = vector.extract_strided_slice %159 {offsets = [0, 37], sizes = [32, 286], strides = [1, 1]} : vector<32x324xf32> to vector<32x286xf32>
    %170 = vector.extract_strided_slice %159 {offsets = [0, 38], sizes = [32, 286], strides = [1, 1]} : vector<32x324xf32> to vector<32x286xf32>
    %171 = tpu.concatenate %162, %163, %164, %165, %166, %167, %168, %169, %170 in 0 : vector<32x286xf32>, vector<32x286xf32>, vector<32x286xf32>, vector<32x286xf32>, vector<32x286xf32>, vector<32x286xf32>, vector<32x286xf32>, vector<32x286xf32>, vector<32x286xf32> -> vector<288x286xf32>
    %172 = arith.truncf %171 : vector<288x286xf32> to vector<288x286xbf16>
    %cst_75 = arith.constant dense<0.000000e+00> : vector<32x286xf32>
    %173 = tpu.matmul %161, %172, %cst_75 {dimension_numbers = #tpu.dot_dimension_numbers<[1], [0], [0], [1], [0, 0, 1, 1], [], []>} : vector<32x288xbf16>, vector<288x286xbf16>, vector<32x286xf32> -> vector<32x286xf32>
    %c2_76 = arith.constant 2 : index
    %c0_77 = arith.constant 0 : index
    %c0_78 = arith.constant 0 : index
    %174 = vector.load %arg9[%c2_76, %c0_77, %c0_78] : memref<6x32x1xf32, #tpu.memory_space<vmem>>, vector<1x32x1xf32>
    %175 = vector.shape_cast %174 : vector<1x32x1xf32> to vector<32x1xf32>
    %176 = vector.broadcast %175 : vector<32x1xf32> to vector<32x286xf32>
    %177 = arith.addf %173, %176 : vector<32x286xf32>
    %178 = vector.extract_strided_slice %131 {offsets = [0, 19], sizes = [32, 286], strides = [1, 1]} : vector<32x324xf32> to vector<32x286xf32>
    %179 = arith.addf %177, %178 : vector<32x286xf32>
    %180 = vector.broadcast %0 : vector<1x286xf32> to vector<32x286xf32>
    %181 = arith.mulf %179, %180 : vector<32x286xf32>
    %c0_79 = arith.constant 0 : index
    %c19_80 = arith.constant 19 : index
    %182 = vector.load %arg11[%c0_79, %c19_80] : memref<32x324xf32, #tpu.memory_space<vmem>>, vector<32x286xf32>
    tpu.vector_store %arg11[%c0_79, %c19_80], %181 {strides = array<i32>} : memref<32x324xf32, #tpu.memory_space<vmem>>, vector<32x286xf32>,
    %c0_81 = arith.constant 0 : index
    %c0_82 = arith.constant 0 : index
    %183 = vector.load %arg11[%c0_81, %c0_82] : memref<32x324xf32, #tpu.memory_space<vmem>>, vector<32x324xf32>
    %c3_83 = arith.constant 3 : index
    %c0_84 = arith.constant 0 : index
    %c0_85 = arith.constant 0 : index
    %184 = vector.load %arg6[%c3_83, %c0_84, %c0_85] : memref<6x32x288xbf16, #tpu.memory_space<vmem>>, vector<1x32x288xbf16>
    %185 = vector.shape_cast %184 : vector<1x32x288xbf16> to vector<32x288xbf16>
    %186 = vector.extract_strided_slice %183 {offsets = [0, 0], sizes = [32, 286], strides = [1, 1]} : vector<32x324xf32> to vector<32x286xf32>
    %187 = vector.extract_strided_slice %183 {offsets = [0, 1], sizes = [32, 286], strides = [1, 1]} : vector<32x324xf32> to vector<32x286xf32>
    %188 = vector.extract_strided_slice %183 {offsets = [0, 2], sizes = [32, 286], strides = [1, 1]} : vector<32x324xf32> to vector<32x286xf32>
    %189 = vector.extract_strided_slice %183 {offsets = [0, 18], sizes = [32, 286], strides = [1, 1]} : vector<32x324xf32> to vector<32x286xf32>
    %190 = vector.extract_strided_slice %183 {offsets = [0, 19], sizes = [32, 286], strides = [1, 1]} : vector<32x324xf32> to vector<32x286xf32>
    %191 = vector.extract_strided_slice %183 {offsets = [0, 20], sizes = [32, 286], strides = [1, 1]} : vector<32x324xf32> to vector<32x286xf32>
    %192 = vector.extract_strided_slice %183 {offsets = [0, 36], sizes = [32, 286], strides = [1, 1]} : vector<32x324xf32> to vector<32x286xf32>
    %193 = vector.extract_strided_slice %183 {offsets = [0, 37], sizes = [32, 286], strides = [1, 1]} : vector<32x324xf32> to vector<32x286xf32>
    %194 = vector.extract_strided_slice %183 {offsets = [0, 38], sizes = [32, 286], strides = [1, 1]} : vector<32x324xf32> to vector<32x286xf32>
    %195 = tpu.concatenate %186, %187, %188, %189, %190, %191, %192, %193, %194 in 0 : vector<32x286xf32>, vector<32x286xf32>, vector<32x286xf32>, vector<32x286xf32>, vector<32x286xf32>, vector<32x286xf32>, vector<32x286xf32>, vector<32x286xf32>, vector<32x286xf32> -> vector<288x286xf32>
    %196 = arith.truncf %195 : vector<288x286xf32> to vector<288x286xbf16>
    %cst_86 = arith.constant dense<0.000000e+00> : vector<32x286xf32>
    %197 = tpu.matmul %185, %196, %cst_86 {dimension_numbers = #tpu.dot_dimension_numbers<[1], [0], [0], [1], [0, 0, 1, 1], [], []>} : vector<32x288xbf16>, vector<288x286xbf16>, vector<32x286xf32> -> vector<32x286xf32>
    %c3_87 = arith.constant 3 : index
    %c0_88 = arith.constant 0 : index
    %c0_89 = arith.constant 0 : index
    %198 = vector.load %arg7[%c3_87, %c0_88, %c0_89] : memref<6x32x1xf32, #tpu.memory_space<vmem>>, vector<1x32x1xf32>
    %199 = vector.shape_cast %198 : vector<1x32x1xf32> to vector<32x1xf32>
    %200 = vector.broadcast %199 : vector<32x1xf32> to vector<32x286xf32>
    %201 = arith.addf %197, %200 : vector<32x286xf32>
    %c4 = arith.constant 4 : index
    %202 = memref.load %arg1[%c4] : memref<8xf32, #tpu.memory_space<smem>>
    %cst_90 = arith.constant 0.000000e+00 : f32
    %203 = vector.broadcast %cst_90 : f32 to vector<32x286xf32>
    %204 = arith.cmpf oge, %201, %203 : vector<32x286xf32>
    %205 = vector.broadcast %202 : f32 to vector<32x286xf32>
    %206 = arith.mulf %205, %201 : vector<32x286xf32>
    %207 = arith.select %204, %201, %206 : vector<32x286xi1>, vector<32x286xf32>
    %208 = vector.broadcast %0 : vector<1x286xf32> to vector<32x286xf32>
    %209 = arith.mulf %207, %208 : vector<32x286xf32>
    %c0_91 = arith.constant 0 : index
    %c19_92 = arith.constant 19 : index
    %210 = vector.load %arg11[%c0_91, %c19_92] : memref<32x324xf32, #tpu.memory_space<vmem>>, vector<32x286xf32>
    tpu.vector_store %arg11[%c0_91, %c19_92], %209 {strides = array<i32>} : memref<32x324xf32, #tpu.memory_space<vmem>>, vector<32x286xf32>,
    %c0_93 = arith.constant 0 : index
    %c0_94 = arith.constant 0 : index
    %211 = vector.load %arg11[%c0_93, %c0_94] : memref<32x324xf32, #tpu.memory_space<vmem>>, vector<32x324xf32>
    %c3_95 = arith.constant 3 : index
    %c0_96 = arith.constant 0 : index
    %c0_97 = arith.constant 0 : index
    %212 = vector.load %arg8[%c3_95, %c0_96, %c0_97] : memref<6x32x288xbf16, #tpu.memory_space<vmem>>, vector<1x32x288xbf16>
    %213 = vector.shape_cast %212 : vector<1x32x288xbf16> to vector<32x288xbf16>
    %214 = vector.extract_strided_slice %211 {offsets = [0, 0], sizes = [32, 286], strides = [1, 1]} : vector<32x324xf32> to vector<32x286xf32>
    %215 = vector.extract_strided_slice %211 {offsets = [0, 1], sizes = [32, 286], strides = [1, 1]} : vector<32x324xf32> to vector<32x286xf32>
    %216 = vector.extract_strided_slice %211 {offsets = [0, 2], sizes = [32, 286], strides = [1, 1]} : vector<32x324xf32> to vector<32x286xf32>
    %217 = vector.extract_strided_slice %211 {offsets = [0, 18], sizes = [32, 286], strides = [1, 1]} : vector<32x324xf32> to vector<32x286xf32>
    %218 = vector.extract_strided_slice %211 {offsets = [0, 19], sizes = [32, 286], strides = [1, 1]} : vector<32x324xf32> to vector<32x286xf32>
    %219 = vector.extract_strided_slice %211 {offsets = [0, 20], sizes = [32, 286], strides = [1, 1]} : vector<32x324xf32> to vector<32x286xf32>
    %220 = vector.extract_strided_slice %211 {offsets = [0, 36], sizes = [32, 286], strides = [1, 1]} : vector<32x324xf32> to vector<32x286xf32>
    %221 = vector.extract_strided_slice %211 {offsets = [0, 37], sizes = [32, 286], strides = [1, 1]} : vector<32x324xf32> to vector<32x286xf32>
    %222 = vector.extract_strided_slice %211 {offsets = [0, 38], sizes = [32, 286], strides = [1, 1]} : vector<32x324xf32> to vector<32x286xf32>
    %223 = tpu.concatenate %214, %215, %216, %217, %218, %219, %220, %221, %222 in 0 : vector<32x286xf32>, vector<32x286xf32>, vector<32x286xf32>, vector<32x286xf32>, vector<32x286xf32>, vector<32x286xf32>, vector<32x286xf32>, vector<32x286xf32>, vector<32x286xf32> -> vector<288x286xf32>
    %224 = arith.truncf %223 : vector<288x286xf32> to vector<288x286xbf16>
    %cst_98 = arith.constant dense<0.000000e+00> : vector<32x286xf32>
    %225 = tpu.matmul %213, %224, %cst_98 {dimension_numbers = #tpu.dot_dimension_numbers<[1], [0], [0], [1], [0, 0, 1, 1], [], []>} : vector<32x288xbf16>, vector<288x286xbf16>, vector<32x286xf32> -> vector<32x286xf32>
    %c3_99 = arith.constant 3 : index
    %c0_100 = arith.constant 0 : index
    %c0_101 = arith.constant 0 : index
    %226 = vector.load %arg9[%c3_99, %c0_100, %c0_101] : memref<6x32x1xf32, #tpu.memory_space<vmem>>, vector<1x32x1xf32>
    %227 = vector.shape_cast %226 : vector<1x32x1xf32> to vector<32x1xf32>
    %228 = vector.broadcast %227 : vector<32x1xf32> to vector<32x286xf32>
    %229 = arith.addf %225, %228 : vector<32x286xf32>
    %230 = vector.extract_strided_slice %183 {offsets = [0, 19], sizes = [32, 286], strides = [1, 1]} : vector<32x324xf32> to vector<32x286xf32>
    %231 = arith.addf %229, %230 : vector<32x286xf32>
    %232 = vector.broadcast %0 : vector<1x286xf32> to vector<32x286xf32>
    %233 = arith.mulf %231, %232 : vector<32x286xf32>
    %c0_102 = arith.constant 0 : index
    %c19_103 = arith.constant 19 : index
    %234 = vector.load %arg11[%c0_102, %c19_103] : memref<32x324xf32, #tpu.memory_space<vmem>>, vector<32x286xf32>
    tpu.vector_store %arg11[%c0_102, %c19_103], %233 {strides = array<i32>} : memref<32x324xf32, #tpu.memory_space<vmem>>, vector<32x286xf32>,
    %c0_104 = arith.constant 0 : index
    %c0_105 = arith.constant 0 : index
    %235 = vector.load %arg11[%c0_104, %c0_105] : memref<32x324xf32, #tpu.memory_space<vmem>>, vector<32x324xf32>
    %c4_106 = arith.constant 4 : index
    %c0_107 = arith.constant 0 : index
    %c0_108 = arith.constant 0 : index
    %236 = vector.load %arg6[%c4_106, %c0_107, %c0_108] : memref<6x32x288xbf16, #tpu.memory_space<vmem>>, vector<1x32x288xbf16>
    %237 = vector.shape_cast %236 : vector<1x32x288xbf16> to vector<32x288xbf16>
    %238 = vector.extract_strided_slice %235 {offsets = [0, 0], sizes = [32, 286], strides = [1, 1]} : vector<32x324xf32> to vector<32x286xf32>
    %239 = vector.extract_strided_slice %235 {offsets = [0, 1], sizes = [32, 286], strides = [1, 1]} : vector<32x324xf32> to vector<32x286xf32>
    %240 = vector.extract_strided_slice %235 {offsets = [0, 2], sizes = [32, 286], strides = [1, 1]} : vector<32x324xf32> to vector<32x286xf32>
    %241 = vector.extract_strided_slice %235 {offsets = [0, 18], sizes = [32, 286], strides = [1, 1]} : vector<32x324xf32> to vector<32x286xf32>
    %242 = vector.extract_strided_slice %235 {offsets = [0, 19], sizes = [32, 286], strides = [1, 1]} : vector<32x324xf32> to vector<32x286xf32>
    %243 = vector.extract_strided_slice %235 {offsets = [0, 20], sizes = [32, 286], strides = [1, 1]} : vector<32x324xf32> to vector<32x286xf32>
    %244 = vector.extract_strided_slice %235 {offsets = [0, 36], sizes = [32, 286], strides = [1, 1]} : vector<32x324xf32> to vector<32x286xf32>
    %245 = vector.extract_strided_slice %235 {offsets = [0, 37], sizes = [32, 286], strides = [1, 1]} : vector<32x324xf32> to vector<32x286xf32>
    %246 = vector.extract_strided_slice %235 {offsets = [0, 38], sizes = [32, 286], strides = [1, 1]} : vector<32x324xf32> to vector<32x286xf32>
    %247 = tpu.concatenate %238, %239, %240, %241, %242, %243, %244, %245, %246 in 0 : vector<32x286xf32>, vector<32x286xf32>, vector<32x286xf32>, vector<32x286xf32>, vector<32x286xf32>, vector<32x286xf32>, vector<32x286xf32>, vector<32x286xf32>, vector<32x286xf32> -> vector<288x286xf32>
    %248 = arith.truncf %247 : vector<288x286xf32> to vector<288x286xbf16>
    %cst_109 = arith.constant dense<0.000000e+00> : vector<32x286xf32>
    %249 = tpu.matmul %237, %248, %cst_109 {dimension_numbers = #tpu.dot_dimension_numbers<[1], [0], [0], [1], [0, 0, 1, 1], [], []>} : vector<32x288xbf16>, vector<288x286xbf16>, vector<32x286xf32> -> vector<32x286xf32>
    %c4_110 = arith.constant 4 : index
    %c0_111 = arith.constant 0 : index
    %c0_112 = arith.constant 0 : index
    %250 = vector.load %arg7[%c4_110, %c0_111, %c0_112] : memref<6x32x1xf32, #tpu.memory_space<vmem>>, vector<1x32x1xf32>
    %251 = vector.shape_cast %250 : vector<1x32x1xf32> to vector<32x1xf32>
    %252 = vector.broadcast %251 : vector<32x1xf32> to vector<32x286xf32>
    %253 = arith.addf %249, %252 : vector<32x286xf32>
    %c5 = arith.constant 5 : index
    %254 = memref.load %arg1[%c5] : memref<8xf32, #tpu.memory_space<smem>>
    %cst_113 = arith.constant 0.000000e+00 : f32
    %255 = vector.broadcast %cst_113 : f32 to vector<32x286xf32>
    %256 = arith.cmpf oge, %253, %255 : vector<32x286xf32>
    %257 = vector.broadcast %254 : f32 to vector<32x286xf32>
    %258 = arith.mulf %257, %253 : vector<32x286xf32>
    %259 = arith.select %256, %253, %258 : vector<32x286xi1>, vector<32x286xf32>
    %260 = vector.broadcast %0 : vector<1x286xf32> to vector<32x286xf32>
    %261 = arith.mulf %259, %260 : vector<32x286xf32>
    %c0_114 = arith.constant 0 : index
    %c19_115 = arith.constant 19 : index
    %262 = vector.load %arg11[%c0_114, %c19_115] : memref<32x324xf32, #tpu.memory_space<vmem>>, vector<32x286xf32>
    tpu.vector_store %arg11[%c0_114, %c19_115], %261 {strides = array<i32>} : memref<32x324xf32, #tpu.memory_space<vmem>>, vector<32x286xf32>,
    %c0_116 = arith.constant 0 : index
    %c0_117 = arith.constant 0 : index
    %263 = vector.load %arg11[%c0_116, %c0_117] : memref<32x324xf32, #tpu.memory_space<vmem>>, vector<32x324xf32>
    %c4_118 = arith.constant 4 : index
    %c0_119 = arith.constant 0 : index
    %c0_120 = arith.constant 0 : index
    %264 = vector.load %arg8[%c4_118, %c0_119, %c0_120] : memref<6x32x288xbf16, #tpu.memory_space<vmem>>, vector<1x32x288xbf16>
    %265 = vector.shape_cast %264 : vector<1x32x288xbf16> to vector<32x288xbf16>
    %266 = vector.extract_strided_slice %263 {offsets = [0, 0], sizes = [32, 286], strides = [1, 1]} : vector<32x324xf32> to vector<32x286xf32>
    %267 = vector.extract_strided_slice %263 {offsets = [0, 1], sizes = [32, 286], strides = [1, 1]} : vector<32x324xf32> to vector<32x286xf32>
    %268 = vector.extract_strided_slice %263 {offsets = [0, 2], sizes = [32, 286], strides = [1, 1]} : vector<32x324xf32> to vector<32x286xf32>
    %269 = vector.extract_strided_slice %263 {offsets = [0, 18], sizes = [32, 286], strides = [1, 1]} : vector<32x324xf32> to vector<32x286xf32>
    %270 = vector.extract_strided_slice %263 {offsets = [0, 19], sizes = [32, 286], strides = [1, 1]} : vector<32x324xf32> to vector<32x286xf32>
    %271 = vector.extract_strided_slice %263 {offsets = [0, 20], sizes = [32, 286], strides = [1, 1]} : vector<32x324xf32> to vector<32x286xf32>
    %272 = vector.extract_strided_slice %263 {offsets = [0, 36], sizes = [32, 286], strides = [1, 1]} : vector<32x324xf32> to vector<32x286xf32>
    %273 = vector.extract_strided_slice %263 {offsets = [0, 37], sizes = [32, 286], strides = [1, 1]} : vector<32x324xf32> to vector<32x286xf32>
    %274 = vector.extract_strided_slice %263 {offsets = [0, 38], sizes = [32, 286], strides = [1, 1]} : vector<32x324xf32> to vector<32x286xf32>
    %275 = tpu.concatenate %266, %267, %268, %269, %270, %271, %272, %273, %274 in 0 : vector<32x286xf32>, vector<32x286xf32>, vector<32x286xf32>, vector<32x286xf32>, vector<32x286xf32>, vector<32x286xf32>, vector<32x286xf32>, vector<32x286xf32>, vector<32x286xf32> -> vector<288x286xf32>
    %276 = arith.truncf %275 : vector<288x286xf32> to vector<288x286xbf16>
    %cst_121 = arith.constant dense<0.000000e+00> : vector<32x286xf32>
    %277 = tpu.matmul %265, %276, %cst_121 {dimension_numbers = #tpu.dot_dimension_numbers<[1], [0], [0], [1], [0, 0, 1, 1], [], []>} : vector<32x288xbf16>, vector<288x286xbf16>, vector<32x286xf32> -> vector<32x286xf32>
    %c4_122 = arith.constant 4 : index
    %c0_123 = arith.constant 0 : index
    %c0_124 = arith.constant 0 : index
    %278 = vector.load %arg9[%c4_122, %c0_123, %c0_124] : memref<6x32x1xf32, #tpu.memory_space<vmem>>, vector<1x32x1xf32>
    %279 = vector.shape_cast %278 : vector<1x32x1xf32> to vector<32x1xf32>
    %280 = vector.broadcast %279 : vector<32x1xf32> to vector<32x286xf32>
    %281 = arith.addf %277, %280 : vector<32x286xf32>
    %282 = vector.extract_strided_slice %235 {offsets = [0, 19], sizes = [32, 286], strides = [1, 1]} : vector<32x324xf32> to vector<32x286xf32>
    %283 = arith.addf %281, %282 : vector<32x286xf32>
    %284 = vector.broadcast %0 : vector<1x286xf32> to vector<32x286xf32>
    %285 = arith.mulf %283, %284 : vector<32x286xf32>
    %c0_125 = arith.constant 0 : index
    %c19_126 = arith.constant 19 : index
    %286 = vector.load %arg11[%c0_125, %c19_126] : memref<32x324xf32, #tpu.memory_space<vmem>>, vector<32x286xf32>
    tpu.vector_store %arg11[%c0_125, %c19_126], %285 {strides = array<i32>} : memref<32x324xf32, #tpu.memory_space<vmem>>, vector<32x286xf32>,
    %c0_127 = arith.constant 0 : index
    %c0_128 = arith.constant 0 : index
    %287 = vector.load %arg11[%c0_127, %c0_128] : memref<32x324xf32, #tpu.memory_space<vmem>>, vector<32x324xf32>
    %c5_129 = arith.constant 5 : index
    %c0_130 = arith.constant 0 : index
    %c0_131 = arith.constant 0 : index
    %288 = vector.load %arg6[%c5_129, %c0_130, %c0_131] : memref<6x32x288xbf16, #tpu.memory_space<vmem>>, vector<1x32x288xbf16>
    %289 = vector.shape_cast %288 : vector<1x32x288xbf16> to vector<32x288xbf16>
    %290 = vector.extract_strided_slice %287 {offsets = [0, 0], sizes = [32, 286], strides = [1, 1]} : vector<32x324xf32> to vector<32x286xf32>
    %291 = vector.extract_strided_slice %287 {offsets = [0, 1], sizes = [32, 286], strides = [1, 1]} : vector<32x324xf32> to vector<32x286xf32>
    %292 = vector.extract_strided_slice %287 {offsets = [0, 2], sizes = [32, 286], strides = [1, 1]} : vector<32x324xf32> to vector<32x286xf32>
    %293 = vector.extract_strided_slice %287 {offsets = [0, 18], sizes = [32, 286], strides = [1, 1]} : vector<32x324xf32> to vector<32x286xf32>
    %294 = vector.extract_strided_slice %287 {offsets = [0, 19], sizes = [32, 286], strides = [1, 1]} : vector<32x324xf32> to vector<32x286xf32>
    %295 = vector.extract_strided_slice %287 {offsets = [0, 20], sizes = [32, 286], strides = [1, 1]} : vector<32x324xf32> to vector<32x286xf32>
    %296 = vector.extract_strided_slice %287 {offsets = [0, 36], sizes = [32, 286], strides = [1, 1]} : vector<32x324xf32> to vector<32x286xf32>
    %297 = vector.extract_strided_slice %287 {offsets = [0, 37], sizes = [32, 286], strides = [1, 1]} : vector<32x324xf32> to vector<32x286xf32>
    %298 = vector.extract_strided_slice %287 {offsets = [0, 38], sizes = [32, 286], strides = [1, 1]} : vector<32x324xf32> to vector<32x286xf32>
    %299 = tpu.concatenate %290, %291, %292, %293, %294, %295, %296, %297, %298 in 0 : vector<32x286xf32>, vector<32x286xf32>, vector<32x286xf32>, vector<32x286xf32>, vector<32x286xf32>, vector<32x286xf32>, vector<32x286xf32>, vector<32x286xf32>, vector<32x286xf32> -> vector<288x286xf32>
    %300 = arith.truncf %299 : vector<288x286xf32> to vector<288x286xbf16>
    %cst_132 = arith.constant dense<0.000000e+00> : vector<32x286xf32>
    %301 = tpu.matmul %289, %300, %cst_132 {dimension_numbers = #tpu.dot_dimension_numbers<[1], [0], [0], [1], [0, 0, 1, 1], [], []>} : vector<32x288xbf16>, vector<288x286xbf16>, vector<32x286xf32> -> vector<32x286xf32>
    %c5_133 = arith.constant 5 : index
    %c0_134 = arith.constant 0 : index
    %c0_135 = arith.constant 0 : index
    %302 = vector.load %arg7[%c5_133, %c0_134, %c0_135] : memref<6x32x1xf32, #tpu.memory_space<vmem>>, vector<1x32x1xf32>
    %303 = vector.shape_cast %302 : vector<1x32x1xf32> to vector<32x1xf32>
    %304 = vector.broadcast %303 : vector<32x1xf32> to vector<32x286xf32>
    %305 = arith.addf %301, %304 : vector<32x286xf32>
    %c6 = arith.constant 6 : index
    %306 = memref.load %arg1[%c6] : memref<8xf32, #tpu.memory_space<smem>>
    %cst_136 = arith.constant 0.000000e+00 : f32
    %307 = vector.broadcast %cst_136 : f32 to vector<32x286xf32>
    %308 = arith.cmpf oge, %305, %307 : vector<32x286xf32>
    %309 = vector.broadcast %306 : f32 to vector<32x286xf32>
    %310 = arith.mulf %309, %305 : vector<32x286xf32>
    %311 = arith.select %308, %305, %310 : vector<32x286xi1>, vector<32x286xf32>
    %312 = vector.broadcast %0 : vector<1x286xf32> to vector<32x286xf32>
    %313 = arith.mulf %311, %312 : vector<32x286xf32>
    %c0_137 = arith.constant 0 : index
    %c19_138 = arith.constant 19 : index
    %314 = vector.load %arg11[%c0_137, %c19_138] : memref<32x324xf32, #tpu.memory_space<vmem>>, vector<32x286xf32>
    tpu.vector_store %arg11[%c0_137, %c19_138], %313 {strides = array<i32>} : memref<32x324xf32, #tpu.memory_space<vmem>>, vector<32x286xf32>,
    %c0_139 = arith.constant 0 : index
    %c0_140 = arith.constant 0 : index
    %315 = vector.load %arg11[%c0_139, %c0_140] : memref<32x324xf32, #tpu.memory_space<vmem>>, vector<32x324xf32>
    %c5_141 = arith.constant 5 : index
    %c0_142 = arith.constant 0 : index
    %c0_143 = arith.constant 0 : index
    %316 = vector.load %arg8[%c5_141, %c0_142, %c0_143] : memref<6x32x288xbf16, #tpu.memory_space<vmem>>, vector<1x32x288xbf16>
    %317 = vector.shape_cast %316 : vector<1x32x288xbf16> to vector<32x288xbf16>
    %318 = vector.extract_strided_slice %315 {offsets = [0, 0], sizes = [32, 286], strides = [1, 1]} : vector<32x324xf32> to vector<32x286xf32>
    %319 = vector.extract_strided_slice %315 {offsets = [0, 1], sizes = [32, 286], strides = [1, 1]} : vector<32x324xf32> to vector<32x286xf32>
    %320 = vector.extract_strided_slice %315 {offsets = [0, 2], sizes = [32, 286], strides = [1, 1]} : vector<32x324xf32> to vector<32x286xf32>
    %321 = vector.extract_strided_slice %315 {offsets = [0, 18], sizes = [32, 286], strides = [1, 1]} : vector<32x324xf32> to vector<32x286xf32>
    %322 = vector.extract_strided_slice %315 {offsets = [0, 19], sizes = [32, 286], strides = [1, 1]} : vector<32x324xf32> to vector<32x286xf32>
    %323 = vector.extract_strided_slice %315 {offsets = [0, 20], sizes = [32, 286], strides = [1, 1]} : vector<32x324xf32> to vector<32x286xf32>
    %324 = vector.extract_strided_slice %315 {offsets = [0, 36], sizes = [32, 286], strides = [1, 1]} : vector<32x324xf32> to vector<32x286xf32>
    %325 = vector.extract_strided_slice %315 {offsets = [0, 37], sizes = [32, 286], strides = [1, 1]} : vector<32x324xf32> to vector<32x286xf32>
    %326 = vector.extract_strided_slice %315 {offsets = [0, 38], sizes = [32, 286], strides = [1, 1]} : vector<32x324xf32> to vector<32x286xf32>
    %327 = tpu.concatenate %318, %319, %320, %321, %322, %323, %324, %325, %326 in 0 : vector<32x286xf32>, vector<32x286xf32>, vector<32x286xf32>, vector<32x286xf32>, vector<32x286xf32>, vector<32x286xf32>, vector<32x286xf32>, vector<32x286xf32>, vector<32x286xf32> -> vector<288x286xf32>
    %328 = arith.truncf %327 : vector<288x286xf32> to vector<288x286xbf16>
    %cst_144 = arith.constant dense<0.000000e+00> : vector<32x286xf32>
    %329 = tpu.matmul %317, %328, %cst_144 {dimension_numbers = #tpu.dot_dimension_numbers<[1], [0], [0], [1], [0, 0, 1, 1], [], []>} : vector<32x288xbf16>, vector<288x286xbf16>, vector<32x286xf32> -> vector<32x286xf32>
    %c5_145 = arith.constant 5 : index
    %c0_146 = arith.constant 0 : index
    %c0_147 = arith.constant 0 : index
    %330 = vector.load %arg9[%c5_145, %c0_146, %c0_147] : memref<6x32x1xf32, #tpu.memory_space<vmem>>, vector<1x32x1xf32>
    %331 = vector.shape_cast %330 : vector<1x32x1xf32> to vector<32x1xf32>
    %332 = vector.broadcast %331 : vector<32x1xf32> to vector<32x286xf32>
    %333 = arith.addf %329, %332 : vector<32x286xf32>
    %334 = vector.extract_strided_slice %287 {offsets = [0, 19], sizes = [32, 286], strides = [1, 1]} : vector<32x324xf32> to vector<32x286xf32>
    %335 = arith.addf %333, %334 : vector<32x286xf32>
    %336 = vector.broadcast %0 : vector<1x286xf32> to vector<32x286xf32>
    %337 = arith.mulf %335, %336 : vector<32x286xf32>
    %c0_148 = arith.constant 0 : index
    %c19_149 = arith.constant 19 : index
    %338 = vector.load %arg11[%c0_148, %c19_149] : memref<32x324xf32, #tpu.memory_space<vmem>>, vector<32x286xf32>
    tpu.vector_store %arg11[%c0_148, %c19_149], %337 {strides = array<i32>} : memref<32x324xf32, #tpu.memory_space<vmem>>, vector<32x286xf32>,
    %c0_150 = arith.constant 0 : index
    %c0_151 = arith.constant 0 : index
    %339 = vector.load %arg11[%c0_150, %c0_151] : memref<32x324xf32, #tpu.memory_space<vmem>>, vector<32x324xf32>
    %cst_152 = arith.constant dense<0xFF800000> : vector<324xf32>
    %340 = vector.multi_reduction <maximumf>, %339, %cst_152 [0] : vector<32x324xf32> to vector<324xf32>
    %341 = vector.shape_cast %340 : vector<324xf32> to vector<1x324xf32>
    %cst_153 = arith.constant dense<0.000000e+00> : vector<324xf32>
    %342 = vector.multi_reduction <add>, %339, %cst_153 [0] : vector<32x324xf32> to vector<324xf32>
    %343 = vector.shape_cast %342 : vector<324xf32> to vector<1x324xf32>
    %cst_154 = arith.constant 3.200000e+01 : f32
    %344 = vector.broadcast %cst_154 : f32 to vector<1x324xf32>
    %345 = arith.divf %343, %344 : vector<1x324xf32>
    %cst_155 = arith.constant 0.000000e+00 : f32
    %346 = vector.broadcast %cst_155 : f32 to vector<1x286xf32>
    %c0_156 = arith.constant 0 : index
    %c0_157 = arith.constant 0 : index
    %347 = memref.load %arg2[%c0_156, %c0_157] : memref<9x2xf32, #tpu.memory_space<smem>>
    %348 = vector.extract_strided_slice %341 {offsets = [0, 0], sizes = [1, 286], strides = [1, 1]} : vector<1x324xf32> to vector<1x286xf32>
    %349 = vector.broadcast %347 : f32 to vector<1x286xf32>
    %350 = arith.mulf %349, %348 : vector<1x286xf32>
    %351 = arith.addf %346, %350 : vector<1x286xf32>
    %c0_158 = arith.constant 0 : index
    %c1_159 = arith.constant 1 : index
    %352 = memref.load %arg2[%c0_158, %c1_159] : memref<9x2xf32, #tpu.memory_space<smem>>
    %353 = vector.extract_strided_slice %345 {offsets = [0, 0], sizes = [1, 286], strides = [1, 1]} : vector<1x324xf32> to vector<1x286xf32>
    %354 = vector.broadcast %352 : f32 to vector<1x286xf32>
    %355 = arith.mulf %354, %353 : vector<1x286xf32>
    %356 = arith.addf %351, %355 : vector<1x286xf32>
    %c1_160 = arith.constant 1 : index
    %c0_161 = arith.constant 0 : index
    %357 = memref.load %arg2[%c1_160, %c0_161] : memref<9x2xf32, #tpu.memory_space<smem>>
    %358 = vector.extract_strided_slice %341 {offsets = [0, 1], sizes = [1, 286], strides = [1, 1]} : vector<1x324xf32> to vector<1x286xf32>
    %359 = vector.broadcast %357 : f32 to vector<1x286xf32>
    %360 = arith.mulf %359, %358 : vector<1x286xf32>
    %361 = arith.addf %356, %360 : vector<1x286xf32>
    %c1_162 = arith.constant 1 : index
    %c1_163 = arith.constant 1 : index
    %362 = memref.load %arg2[%c1_162, %c1_163] : memref<9x2xf32, #tpu.memory_space<smem>>
    %363 = vector.extract_strided_slice %345 {offsets = [0, 1], sizes = [1, 286], strides = [1, 1]} : vector<1x324xf32> to vector<1x286xf32>
    %364 = vector.broadcast %362 : f32 to vector<1x286xf32>
    %365 = arith.mulf %364, %363 : vector<1x286xf32>
    %366 = arith.addf %361, %365 : vector<1x286xf32>
    %c2_164 = arith.constant 2 : index
    %c0_165 = arith.constant 0 : index
    %367 = memref.load %arg2[%c2_164, %c0_165] : memref<9x2xf32, #tpu.memory_space<smem>>
    %368 = vector.extract_strided_slice %341 {offsets = [0, 2], sizes = [1, 286], strides = [1, 1]} : vector<1x324xf32> to vector<1x286xf32>
    %369 = vector.broadcast %367 : f32 to vector<1x286xf32>
    %370 = arith.mulf %369, %368 : vector<1x286xf32>
    %371 = arith.addf %366, %370 : vector<1x286xf32>
    %c2_166 = arith.constant 2 : index
    %c1_167 = arith.constant 1 : index
    %372 = memref.load %arg2[%c2_166, %c1_167] : memref<9x2xf32, #tpu.memory_space<smem>>
    %373 = vector.extract_strided_slice %345 {offsets = [0, 2], sizes = [1, 286], strides = [1, 1]} : vector<1x324xf32> to vector<1x286xf32>
    %374 = vector.broadcast %372 : f32 to vector<1x286xf32>
    %375 = arith.mulf %374, %373 : vector<1x286xf32>
    %376 = arith.addf %371, %375 : vector<1x286xf32>
    %c3_168 = arith.constant 3 : index
    %c0_169 = arith.constant 0 : index
    %377 = memref.load %arg2[%c3_168, %c0_169] : memref<9x2xf32, #tpu.memory_space<smem>>
    %378 = vector.extract_strided_slice %341 {offsets = [0, 18], sizes = [1, 286], strides = [1, 1]} : vector<1x324xf32> to vector<1x286xf32>
    %379 = vector.broadcast %377 : f32 to vector<1x286xf32>
    %380 = arith.mulf %379, %378 : vector<1x286xf32>
    %381 = arith.addf %376, %380 : vector<1x286xf32>
    %c3_170 = arith.constant 3 : index
    %c1_171 = arith.constant 1 : index
    %382 = memref.load %arg2[%c3_170, %c1_171] : memref<9x2xf32, #tpu.memory_space<smem>>
    %383 = vector.extract_strided_slice %345 {offsets = [0, 18], sizes = [1, 286], strides = [1, 1]} : vector<1x324xf32> to vector<1x286xf32>
    %384 = vector.broadcast %382 : f32 to vector<1x286xf32>
    %385 = arith.mulf %384, %383 : vector<1x286xf32>
    %386 = arith.addf %381, %385 : vector<1x286xf32>
    %c4_172 = arith.constant 4 : index
    %c0_173 = arith.constant 0 : index
    %387 = memref.load %arg2[%c4_172, %c0_173] : memref<9x2xf32, #tpu.memory_space<smem>>
    %388 = vector.extract_strided_slice %341 {offsets = [0, 19], sizes = [1, 286], strides = [1, 1]} : vector<1x324xf32> to vector<1x286xf32>
    %389 = vector.broadcast %387 : f32 to vector<1x286xf32>
    %390 = arith.mulf %389, %388 : vector<1x286xf32>
    %391 = arith.addf %386, %390 : vector<1x286xf32>
    %c4_174 = arith.constant 4 : index
    %c1_175 = arith.constant 1 : index
    %392 = memref.load %arg2[%c4_174, %c1_175] : memref<9x2xf32, #tpu.memory_space<smem>>
    %393 = vector.extract_strided_slice %345 {offsets = [0, 19], sizes = [1, 286], strides = [1, 1]} : vector<1x324xf32> to vector<1x286xf32>
    %394 = vector.broadcast %392 : f32 to vector<1x286xf32>
    %395 = arith.mulf %394, %393 : vector<1x286xf32>
    %396 = arith.addf %391, %395 : vector<1x286xf32>
    %c5_176 = arith.constant 5 : index
    %c0_177 = arith.constant 0 : index
    %397 = memref.load %arg2[%c5_176, %c0_177] : memref<9x2xf32, #tpu.memory_space<smem>>
    %398 = vector.extract_strided_slice %341 {offsets = [0, 20], sizes = [1, 286], strides = [1, 1]} : vector<1x324xf32> to vector<1x286xf32>
    %399 = vector.broadcast %397 : f32 to vector<1x286xf32>
    %400 = arith.mulf %399, %398 : vector<1x286xf32>
    %401 = arith.addf %396, %400 : vector<1x286xf32>
    %c5_178 = arith.constant 5 : index
    %c1_179 = arith.constant 1 : index
    %402 = memref.load %arg2[%c5_178, %c1_179] : memref<9x2xf32, #tpu.memory_space<smem>>
    %403 = vector.extract_strided_slice %345 {offsets = [0, 20], sizes = [1, 286], strides = [1, 1]} : vector<1x324xf32> to vector<1x286xf32>
    %404 = vector.broadcast %402 : f32 to vector<1x286xf32>
    %405 = arith.mulf %404, %403 : vector<1x286xf32>
    %406 = arith.addf %401, %405 : vector<1x286xf32>
    %c6_180 = arith.constant 6 : index
    %c0_181 = arith.constant 0 : index
    %407 = memref.load %arg2[%c6_180, %c0_181] : memref<9x2xf32, #tpu.memory_space<smem>>
    %408 = vector.extract_strided_slice %341 {offsets = [0, 36], sizes = [1, 286], strides = [1, 1]} : vector<1x324xf32> to vector<1x286xf32>
    %409 = vector.broadcast %407 : f32 to vector<1x286xf32>
    %410 = arith.mulf %409, %408 : vector<1x286xf32>
    %411 = arith.addf %406, %410 : vector<1x286xf32>
    %c6_182 = arith.constant 6 : index
    %c1_183 = arith.constant 1 : index
    %412 = memref.load %arg2[%c6_182, %c1_183] : memref<9x2xf32, #tpu.memory_space<smem>>
    %413 = vector.extract_strided_slice %345 {offsets = [0, 36], sizes = [1, 286], strides = [1, 1]} : vector<1x324xf32> to vector<1x286xf32>
    %414 = vector.broadcast %412 : f32 to vector<1x286xf32>
    %415 = arith.mulf %414, %413 : vector<1x286xf32>
    %416 = arith.addf %411, %415 : vector<1x286xf32>
    %c7 = arith.constant 7 : index
    %c0_184 = arith.constant 0 : index
    %417 = memref.load %arg2[%c7, %c0_184] : memref<9x2xf32, #tpu.memory_space<smem>>
    %418 = vector.extract_strided_slice %341 {offsets = [0, 37], sizes = [1, 286], strides = [1, 1]} : vector<1x324xf32> to vector<1x286xf32>
    %419 = vector.broadcast %417 : f32 to vector<1x286xf32>
    %420 = arith.mulf %419, %418 : vector<1x286xf32>
    %421 = arith.addf %416, %420 : vector<1x286xf32>
    %c7_185 = arith.constant 7 : index
    %c1_186 = arith.constant 1 : index
    %422 = memref.load %arg2[%c7_185, %c1_186] : memref<9x2xf32, #tpu.memory_space<smem>>
    %423 = vector.extract_strided_slice %345 {offsets = [0, 37], sizes = [1, 286], strides = [1, 1]} : vector<1x324xf32> to vector<1x286xf32>
    %424 = vector.broadcast %422 : f32 to vector<1x286xf32>
    %425 = arith.mulf %424, %423 : vector<1x286xf32>
    %426 = arith.addf %421, %425 : vector<1x286xf32>
    %c8 = arith.constant 8 : index
    %c0_187 = arith.constant 0 : index
    %427 = memref.load %arg2[%c8, %c0_187] : memref<9x2xf32, #tpu.memory_space<smem>>
    %428 = vector.extract_strided_slice %341 {offsets = [0, 38], sizes = [1, 286], strides = [1, 1]} : vector<1x324xf32> to vector<1x286xf32>
    %429 = vector.broadcast %427 : f32 to vector<1x286xf32>
    %430 = arith.mulf %429, %428 : vector<1x286xf32>
    %431 = arith.addf %426, %430 : vector<1x286xf32>
    %c8_188 = arith.constant 8 : index
    %c1_189 = arith.constant 1 : index
    %432 = memref.load %arg2[%c8_188, %c1_189] : memref<9x2xf32, #tpu.memory_space<smem>>
    %433 = vector.extract_strided_slice %345 {offsets = [0, 38], sizes = [1, 286], strides = [1, 1]} : vector<1x324xf32> to vector<1x286xf32>
    %434 = vector.broadcast %432 : f32 to vector<1x286xf32>
    %435 = arith.mulf %434, %433 : vector<1x286xf32>
    %436 = arith.addf %431, %435 : vector<1x286xf32>
    %c7_190 = arith.constant 7 : index
    %437 = memref.load %arg1[%c7_190] : memref<8xf32, #tpu.memory_space<smem>>
    %cst_191 = arith.constant 0.000000e+00 : f32
    %438 = vector.broadcast %cst_191 : f32 to vector<1x286xf32>
    %439 = arith.cmpf oge, %436, %438 : vector<1x286xf32>
    %440 = vector.broadcast %437 : f32 to vector<1x286xf32>
    %441 = arith.mulf %440, %436 : vector<1x286xf32>
    %442 = arith.select %439, %436, %441 : vector<1x286xi1>, vector<1x286xf32>
    %443 = arith.negf %442 : vector<1x286xf32>
    %444 = math.exp %443 : vector<1x286xf32>
    %cst_192 = arith.constant 1.000000e+00 : f32
    %445 = vector.broadcast %cst_192 : f32 to vector<1x286xf32>
    %446 = arith.addf %445, %444 : vector<1x286xf32>
    %447 = arith.divf %445, %446 : vector<1x286xf32>
    %c0_193 = arith.constant 0 : index
    %c0_194 = arith.constant 0 : index
    %c0_195 = arith.constant 0 : index
    %448 = vector.load %arg10[%c0_193, %c0_194, %c0_195] : memref<1x1x286xf32, #tpu.memory_space<vmem>>, vector<1x1x286xf32>
    %449 = vector.shape_cast %448 : vector<1x1x286xf32> to vector<1x286xf32>
    %450 = vector.shape_cast %447 : vector<1x286xf32> to vector<1x1x286xf32>
    tpu.vector_store %arg10[%c0_193, %c0_194, %c0_195], %450 {strides = array<i32>} : memref<1x1x286xf32, #tpu.memory_space<vmem>>, vector<1x1x286xf32>,
    return
  }
  func.func @transform_0(%arg0: i32) -> i32 {
    %c0_i32 = arith.constant 0 : i32
    %c0_i32_0 = arith.constant 0 : i32
    return %c0_i32 : i32
  }
  func.func @transform_1(%arg0: i32) -> (i32, i32) {
    %c0_i32 = arith.constant 0 : i32
    %c0_i32_0 = arith.constant 0 : i32
    %c0_i32_1 = arith.constant 0 : i32
    return %c0_i32, %c0_i32_0 : i32, i32
  }
  func.func @transform_2(%arg0: i32) -> (i32, i32, i32) {
    %c0_i32 = arith.constant 0 : i32
    %c0_i32_0 = arith.constant 0 : i32
    %c0_i32_1 = arith.constant 0 : i32
    return %arg0, %c0_i32, %c0_i32_0 : i32, i32, i32
  }
  func.func @transform_3(%arg0: i32) -> (i32, i32) {
    %c0_i32 = arith.constant 0 : i32
    %c0_i32_0 = arith.constant 0 : i32
    %c0_i32_1 = arith.constant 0 : i32
    return %c0_i32, %c0_i32_0 : i32, i32
  }
  func.func @transform_4(%arg0: i32) -> (i32, i32) {
    %c0_i32 = arith.constant 0 : i32
    %c0_i32_0 = arith.constant 0 : i32
    %c0_i32_1 = arith.constant 0 : i32
    return %c0_i32, %c0_i32_0 : i32, i32
  }
  func.func @transform_5(%arg0: i32) -> (i32, i32, i32) {
    %c0_i32 = arith.constant 0 : i32
    %c0_i32_0 = arith.constant 0 : i32
    %c0_i32_1 = arith.constant 0 : i32
    %c0_i32_2 = arith.constant 0 : i32
    return %c0_i32, %c0_i32_0, %c0_i32_1 : i32, i32, i32
  }
  func.func @transform_6(%arg0: i32) -> (i32, i32, i32) {
    %c0_i32 = arith.constant 0 : i32
    %c0_i32_0 = arith.constant 0 : i32
    %c0_i32_1 = arith.constant 0 : i32
    %c0_i32_2 = arith.constant 0 : i32
    return %c0_i32, %c0_i32_0, %c0_i32_1 : i32, i32, i32
  }
  func.func @transform_7(%arg0: i32) -> (i32, i32, i32) {
    %c0_i32 = arith.constant 0 : i32
    %c0_i32_0 = arith.constant 0 : i32
    %c0_i32_1 = arith.constant 0 : i32
    %c0_i32_2 = arith.constant 0 : i32
    return %c0_i32, %c0_i32_0, %c0_i32_1 : i32, i32, i32
  }
  func.func @transform_8(%arg0: i32) -> (i32, i32, i32) {
    %c0_i32 = arith.constant 0 : i32
    %c0_i32_0 = arith.constant 0 : i32
    %c0_i32_1 = arith.constant 0 : i32
    %c0_i32_2 = arith.constant 0 : i32
    return %c0_i32, %c0_i32_0, %c0_i32_1 : i32, i32, i32
  }
  func.func @transform_9(%arg0: i32) -> (i32, i32, i32) {
    %c0_i32 = arith.constant 0 : i32
    %c0_i32_0 = arith.constant 0 : i32
    %c0_i32_1 = arith.constant 0 : i32
    return %arg0, %c0_i32, %c0_i32_0 : i32, i32, i32
  }
}

</mosaic_0001>

<llo_original>
// kernel: att_spatial_forward.1
$region0: #{att_spatial_forward.1}
  #allocation0 [shape = 'u32[]', space=smem, size = 0x4, offset = 0x4, fixed_abs, tag = 'smem constant byte address 0x4 - core index']
  #allocation1 [shape = 'u32[144,128]{1,0:T(1,128)}', space=vmem, size = 0x12000, scoped, tag = 'internal scratch']
  #allocation2 [shape = 'f32[32,324]{1,0:T(8,128)}', space=vmem, size = 0xc000, scoped, tag = 'scratch operand']
  %s0 = inlined_call_operand.vmem [shape: f32[8], index: 0, kind: input, shape index: {}]
  %s1 = inlined_call_operand.vmem [shape: f32[9,2], index: 1, kind: input, shape index: {}]
  %s2 = inlined_call_operand.vmem [shape: f32[2,8,324], index: 2, kind: input, shape index: {}]
  %s3 = inlined_call_operand.vmem [shape: f32[1,286], index: 3, kind: input, shape index: {}]
  %s4 = inlined_call_operand.vmem [shape: bf16[32,72], index: 4, kind: input, shape index: {}]
  %s5 = inlined_call_operand.vmem [shape: bf16[6,32,288], index: 5, kind: input, shape index: {}]
  %s6 = inlined_call_operand.vmem [shape: f32[6,32,1], index: 6, kind: input, shape index: {}]
  %s7 = inlined_call_operand.vmem [shape: bf16[6,32,288], index: 7, kind: input, shape index: {}]
  %s8 = inlined_call_operand.vmem [shape: f32[6,32,1], index: 8, kind: input, shape index: {}]
  %s9 = inlined_call_operand.vmem [shape: f32[2,1,286], index: 9, kind: output, shape index: {}]
  %s10 = sld [smem:[#allocation0]]
  $region77: #{att_spatial_forward.1} parent=0
    _
  %s12 = ssub.s32 1, %s10
  %s13 = scalar_select 0, %s12, %s10
  $region1: #{att_spatial_forward.1} parent=0
    #allocation3 [shape = 'u8[512]{0}', space=smem, size = 0x200, scoped, tag = 'input window, operand 0, single buffered']
    #allocation4 [shape = 's32[2]{0}', space=sflag, size = 0x8, scoped, tag = 'scoped memory for att_spatial_forward.1']
    #allocation5 [shape = 'u8[8192]{0}', space=smem, size = 0x2000, scoped, tag = 'input window, operand 1, single buffered']
    #allocation6 [shape = 's32[1]{0}', space=sflag, size = 0x4, scoped, tag = 'scoped memory for att_spatial_forward.1']
    %14 = vsyncpa [#allocation4], 0
    %15 = vsyncpa [#allocation6], 0
    loop: start=0, step=1, limit=4
    $region2: #{att_spatial_forward.1} parent=1 // loop_pre_header
      _
    $region3: #{att_spatial_forward.1} parent=1 // loop_header
      %s17 = sphi 0, %s21
      %p18 = scmp.ge.s32.totalorder %s17, 4
      %s25 = sphi 0, %s25
      %s27 = sphi 0, %s25
      %s28 = sphi 0, %s27
      %s42 = sphi 0, %s28
      %s46 = sphi 0, %s46
      %s48 = sphi 0, %s46
      %s49 = sphi 0, %s48
      %s63 = sphi 0, %s49
      %s69 = sphi 0, %s71
      %s72 = sphi 0, %s69
      %s73 = sphi 0, %s72
      %s89 = sphi 0, %s73
      %s93 = sphi 0, %s93
      %s95 = sphi 0, %s93
      %s96 = sphi 0, %s95
      %s110 = sphi 0, %s96
      %s114 = sphi 0, %s114
      %s116 = sphi 0, %s114
      %s117 = sphi 0, %s116
      %s131 = sphi 0, %s117
      %s135 = sphi 0, %s135
      %s137 = sphi 0, %s135
      %s138 = sphi 0, %s137
      %s152 = sphi 0, %s138
      %s156 = sphi 0, %s156
      %s158 = sphi 0, %s156
      %s159 = sphi 0, %s158
      %s173 = sphi 0, %s159
      %s177 = sphi 0, %s177
      %s179 = sphi 0, %s177
      %s180 = sphi 0, %s179
      %s194 = sphi 0, %s180
      %s198 = sphi 0, %s198
      %s200 = sphi 0, %s198
      %s201 = sphi 0, %s200
      %s215 = sphi 0, %s201
      %s221 = sphi 0, %s223
      %s224 = sphi 0, %s221
      %s225 = sphi 0, %s224
      %s241 = sphi 0, %s225
    $region4: #{att_spatial_forward.1} parent=1 // loop_header_branch
      %20 = sbr.rel (%p18) target = $region8
    $region5: #{att_spatial_forward.1} parent=1 // loop_body
      %s22 = ssub.s32 %s17, 1
      %s23 = ssub.s32 %s17, 2
      %s24 = sadd.s32 %s17, 1
      %s26 = sadd.s32 %s25, 1
      %p29 = scmp.eq.s32.totalorder %s17, 1
      %p30 = scmp.ne.s32.totalorder %s25, %s27
      %p31 = scmp.eq.s32.totalorder %s17, 0
      %p32 = por %p30, %p31
      %p33 = scmp.ne.s32.totalorder %s25, %s27
      %p34 = scmp.eq.s32.totalorder %s22, 1
      %p35 = por %p33, %p34
      %p36 = scmp.ne.s32.totalorder %s27, %s28
      %p37 = scmp.eq.s32.totalorder %s22, 0
      %p38 = por %p36, %p37
      %p39 = scmp.ne.s32.totalorder %s27, %s28
      %p40 = scmp.eq.s32.totalorder %s23, 1
      %p41 = por %p39, %p40
      %p43 = scmp.ne.s32.totalorder %s28, %s42
      %p44 = scmp.eq.s32.totalorder %s23, 0
      %p45 = por %p43, %p44
      %s47 = sadd.s32 %s46, 1
      %p50 = scmp.eq.s32.totalorder %s17, 1
      %p51 = scmp.ne.s32.totalorder %s46, %s48
      %p52 = scmp.eq.s32.totalorder %s17, 0
      %p53 = por %p51, %p52
      %p54 = scmp.ne.s32.totalorder %s46, %s48
      %p55 = scmp.eq.s32.totalorder %s22, 1
      %p56 = por %p54, %p55
      %p57 = scmp.ne.s32.totalorder %s48, %s49
      %p58 = scmp.eq.s32.totalorder %s22, 0
      %p59 = por %p57, %p58
      %p60 = scmp.ne.s32.totalorder %s48, %s49
      %p61 = scmp.eq.s32.totalorder %s23, 1
      %p62 = por %p60, %p61
      %p64 = scmp.ne.s32.totalorder %s49, %s63
      %p65 = scmp.eq.s32.totalorder %s23, 0
      %p66 = por %p64, %p65
      %s67 = ssub.s32 %s17, %s24
      %p68 = scmp.eq.s32.totalorder %s67, 0
      %s70 = sadd.s32 %s69, 1
      %s71 = scalar_select %p68, %s69, %s70
      %p74 = pneg %p68
      %p75 = scmp.eq.s32.totalorder %s17, 1
      %p76 = por %p74, %p75
      %p77 = scmp.ne.s32.totalorder %s69, %s72
      %p78 = scmp.eq.s32.totalorder %s17, 0
      %p79 = por %p77, %p78
      %p80 = scmp.ne.s32.totalorder %s69, %s72
      %p81 = scmp.eq.s32.totalorder %s22, 1
      %p82 = por %p80, %p81
      %p83 = scmp.ne.s32.totalorder %s72, %s73
      %p84 = scmp.eq.s32.totalorder %s22, 0
      %p85 = por %p83, %p84
      %p86 = scmp.ne.s32.totalorder %s72, %s73
      %p87 = scmp.eq.s32.totalorder %s23, 1
      %p88 = por %p86, %p87
      %p90 = scmp.ne.s32.totalorder %s73, %s89
      %p91 = scmp.eq.s32.totalorder %s23, 0
      %p92 = por %p90, %p91
      %s94 = sadd.s32 %s93, 1
      %p97 = scmp.eq.s32.totalorder %s17, 1
      %p98 = scmp.ne.s32.totalorder %s93, %s95
      %p99 = scmp.eq.s32.totalorder %s17, 0
      %p100 = por %p98, %p99
      %p101 = scmp.ne.s32.totalorder %s93, %s95
      %p102 = scmp.eq.s32.totalorder %s22, 1
      %p103 = por %p101, %p102
      %p104 = scmp.ne.s32.totalorder %s95, %s96
      %p105 = scmp.eq.s32.totalorder %s22, 0
      %p106 = por %p104, %p105
      %p107 = scmp.ne.s32.totalorder %s95, %s96
      %p108 = scmp.eq.s32.totalorder %s23, 1
      %p109 = por %p107, %p108
      %p111 = scmp.ne.s32.totalorder %s96, %s110
      %p112 = scmp.eq.s32.totalorder %s23, 0
      %p113 = por %p111, %p112
      %s115 = sadd.s32 %s114, 1
      %p118 = scmp.eq.s32.totalorder %s17, 1
      %p119 = scmp.ne.s32.totalorder %s114, %s116
      %p120 = scmp.eq.s32.totalorder %s17, 0
      %p121 = por %p119, %p120
      %p122 = scmp.ne.s32.totalorder %s114, %s116
      %p123 = scmp.eq.s32.totalorder %s22, 1
      %p124 = por %p122, %p123
      %p125 = scmp.ne.s32.totalorder %s116, %s117
      %p126 = scmp.eq.s32.totalorder %s22, 0
      %p127 = por %p125, %p126
      %p128 = scmp.ne.s32.totalorder %s116, %s117
      %p129 = scmp.eq.s32.totalorder %s23, 1
      %p130 = por %p128, %p129
      %p132 = scmp.ne.s32.totalorder %s117, %s131
      %p133 = scmp.eq.s32.totalorder %s23, 0
      %p134 = por %p132, %p133
      %s136 = sadd.s32 %s135, 1
      %p139 = scmp.eq.s32.totalorder %s17, 1
      %p140 = scmp.ne.s32.totalorder %s135, %s137
      %p141 = scmp.eq.s32.totalorder %s17, 0
      %p142 = por %p140, %p141
      %p143 = scmp.ne.s32.totalorder %s135, %s137
      %p144 = scmp.eq.s32.totalorder %s22, 1
      %p145 = por %p143, %p144
      %p146 = scmp.ne.s32.totalorder %s137, %s138
      %p147 = scmp.eq.s32.totalorder %s22, 0
      %p148 = por %p146, %p147
      %p149 = scmp.ne.s32.totalorder %s137, %s138
      %p150 = scmp.eq.s32.totalorder %s23, 1
      %p151 = por %p149, %p150
      %p153 = scmp.ne.s32.totalorder %s138, %s152
      %p154 = scmp.eq.s32.totalorder %s23, 0
      %p155 = por %p153, %p154
      %s157 = sadd.s32 %s156, 1
      %p160 = scmp.eq.s32.totalorder %s17, 1
      %p161 = scmp.ne.s32.totalorder %s156, %s158
      %p162 = scmp.eq.s32.totalorder %s17, 0
      %p163 = por %p161, %p162
      %p164 = scmp.ne.s32.totalorder %s156, %s158
      %p165 = scmp.eq.s32.totalorder %s22, 1
      %p166 = por %p164, %p165
      %p167 = scmp.ne.s32.totalorder %s158, %s159
      %p168 = scmp.eq.s32.totalorder %s22, 0
      %p169 = por %p167, %p168
      %p170 = scmp.ne.s32.totalorder %s158, %s159
      %p171 = scmp.eq.s32.totalorder %s23, 1
      %p172 = por %p170, %p171
      %p174 = scmp.ne.s32.totalorder %s159, %s173
      %p175 = scmp.eq.s32.totalorder %s23, 0
      %p176 = por %p174, %p175
      %s178 = sadd.s32 %s177, 1
      %p181 = scmp.eq.s32.totalorder %s17, 1
      %p182 = scmp.ne.s32.totalorder %s177, %s179
      %p183 = scmp.eq.s32.totalorder %s17, 0
      %p184 = por %p182, %p183
      %p185 = scmp.ne.s32.totalorder %s177, %s179
      %p186 = scmp.eq.s32.totalorder %s22, 1
      %p187 = por %p185, %p186
      %p188 = scmp.ne.s32.totalorder %s179, %s180
      %p189 = scmp.eq.s32.totalorder %s22, 0
      %p190 = por %p188, %p189
      %p191 = scmp.ne.s32.totalorder %s179, %s180
      %p192 = scmp.eq.s32.totalorder %s23, 1
      %p193 = por %p191, %p192
      %p195 = scmp.ne.s32.totalorder %s180, %s194
      %p196 = scmp.eq.s32.totalorder %s23, 0
      %p197 = por %p195, %p196
      %s199 = sadd.s32 %s198, 1
      %p202 = scmp.eq.s32.totalorder %s17, 1
      %p203 = scmp.ne.s32.totalorder %s198, %s200
      %p204 = scmp.eq.s32.totalorder %s17, 0
      %p205 = por %p203, %p204
      %p206 = scmp.ne.s32.totalorder %s198, %s200
      %p207 = scmp.eq.s32.totalorder %s22, 1
      %p208 = por %p206, %p207
      %p209 = scmp.ne.s32.totalorder %s200, %s201
      %p210 = scmp.eq.s32.totalorder %s22, 0
      %p211 = por %p209, %p210
      %p212 = scmp.ne.s32.totalorder %s200, %s201
      %p213 = scmp.eq.s32.totalorder %s23, 1
      %p214 = por %p212, %p213
      %p216 = scmp.ne.s32.totalorder %s201, %s215
      %p217 = scmp.eq.s32.totalorder %s23, 0
      %p218 = por %p216, %p217
      %s219 = ssub.s32 %s17, %s24
      %p220 = scmp.eq.s32.totalorder %s219, 0
      %s222 = sadd.s32 %s221, 1
      %s223 = scalar_select %p220, %s221, %s222
      %p226 = pneg %p220
      %p227 = scmp.eq.s32.totalorder %s17, 1
      %p228 = por %p226, %p227
      %p229 = scmp.ne.s32.totalorder %s221, %s224
      %p230 = scmp.eq.s32.totalorder %s17, 0
      %p231 = por %p229, %p230
      %p232 = scmp.ne.s32.totalorder %s221, %s224
      %p233 = scmp.eq.s32.totalorder %s22, 1
      %p234 = por %p232, %p233
      %p235 = scmp.ne.s32.totalorder %s224, %s225
      %p236 = scmp.eq.s32.totalorder %s22, 0
      %p237 = por %p235, %p236
      %p238 = scmp.ne.s32.totalorder %s224, %s225
      %p239 = scmp.eq.s32.totalorder %s23, 1
      %p240 = por %p238, %p239
      %p242 = scmp.ne.s32.totalorder %s225, %s241
      %p243 = scmp.eq.s32.totalorder %s23, 0
      %p244 = por %p242, %p243
      %p245 = scmp.le.s32.totalorder 1, %s17
      %p246 = scmp.lt.s32.totalorder %s17, 3
      %p247 = pnand %p245, %p246
      %p248 = pneg %p247
      // Predicated region
      $region9: #{att_spatial_forward.1} parent=5 // pred_check
        _
      $region10: #{att_spatial_forward.1} parent=5 // pred_check_branch
        %250 = sbr.rel (%p247) target = $region12
      $region11: #{att_spatial_forward.1} parent=5 // pred_region
        %s251 = ssub.s32 %s17, 1
        // Predicated region
        $region13: #{att_spatial_forward.1} parent=11 // pred_check
          %p252 = pneg %p38
        $region14: #{att_spatial_forward.1} parent=11 // pred_check_branch
          %254 = sbr.rel (%p252) target = $region16
        $region15: #{att_spatial_forward.1} parent=11 // pred_region
          %s256 = ssub.s32 16, 16
          %257 = vsyncadd [#allocation4], %s256
          %s259 = sshll.u32 %s0, 4
          %s260 = int_to_ptr.vmem [resolvable:$true] %s259
          %262 = dma.vmem_to_smem %s260, 16, [#allocation3], [#allocation4]
        $region16: #{att_spatial_forward.1} parent=11 // pred_fallthru
          _
        // Predicated region
        $region17: #{att_spatial_forward.1} parent=11 // pred_check
          %p263 = pneg %p59
        $region18: #{att_spatial_forward.1} parent=11 // pred_check_branch
          %265 = sbr.rel (%p263) target = $region20
        $region19: #{att_spatial_forward.1} parent=11 // pred_region
          %s267 = ssub.s32 256, 256
          %268 = vsyncadd [#allocation6], %s267
          %s269 = sshll.u32 %s1, 4
          %s270 = int_to_ptr.vmem [resolvable:$true] %s269
          %275 = dma.vmem_to_smem %s270, 256, [#allocation5], [#allocation6], 128, 128, 8
        $region20: #{att_spatial_forward.1} parent=11 // pred_fallthru
          _
        // Predicated region
        $region21: #{att_spatial_forward.1} parent=11 // pred_check
          %p276 = pneg %p106
        $region22: #{att_spatial_forward.1} parent=11 // pred_check_branch
          %278 = sbr.rel (%p276) target = $region24
        $region23: #{att_spatial_forward.1} parent=11 // pred_region
          _
        $region24: #{att_spatial_forward.1} parent=11 // pred_fallthru
          _
        // Predicated region
        $region25: #{att_spatial_forward.1} parent=11 // pred_check
          %p279 = pneg %p127
        $region26: #{att_spatial_forward.1} parent=11 // pred_check_branch
          %281 = sbr.rel (%p279) target = $region28
        $region27: #{att_spatial_forward.1} parent=11 // pred_region
          _
        $region28: #{att_spatial_forward.1} parent=11 // pred_fallthru
          _
        // Predicated region
        $region29: #{att_spatial_forward.1} parent=11 // pred_check
          %p282 = pneg %p148
        $region30: #{att_spatial_forward.1} parent=11 // pred_check_branch
          %284 = sbr.rel (%p282) target = $region32
        $region31: #{att_spatial_forward.1} parent=11 // pred_region
          _
        $region32: #{att_spatial_forward.1} parent=11 // pred_fallthru
          _
        // Predicated region
        $region33: #{att_spatial_forward.1} parent=11 // pred_check
          %p285 = pneg %p169
        $region34: #{att_spatial_forward.1} parent=11 // pred_check_branch
          %287 = sbr.rel (%p285) target = $region36
        $region35: #{att_spatial_forward.1} parent=11 // pred_region
          _
        $region36: #{att_spatial_forward.1} parent=11 // pred_fallthru
          _
        // Predicated region
        $region37: #{att_spatial_forward.1} parent=11 // pred_check
          %p288 = pneg %p190
        $region38: #{att_spatial_forward.1} parent=11 // pred_check_branch
          %290 = sbr.rel (%p288) target = $region40
        $region39: #{att_spatial_forward.1} parent=11 // pred_region
          _
        $region40: #{att_spatial_forward.1} parent=11 // pred_fallthru
          _
        // Predicated region
        $region41: #{att_spatial_forward.1} parent=11 // pred_check
          %p291 = pneg %p211
        $region42: #{att_spatial_forward.1} parent=11 // pred_check_branch
          %293 = sbr.rel (%p291) target = $region44
        $region43: #{att_spatial_forward.1} parent=11 // pred_region
          _
        $region44: #{att_spatial_forward.1} parent=11 // pred_fallthru
          _
      $region12: #{att_spatial_forward.1} parent=5 // pred_fallthru
        _
      %p294 = scmp.lt.s32.totalorder %s17, 2
      // Predicated region
      $region45: #{att_spatial_forward.1} parent=5 // pred_check
        %p295 = pneg %p294
      $region46: #{att_spatial_forward.1} parent=5 // pred_check_branch
        %297 = sbr.rel (%p295) target = $region48
      $region47: #{att_spatial_forward.1} parent=5 // pred_region
        // Predicated region
        $region49: #{att_spatial_forward.1} parent=47 // pred_check
          %p298 = pneg %p79
        $region50: #{att_spatial_forward.1} parent=47 // pred_check_branch
          %300 = sbr.rel (%p298) target = $region52
        $region51: #{att_spatial_forward.1} parent=47 // pred_region
          %p301 = scmp.lt.s32.totalorder %s17, 1
          %s302 = scalar_select %p301, %s17, 1
          %s303 = smul.addr %s302, 3
          %s304 = smul.addr %s303, 8
          %s305 = scalar_lea.vmem %s2, %s304
        $region52: #{att_spatial_forward.1} parent=47 // pred_fallthru
          _
      $region48: #{att_spatial_forward.1} parent=5 // pred_fallthru
        _
      %p306 = scmp.le.s32.totalorder 1, %s17
      %p307 = scmp.lt.s32.totalorder %s17, 3
      %p308 = pnand %p306, %p307
      %p309 = pneg %p308
      // Predicated region
      $region53: #{att_spatial_forward.1} parent=5 // pred_check
        _
      $region54: #{att_spatial_forward.1} parent=5 // pred_check_branch
        %311 = sbr.rel (%p308) target = $region56
      $region55: #{att_spatial_forward.1} parent=5 // pred_region
        %s312 = ssub.s32 %s17, 1
        // Predicated region
        $region57: #{att_spatial_forward.1} parent=55 // pred_check
          %p313 = pneg %p38
        $region58: #{att_spatial_forward.1} parent=55 // pred_check_branch
          %315 = sbr.rel (%p313) target = $region60
        $region59: #{att_spatial_forward.1} parent=55 // pred_region
          %316 = dma.done [#allocation4], 16
        $region60: #{att_spatial_forward.1} parent=55 // pred_fallthru
          _
        // Predicated region
        $region61: #{att_spatial_forward.1} parent=55 // pred_check
          %p317 = pneg %p59
        $region62: #{att_spatial_forward.1} parent=55 // pred_check_branch
          %319 = sbr.rel (%p317) target = $region64
        $region63: #{att_spatial_forward.1} parent=55 // pred_region
          %320 = dma.done [#allocation6], 256
        $region64: #{att_spatial_forward.1} parent=55 // pred_fallthru
          _
        %321 = sfence
        %p322 = pneg %p38
        %p323 = pneg %p35
        %p324 = pneg %p59
        %p325 = pneg %p56
        %p326 = scmp.lt.s32.totalorder %s22, 1
        %s327 = scalar_select %p326, %s22, 1
        %s328 = smul.addr %s327, 3
        %s329 = smul.addr %s328, 8
        %s330 = scalar_lea.vmem %s2, %s329
        %p331 = pneg %p85
        %p332 = pneg %p82
        %p333 = pneg %p106
        %p334 = pneg %p103
        %p335 = pneg %p127
        %p336 = pneg %p124
        %p337 = pneg %p148
        %p338 = pneg %p145
        %p339 = pneg %p169
        %p340 = pneg %p166
        %p341 = pneg %p190
        %p342 = pneg %p187
        %p343 = pneg %p211
        %p344 = pneg %p208
        %p345 = pneg %p237
        %p346 = pneg %p234
        %p347 = scmp.lt.s32.totalorder %s22, 1
        %s348 = scalar_select %p347, %s22, 1
        %s349 = smul.addr %s348, 3
        %s350 = scalar_lea.vmem %s9, %s349
        %p351 = scmp.lt.s32.totalorder %s22, 1
        %s352 = scalar_select %p351, %s22, 1
        %s353 = smul.addr %s352, 3
        %s354 = smul.addr %s353, 8
        %s355 = scalar_lea.vmem %s2, %s354
        %p356 = scmp.lt.s32.totalorder %s22, 1
        %s357 = scalar_select %p356, %s22, 1
        %s358 = smul.addr %s357, 3
        %s359 = scalar_lea.vmem %s9, %s358
        %v361 = vld [vmem:[%s3] sm:$0x7]
        %362 = vst [vmem:[#allocation2] sm:$0xff] 0.0
        %363 = vst [vmem:[#allocation2 + $0x8] sm:$0xff] 0.0
        %vm364 = vcmask 556032
        %365 = vst.msk [vmem:[#allocation2 + $0x10] sm:$0xff] %vm364, 0.0
        %366 = vst [vmem:[#allocation2 + $0x18] sm:$0xff] 0.0
        %367 = vst [vmem:[#allocation2 + $0x20] sm:$0xff] 0.0
        %368 = vst.msk [vmem:[#allocation2 + $0x28] sm:$0xff] %vm364, 0.0
        %369 = vst [vmem:[#allocation2 + $0x30] sm:$0xff] 0.0
        %370 = vst [vmem:[#allocation2 + $0x38] sm:$0xff] 0.0
        %371 = vst.msk [vmem:[#allocation2 + $0x40] sm:$0xff] %vm364, 0.0
        %372 = vst [vmem:[#allocation2 + $0x48] sm:$0xff] 0.0
        %373 = vst [vmem:[#allocation2 + $0x50] sm:$0xff] 0.0
        %374 = vst.msk [vmem:[#allocation2 + $0x58] sm:$0xff] %vm364, 0.0
        %v375 = vld [vmem:[%s355] sm:$0xff]
        %v376 = vld [vmem:[%s355 + $0x8] sm:$0xff]
        %v377 = vld [vmem:[%s355 + $0x10] sm:$0xff]
        %v378 = vld [vmem:[%s4] sm:$0xf]
        %v379 = vld [vmem:[%s4 + $0x4] sm:$0xf]
        %v380 = vld [vmem:[%s4 + $0x8] sm:$0xf]
        %v381 = vld [vmem:[%s4 + $0xc] sm:$0xf]
        %385 = vrot.lane.b32.xlu0 %v375, 127
        %v386 = vpop.permute.xlu0 %385
        %387 = vrot.lane.b32.xlu0 %v376, 127
        %v388 = vpop.permute.xlu0 %387
        %389 = vrot.lane.b32.xlu0 %v377, 127
        %v390 = vpop.permute.xlu0 %389
        %vm391 = vcmask 1039360
        %v392 = vsel %vm391, %v386, %v388
        %v393 = vsel %vm391, %v388, %v390
        %397 = vrot.lane.b32.xlu0 %v375, 126
        %v398 = vpop.permute.xlu0 %397
        %399 = vrot.lane.b32.xlu0 %v376, 126
        %v400 = vpop.permute.xlu0 %399
        %401 = vrot.lane.b32.xlu0 %v377, 126
        %v402 = vpop.permute.xlu0 %401
        %vm403 = vcmask 1031168
        %v404 = vsel %vm403, %v398, %v400
        %v405 = vsel %vm403, %v400, %v402
        %409 = vrot.lane.b32.xlu0 %v375, 110
        %v410 = vpop.permute.xlu0 %409
        %411 = vrot.lane.b32.xlu0 %v376, 110
        %v412 = vpop.permute.xlu0 %411
        %413 = vrot.lane.b32.xlu0 %v377, 110
        %v414 = vpop.permute.xlu0 %413
        %vm415 = vcmask 900096
        %v416 = vsel %vm415, %v410, %v412
        %v417 = vsel %vm415, %v412, %v414
        %421 = vrot.lane.b32.xlu0 %v375, 109
        %v422 = vpop.permute.xlu0 %421
        %423 = vrot.lane.b32.xlu0 %v376, 109
        %v424 = vpop.permute.xlu0 %423
        %425 = vrot.lane.b32.xlu0 %v377, 109
        %v426 = vpop.permute.xlu0 %425
        %vm427 = vcmask 891904
        %v428 = vsel %vm427, %v422, %v424
        %v429 = vsel %vm427, %v424, %v426
        %433 = vrot.lane.b32.xlu0 %v375, 108
        %v434 = vpop.permute.xlu0 %433
        %435 = vrot.lane.b32.xlu0 %v376, 108
        %v436 = vpop.permute.xlu0 %435
        %437 = vrot.lane.b32.xlu0 %v377, 108
        %v438 = vpop.permute.xlu0 %437
        %vm439 = vcmask 883712
        %v440 = vsel %vm439, %v434, %v436
        %v441 = vsel %vm439, %v436, %v438
        %445 = vrot.lane.b32.xlu0 %v375, 92
        %v446 = vpop.permute.xlu0 %445
        %447 = vrot.lane.b32.xlu0 %v376, 92
        %v448 = vpop.permute.xlu0 %447
        %449 = vrot.lane.b32.xlu0 %v377, 92
        %v450 = vpop.permute.xlu0 %449
        %vm451 = vcmask 752640
        %v452 = vsel %vm451, %v446, %v448
        %v453 = vsel %vm451, %v448, %v450
        %457 = vrot.lane.b32.xlu0 %v375, 91
        %v458 = vpop.permute.xlu0 %457
        %459 = vrot.lane.b32.xlu0 %v376, 91
        %v460 = vpop.permute.xlu0 %459
        %461 = vrot.lane.b32.xlu0 %v377, 91
        %v462 = vpop.permute.xlu0 %461
        %vm463 = vcmask 744448
        %v464 = vsel %vm463, %v458, %v460
        %v465 = vsel %vm463, %v460, %v462
        %469 = vrot.lane.b32.xlu0 %v375, 90
        %v470 = vpop.permute.xlu0 %469
        %471 = vrot.lane.b32.xlu0 %v376, 90
        %v472 = vpop.permute.xlu0 %471
        %473 = vrot.lane.b32.xlu0 %v377, 90
        %v474 = vpop.permute.xlu0 %473
        %vm475 = vcmask 736256
        %v476 = vsel %vm475, %v470, %v472
        %v477 = vsel %vm475, %v472, %v474
        %v481 = vpack.c.bf16 %v392, %v375
        %v482 = vpack.c.bf16 %v393, %v376
        %v483 = vpack.c.bf16 %v390, %v377
        %v484 = vpack.c.bf16 %v416, %v404
        %v485 = vpack.c.bf16 %v417, %v405
        %v486 = vpack.c.bf16 %v414, %v402
        %v487 = vpack.c.bf16 %v440, %v428
        %v488 = vpack.c.bf16 %v441, %v429
        %v489 = vpack.c.bf16 %v438, %v426
        %v490 = vpack.c.bf16 %v464, %v452
        %v491 = vpack.c.bf16 %v465, %v453
        %v492 = vpack.c.bf16 %v462, %v450
        %v493 = vpack.c.bf16 %v476, %v476
        %v494 = vpack.c.bf16 %v477, %v477
        %v495 = vpack.c.bf16 %v474, %v474
        %v500 = vunpack.c.l.b16 %v378
        %v501 = vunpack.c.l.b16 %v379
        %v502 = vunpack.c.l.b16 %v380
        %v503 = vunpack.c.l.b16 %v381
        %v504 = vpack.c.b16 %v501, %v500
        %v505 = vpack.c.b16 %v503, %v502
        %vm506 = vcmask 588800
        %v508 = vsel %vm506, %v504, 0
        %v511 = vsel %vm506, %v505, 0
        %vm513 = vcmask 1043456
        %v515 = vsel %vm513, %v493, 0
        %v518 = vsel %vm513, %v494, 0
        %v521 = vsel %vm513, %v495, 0
        %523 = vmatprep.subr.bf16.mxu0 %v482
        %524 = vmatpush1.bf16.msra.mxu0 %v481
        %525 = vmatprep.subr.bf16.mxu0 %v485
        %526 = vmatpush1.bf16.msra.mxu0 %v484
        %527 = vmatprep.subr.bf16.mxu0 %v488
        %528 = vmatpush1.bf16.msra.mxu0 %v487
        %529 = vmatprep.subr.bf16.mxu0 %v491
        %530 = vmatpush1.bf16.msra.mxu0 %v490
        %531 = vmatprep.subr.bf16.mxu0 %v518
        %532 = vmatpush1.bf16.msra.mxu0 %v515
        %533 = vmatprep.subr.bf16.mxu0 0
        %534 = vmatpush1.bf16.msra.mxu0 0
        %535 = vmatprep.subr.bf16.mxu0 0
        %536 = vmatpush1.bf16.msra.mxu0 0
        %537 = vmatprep.subr.bf16.mxu0 0
        %538 = vmatpush1.bf16.msra.mxu0 0
        %539 = vmatprep.subr.bf16.mxu0 0
        %540 = vmatpush1.bf16.msra.mxu0 0
        %541 = vmatprep.subr.bf16.mxu0 0
        %542 = vmatpush1.bf16.msra.mxu0 0
        %543 = vmatprep.subr.bf16.mxu0 0
        %544 = vmatpush1.bf16.msra.mxu0 0
        %545 = vmatprep.subr.bf16.mxu0 0
        %546 = vmatpush1.bf16.msra.mxu0 0
        %547 = vmatprep.subr.bf16.mxu0 0
        %548 = vmatpush1.bf16.msra.mxu0 0
        %549 = vmatprep.subr.bf16.mxu0 0
        %550 = vmatpush1.bf16.msra.mxu0 0
        %551 = vmatprep.subr.bf16.mxu0 0
        %552 = vmatpush1.bf16.msra.mxu0 0
        %553 = vmatprep.subr.bf16.mxu0 0
        %554 = vmatpush1.bf16.msra.mxu0 0
        %555 = vmatprep.mubr.bf16.mxu0 0
        %556 = vmatmul.mubr.bf16.gmra.mrb[0].mxu0 %v508
        %v557 = vpop.f32.mrb[0].mxu0
        %v558 = vadd.f32 0.0, %v557
        %v559 = vpop.f32.mrb[0].mxu0
        %v560 = vadd.f32 0.0, %v559
        %v561 = vpop.f32.mrb[0].mxu0
        %v562 = vadd.f32 0.0, %v561
        %v563 = vpop.f32.mrb[0].mxu0
        %v564 = vadd.f32 0.0, %v563
        %565 = vmatprep.mubr.bf16.mxu0 0
        %566 = vmatmul.mubr.bf16.gmra.mrb[0].mxu0 %v511
        %v567 = vpop.f32.mrb[0].mxu0
        %v568 = vadd.f32 0.0, %v567
        %v569 = vpop.f32.mrb[0].mxu0
        %v570 = vadd.f32 0.0, %v569
        %v571 = vpop.f32.mrb[0].mxu0
        %v572 = vadd.f32 0.0, %v571
        %v573 = vpop.f32.mrb[0].mxu0
        %v574 = vadd.f32 0.0, %v573
        %575 = vdwg.mxu0
        %576 = vmatprep.subr.bf16.mxu0 0
        %577 = vmatpush1.bf16.msra.mxu0 %v483
        %578 = vmatprep.subr.bf16.mxu0 0
        %579 = vmatpush1.bf16.msra.mxu0 %v486
        %580 = vmatprep.subr.bf16.mxu0 0
        %581 = vmatpush1.bf16.msra.mxu0 %v489
        %582 = vmatprep.subr.bf16.mxu0 0
        %583 = vmatpush1.bf16.msra.mxu0 %v492
        %584 = vmatprep.subr.bf16.mxu0 0
        %585 = vmatpush1.bf16.msra.mxu0 %v521
        %586 = vmatprep.subr.bf16.mxu0 0
        %587 = vmatpush1.bf16.msra.mxu0 0
        %588 = vmatprep.subr.bf16.mxu0 0
        %589 = vmatpush1.bf16.msra.mxu0 0
        %590 = vmatprep.subr.bf16.mxu0 0
        %591 = vmatpush1.bf16.msra.mxu0 0
        %592 = vmatprep.subr.bf16.mxu0 0
        %593 = vmatpush1.bf16.msra.mxu0 0
        %594 = vmatprep.subr.bf16.mxu0 0
        %595 = vmatpush1.bf16.msra.mxu0 0
        %596 = vmatprep.subr.bf16.mxu0 0
        %597 = vmatpush1.bf16.msra.mxu0 0
        %598 = vmatprep.subr.bf16.mxu0 0
        %599 = vmatpush1.bf16.msra.mxu0 0
        %600 = vmatprep.subr.bf16.mxu0 0
        %601 = vmatpush1.bf16.msra.mxu0 0
        %602 = vmatprep.subr.bf16.mxu0 0
        %603 = vmatpush1.bf16.msra.mxu0 0
        %604 = vmatprep.subr.bf16.mxu0 0
        %605 = vmatpush1.bf16.msra.mxu0 0
        %606 = vmatprep.subr.bf16.mxu0 0
        %607 = vmatpush1.bf16.msra.mxu0 0
        %608 = vmatprep.mubr.bf16.mxu0 0
        %609 = vmatmul.mubr.bf16.gmra.mrb[0].mxu0 %v508
        %v610 = vpop.f32.mrb[0].mxu0
        %v611 = vadd.f32 0.0, %v610
        %v612 = vpop.f32.mrb[0].mxu0
        %v613 = vpop.f32.mrb[0].mxu0
        %v614 = vadd.f32 0.0, %v613
        %v615 = vpop.f32.mrb[0].mxu0
        %616 = vmatprep.mubr.bf16.mxu0 0
        %617 = vmatmul.mubr.bf16.gmra.mrb[0].mxu0 %v511
        %v618 = vpop.f32.mrb[0].mxu0
        %v619 = vadd.f32 0.0, %v618
        %v620 = vpop.f32.mrb[0].mxu0
        %v621 = vpop.f32.mrb[0].mxu0
        %v622 = vadd.f32 0.0, %v621
        %v623 = vpop.f32.mrb[0].mxu0
        %624 = vdwg.mxu0
        %s625 = sld [smem:[#allocation3]]
        %vm626 = vcmp.ge.f32.partialorder %v558, 0.0
        %vm627 = vcmp.ge.f32.partialorder %v560, 0.0
        %vm628 = vcmp.ge.f32.partialorder %v611, 0.0
        %vm629 = vcmp.ge.f32.partialorder %v562, 0.0
        %vm630 = vcmp.ge.f32.partialorder %v564, 0.0
        %vm631 = vcmp.ge.f32.partialorder %v614, 0.0
        %vm632 = vcmp.ge.f32.partialorder %v568, 0.0
        %vm633 = vcmp.ge.f32.partialorder %v570, 0.0
        %vm634 = vcmp.ge.f32.partialorder %v619, 0.0
        %vm635 = vcmp.ge.f32.partialorder %v572, 0.0
        %vm636 = vcmp.ge.f32.partialorder %v574, 0.0
        %vm637 = vcmp.ge.f32.partialorder %v622, 0.0
        %v638 = vstv %s625
        %v639 = vmul.f32 %v638, %v558
        %v640 = vmul.f32 %v638, %v560
        %v641 = vmul.f32 %v638, %v611
        %v642 = vmul.f32 %v638, %v562
        %v643 = vmul.f32 %v638, %v564
        %v644 = vmul.f32 %v638, %v614
        %v645 = vmul.f32 %v638, %v568
        %v646 = vmul.f32 %v638, %v570
        %v647 = vmul.f32 %v638, %v619
        %v648 = vmul.f32 %v638, %v572
        %v649 = vmul.f32 %v638, %v574
        %v650 = vmul.f32 %v638, %v622
        %v651 = vsel %vm626, %v558, %v639
        %v652 = vsel %vm627, %v560, %v640
        %v653 = vsel %vm628, %v611, %v641
        %v654 = vsel %vm629, %v562, %v642
        %v655 = vsel %vm630, %v564, %v643
        %v656 = vsel %vm631, %v614, %v644
        %v657 = vsel %vm632, %v568, %v645
        %v658 = vsel %vm633, %v570, %v646
        %v659 = vsel %vm634, %v619, %v647
        %v660 = vsel %vm635, %v572, %v648
        %v661 = vsel %vm636, %v574, %v649
        %v662 = vsel %vm637, %v622, %v650
        %v664 = vlaneseq
        %v665 = vshrl.u32 %v664, 7
        %v666 = vsub.s32 0, %v665
        %v667 = vrot.slane %v361, %v666
        %v668 = vlaneseq
        %v669 = vshrl.u32 %v668, 7
        %v670 = vsub.s32 1, %v669
        %v671 = vrot.slane %v361, %v670
        %v672 = vlaneseq
        %v673 = vshrl.u32 %v672, 7
        %v674 = vsub.s32 2, %v673
        %v675 = vrot.slane %v361, %v674
        %v679 = vmul.f32 %v651, %v667
        %v680 = vmul.f32 %v652, %v671
        %v681 = vmul.f32 %v653, %v675
        %v682 = vmul.f32 %v654, %v667
        %v683 = vmul.f32 %v655, %v671
        %v684 = vmul.f32 %v656, %v675
        %v685 = vmul.f32 %v657, %v667
        %v686 = vmul.f32 %v658, %v671
        %v687 = vmul.f32 %v659, %v675
        %v688 = vmul.f32 %v660, %v667
        %v689 = vmul.f32 %v661, %v671
        %v690 = vmul.f32 %v662, %v675
        %703 = vrot.lane.b32.xlu0 %v679, 19
        %v704 = vpop.permute.xlu0 %703
        %705 = vrot.lane.b32.xlu0 %v680, 19
        %v706 = vpop.permute.xlu0 %705
        %707 = vrot.lane.b32.xlu0 %v681, 19
        %v708 = vpop.permute.xlu0 %707
        %709 = vrot.lane.b32.xlu0 %v682, 19
        %v710 = vpop.permute.xlu0 %709
        %711 = vrot.lane.b32.xlu0 %v683, 19
        %v712 = vpop.permute.xlu0 %711
        %713 = vrot.lane.b32.xlu0 %v684, 19
        %v714 = vpop.permute.xlu0 %713
        %715 = vrot.lane.b32.xlu0 %v685, 19
        %v716 = vpop.permute.xlu0 %715
        %717 = vrot.lane.b32.xlu0 %v686, 19
        %v718 = vpop.permute.xlu0 %717
        %719 = vrot.lane.b32.xlu0 %v687, 19
        %v720 = vpop.permute.xlu0 %719
        %721 = vrot.lane.b32.xlu0 %v688, 19
        %v722 = vpop.permute.xlu0 %721
        %723 = vrot.lane.b32.xlu0 %v689, 19
        %v724 = vpop.permute.xlu0 %723
        %725 = vrot.lane.b32.xlu0 %v690, 19
        %v726 = vpop.permute.xlu0 %725
        %vm727 = vcmask 154624
        %v728 = vsel %vm727, %v704, %v706
        %v729 = vsel %vm727, %v706, %v708
        %v730 = vsel %vm727, %v710, %v712
        %v731 = vsel %vm727, %v712, %v714
        %v732 = vsel %vm727, %v716, %v718
        %v733 = vsel %vm727, %v718, %v720
        %v734 = vsel %vm727, %v722, %v724
        %v735 = vsel %vm727, %v724, %v726
        %vm748 = vcmask 1047704
        %749 = vst.msk [vmem:[#allocation2] sm:$0xff] %vm748, %v704
        %750 = vst [vmem:[#allocation2 + $0x8] sm:$0xff] %v728
        %vm751 = vcmask 400384
        %752 = vst.msk [vmem:[#allocation2 + $0x10] sm:$0xff] %vm751, %v729
        %753 = vst.msk [vmem:[#allocation2 + $0x18] sm:$0xff] %vm748, %v710
        %754 = vst [vmem:[#allocation2 + $0x20] sm:$0xff] %v730
        %755 = vst.msk [vmem:[#allocation2 + $0x28] sm:$0xff] %vm751, %v731
        %756 = vst.msk [vmem:[#allocation2 + $0x30] sm:$0xff] %vm748, %v716
        %757 = vst [vmem:[#allocation2 + $0x38] sm:$0xff] %v732
        %758 = vst.msk [vmem:[#allocation2 + $0x40] sm:$0xff] %vm751, %v733
        %759 = vst.msk [vmem:[#allocation2 + $0x48] sm:$0xff] %vm748, %v722
        %760 = vst [vmem:[#allocation2 + $0x50] sm:$0xff] %v734
        %761 = vst.msk [vmem:[#allocation2 + $0x58] sm:$0xff] %vm751, %v735
        %v762 = vld [vmem:[#allocation2] sm:$0xff]
        %v763 = vld [vmem:[#allocation2 + $0x8] sm:$0xff]
        %v764 = vld [vmem:[#allocation2 + $0x10] sm:$0xff]
        %v765 = vld [vmem:[#allocation2 + $0x18] sm:$0xff]
        %v766 = vld [vmem:[#allocation2 + $0x20] sm:$0xff]
        %v767 = vld [vmem:[#allocation2 + $0x28] sm:$0xff]
        %v768 = vld [vmem:[#allocation2 + $0x30] sm:$0xff]
        %v769 = vld [vmem:[#allocation2 + $0x38] sm:$0xff]
        %v770 = vld [vmem:[#allocation2 + $0x40] sm:$0xff]
        %v771 = vld [vmem:[#allocation2 + $0x48] sm:$0xff]
        %v772 = vld [vmem:[#allocation2 + $0x50] sm:$0xff]
        %v773 = vld [vmem:[#allocation2 + $0x58] sm:$0xff]
        %v774 = vld [vmem:[%s5] sm:$0xff]
        %v775 = vld [vmem:[%s5 + $0x8] sm:$0xf]
        %v776 = vld [vmem:[%s5 + $0xc] sm:$0xff]
        %v777 = vld [vmem:[%s5 + $0x14] sm:$0xf]
        %v778 = vld [vmem:[%s5 + $0x18] sm:$0xff]
        %v779 = vld [vmem:[%s5 + $0x20] sm:$0xf]
        %v780 = vld [vmem:[%s5 + $0x24] sm:$0xff]
        %v781 = vld [vmem:[%s5 + $0x2c] sm:$0xf]
        %794 = vrot.lane.b32.xlu0 %v762, 127
        %v795 = vpop.permute.xlu0 %794
        %796 = vrot.lane.b32.xlu0 %v763, 127
        %v797 = vpop.permute.xlu0 %796
        %798 = vrot.lane.b32.xlu0 %v764, 127
        %v799 = vpop.permute.xlu0 %798
        %800 = vrot.lane.b32.xlu0 %v765, 127
        %v801 = vpop.permute.xlu0 %800
        %802 = vrot.lane.b32.xlu0 %v766, 127
        %v803 = vpop.permute.xlu0 %802
        %804 = vrot.lane.b32.xlu0 %v767, 127
        %v805 = vpop.permute.xlu0 %804
        %806 = vrot.lane.b32.xlu0 %v768, 127
        %v807 = vpop.permute.xlu0 %806
        %808 = vrot.lane.b32.xlu0 %v769, 127
        %v809 = vpop.permute.xlu0 %808
        %810 = vrot.lane.b32.xlu0 %v770, 127
        %v811 = vpop.permute.xlu0 %810
        %812 = vrot.lane.b32.xlu0 %v771, 127
        %v813 = vpop.permute.xlu0 %812
        %814 = vrot.lane.b32.xlu0 %v772, 127
        %v815 = vpop.permute.xlu0 %814
        %816 = vrot.lane.b32.xlu0 %v773, 127
        %v817 = vpop.permute.xlu0 %816
        %v818 = vsel %vm391, %v795, %v797
        %v819 = vsel %vm391, %v797, %v799
        %v820 = vsel %vm391, %v801, %v803
        %v821 = vsel %vm391, %v803, %v805
        %v822 = vsel %vm391, %v807, %v809
        %v823 = vsel %vm391, %v809, %v811
        %v824 = vsel %vm391, %v813, %v815
        %v825 = vsel %vm391, %v815, %v817
        %838 = vrot.lane.b32.xlu0 %v762, 126
        %v839 = vpop.permute.xlu0 %838
        %840 = vrot.lane.b32.xlu0 %v763, 126
        %v841 = vpop.permute.xlu0 %840
        %842 = vrot.lane.b32.xlu0 %v764, 126
        %v843 = vpop.permute.xlu0 %842
        %844 = vrot.lane.b32.xlu0 %v765, 126
        %v845 = vpop.permute.xlu0 %844
        %846 = vrot.lane.b32.xlu0 %v766, 126
        %v847 = vpop.permute.xlu0 %846
        %848 = vrot.lane.b32.xlu0 %v767, 126
        %v849 = vpop.permute.xlu0 %848
        %850 = vrot.lane.b32.xlu0 %v768, 126
        %v851 = vpop.permute.xlu0 %850
        %852 = vrot.lane.b32.xlu0 %v769, 126
        %v853 = vpop.permute.xlu0 %852
        %854 = vrot.lane.b32.xlu0 %v770, 126
        %v855 = vpop.permute.xlu0 %854
        %856 = vrot.lane.b32.xlu0 %v771, 126
        %v857 = vpop.permute.xlu0 %856
        %858 = vrot.lane.b32.xlu0 %v772, 126
        %v859 = vpop.permute.xlu0 %858
        %860 = vrot.lane.b32.xlu0 %v773, 126
        %v861 = vpop.permute.xlu0 %860
        %v862 = vsel %vm403, %v839, %v841
        %v863 = vsel %vm403, %v841, %v843
        %v864 = vsel %vm403, %v845, %v847
        %v865 = vsel %vm403, %v847, %v849
        %v866 = vsel %vm403, %v851, %v853
        %v867 = vsel %vm403, %v853, %v855
        %v868 = vsel %vm403, %v857, %v859
        %v869 = vsel %vm403, %v859, %v861
        %882 = vrot.lane.b32.xlu0 %v762, 110
        %v883 = vpop.permute.xlu0 %882
        %884 = vrot.lane.b32.xlu0 %v763, 110
        %v885 = vpop.permute.xlu0 %884
        %886 = vrot.lane.b32.xlu0 %v764, 110
        %v887 = vpop.permute.xlu0 %886
        %888 = vrot.lane.b32.xlu0 %v765, 110
        %v889 = vpop.permute.xlu0 %888
        %890 = vrot.lane.b32.xlu0 %v766, 110
        %v891 = vpop.permute.xlu0 %890
        %892 = vrot.lane.b32.xlu0 %v767, 110
        %v893 = vpop.permute.xlu0 %892
        %894 = vrot.lane.b32.xlu0 %v768, 110
        %v895 = vpop.permute.xlu0 %894
        %896 = vrot.lane.b32.xlu0 %v769, 110
        %v897 = vpop.permute.xlu0 %896
        %898 = vrot.lane.b32.xlu0 %v770, 110
        %v899 = vpop.permute.xlu0 %898
        %900 = vrot.lane.b32.xlu0 %v771, 110
        %v901 = vpop.permute.xlu0 %900
        %902 = vrot.lane.b32.xlu0 %v772, 110
        %v903 = vpop.permute.xlu0 %902
        %904 = vrot.lane.b32.xlu0 %v773, 110
        %v905 = vpop.permute.xlu0 %904
        %v906 = vsel %vm415, %v883, %v885
        %v907 = vsel %vm415, %v885, %v887
        %v908 = vsel %vm415, %v889, %v891
        %v909 = vsel %vm415, %v891, %v893
        %v910 = vsel %vm415, %v895, %v897
        %v911 = vsel %vm415, %v897, %v899
        %v912 = vsel %vm415, %v901, %v903
        %v913 = vsel %vm415, %v903, %v905
        %926 = vrot.lane.b32.xlu0 %v762, 109
        %v927 = vpop.permute.xlu0 %926
        %928 = vrot.lane.b32.xlu0 %v763, 109
        %v929 = vpop.permute.xlu0 %928
        %930 = vrot.lane.b32.xlu0 %v764, 109
        %v931 = vpop.permute.xlu0 %930
        %932 = vrot.lane.b32.xlu0 %v765, 109
        %v933 = vpop.permute.xlu0 %932
        %934 = vrot.lane.b32.xlu0 %v766, 109
        %v935 = vpop.permute.xlu0 %934
        %936 = vrot.lane.b32.xlu0 %v767, 109
        %v937 = vpop.permute.xlu0 %936
        %938 = vrot.lane.b32.xlu0 %v768, 109
        %v939 = vpop.permute.xlu0 %938
        %940 = vrot.lane.b32.xlu0 %v769, 109
        %v941 = vpop.permute.xlu0 %940
        %942 = vrot.lane.b32.xlu0 %v770, 109
        %v943 = vpop.permute.xlu0 %942
        %944 = vrot.lane.b32.xlu0 %v771, 109
        %v945 = vpop.permute.xlu0 %944
        %946 = vrot.lane.b32.xlu0 %v772, 109
        %v947 = vpop.permute.xlu0 %946
        %948 = vrot.lane.b32.xlu0 %v773, 109
        %v949 = vpop.permute.xlu0 %948
        %v950 = vsel %vm427, %v927, %v929
        %v951 = vsel %vm427, %v929, %v931
        %v952 = vsel %vm427, %v933, %v935
        %v953 = vsel %vm427, %v935, %v937
        %v954 = vsel %vm427, %v939, %v941
        %v955 = vsel %vm427, %v941, %v943
        %v956 = vsel %vm427, %v945, %v947
        %v957 = vsel %vm427, %v947, %v949
        %970 = vrot.lane.b32.xlu0 %v762, 108
        %v971 = vpop.permute.xlu0 %970
        %972 = vrot.lane.b32.xlu0 %v763, 108
        %v973 = vpop.permute.xlu0 %972
        %974 = vrot.lane.b32.xlu0 %v764, 108
        %v975 = vpop.permute.xlu0 %974
        %976 = vrot.lane.b32.xlu0 %v765, 108
        %v977 = vpop.permute.xlu0 %976
        %978 = vrot.lane.b32.xlu0 %v766, 108
        %v979 = vpop.permute.xlu0 %978
        %980 = vrot.lane.b32.xlu0 %v767, 108
        %v981 = vpop.permute.xlu0 %980
        %982 = vrot.lane.b32.xlu0 %v768, 108
        %v983 = vpop.permute.xlu0 %982
        %984 = vrot.lane.b32.xlu0 %v769, 108
        %v985 = vpop.permute.xlu0 %984
        %986 = vrot.lane.b32.xlu0 %v770, 108
        %v987 = vpop.permute.xlu0 %986
        %988 = vrot.lane.b32.xlu0 %v771, 108
        %v989 = vpop.permute.xlu0 %988
        %990 = vrot.lane.b32.xlu0 %v772, 108
        %v991 = vpop.permute.xlu0 %990
        %992 = vrot.lane.b32.xlu0 %v773, 108
        %v993 = vpop.permute.xlu0 %992
        %v994 = vsel %vm439, %v971, %v973
        %v995 = vsel %vm439, %v973, %v975
        %v996 = vsel %vm439, %v977, %v979
        %v997 = vsel %vm439, %v979, %v981
        %v998 = vsel %vm439, %v983, %v985
        %v999 = vsel %vm439, %v985, %v987
        %v1000 = vsel %vm439, %v989, %v991
        %v1001 = vsel %vm439, %v991, %v993
        %1014 = vrot.lane.b32.xlu0 %v762, 92
        %v1015 = vpop.permute.xlu0 %1014
        %1016 = vrot.lane.b32.xlu0 %v763, 92
        %v1017 = vpop.permute.xlu0 %1016
        %1018 = vrot.lane.b32.xlu0 %v764, 92
        %v1019 = vpop.permute.xlu0 %1018
        %1020 = vrot.lane.b32.xlu0 %v765, 92
        %v1021 = vpop.permute.xlu0 %1020
        %1022 = vrot.lane.b32.xlu0 %v766, 92
        %v1023 = vpop.permute.xlu0 %1022
        %1024 = vrot.lane.b32.xlu0 %v767, 92
        %v1025 = vpop.permute.xlu0 %1024
        %1026 = vrot.lane.b32.xlu0 %v768, 92
        %v1027 = vpop.permute.xlu0 %1026
        %1028 = vrot.lane.b32.xlu0 %v769, 92
        %v1029 = vpop.permute.xlu0 %1028
        %1030 = vrot.lane.b32.xlu0 %v770, 92
        %v1031 = vpop.permute.xlu0 %1030
        %1032 = vrot.lane.b32.xlu0 %v771, 92
        %v1033 = vpop.permute.xlu0 %1032
        %1034 = vrot.lane.b32.xlu0 %v772, 92
        %v1035 = vpop.permute.xlu0 %1034
        %1036 = vrot.lane.b32.xlu0 %v773, 92
        %v1037 = vpop.permute.xlu0 %1036
        %v1038 = vsel %vm451, %v1015, %v1017
        %v1039 = vsel %vm451, %v1017, %v1019
        %v1040 = vsel %vm451, %v1021, %v1023
        %v1041 = vsel %vm451, %v1023, %v1025
        %v1042 = vsel %vm451, %v1027, %v1029
        %v1043 = vsel %vm451, %v1029, %v1031
        %v1044 = vsel %vm451, %v1033, %v1035
        %v1045 = vsel %vm451, %v1035, %v1037
        %1058 = vrot.lane.b32.xlu0 %v762, 91
        %v1059 = vpop.permute.xlu0 %1058
        %1060 = vrot.lane.b32.xlu0 %v763, 91
        %v1061 = vpop.permute.xlu0 %1060
        %1062 = vrot.lane.b32.xlu0 %v764, 91
        %v1063 = vpop.permute.xlu0 %1062
        %1064 = vrot.lane.b32.xlu0 %v765, 91
        %v1065 = vpop.permute.xlu0 %1064
        %1066 = vrot.lane.b32.xlu0 %v766, 91
        %v1067 = vpop.permute.xlu0 %1066
        %1068 = vrot.lane.b32.xlu0 %v767, 91
        %v1069 = vpop.permute.xlu0 %1068
        %1070 = vrot.lane.b32.xlu0 %v768, 91
        %v1071 = vpop.permute.xlu0 %1070
        %1072 = vrot.lane.b32.xlu0 %v769, 91
        %v1073 = vpop.permute.xlu0 %1072
        %1074 = vrot.lane.b32.xlu0 %v770, 91
        %v1075 = vpop.permute.xlu0 %1074
        %1076 = vrot.lane.b32.xlu0 %v771, 91
        %v1077 = vpop.permute.xlu0 %1076
        %1078 = vrot.lane.b32.xlu0 %v772, 91
        %v1079 = vpop.permute.xlu0 %1078
        %1080 = vrot.lane.b32.xlu0 %v773, 91
        %v1081 = vpop.permute.xlu0 %1080
        %v1082 = vsel %vm463, %v1059, %v1061
        %v1083 = vsel %vm463, %v1061, %v1063
        %v1084 = vsel %vm463, %v1065, %v1067
        %v1085 = vsel %vm463, %v1067, %v1069
        %v1086 = vsel %vm463, %v1071, %v1073
        %v1087 = vsel %vm463, %v1073, %v1075
        %v1088 = vsel %vm463, %v1077, %v1079
        %v1089 = vsel %vm463, %v1079, %v1081
        %1102 = vrot.lane.b32.xlu0 %v762, 90
        %v1103 = vpop.permute.xlu0 %1102
        %1104 = vrot.lane.b32.xlu0 %v763, 90
        %v1105 = vpop.permute.xlu0 %1104
        %1106 = vrot.lane.b32.xlu0 %v764, 90
        %v1107 = vpop.permute.xlu0 %1106
        %1108 = vrot.lane.b32.xlu0 %v765, 90
        %v1109 = vpop.permute.xlu0 %1108
        %1110 = vrot.lane.b32.xlu0 %v766, 90
        %v1111 = vpop.permute.xlu0 %1110
        %1112 = vrot.lane.b32.xlu0 %v767, 90
        %v1113 = vpop.permute.xlu0 %1112
        %1114 = vrot.lane.b32.xlu0 %v768, 90
        %v1115 = vpop.permute.xlu0 %1114
        %1116 = vrot.lane.b32.xlu0 %v769, 90
        %v1117 = vpop.permute.xlu0 %1116
        %1118 = vrot.lane.b32.xlu0 %v770, 90
        %v1119 = vpop.permute.xlu0 %1118
        %1120 = vrot.lane.b32.xlu0 %v771, 90
        %v1121 = vpop.permute.xlu0 %1120
        %1122 = vrot.lane.b32.xlu0 %v772, 90
        %v1123 = vpop.permute.xlu0 %1122
        %1124 = vrot.lane.b32.xlu0 %v773, 90
        %v1125 = vpop.permute.xlu0 %1124
        %v1126 = vsel %vm475, %v1103, %v1105
        %v1127 = vsel %vm475, %v1105, %v1107
        %v1128 = vsel %vm475, %v1109, %v1111
        %v1129 = vsel %vm475, %v1111, %v1113
        %v1130 = vsel %vm475, %v1115, %v1117
        %v1131 = vsel %vm475, %v1117, %v1119
        %v1132 = vsel %vm475, %v1121, %v1123
        %v1133 = vsel %vm475, %v1123, %v1125
        %v1146 = vpack.c.bf16 %v765, %v762
        %v1147 = vpack.c.bf16 %v766, %v763
        %v1148 = vpack.c.bf16 %v767, %v764
        %v1149 = vpack.c.bf16 %v771, %v768
        %v1150 = vpack.c.bf16 %v772, %v769
        %v1151 = vpack.c.bf16 %v773, %v770
        %v1152 = vpack.c.bf16 %v820, %v818
        %v1153 = vpack.c.bf16 %v821, %v819
        %v1154 = vpack.c.bf16 %v805, %v799
        %v1155 = vpack.c.bf16 %v824, %v822
        %v1156 = vpack.c.bf16 %v825, %v823
        %v1157 = vpack.c.bf16 %v817, %v811
        %v1158 = vpack.c.bf16 %v864, %v862
        %v1159 = vpack.c.bf16 %v865, %v863
        %v1160 = vpack.c.bf16 %v849, %v843
        %v1161 = vpack.c.bf16 %v868, %v866
        %v1162 = vpack.c.bf16 %v869, %v867
        %v1163 = vpack.c.bf16 %v861, %v855
        %v1164 = vpack.c.bf16 %v908, %v906
        %v1165 = vpack.c.bf16 %v909, %v907
        %v1166 = vpack.c.bf16 %v893, %v887
        %v1167 = vpack.c.bf16 %v912, %v910
        %v1168 = vpack.c.bf16 %v913, %v911
        %v1169 = vpack.c.bf16 %v905, %v899
        %v1170 = vpack.c.bf16 %v952, %v950
        %v1171 = vpack.c.bf16 %v953, %v951
        %v1172 = vpack.c.bf16 %v937, %v931
        %v1173 = vpack.c.bf16 %v956, %v954
        %v1174 = vpack.c.bf16 %v957, %v955
        %v1175 = vpack.c.bf16 %v949, %v943
        %v1176 = vpack.c.bf16 %v996, %v994
        %v1177 = vpack.c.bf16 %v997, %v995
        %v1178 = vpack.c.bf16 %v981, %v975
        %v1179 = vpack.c.bf16 %v1000, %v998
        %v1180 = vpack.c.bf16 %v1001, %v999
        %v1181 = vpack.c.bf16 %v993, %v987
        %v1182 = vpack.c.bf16 %v1040, %v1038
        %v1183 = vpack.c.bf16 %v1041, %v1039
        %v1184 = vpack.c.bf16 %v1025, %v1019
        %v1185 = vpack.c.bf16 %v1044, %v1042
        %v1186 = vpack.c.bf16 %v1045, %v1043
        %v1187 = vpack.c.bf16 %v1037, %v1031
        %v1188 = vpack.c.bf16 %v1084, %v1082
        %v1189 = vpack.c.bf16 %v1085, %v1083
        %v1190 = vpack.c.bf16 %v1069, %v1063
        %v1191 = vpack.c.bf16 %v1088, %v1086
        %v1192 = vpack.c.bf16 %v1089, %v1087
        %v1193 = vpack.c.bf16 %v1081, %v1075
        %v1194 = vpack.c.bf16 %v1128, %v1126
        %v1195 = vpack.c.bf16 %v1129, %v1127
        %v1196 = vpack.c.bf16 %v1113, %v1107
        %v1197 = vpack.c.bf16 %v1132, %v1130
        %v1198 = vpack.c.bf16 %v1133, %v1131
        %v1199 = vpack.c.bf16 %v1125, %v1119
        %v1200 = vld [vmem:[%s6] sm:$0xff]
        %v1201 = vld [vmem:[%s6 + $0x8] sm:$0xff]
        %v1202 = vld [vmem:[%s6 + $0x10] sm:$0xff]
        %v1203 = vld [vmem:[%s6 + $0x18] sm:$0xff]
        %1205 = vset.pattern.permute.xlu0 0
        %1206 = vperm.xlu0 %1205, %v1200
        %v1207 = vpop.permute.xlu0 %1206
        %1210 = vset.pattern.permute.xlu0 0
        %1211 = vperm.xlu0 %1210, %v1201
        %v1212 = vpop.permute.xlu0 %1211
        %1215 = vset.pattern.permute.xlu0 0
        %1216 = vperm.xlu0 %1215, %v1202
        %v1217 = vpop.permute.xlu0 %1216
        %1220 = vset.pattern.permute.xlu0 0
        %1221 = vperm.xlu0 %1220, %v1203
        %v1222 = vpop.permute.xlu0 %1221
        %v1232 = vunpack.c.l.b16 %v774
        %v1233 = vunpack.c.h.b16 %v774
        %v1234 = vunpack.c.l.b16 %v775
        %v1235 = vunpack.c.l.b16 %v776
        %v1236 = vunpack.c.h.b16 %v776
        %v1237 = vunpack.c.l.b16 %v777
        %v1238 = vunpack.c.l.b16 %v778
        %v1239 = vunpack.c.h.b16 %v778
        %v1240 = vunpack.c.l.b16 %v779
        %v1241 = vunpack.c.l.b16 %v780
        %v1242 = vunpack.c.h.b16 %v780
        %v1243 = vunpack.c.l.b16 %v781
        %v1244 = vpack.c.b16 %v1235, %v1232
        %v1245 = vpack.c.b16 %v1236, %v1233
        %v1246 = vpack.c.b16 %v1237, %v1234
        %v1247 = vpack.c.b16 %v1241, %v1238
        %v1248 = vpack.c.b16 %v1242, %v1239
        %v1249 = vpack.c.b16 %v1243, %v1240
        %vm1254 = vcmask 261120
        %v1256 = vsel %vm1254, %v1246, 0
        %v1259 = vsel %vm1254, %v1249, 0
        %1261 = vmatprep.subr.bf16.mxu0 %v1147
        %1262 = vmatpush1.bf16.msra.mxu0 %v1146
        %1263 = vmatprep.subr.bf16.mxu0 %v1150
        %1264 = vmatpush1.bf16.msra.mxu0 %v1149
        %1265 = vmatprep.subr.bf16.mxu0 %v1153
        %1266 = vmatpush1.bf16.msra.mxu0 %v1152
        %1267 = vmatprep.subr.bf16.mxu0 %v1156
        %1268 = vmatpush1.bf16.msra.mxu0 %v1155
        %1269 = vmatprep.subr.bf16.mxu0 %v1159
        %1270 = vmatpush1.bf16.msra.mxu0 %v1158
        %1271 = vmatprep.subr.bf16.mxu0 %v1162
        %1272 = vmatpush1.bf16.msra.mxu0 %v1161
        %1273 = vmatprep.subr.bf16.mxu0 %v1165
        %1274 = vmatpush1.bf16.msra.mxu0 %v1164
        %1275 = vmatprep.subr.bf16.mxu0 %v1168
        %1276 = vmatpush1.bf16.msra.mxu0 %v1167
        %1277 = vmatprep.subr.bf16.mxu0 %v1171
        %1278 = vmatpush1.bf16.msra.mxu0 %v1170
        %1279 = vmatprep.subr.bf16.mxu0 %v1174
        %1280 = vmatpush1.bf16.msra.mxu0 %v1173
        %1281 = vmatprep.subr.bf16.mxu0 %v1177
        %1282 = vmatpush1.bf16.msra.mxu0 %v1176
        %1283 = vmatprep.subr.bf16.mxu0 %v1180
        %1284 = vmatpush1.bf16.msra.mxu0 %v1179
        %1285 = vmatprep.subr.bf16.mxu0 %v1183
        %1286 = vmatpush1.bf16.msra.mxu0 %v1182
        %1287 = vmatprep.subr.bf16.mxu0 %v1186
        %1288 = vmatpush1.bf16.msra.mxu0 %v1185
        %1289 = vmatprep.subr.bf16.mxu0 %v1189
        %1290 = vmatpush1.bf16.msra.mxu0 %v1188
        %1291 = vmatprep.subr.bf16.mxu0 %v1192
        %1292 = vmatpush1.bf16.msra.mxu0 %v1191
        %1293 = vmatprep.mubr.bf16.mxu0 %v1245
        %1294 = vmatmul.mubr.bf16.gmra.mrb[0].mxu0 %v1244
        %v1295 = vpop.f32.mrb[0].mxu0
        %v1296 = vadd.f32 %v1207, %v1295
        %v1297 = vpop.f32.mrb[0].mxu0
        %v1298 = vadd.f32 %v1207, %v1297
        %v1299 = vpop.f32.mrb[0].mxu0
        %v1300 = vadd.f32 %v1212, %v1299
        %v1301 = vpop.f32.mrb[0].mxu0
        %v1302 = vadd.f32 %v1212, %v1301
        %1303 = vmatprep.mubr.bf16.mxu0 %v1248
        %1304 = vmatmul.mubr.bf16.gmra.mrb[0].mxu0 %v1247
        %v1305 = vpop.f32.mrb[0].mxu0
        %v1306 = vadd.f32 %v1217, %v1305
        %v1307 = vpop.f32.mrb[0].mxu0
        %v1308 = vadd.f32 %v1217, %v1307
        %v1309 = vpop.f32.mrb[0].mxu0
        %v1310 = vadd.f32 %v1222, %v1309
        %v1311 = vpop.f32.mrb[0].mxu0
        %v1312 = vadd.f32 %v1222, %v1311
        %1313 = vdwg.mxu0
        %1314 = vmatprep.subr.bf16.mxu0 %v1195
        %1315 = vmatpush1.bf16.msra.mxu0 %v1194
        %1316 = vmatprep.subr.bf16.mxu0 %v1198
        %1317 = vmatpush1.bf16.msra.mxu0 %v1197
        %1318 = vmatprep.subr.bf16.mxu0 0
        %1319 = vmatpush1.bf16.msra.mxu0 0
        %1320 = vmatprep.subr.bf16.mxu0 0
        %1321 = vmatpush1.bf16.msra.mxu0 0
        %1322 = vmatprep.subr.bf16.mxu0 0
        %1323 = vmatpush1.bf16.msra.mxu0 0
        %1324 = vmatprep.subr.bf16.mxu0 0
        %1325 = vmatpush1.bf16.msra.mxu0 0
        %1326 = vmatprep.subr.bf16.mxu0 0
        %1327 = vmatpush1.bf16.msra.mxu0 0
        %1328 = vmatprep.subr.bf16.mxu0 0
        %1329 = vmatpush1.bf16.msra.mxu0 0
        %1330 = vmatprep.subr.bf16.mxu0 0
        %1331 = vmatpush1.bf16.msra.mxu0 0
        %1332 = vmatprep.subr.bf16.mxu0 0
        %1333 = vmatpush1.bf16.msra.mxu0 0
        %1334 = vmatprep.subr.bf16.mxu0 0
        %1335 = vmatpush1.bf16.msra.mxu0 0
        %1336 = vmatprep.subr.bf16.mxu0 0
        %1337 = vmatpush1.bf16.msra.mxu0 0
        %1338 = vmatprep.subr.bf16.mxu0 0
        %1339 = vmatpush1.bf16.msra.mxu0 0
        %1340 = vmatprep.subr.bf16.mxu0 0
        %1341 = vmatpush1.bf16.msra.mxu0 0
        %1342 = vmatprep.subr.bf16.mxu0 0
        %1343 = vmatpush1.bf16.msra.mxu0 0
        %1344 = vmatprep.subr.bf16.mxu0 0
        %1345 = vmatpush1.bf16.msra.mxu0 0
        %1346 = vmatprep.mubr.bf16.mxu0 0
        %1347 = vmatmul.mubr.bf16.gmra.mrb[0].mxu0 %v1256
        %v1348 = vpop.f32.mrb[0].mxu0
        %v1349 = vadd.f32 %v1296, %v1348
        %v1350 = vpop.f32.mrb[0].mxu0
        %v1351 = vadd.f32 %v1298, %v1350
        %v1352 = vpop.f32.mrb[0].mxu0
        %v1353 = vadd.f32 %v1300, %v1352
        %v1354 = vpop.f32.mrb[0].mxu0
        %v1355 = vadd.f32 %v1302, %v1354
        %1356 = vmatprep.mubr.bf16.mxu0 0
        %1357 = vmatmul.mubr.bf16.gmra.mrb[0].mxu0 %v1259
        %v1358 = vpop.f32.mrb[0].mxu0
        %v1359 = vadd.f32 %v1306, %v1358
        %v1360 = vpop.f32.mrb[0].mxu0
        %v1361 = vadd.f32 %v1308, %v1360
        %v1362 = vpop.f32.mrb[0].mxu0
        %v1363 = vadd.f32 %v1310, %v1362
        %v1364 = vpop.f32.mrb[0].mxu0
        %v1365 = vadd.f32 %v1312, %v1364
        %1366 = vdwg.mxu0
        %1367 = vmatprep.subr.bf16.mxu0 0
        %1368 = vmatpush1.bf16.msra.mxu0 %v1148
        %1369 = vmatprep.subr.bf16.mxu0 0
        %1370 = vmatpush1.bf16.msra.mxu0 %v1151
        %1371 = vmatprep.subr.bf16.mxu0 0
        %1372 = vmatpush1.bf16.msra.mxu0 %v1154
        %1373 = vmatprep.subr.bf16.mxu0 0
        %1374 = vmatpush1.bf16.msra.mxu0 %v1157
        %1375 = vmatprep.subr.bf16.mxu0 0
        %1376 = vmatpush1.bf16.msra.mxu0 %v1160
        %1377 = vmatprep.subr.bf16.mxu0 0
        %1378 = vmatpush1.bf16.msra.mxu0 %v1163
        %1379 = vmatprep.subr.bf16.mxu0 0
        %1380 = vmatpush1.bf16.msra.mxu0 %v1166
        %1381 = vmatprep.subr.bf16.mxu0 0
        %1382 = vmatpush1.bf16.msra.mxu0 %v1169
        %1383 = vmatprep.subr.bf16.mxu0 0
        %1384 = vmatpush1.bf16.msra.mxu0 %v1172
        %1385 = vmatprep.subr.bf16.mxu0 0
        %1386 = vmatpush1.bf16.msra.mxu0 %v1175
        %1387 = vmatprep.subr.bf16.mxu0 0
        %1388 = vmatpush1.bf16.msra.mxu0 %v1178
        %1389 = vmatprep.subr.bf16.mxu0 0
        %1390 = vmatpush1.bf16.msra.mxu0 %v1181
        %1391 = vmatprep.subr.bf16.mxu0 0
        %1392 = vmatpush1.bf16.msra.mxu0 %v1184
        %1393 = vmatprep.subr.bf16.mxu0 0
        %1394 = vmatpush1.bf16.msra.mxu0 %v1187
        %1395 = vmatprep.subr.bf16.mxu0 0
        %1396 = vmatpush1.bf16.msra.mxu0 %v1190
        %1397 = vmatprep.subr.bf16.mxu0 0
        %1398 = vmatpush1.bf16.msra.mxu0 %v1193
        %1399 = vmatprep.mubr.bf16.mxu0 %v1245
        %1400 = vmatmul.mubr.bf16.gmra.mrb[0].mxu0 %v1244
        %v1401 = vpop.f32.mrb[0].mxu0
        %v1402 = vadd.f32 %v1207, %v1401
        %v1403 = vpop.f32.mrb[0].mxu0
        %v1404 = vpop.f32.mrb[0].mxu0
        %v1405 = vadd.f32 %v1212, %v1404
        %v1406 = vpop.f32.mrb[0].mxu0
        %1407 = vmatprep.mubr.bf16.mxu0 %v1248
        %1408 = vmatmul.mubr.bf16.gmra.mrb[0].mxu0 %v1247
        %v1409 = vpop.f32.mrb[0].mxu0
        %v1410 = vadd.f32 %v1217, %v1409
        %v1411 = vpop.f32.mrb[0].mxu0
        %v1412 = vpop.f32.mrb[0].mxu0
        %v1413 = vadd.f32 %v1222, %v1412
        %v1414 = vpop.f32.mrb[0].mxu0
        %1415 = vdwg.mxu0
        %1416 = vmatprep.subr.bf16.mxu0 0
        %1417 = vmatpush1.bf16.msra.mxu0 %v1196
        %1418 = vmatprep.subr.bf16.mxu0 0
        %1419 = vmatpush1.bf16.msra.mxu0 %v1199
        %1420 = vmatprep.subr.bf16.mxu0 0
        %1421 = vmatpush1.bf16.msra.mxu0 0
        %1422 = vmatprep.subr.bf16.mxu0 0
        %1423 = vmatpush1.bf16.msra.mxu0 0
        %1424 = vmatprep.subr.bf16.mxu0 0
        %1425 = vmatpush1.bf16.msra.mxu0 0
        %1426 = vmatprep.subr.bf16.mxu0 0
        %1427 = vmatpush1.bf16.msra.mxu0 0
        %1428 = vmatprep.subr.bf16.mxu0 0
        %1429 = vmatpush1.bf16.msra.mxu0 0
        %1430 = vmatprep.subr.bf16.mxu0 0
        %1431 = vmatpush1.bf16.msra.mxu0 0
        %1432 = vmatprep.subr.bf16.mxu0 0
        %1433 = vmatpush1.bf16.msra.mxu0 0
        %1434 = vmatprep.subr.bf16.mxu0 0
        %1435 = vmatpush1.bf16.msra.mxu0 0
        %1436 = vmatprep.subr.bf16.mxu0 0
        %1437 = vmatpush1.bf16.msra.mxu0 0
        %1438 = vmatprep.subr.bf16.mxu0 0
        %1439 = vmatpush1.bf16.msra.mxu0 0
        %1440 = vmatprep.subr.bf16.mxu0 0
        %1441 = vmatpush1.bf16.msra.mxu0 0
        %1442 = vmatprep.subr.bf16.mxu0 0
        %1443 = vmatpush1.bf16.msra.mxu0 0
        %1444 = vmatprep.subr.bf16.mxu0 0
        %1445 = vmatpush1.bf16.msra.mxu0 0
        %1446 = vmatprep.subr.bf16.mxu0 0
        %1447 = vmatpush1.bf16.msra.mxu0 0
        %1448 = vmatprep.mubr.bf16.mxu0 0
        %1449 = vmatmul.mubr.bf16.gmra.mrb[0].mxu0 %v1256
        %v1450 = vpop.f32.mrb[0].mxu0
        %v1451 = vadd.f32 %v1402, %v1450
        %v1452 = vpop.f32.mrb[0].mxu0
        %v1453 = vpop.f32.mrb[0].mxu0
        %v1454 = vadd.f32 %v1405, %v1453
        %v1455 = vpop.f32.mrb[0].mxu0
        %1456 = vmatprep.mubr.bf16.mxu0 0
        %1457 = vmatmul.mubr.bf16.gmra.mrb[0].mxu0 %v1259
        %v1458 = vpop.f32.mrb[0].mxu0
        %v1459 = vadd.f32 %v1410, %v1458
        %v1460 = vpop.f32.mrb[0].mxu0
        %v1461 = vpop.f32.mrb[0].mxu0
        %v1462 = vadd.f32 %v1413, %v1461
        %v1463 = vpop.f32.mrb[0].mxu0
        %1464 = vdwg.mxu0
        %s1465 = sld [smem:[#allocation3 + $0x1]]
        %vm1466 = vcmp.ge.f32.partialorder %v1349, 0.0
        %vm1467 = vcmp.ge.f32.partialorder %v1351, 0.0
        %vm1468 = vcmp.ge.f32.partialorder %v1451, 0.0
        %vm1469 = vcmp.ge.f32.partialorder %v1353, 0.0
        %vm1470 = vcmp.ge.f32.partialorder %v1355, 0.0
        %vm1471 = vcmp.ge.f32.partialorder %v1454, 0.0
        %vm1472 = vcmp.ge.f32.partialorder %v1359, 0.0
        %vm1473 = vcmp.ge.f32.partialorder %v1361, 0.0
        %vm1474 = vcmp.ge.f32.partialorder %v1459, 0.0
        %vm1475 = vcmp.ge.f32.partialorder %v1363, 0.0
        %vm1476 = vcmp.ge.f32.partialorder %v1365, 0.0
        %vm1477 = vcmp.ge.f32.partialorder %v1462, 0.0
        %v1478 = vstv %s1465
        %v1479 = vmul.f32 %v1478, %v1349
        %v1480 = vmul.f32 %v1478, %v1351
        %v1481 = vmul.f32 %v1478, %v1451
        %v1482 = vmul.f32 %v1478, %v1353
        %v1483 = vmul.f32 %v1478, %v1355
        %v1484 = vmul.f32 %v1478, %v1454
        %v1485 = vmul.f32 %v1478, %v1359
        %v1486 = vmul.f32 %v1478, %v1361
        %v1487 = vmul.f32 %v1478, %v1459
        %v1488 = vmul.f32 %v1478, %v1363
        %v1489 = vmul.f32 %v1478, %v1365
        %v1490 = vmul.f32 %v1478, %v1462
        %v1491 = vsel %vm1466, %v1349, %v1479
        %v1492 = vsel %vm1467, %v1351, %v1480
        %v1493 = vsel %vm1468, %v1451, %v1481
        %v1494 = vsel %vm1469, %v1353, %v1482
        %v1495 = vsel %vm1470, %v1355, %v1483
        %v1496 = vsel %vm1471, %v1454, %v1484
        %v1497 = vsel %vm1472, %v1359, %v1485
        %v1498 = vsel %vm1473, %v1361, %v1486
        %v1499 = vsel %vm1474, %v1459, %v1487
        %v1500 = vsel %vm1475, %v1363, %v1488
        %v1501 = vsel %vm1476, %v1365, %v1489
        %v1502 = vsel %vm1477, %v1462, %v1490
        %v1503 = vmul.f32 %v1491, %v667
        %v1504 = vmul.f32 %v1492, %v671
        %v1505 = vmul.f32 %v1493, %v675
        %v1506 = vmul.f32 %v1494, %v667
        %v1507 = vmul.f32 %v1495, %v671
        %v1508 = vmul.f32 %v1496, %v675
        %v1509 = vmul.f32 %v1497, %v667
        %v1510 = vmul.f32 %v1498, %v671
        %v1511 = vmul.f32 %v1499, %v675
        %v1512 = vmul.f32 %v1500, %v667
        %v1513 = vmul.f32 %v1501, %v671
        %v1514 = vmul.f32 %v1502, %v675
        %1527 = vrot.lane.b32.xlu0 %v1503, 19
        %v1528 = vpop.permute.xlu0 %1527
        %1529 = vrot.lane.b32.xlu0 %v1504, 19
        %v1530 = vpop.permute.xlu0 %1529
        %1531 = vrot.lane.b32.xlu0 %v1505, 19
        %v1532 = vpop.permute.xlu0 %1531
        %1533 = vrot.lane.b32.xlu0 %v1506, 19
        %v1534 = vpop.permute.xlu0 %1533
        %1535 = vrot.lane.b32.xlu0 %v1507, 19
        %v1536 = vpop.permute.xlu0 %1535
        %1537 = vrot.lane.b32.xlu0 %v1508, 19
        %v1538 = vpop.permute.xlu0 %1537
        %1539 = vrot.lane.b32.xlu0 %v1509, 19
        %v1540 = vpop.permute.xlu0 %1539
        %1541 = vrot.lane.b32.xlu0 %v1510, 19
        %v1542 = vpop.permute.xlu0 %1541
        %1543 = vrot.lane.b32.xlu0 %v1511, 19
        %v1544 = vpop.permute.xlu0 %1543
        %1545 = vrot.lane.b32.xlu0 %v1512, 19
        %v1546 = vpop.permute.xlu0 %1545
        %1547 = vrot.lane.b32.xlu0 %v1513, 19
        %v1548 = vpop.permute.xlu0 %1547
        %1549 = vrot.lane.b32.xlu0 %v1514, 19
        %v1550 = vpop.permute.xlu0 %1549
        %v1551 = vsel %vm727, %v1528, %v1530
        %v1552 = vsel %vm727, %v1530, %v1532
        %v1553 = vsel %vm727, %v1534, %v1536
        %v1554 = vsel %vm727, %v1536, %v1538
        %v1555 = vsel %vm727, %v1540, %v1542
        %v1556 = vsel %vm727, %v1542, %v1544
        %v1557 = vsel %vm727, %v1546, %v1548
        %v1558 = vsel %vm727, %v1548, %v1550
        %1571 = vst.msk [vmem:[#allocation2] sm:$0xff] %vm748, %v1528
        %1572 = vst [vmem:[#allocation2 + $0x8] sm:$0xff] %v1551
        %1573 = vst.msk [vmem:[#allocation2 + $0x10] sm:$0xff] %vm751, %v1552
        %1574 = vst.msk [vmem:[#allocation2 + $0x18] sm:$0xff] %vm748, %v1534
        %1575 = vst [vmem:[#allocation2 + $0x20] sm:$0xff] %v1553
        %1576 = vst.msk [vmem:[#allocation2 + $0x28] sm:$0xff] %vm751, %v1554
        %1577 = vst.msk [vmem:[#allocation2 + $0x30] sm:$0xff] %vm748, %v1540
        %1578 = vst [vmem:[#allocation2 + $0x38] sm:$0xff] %v1555
        %1579 = vst.msk [vmem:[#allocation2 + $0x40] sm:$0xff] %vm751, %v1556
        %1580 = vst.msk [vmem:[#allocation2 + $0x48] sm:$0xff] %vm748, %v1546
        %1581 = vst [vmem:[#allocation2 + $0x50] sm:$0xff] %v1557
        %1582 = vst.msk [vmem:[#allocation2 + $0x58] sm:$0xff] %vm751, %v1558
        %v1583 = vld [vmem:[#allocation2] sm:$0xff]
        %v1584 = vld [vmem:[#allocation2 + $0x8] sm:$0xff]
        %v1585 = vld [vmem:[#allocation2 + $0x10] sm:$0xff]
        %v1586 = vld [vmem:[#allocation2 + $0x18] sm:$0xff]
        %v1587 = vld [vmem:[#allocation2 + $0x20] sm:$0xff]
        %v1588 = vld [vmem:[#allocation2 + $0x28] sm:$0xff]
        %v1589 = vld [vmem:[#allocation2 + $0x30] sm:$0xff]
        %v1590 = vld [vmem:[#allocation2 + $0x38] sm:$0xff]
        %v1591 = vld [vmem:[#allocation2 + $0x40] sm:$0xff]
        %v1592 = vld [vmem:[#allocation2 + $0x48] sm:$0xff]
        %v1593 = vld [vmem:[#allocation2 + $0x50] sm:$0xff]
        %v1594 = vld [vmem:[#allocation2 + $0x58] sm:$0xff]
        %v1595 = vld [vmem:[%s7] sm:$0xff]
        %v1596 = vld [vmem:[%s7 + $0x8] sm:$0xf]
        %v1597 = vld [vmem:[%s7 + $0xc] sm:$0xff]
        %v1598 = vld [vmem:[%s7 + $0x14] sm:$0xf]
        %v1599 = vld [vmem:[%s7 + $0x18] sm:$0xff]
        %v1600 = vld [vmem:[%s7 + $0x20] sm:$0xf]
        %v1601 = vld [vmem:[%s7 + $0x24] sm:$0xff]
        %v1602 = vld [vmem:[%s7 + $0x2c] sm:$0xf]
        %1615 = vrot.lane.b32.xlu0 %v1583, 127
        %v1616 = vpop.permute.xlu0 %1615
        %1617 = vrot.lane.b32.xlu0 %v1584, 127
        %v1618 = vpop.permute.xlu0 %1617
        %1619 = vrot.lane.b32.xlu0 %v1585, 127
        %v1620 = vpop.permute.xlu0 %1619
        %1621 = vrot.lane.b32.xlu0 %v1586, 127
        %v1622 = vpop.permute.xlu0 %1621
        %1623 = vrot.lane.b32.xlu0 %v1587, 127
        %v1624 = vpop.permute.xlu0 %1623
        %1625 = vrot.lane.b32.xlu0 %v1588, 127
        %v1626 = vpop.permute.xlu0 %1625
        %1627 = vrot.lane.b32.xlu0 %v1589, 127
        %v1628 = vpop.permute.xlu0 %1627
        %1629 = vrot.lane.b32.xlu0 %v1590, 127
        %v1630 = vpop.permute.xlu0 %1629
        %1631 = vrot.lane.b32.xlu0 %v1591, 127
        %v1632 = vpop.permute.xlu0 %1631
        %1633 = vrot.lane.b32.xlu0 %v1592, 127
        %v1634 = vpop.permute.xlu0 %1633
        %1635 = vrot.lane.b32.xlu0 %v1593, 127
        %v1636 = vpop.permute.xlu0 %1635
        %1637 = vrot.lane.b32.xlu0 %v1594, 127
        %v1638 = vpop.permute.xlu0 %1637
        %v1639 = vsel %vm391, %v1616, %v1618
        %v1640 = vsel %vm391, %v1618, %v1620
        %v1641 = vsel %vm391, %v1622, %v1624
        %v1642 = vsel %vm391, %v1624, %v1626
        %v1643 = vsel %vm391, %v1628, %v1630
        %v1644 = vsel %vm391, %v1630, %v1632
        %v1645 = vsel %vm391, %v1634, %v1636
        %v1646 = vsel %vm391, %v1636, %v1638
        %1659 = vrot.lane.b32.xlu0 %v1583, 126
        %v1660 = vpop.permute.xlu0 %1659
        %1661 = vrot.lane.b32.xlu0 %v1584, 126
        %v1662 = vpop.permute.xlu0 %1661
        %1663 = vrot.lane.b32.xlu0 %v1585, 126
        %v1664 = vpop.permute.xlu0 %1663
        %1665 = vrot.lane.b32.xlu0 %v1586, 126
        %v1666 = vpop.permute.xlu0 %1665
        %1667 = vrot.lane.b32.xlu0 %v1587, 126
        %v1668 = vpop.permute.xlu0 %1667
        %1669 = vrot.lane.b32.xlu0 %v1588, 126
        %v1670 = vpop.permute.xlu0 %1669
        %1671 = vrot.lane.b32.xlu0 %v1589, 126
        %v1672 = vpop.permute.xlu0 %1671
        %1673 = vrot.lane.b32.xlu0 %v1590, 126
        %v1674 = vpop.permute.xlu0 %1673
        %1675 = vrot.lane.b32.xlu0 %v1591, 126
        %v1676 = vpop.permute.xlu0 %1675
        %1677 = vrot.lane.b32.xlu0 %v1592, 126
        %v1678 = vpop.permute.xlu0 %1677
        %1679 = vrot.lane.b32.xlu0 %v1593, 126
        %v1680 = vpop.permute.xlu0 %1679
        %1681 = vrot.lane.b32.xlu0 %v1594, 126
        %v1682 = vpop.permute.xlu0 %1681
        %v1683 = vsel %vm403, %v1660, %v1662
        %v1684 = vsel %vm403, %v1662, %v1664
        %v1685 = vsel %vm403, %v1666, %v1668
        %v1686 = vsel %vm403, %v1668, %v1670
        %v1687 = vsel %vm403, %v1672, %v1674
        %v1688 = vsel %vm403, %v1674, %v1676
        %v1689 = vsel %vm403, %v1678, %v1680
        %v1690 = vsel %vm403, %v1680, %v1682
        %1703 = vrot.lane.b32.xlu0 %v1583, 110
        %v1704 = vpop.permute.xlu0 %1703
        %1705 = vrot.lane.b32.xlu0 %v1584, 110
        %v1706 = vpop.permute.xlu0 %1705
        %1707 = vrot.lane.b32.xlu0 %v1585, 110
        %v1708 = vpop.permute.xlu0 %1707
        %1709 = vrot.lane.b32.xlu0 %v1586, 110
        %v1710 = vpop.permute.xlu0 %1709
        %1711 = vrot.lane.b32.xlu0 %v1587, 110
        %v1712 = vpop.permute.xlu0 %1711
        %1713 = vrot.lane.b32.xlu0 %v1588, 110
        %v1714 = vpop.permute.xlu0 %1713
        %1715 = vrot.lane.b32.xlu0 %v1589, 110
        %v1716 = vpop.permute.xlu0 %1715
        %1717 = vrot.lane.b32.xlu0 %v1590, 110
        %v1718 = vpop.permute.xlu0 %1717
        %1719 = vrot.lane.b32.xlu0 %v1591, 110
        %v1720 = vpop.permute.xlu0 %1719
        %1721 = vrot.lane.b32.xlu0 %v1592, 110
        %v1722 = vpop.permute.xlu0 %1721
        %1723 = vrot.lane.b32.xlu0 %v1593, 110
        %v1724 = vpop.permute.xlu0 %1723
        %1725 = vrot.lane.b32.xlu0 %v1594, 110
        %v1726 = vpop.permute.xlu0 %1725
        %v1727 = vsel %vm415, %v1704, %v1706
        %v1728 = vsel %vm415, %v1706, %v1708
        %v1729 = vsel %vm415, %v1710, %v1712
        %v1730 = vsel %vm415, %v1712, %v1714
        %v1731 = vsel %vm415, %v1716, %v1718
        %v1732 = vsel %vm415, %v1718, %v1720
        %v1733 = vsel %vm415, %v1722, %v1724
        %v1734 = vsel %vm415, %v1724, %v1726
        %1747 = vrot.lane.b32.xlu0 %v1583, 109
        %v1748 = vpop.permute.xlu0 %1747
        %1749 = vrot.lane.b32.xlu0 %v1584, 109
        %v1750 = vpop.permute.xlu0 %1749
        %1751 = vrot.lane.b32.xlu0 %v1585, 109
        %v1752 = vpop.permute.xlu0 %1751
        %1753 = vrot.lane.b32.xlu0 %v1586, 109
        %v1754 = vpop.permute.xlu0 %1753
        %1755 = vrot.lane.b32.xlu0 %v1587, 109
        %v1756 = vpop.permute.xlu0 %1755
        %1757 = vrot.lane.b32.xlu0 %v1588, 109
        %v1758 = vpop.permute.xlu0 %1757
        %1759 = vrot.lane.b32.xlu0 %v1589, 109
        %v1760 = vpop.permute.xlu0 %1759
        %1761 = vrot.lane.b32.xlu0 %v1590, 109
        %v1762 = vpop.permute.xlu0 %1761
        %1763 = vrot.lane.b32.xlu0 %v1591, 109
        %v1764 = vpop.permute.xlu0 %1763
        %1765 = vrot.lane.b32.xlu0 %v1592, 109
        %v1766 = vpop.permute.xlu0 %1765
        %1767 = vrot.lane.b32.xlu0 %v1593, 109
        %v1768 = vpop.permute.xlu0 %1767
        %1769 = vrot.lane.b32.xlu0 %v1594, 109
        %v1770 = vpop.permute.xlu0 %1769
        %v1771 = vsel %vm427, %v1748, %v1750
        %v1772 = vsel %vm427, %v1750, %v1752
        %v1773 = vsel %vm427, %v1754, %v1756
        %v1774 = vsel %vm427, %v1756, %v1758
        %v1775 = vsel %vm427, %v1760, %v1762
        %v1776 = vsel %vm427, %v1762, %v1764
        %v1777 = vsel %vm427, %v1766, %v1768
        %v1778 = vsel %vm427, %v1768, %v1770
        %1791 = vrot.lane.b32.xlu0 %v1583, 108
        %v1792 = vpop.permute.xlu0 %1791
        %1793 = vrot.lane.b32.xlu0 %v1584, 108
        %v1794 = vpop.permute.xlu0 %1793
        %1795 = vrot.lane.b32.xlu0 %v1585, 108
        %v1796 = vpop.permute.xlu0 %1795
        %1797 = vrot.lane.b32.xlu0 %v1586, 108
        %v1798 = vpop.permute.xlu0 %1797
        %1799 = vrot.lane.b32.xlu0 %v1587, 108
        %v1800 = vpop.permute.xlu0 %1799
        %1801 = vrot.lane.b32.xlu0 %v1588, 108
        %v1802 = vpop.permute.xlu0 %1801
        %1803 = vrot.lane.b32.xlu0 %v1589, 108
        %v1804 = vpop.permute.xlu0 %1803
        %1805 = vrot.lane.b32.xlu0 %v1590, 108
        %v1806 = vpop.permute.xlu0 %1805
        %1807 = vrot.lane.b32.xlu0 %v1591, 108
        %v1808 = vpop.permute.xlu0 %1807
        %1809 = vrot.lane.b32.xlu0 %v1592, 108
        %v1810 = vpop.permute.xlu0 %1809
        %1811 = vrot.lane.b32.xlu0 %v1593, 108
        %v1812 = vpop.permute.xlu0 %1811
        %1813 = vrot.lane.b32.xlu0 %v1594, 108
        %v1814 = vpop.permute.xlu0 %1813
        %v1815 = vsel %vm439, %v1792, %v1794
        %v1816 = vsel %vm439, %v1794, %v1796
        %v1817 = vsel %vm439, %v1798, %v1800
        %v1818 = vsel %vm439, %v1800, %v1802
        %v1819 = vsel %vm439, %v1804, %v1806
        %v1820 = vsel %vm439, %v1806, %v1808
        %v1821 = vsel %vm439, %v1810, %v1812
        %v1822 = vsel %vm439, %v1812, %v1814
        %1835 = vrot.lane.b32.xlu0 %v1583, 92
        %v1836 = vpop.permute.xlu0 %1835
        %1837 = vrot.lane.b32.xlu0 %v1584, 92
        %v1838 = vpop.permute.xlu0 %1837
        %1839 = vrot.lane.b32.xlu0 %v1585, 92
        %v1840 = vpop.permute.xlu0 %1839
        %1841 = vrot.lane.b32.xlu0 %v1586, 92
        %v1842 = vpop.permute.xlu0 %1841
        %1843 = vrot.lane.b32.xlu0 %v1587, 92
        %v1844 = vpop.permute.xlu0 %1843
        %1845 = vrot.lane.b32.xlu0 %v1588, 92
        %v1846 = vpop.permute.xlu0 %1845
        %1847 = vrot.lane.b32.xlu0 %v1589, 92
        %v1848 = vpop.permute.xlu0 %1847
        %1849 = vrot.lane.b32.xlu0 %v1590, 92
        %v1850 = vpop.permute.xlu0 %1849
        %1851 = vrot.lane.b32.xlu0 %v1591, 92
        %v1852 = vpop.permute.xlu0 %1851
        %1853 = vrot.lane.b32.xlu0 %v1592, 92
        %v1854 = vpop.permute.xlu0 %1853
        %1855 = vrot.lane.b32.xlu0 %v1593, 92
        %v1856 = vpop.permute.xlu0 %1855
        %1857 = vrot.lane.b32.xlu0 %v1594, 92
        %v1858 = vpop.permute.xlu0 %1857
        %v1859 = vsel %vm451, %v1836, %v1838
        %v1860 = vsel %vm451, %v1838, %v1840
        %v1861 = vsel %vm451, %v1842, %v1844
        %v1862 = vsel %vm451, %v1844, %v1846
        %v1863 = vsel %vm451, %v1848, %v1850
        %v1864 = vsel %vm451, %v1850, %v1852
        %v1865 = vsel %vm451, %v1854, %v1856
        %v1866 = vsel %vm451, %v1856, %v1858
        %1879 = vrot.lane.b32.xlu0 %v1583, 91
        %v1880 = vpop.permute.xlu0 %1879
        %1881 = vrot.lane.b32.xlu0 %v1584, 91
        %v1882 = vpop.permute.xlu0 %1881
        %1883 = vrot.lane.b32.xlu0 %v1585, 91
        %v1884 = vpop.permute.xlu0 %1883
        %1885 = vrot.lane.b32.xlu0 %v1586, 91
        %v1886 = vpop.permute.xlu0 %1885
        %1887 = vrot.lane.b32.xlu0 %v1587, 91
        %v1888 = vpop.permute.xlu0 %1887
        %1889 = vrot.lane.b32.xlu0 %v1588, 91
        %v1890 = vpop.permute.xlu0 %1889
        %1891 = vrot.lane.b32.xlu0 %v1589, 91
        %v1892 = vpop.permute.xlu0 %1891
        %1893 = vrot.lane.b32.xlu0 %v1590, 91
        %v1894 = vpop.permute.xlu0 %1893
        %1895 = vrot.lane.b32.xlu0 %v1591, 91
        %v1896 = vpop.permute.xlu0 %1895
        %1897 = vrot.lane.b32.xlu0 %v1592, 91
        %v1898 = vpop.permute.xlu0 %1897
        %1899 = vrot.lane.b32.xlu0 %v1593, 91
        %v1900 = vpop.permute.xlu0 %1899
        %1901 = vrot.lane.b32.xlu0 %v1594, 91
        %v1902 = vpop.permute.xlu0 %1901
        %v1903 = vsel %vm463, %v1880, %v1882
        %v1904 = vsel %vm463, %v1882, %v1884
        %v1905 = vsel %vm463, %v1886, %v1888
        %v1906 = vsel %vm463, %v1888, %v1890
        %v1907 = vsel %vm463, %v1892, %v1894
        %v1908 = vsel %vm463, %v1894, %v1896
        %v1909 = vsel %vm463, %v1898, %v1900
        %v1910 = vsel %vm463, %v1900, %v1902
        %1923 = vrot.lane.b32.xlu0 %v1583, 90
        %v1924 = vpop.permute.xlu0 %1923
        %1925 = vrot.lane.b32.xlu0 %v1584, 90
        %v1926 = vpop.permute.xlu0 %1925
        %1927 = vrot.lane.b32.xlu0 %v1585, 90
        %v1928 = vpop.permute.xlu0 %1927
        %1929 = vrot.lane.b32.xlu0 %v1586, 90
        %v1930 = vpop.permute.xlu0 %1929
        %1931 = vrot.lane.b32.xlu0 %v1587, 90
        %v1932 = vpop.permute.xlu0 %1931
        %1933 = vrot.lane.b32.xlu0 %v1588, 90
        %v1934 = vpop.permute.xlu0 %1933
        %1935 = vrot.lane.b32.xlu0 %v1589, 90
        %v1936 = vpop.permute.xlu0 %1935
        %1937 = vrot.lane.b32.xlu0 %v1590, 90
        %v1938 = vpop.permute.xlu0 %1937
        %1939 = vrot.lane.b32.xlu0 %v1591, 90
        %v1940 = vpop.permute.xlu0 %1939
        %1941 = vrot.lane.b32.xlu0 %v1592, 90
        %v1942 = vpop.permute.xlu0 %1941
        %1943 = vrot.lane.b32.xlu0 %v1593, 90
        %v1944 = vpop.permute.xlu0 %1943
        %1945 = vrot.lane.b32.xlu0 %v1594, 90
        %v1946 = vpop.permute.xlu0 %1945
        %v1947 = vsel %vm475, %v1924, %v1926
        %v1948 = vsel %vm475, %v1926, %v1928
        %v1949 = vsel %vm475, %v1930, %v1932
        %v1950 = vsel %vm475, %v1932, %v1934
        %v1951 = vsel %vm475, %v1936, %v1938
        %v1952 = vsel %vm475, %v1938, %v1940
        %v1953 = vsel %vm475, %v1942, %v1944
        %v1954 = vsel %vm475, %v1944, %v1946
        %v1967 = vpack.c.bf16 %v1586, %v1583
        %v1968 = vpack.c.bf16 %v1587, %v1584
        %v1969 = vpack.c.bf16 %v1588, %v1585
        %v1970 = vpack.c.bf16 %v1592, %v1589
        %v1971 = vpack.c.bf16 %v1593, %v1590
        %v1972 = vpack.c.bf16 %v1594, %v1591
        %v1973 = vpack.c.bf16 %v1641, %v1639
        %v1974 = vpack.c.bf16 %v1642, %v1640
        %v1975 = vpack.c.bf16 %v1626, %v1620
        %v1976 = vpack.c.bf16 %v1645, %v1643
        %v1977 = vpack.c.bf16 %v1646, %v1644
        %v1978 = vpack.c.bf16 %v1638, %v1632
        %v1979 = vpack.c.bf16 %v1685, %v1683
        %v1980 = vpack.c.bf16 %v1686, %v1684
        %v1981 = vpack.c.bf16 %v1670, %v1664
        %v1982 = vpack.c.bf16 %v1689, %v1687
        %v1983 = vpack.c.bf16 %v1690, %v1688
        %v1984 = vpack.c.bf16 %v1682, %v1676
        %v1985 = vpack.c.bf16 %v1729, %v1727
        %v1986 = vpack.c.bf16 %v1730, %v1728
        %v1987 = vpack.c.bf16 %v1714, %v1708
        %v1988 = vpack.c.bf16 %v1733, %v1731
        %v1989 = vpack.c.bf16 %v1734, %v1732
        %v1990 = vpack.c.bf16 %v1726, %v1720
        %v1991 = vpack.c.bf16 %v1773, %v1771
        %v1992 = vpack.c.bf16 %v1774, %v1772
        %v1993 = vpack.c.bf16 %v1758, %v1752
        %v1994 = vpack.c.bf16 %v1777, %v1775
        %v1995 = vpack.c.bf16 %v1778, %v1776
        %v1996 = vpack.c.bf16 %v1770, %v1764
        %v1997 = vpack.c.bf16 %v1817, %v1815
        %v1998 = vpack.c.bf16 %v1818, %v1816
        %v1999 = vpack.c.bf16 %v1802, %v1796
        %v2000 = vpack.c.bf16 %v1821, %v1819
        %v2001 = vpack.c.bf16 %v1822, %v1820
        %v2002 = vpack.c.bf16 %v1814, %v1808
        %v2003 = vpack.c.bf16 %v1861, %v1859
        %v2004 = vpack.c.bf16 %v1862, %v1860
        %v2005 = vpack.c.bf16 %v1846, %v1840
        %v2006 = vpack.c.bf16 %v1865, %v1863
        %v2007 = vpack.c.bf16 %v1866, %v1864
        %v2008 = vpack.c.bf16 %v1858, %v1852
        %v2009 = vpack.c.bf16 %v1905, %v1903
        %v2010 = vpack.c.bf16 %v1906, %v1904
        %v2011 = vpack.c.bf16 %v1890, %v1884
        %v2012 = vpack.c.bf16 %v1909, %v1907
        %v2013 = vpack.c.bf16 %v1910, %v1908
        %v2014 = vpack.c.bf16 %v1902, %v1896
        %v2015 = vpack.c.bf16 %v1949, %v1947
        %v2016 = vpack.c.bf16 %v1950, %v1948
        %v2017 = vpack.c.bf16 %v1934, %v1928
        %v2018 = vpack.c.bf16 %v1953, %v1951
        %v2019 = vpack.c.bf16 %v1954, %v1952
        %v2020 = vpack.c.bf16 %v1946, %v1940
        %v2021 = vld [vmem:[%s8] sm:$0xff]
        %v2022 = vld [vmem:[%s8 + $0x8] sm:$0xff]
        %v2023 = vld [vmem:[%s8 + $0x10] sm:$0xff]
        %v2024 = vld [vmem:[%s8 + $0x18] sm:$0xff]
        %2026 = vset.pattern.permute.xlu0 0
        %2027 = vperm.xlu0 %2026, %v2021
        %v2028 = vpop.permute.xlu0 %2027
        %2031 = vset.pattern.permute.xlu0 0
        %2032 = vperm.xlu0 %2031, %v2022
        %v2033 = vpop.permute.xlu0 %2032
        %2036 = vset.pattern.permute.xlu0 0
        %2037 = vperm.xlu0 %2036, %v2023
        %v2038 = vpop.permute.xlu0 %2037
        %2041 = vset.pattern.permute.xlu0 0
        %2042 = vperm.xlu0 %2041, %v2024
        %v2043 = vpop.permute.xlu0 %2042
        %v2053 = vunpack.c.l.b16 %v1595
        %v2054 = vunpack.c.h.b16 %v1595
        %v2055 = vunpack.c.l.b16 %v1596
        %v2056 = vunpack.c.l.b16 %v1597
        %v2057 = vunpack.c.h.b16 %v1597
        %v2058 = vunpack.c.l.b16 %v1598
        %v2059 = vunpack.c.l.b16 %v1599
        %v2060 = vunpack.c.h.b16 %v1599
        %v2061 = vunpack.c.l.b16 %v1600
        %v2062 = vunpack.c.l.b16 %v1601
        %v2063 = vunpack.c.h.b16 %v1601
        %v2064 = vunpack.c.l.b16 %v1602
        %v2065 = vpack.c.b16 %v2056, %v2053
        %v2066 = vpack.c.b16 %v2057, %v2054
        %v2067 = vpack.c.b16 %v2058, %v2055
        %v2068 = vpack.c.b16 %v2062, %v2059
        %v2069 = vpack.c.b16 %v2063, %v2060
        %v2070 = vpack.c.b16 %v2064, %v2061
        %v2076 = vsel %vm1254, %v2067, 0
        %v2079 = vsel %vm1254, %v2070, 0
        %2081 = vmatprep.subr.bf16.mxu0 %v1968
        %2082 = vmatpush1.bf16.msra.mxu0 %v1967
        %2083 = vmatprep.subr.bf16.mxu0 %v1971
        %2084 = vmatpush1.bf16.msra.mxu0 %v1970
        %2085 = vmatprep.subr.bf16.mxu0 %v1974
        %2086 = vmatpush1.bf16.msra.mxu0 %v1973
        %2087 = vmatprep.subr.bf16.mxu0 %v1977
        %2088 = vmatpush1.bf16.msra.mxu0 %v1976
        %2089 = vmatprep.subr.bf16.mxu0 %v1980
        %2090 = vmatpush1.bf16.msra.mxu0 %v1979
        %2091 = vmatprep.subr.bf16.mxu0 %v1983
        %2092 = vmatpush1.bf16.msra.mxu0 %v1982
        %2093 = vmatprep.subr.bf16.mxu0 %v1986
        %2094 = vmatpush1.bf16.msra.mxu0 %v1985
        %2095 = vmatprep.subr.bf16.mxu0 %v1989
        %2096 = vmatpush1.bf16.msra.mxu0 %v1988
        %2097 = vmatprep.subr.bf16.mxu0 %v1992
        %2098 = vmatpush1.bf16.msra.mxu0 %v1991
        %2099 = vmatprep.subr.bf16.mxu0 %v1995
        %2100 = vmatpush1.bf16.msra.mxu0 %v1994
        %2101 = vmatprep.subr.bf16.mxu0 %v1998
        %2102 = vmatpush1.bf16.msra.mxu0 %v1997
        %2103 = vmatprep.subr.bf16.mxu0 %v2001
        %2104 = vmatpush1.bf16.msra.mxu0 %v2000
        %2105 = vmatprep.subr.bf16.mxu0 %v2004
        %2106 = vmatpush1.bf16.msra.mxu0 %v2003
        %2107 = vmatprep.subr.bf16.mxu0 %v2007
        %2108 = vmatpush1.bf16.msra.mxu0 %v2006
        %2109 = vmatprep.subr.bf16.mxu0 %v2010
        %2110 = vmatpush1.bf16.msra.mxu0 %v2009
        %2111 = vmatprep.subr.bf16.mxu0 %v2013
        %2112 = vmatpush1.bf16.msra.mxu0 %v2012
        %2113 = vmatprep.mubr.bf16.mxu0 %v2066
        %2114 = vmatmul.mubr.bf16.gmra.mrb[0].mxu0 %v2065
        %v2115 = vpop.f32.mrb[0].mxu0
        %v2116 = vadd.f32 %v2028, %v2115
        %v2117 = vpop.f32.mrb[0].mxu0
        %v2118 = vadd.f32 %v2028, %v2117
        %v2119 = vpop.f32.mrb[0].mxu0
        %v2120 = vadd.f32 %v2033, %v2119
        %v2121 = vpop.f32.mrb[0].mxu0
        %v2122 = vadd.f32 %v2033, %v2121
        %2123 = vmatprep.mubr.bf16.mxu0 %v2069
        %2124 = vmatmul.mubr.bf16.gmra.mrb[0].mxu0 %v2068
        %v2125 = vpop.f32.mrb[0].mxu0
        %v2126 = vadd.f32 %v2038, %v2125
        %v2127 = vpop.f32.mrb[0].mxu0
        %v2128 = vadd.f32 %v2038, %v2127
        %v2129 = vpop.f32.mrb[0].mxu0
        %v2130 = vadd.f32 %v2043, %v2129
        %v2131 = vpop.f32.mrb[0].mxu0
        %v2132 = vadd.f32 %v2043, %v2131
        %2133 = vdwg.mxu0
        %2134 = vmatprep.subr.bf16.mxu0 %v2016
        %2135 = vmatpush1.bf16.msra.mxu0 %v2015
        %2136 = vmatprep.subr.bf16.mxu0 %v2019
        %2137 = vmatpush1.bf16.msra.mxu0 %v2018
        %2138 = vmatprep.subr.bf16.mxu0 0
        %2139 = vmatpush1.bf16.msra.mxu0 0
        %2140 = vmatprep.subr.bf16.mxu0 0
        %2141 = vmatpush1.bf16.msra.mxu0 0
        %2142 = vmatprep.subr.bf16.mxu0 0
        %2143 = vmatpush1.bf16.msra.mxu0 0
        %2144 = vmatprep.subr.bf16.mxu0 0
        %2145 = vmatpush1.bf16.msra.mxu0 0
        %2146 = vmatprep.subr.bf16.mxu0 0
        %2147 = vmatpush1.bf16.msra.mxu0 0
        %2148 = vmatprep.subr.bf16.mxu0 0
        %2149 = vmatpush1.bf16.msra.mxu0 0
        %2150 = vmatprep.subr.bf16.mxu0 0
        %2151 = vmatpush1.bf16.msra.mxu0 0
        %2152 = vmatprep.subr.bf16.mxu0 0
        %2153 = vmatpush1.bf16.msra.mxu0 0
        %2154 = vmatprep.subr.bf16.mxu0 0
        %2155 = vmatpush1.bf16.msra.mxu0 0
        %2156 = vmatprep.subr.bf16.mxu0 0
        %2157 = vmatpush1.bf16.msra.mxu0 0
        %2158 = vmatprep.subr.bf16.mxu0 0
        %2159 = vmatpush1.bf16.msra.mxu0 0
        %2160 = vmatprep.subr.bf16.mxu0 0
        %2161 = vmatpush1.bf16.msra.mxu0 0
        %2162 = vmatprep.subr.bf16.mxu0 0
        %2163 = vmatpush1.bf16.msra.mxu0 0
        %2164 = vmatprep.subr.bf16.mxu0 0
        %2165 = vmatpush1.bf16.msra.mxu0 0
        %2166 = vmatprep.mubr.bf16.mxu0 0
        %2167 = vmatmul.mubr.bf16.gmra.mrb[0].mxu0 %v2076
        %v2168 = vpop.f32.mrb[0].mxu0
        %v2169 = vadd.f32 %v2116, %v2168
        %v2170 = vpop.f32.mrb[0].mxu0
        %v2171 = vadd.f32 %v2118, %v2170
        %v2172 = vpop.f32.mrb[0].mxu0
        %v2173 = vadd.f32 %v2120, %v2172
        %v2174 = vpop.f32.mrb[0].mxu0
        %v2175 = vadd.f32 %v2122, %v2174
        %2176 = vmatprep.mubr.bf16.mxu0 0
        %2177 = vmatmul.mubr.bf16.gmra.mrb[0].mxu0 %v2079
        %v2178 = vpop.f32.mrb[0].mxu0
        %v2179 = vadd.f32 %v2126, %v2178
        %v2180 = vpop.f32.mrb[0].mxu0
        %v2181 = vadd.f32 %v2128, %v2180
        %v2182 = vpop.f32.mrb[0].mxu0
        %v2183 = vadd.f32 %v2130, %v2182
        %v2184 = vpop.f32.mrb[0].mxu0
        %v2185 = vadd.f32 %v2132, %v2184
        %2186 = vdwg.mxu0
        %2187 = vmatprep.subr.bf16.mxu0 0
        %2188 = vmatpush1.bf16.msra.mxu0 %v1969
        %2189 = vmatprep.subr.bf16.mxu0 0
        %2190 = vmatpush1.bf16.msra.mxu0 %v1972
        %2191 = vmatprep.subr.bf16.mxu0 0
        %2192 = vmatpush1.bf16.msra.mxu0 %v1975
        %2193 = vmatprep.subr.bf16.mxu0 0
        %2194 = vmatpush1.bf16.msra.mxu0 %v1978
        %2195 = vmatprep.subr.bf16.mxu0 0
        %2196 = vmatpush1.bf16.msra.mxu0 %v1981
        %2197 = vmatprep.subr.bf16.mxu0 0
        %2198 = vmatpush1.bf16.msra.mxu0 %v1984
        %2199 = vmatprep.subr.bf16.mxu0 0
        %2200 = vmatpush1.bf16.msra.mxu0 %v1987
        %2201 = vmatprep.subr.bf16.mxu0 0
        %2202 = vmatpush1.bf16.msra.mxu0 %v1990
        %2203 = vmatprep.subr.bf16.mxu0 0
        %2204 = vmatpush1.bf16.msra.mxu0 %v1993
        %2205 = vmatprep.subr.bf16.mxu0 0
        %2206 = vmatpush1.bf16.msra.mxu0 %v1996
        %2207 = vmatprep.subr.bf16.mxu0 0
        %2208 = vmatpush1.bf16.msra.mxu0 %v1999
        %2209 = vmatprep.subr.bf16.mxu0 0
        %2210 = vmatpush1.bf16.msra.mxu0 %v2002
        %2211 = vmatprep.subr.bf16.mxu0 0
        %2212 = vmatpush1.bf16.msra.mxu0 %v2005
        %2213 = vmatprep.subr.bf16.mxu0 0
        %2214 = vmatpush1.bf16.msra.mxu0 %v2008
        %2215 = vmatprep.subr.bf16.mxu0 0
        %2216 = vmatpush1.bf16.msra.mxu0 %v2011
        %2217 = vmatprep.subr.bf16.mxu0 0
        %2218 = vmatpush1.bf16.msra.mxu0 %v2014
        %2219 = vmatprep.mubr.bf16.mxu0 %v2066
        %2220 = vmatmul.mubr.bf16.gmra.mrb[0].mxu0 %v2065
        %v2221 = vpop.f32.mrb[0].mxu0
        %v2222 = vadd.f32 %v2028, %v2221
        %v2223 = vpop.f32.mrb[0].mxu0
        %v2224 = vpop.f32.mrb[0].mxu0
        %v2225 = vadd.f32 %v2033, %v2224
        %v2226 = vpop.f32.mrb[0].mxu0
        %2227 = vmatprep.mubr.bf16.mxu0 %v2069
        %2228 = vmatmul.mubr.bf16.gmra.mrb[0].mxu0 %v2068
        %v2229 = vpop.f32.mrb[0].mxu0
        %v2230 = vadd.f32 %v2038, %v2229
        %v2231 = vpop.f32.mrb[0].mxu0
        %v2232 = vpop.f32.mrb[0].mxu0
        %v2233 = vadd.f32 %v2043, %v2232
        %v2234 = vpop.f32.mrb[0].mxu0
        %2235 = vdwg.mxu0
        %2236 = vmatprep.subr.bf16.mxu0 0
        %2237 = vmatpush1.bf16.msra.mxu0 %v2017
        %2238 = vmatprep.subr.bf16.mxu0 0
        %2239 = vmatpush1.bf16.msra.mxu0 %v2020
        %2240 = vmatprep.subr.bf16.mxu0 0
        %2241 = vmatpush1.bf16.msra.mxu0 0
        %2242 = vmatprep.subr.bf16.mxu0 0
        %2243 = vmatpush1.bf16.msra.mxu0 0
        %2244 = vmatprep.subr.bf16.mxu0 0
        %2245 = vmatpush1.bf16.msra.mxu0 0
        %2246 = vmatprep.subr.bf16.mxu0 0
        %2247 = vmatpush1.bf16.msra.mxu0 0
        %2248 = vmatprep.subr.bf16.mxu0 0
        %2249 = vmatpush1.bf16.msra.mxu0 0
        %2250 = vmatprep.subr.bf16.mxu0 0
        %2251 = vmatpush1.bf16.msra.mxu0 0
        %2252 = vmatprep.subr.bf16.mxu0 0
        %2253 = vmatpush1.bf16.msra.mxu0 0
        %2254 = vmatprep.subr.bf16.mxu0 0
        %2255 = vmatpush1.bf16.msra.mxu0 0
        %2256 = vmatprep.subr.bf16.mxu0 0
        %2257 = vmatpush1.bf16.msra.mxu0 0
        %2258 = vmatprep.subr.bf16.mxu0 0
        %2259 = vmatpush1.bf16.msra.mxu0 0
        %2260 = vmatprep.subr.bf16.mxu0 0
        %2261 = vmatpush1.bf16.msra.mxu0 0
        %2262 = vmatprep.subr.bf16.mxu0 0
        %2263 = vmatpush1.bf16.msra.mxu0 0
        %2264 = vmatprep.subr.bf16.mxu0 0
        %2265 = vmatpush1.bf16.msra.mxu0 0
        %2266 = vmatprep.subr.bf16.mxu0 0
        %2267 = vmatpush1.bf16.msra.mxu0 0
        %2268 = vmatprep.mubr.bf16.mxu0 0
        %2269 = vmatmul.mubr.bf16.gmra.mrb[0].mxu0 %v2076
        %v2270 = vpop.f32.mrb[0].mxu0
        %v2271 = vadd.f32 %v2222, %v2270
        %v2272 = vpop.f32.mrb[0].mxu0
        %v2273 = vpop.f32.mrb[0].mxu0
        %v2274 = vadd.f32 %v2225, %v2273
        %v2275 = vpop.f32.mrb[0].mxu0
        %2276 = vmatprep.mubr.bf16.mxu0 0
        %2277 = vmatmul.mubr.bf16.gmra.mrb[0].mxu0 %v2079
        %v2278 = vpop.f32.mrb[0].mxu0
        %v2279 = vadd.f32 %v2230, %v2278
        %v2280 = vpop.f32.mrb[0].mxu0
        %v2281 = vpop.f32.mrb[0].mxu0
        %v2282 = vadd.f32 %v2233, %v2281
        %v2283 = vpop.f32.mrb[0].mxu0
        %2284 = vdwg.mxu0
        %v2285 = vadd.f32 %v2169, %v950
        %v2286 = vadd.f32 %v2171, %v951
        %v2287 = vadd.f32 %v2271, %v931
        %v2288 = vadd.f32 %v2173, %v952
        %v2289 = vadd.f32 %v2175, %v953
        %v2290 = vadd.f32 %v2274, %v937
        %v2291 = vadd.f32 %v2179, %v954
        %v2292 = vadd.f32 %v2181, %v955
        %v2293 = vadd.f32 %v2279, %v943
        %v2294 = vadd.f32 %v2183, %v956
        %v2295 = vadd.f32 %v2185, %v957
        %v2296 = vadd.f32 %v2282, %v949
        %v2297 = vmul.f32 %v2285, %v667
        %v2298 = vmul.f32 %v2286, %v671
        %v2299 = vmul.f32 %v2287, %v675
        %v2300 = vmul.f32 %v2288, %v667
        %v2301 = vmul.f32 %v2289, %v671
        %v2302 = vmul.f32 %v2290, %v675
        %v2303 = vmul.f32 %v2291, %v667
        %v2304 = vmul.f32 %v2292, %v671
        %v2305 = vmul.f32 %v2293, %v675
        %v2306 = vmul.f32 %v2294, %v667
        %v2307 = vmul.f32 %v2295, %v671
        %v2308 = vmul.f32 %v2296, %v675
        %2321 = vrot.lane.b32.xlu0 %v2297, 19
        %v2322 = vpop.permute.xlu0 %2321
        %2323 = vrot.lane.b32.xlu0 %v2298, 19
        %v2324 = vpop.permute.xlu0 %2323
        %2325 = vrot.lane.b32.xlu0 %v2299, 19
        %v2326 = vpop.permute.xlu0 %2325
        %2327 = vrot.lane.b32.xlu0 %v2300, 19
        %v2328 = vpop.permute.xlu0 %2327
        %2329 = vrot.lane.b32.xlu0 %v2301, 19
        %v2330 = vpop.permute.xlu0 %2329
        %2331 = vrot.lane.b32.xlu0 %v2302, 19
        %v2332 = vpop.permute.xlu0 %2331
        %2333 = vrot.lane.b32.xlu0 %v2303, 19
        %v2334 = vpop.permute.xlu0 %2333
        %2335 = vrot.lane.b32.xlu0 %v2304, 19
        %v2336 = vpop.permute.xlu0 %2335
        %2337 = vrot.lane.b32.xlu0 %v2305, 19
        %v2338 = vpop.permute.xlu0 %2337
        %2339 = vrot.lane.b32.xlu0 %v2306, 19
        %v2340 = vpop.permute.xlu0 %2339
        %2341 = vrot.lane.b32.xlu0 %v2307, 19
        %v2342 = vpop.permute.xlu0 %2341
        %2343 = vrot.lane.b32.xlu0 %v2308, 19
        %v2344 = vpop.permute.xlu0 %2343
        %v2345 = vsel %vm727, %v2322, %v2324
        %v2346 = vsel %vm727, %v2324, %v2326
        %v2347 = vsel %vm727, %v2328, %v2330
        %v2348 = vsel %vm727, %v2330, %v2332
        %v2349 = vsel %vm727, %v2334, %v2336
        %v2350 = vsel %vm727, %v2336, %v2338
        %v2351 = vsel %vm727, %v2340, %v2342
        %v2352 = vsel %vm727, %v2342, %v2344
        %2365 = vst.msk [vmem:[#allocation2] sm:$0xff] %vm748, %v2322
        %2366 = vst [vmem:[#allocation2 + $0x8] sm:$0xff] %v2345
        %2367 = vst.msk [vmem:[#allocation2 + $0x10] sm:$0xff] %vm751, %v2346
        %2368 = vst.msk [vmem:[#allocation2 + $0x18] sm:$0xff] %vm748, %v2328
        %2369 = vst [vmem:[#allocation2 + $0x20] sm:$0xff] %v2347
        %2370 = vst.msk [vmem:[#allocation2 + $0x28] sm:$0xff] %vm751, %v2348
        %2371 = vst.msk [vmem:[#allocation2 + $0x30] sm:$0xff] %vm748, %v2334
        %2372 = vst [vmem:[#allocation2 + $0x38] sm:$0xff] %v2349
        %2373 = vst.msk [vmem:[#allocation2 + $0x40] sm:$0xff] %vm751, %v2350
        %2374 = vst.msk [vmem:[#allocation2 + $0x48] sm:$0xff] %vm748, %v2340
        %2375 = vst [vmem:[#allocation2 + $0x50] sm:$0xff] %v2351
        %2376 = vst.msk [vmem:[#allocation2 + $0x58] sm:$0xff] %vm751, %v2352
        %v2377 = vld [vmem:[#allocation2] sm:$0xff]
        %v2378 = vld [vmem:[#allocation2 + $0x8] sm:$0xff]
        %v2379 = vld [vmem:[#allocation2 + $0x10] sm:$0xff]
        %v2380 = vld [vmem:[#allocation2 + $0x18] sm:$0xff]
        %v2381 = vld [vmem:[#allocation2 + $0x20] sm:$0xff]
        %v2382 = vld [vmem:[#allocation2 + $0x28] sm:$0xff]
        %v2383 = vld [vmem:[#allocation2 + $0x30] sm:$0xff]
        %v2384 = vld [vmem:[#allocation2 + $0x38] sm:$0xff]
        %v2385 = vld [vmem:[#allocation2 + $0x40] sm:$0xff]
        %v2386 = vld [vmem:[#allocation2 + $0x48] sm:$0xff]
        %v2387 = vld [vmem:[#allocation2 + $0x50] sm:$0xff]
        %v2388 = vld [vmem:[#allocation2 + $0x58] sm:$0xff]
        %s2389 = scalar_lea.vmem %s5, 48
        %v2390 = vld [vmem:[%s2389] sm:$0xff]
        %v2391 = vld [vmem:[%s2389 + $0x8] sm:$0xf]
        %v2392 = vld [vmem:[%s2389 + $0xc] sm:$0xff]
        %v2393 = vld [vmem:[%s2389 + $0x14] sm:$0xf]
        %v2394 = vld [vmem:[%s2389 + $0x18] sm:$0xff]
        %v2395 = vld [vmem:[%s2389 + $0x20] sm:$0xf]
        %v2396 = vld [vmem:[%s2389 + $0x24] sm:$0xff]
        %v2397 = vld [vmem:[%s2389 + $0x2c] sm:$0xf]
        %2410 = vrot.lane.b32.xlu0 %v2377, 127
        %v2411 = vpop.permute.xlu0 %2410
        %2412 = vrot.lane.b32.xlu0 %v2378, 127
        %v2413 = vpop.permute.xlu0 %2412
        %2414 = vrot.lane.b32.xlu0 %v2379, 127
        %v2415 = vpop.permute.xlu0 %2414
        %2416 = vrot.lane.b32.xlu0 %v2380, 127
        %v2417 = vpop.permute.xlu0 %2416
        %2418 = vrot.lane.b32.xlu0 %v2381, 127
        %v2419 = vpop.permute.xlu0 %2418
        %2420 = vrot.lane.b32.xlu0 %v2382, 127
        %v2421 = vpop.permute.xlu0 %2420
        %2422 = vrot.lane.b32.xlu0 %v2383, 127
        %v2423 = vpop.permute.xlu0 %2422
        %2424 = vrot.lane.b32.xlu0 %v2384, 127
        %v2425 = vpop.permute.xlu0 %2424
        %2426 = vrot.lane.b32.xlu0 %v2385, 127
        %v2427 = vpop.permute.xlu0 %2426
        %2428 = vrot.lane.b32.xlu0 %v2386, 127
        %v2429 = vpop.permute.xlu0 %2428
        %2430 = vrot.lane.b32.xlu0 %v2387, 127
        %v2431 = vpop.permute.xlu0 %2430
        %2432 = vrot.lane.b32.xlu0 %v2388, 127
        %v2433 = vpop.permute.xlu0 %2432
        %v2434 = vsel %vm391, %v2411, %v2413
        %v2435 = vsel %vm391, %v2413, %v2415
        %v2436 = vsel %vm391, %v2417, %v2419
        %v2437 = vsel %vm391, %v2419, %v2421
        %v2438 = vsel %vm391, %v2423, %v2425
        %v2439 = vsel %vm391, %v2425, %v2427
        %v2440 = vsel %vm391, %v2429, %v2431
        %v2441 = vsel %vm391, %v2431, %v2433
        %2454 = vrot.lane.b32.xlu0 %v2377, 126
        %v2455 = vpop.permute.xlu0 %2454
        %2456 = vrot.lane.b32.xlu0 %v2378, 126
        %v2457 = vpop.permute.xlu0 %2456
        %2458 = vrot.lane.b32.xlu0 %v2379, 126
        %v2459 = vpop.permute.xlu0 %2458
        %2460 = vrot.lane.b32.xlu0 %v2380, 126
        %v2461 = vpop.permute.xlu0 %2460
        %2462 = vrot.lane.b32.xlu0 %v2381, 126
        %v2463 = vpop.permute.xlu0 %2462
        %2464 = vrot.lane.b32.xlu0 %v2382, 126
        %v2465 = vpop.permute.xlu0 %2464
        %2466 = vrot.lane.b32.xlu0 %v2383, 126
        %v2467 = vpop.permute.xlu0 %2466
        %2468 = vrot.lane.b32.xlu0 %v2384, 126
        %v2469 = vpop.permute.xlu0 %2468
        %2470 = vrot.lane.b32.xlu0 %v2385, 126
        %v2471 = vpop.permute.xlu0 %2470
        %2472 = vrot.lane.b32.xlu0 %v2386, 126
        %v2473 = vpop.permute.xlu0 %2472
        %2474 = vrot.lane.b32.xlu0 %v2387, 126
        %v2475 = vpop.permute.xlu0 %2474
        %2476 = vrot.lane.b32.xlu0 %v2388, 126
        %v2477 = vpop.permute.xlu0 %2476
        %v2478 = vsel %vm403, %v2455, %v2457
        %v2479 = vsel %vm403, %v2457, %v2459
        %v2480 = vsel %vm403, %v2461, %v2463
        %v2481 = vsel %vm403, %v2463, %v2465
        %v2482 = vsel %vm403, %v2467, %v2469
        %v2483 = vsel %vm403, %v2469, %v2471
        %v2484 = vsel %vm403, %v2473, %v2475
        %v2485 = vsel %vm403, %v2475, %v2477
        %2498 = vrot.lane.b32.xlu0 %v2377, 110
        %v2499 = vpop.permute.xlu0 %2498
        %2500 = vrot.lane.b32.xlu0 %v2378, 110
        %v2501 = vpop.permute.xlu0 %2500
        %2502 = vrot.lane.b32.xlu0 %v2379, 110
        %v2503 = vpop.permute.xlu0 %2502
        %2504 = vrot.lane.b32.xlu0 %v2380, 110
        %v2505 = vpop.permute.xlu0 %2504
        %2506 = vrot.lane.b32.xlu0 %v2381, 110
        %v2507 = vpop.permute.xlu0 %2506
        %2508 = vrot.lane.b32.xlu0 %v2382, 110
        %v2509 = vpop.permute.xlu0 %2508
        %2510 = vrot.lane.b32.xlu0 %v2383, 110
        %v2511 = vpop.permute.xlu0 %2510
        %2512 = vrot.lane.b32.xlu0 %v2384, 110
        %v2513 = vpop.permute.xlu0 %2512
        %2514 = vrot.lane.b32.xlu0 %v2385, 110
        %v2515 = vpop.permute.xlu0 %2514
        %2516 = vrot.lane.b32.xlu0 %v2386, 110
        %v2517 = vpop.permute.xlu0 %2516
        %2518 = vrot.lane.b32.xlu0 %v2387, 110
        %v2519 = vpop.permute.xlu0 %2518
        %2520 = vrot.lane.b32.xlu0 %v2388, 110
        %v2521 = vpop.permute.xlu0 %2520
        %v2522 = vsel %vm415, %v2499, %v2501
        %v2523 = vsel %vm415, %v2501, %v2503
        %v2524 = vsel %vm415, %v2505, %v2507
        %v2525 = vsel %vm415, %v2507, %v2509
        %v2526 = vsel %vm415, %v2511, %v2513
        %v2527 = vsel %vm415, %v2513, %v2515
        %v2528 = vsel %vm415, %v2517, %v2519
        %v2529 = vsel %vm415, %v2519, %v2521
        %2542 = vrot.lane.b32.xlu0 %v2377, 109
        %v2543 = vpop.permute.xlu0 %2542
        %2544 = vrot.lane.b32.xlu0 %v2378, 109
        %v2545 = vpop.permute.xlu0 %2544
        %2546 = vrot.lane.b32.xlu0 %v2379, 109
        %v2547 = vpop.permute.xlu0 %2546
        %2548 = vrot.lane.b32.xlu0 %v2380, 109
        %v2549 = vpop.permute.xlu0 %2548
        %2550 = vrot.lane.b32.xlu0 %v2381, 109
        %v2551 = vpop.permute.xlu0 %2550
        %2552 = vrot.lane.b32.xlu0 %v2382, 109
        %v2553 = vpop.permute.xlu0 %2552
        %2554 = vrot.lane.b32.xlu0 %v2383, 109
        %v2555 = vpop.permute.xlu0 %2554
        %2556 = vrot.lane.b32.xlu0 %v2384, 109
        %v2557 = vpop.permute.xlu0 %2556
        %2558 = vrot.lane.b32.xlu0 %v2385, 109
        %v2559 = vpop.permute.xlu0 %2558
        %2560 = vrot.lane.b32.xlu0 %v2386, 109
        %v2561 = vpop.permute.xlu0 %2560
        %2562 = vrot.lane.b32.xlu0 %v2387, 109
        %v2563 = vpop.permute.xlu0 %2562
        %2564 = vrot.lane.b32.xlu0 %v2388, 109
        %v2565 = vpop.permute.xlu0 %2564
        %v2566 = vsel %vm427, %v2543, %v2545
        %v2567 = vsel %vm427, %v2545, %v2547
        %v2568 = vsel %vm427, %v2549, %v2551
        %v2569 = vsel %vm427, %v2551, %v2553
        %v2570 = vsel %vm427, %v2555, %v2557
        %v2571 = vsel %vm427, %v2557, %v2559
        %v2572 = vsel %vm427, %v2561, %v2563
        %v2573 = vsel %vm427, %v2563, %v2565
        %2586 = vrot.lane.b32.xlu0 %v2377, 108
        %v2587 = vpop.permute.xlu0 %2586
        %2588 = vrot.lane.b32.xlu0 %v2378, 108
        %v2589 = vpop.permute.xlu0 %2588
        %2590 = vrot.lane.b32.xlu0 %v2379, 108
        %v2591 = vpop.permute.xlu0 %2590
        %2592 = vrot.lane.b32.xlu0 %v2380, 108
        %v2593 = vpop.permute.xlu0 %2592
        %2594 = vrot.lane.b32.xlu0 %v2381, 108
        %v2595 = vpop.permute.xlu0 %2594
        %2596 = vrot.lane.b32.xlu0 %v2382, 108
        %v2597 = vpop.permute.xlu0 %2596
        %2598 = vrot.lane.b32.xlu0 %v2383, 108
        %v2599 = vpop.permute.xlu0 %2598
        %2600 = vrot.lane.b32.xlu0 %v2384, 108
        %v2601 = vpop.permute.xlu0 %2600
        %2602 = vrot.lane.b32.xlu0 %v2385, 108
        %v2603 = vpop.permute.xlu0 %2602
        %2604 = vrot.lane.b32.xlu0 %v2386, 108
        %v2605 = vpop.permute.xlu0 %2604
        %2606 = vrot.lane.b32.xlu0 %v2387, 108
        %v2607 = vpop.permute.xlu0 %2606
        %2608 = vrot.lane.b32.xlu0 %v2388, 108
        %v2609 = vpop.permute.xlu0 %2608
        %v2610 = vsel %vm439, %v2587, %v2589
        %v2611 = vsel %vm439, %v2589, %v2591
        %v2612 = vsel %vm439, %v2593, %v2595
        %v2613 = vsel %vm439, %v2595, %v2597
        %v2614 = vsel %vm439, %v2599, %v2601
        %v2615 = vsel %vm439, %v2601, %v2603
        %v2616 = vsel %vm439, %v2605, %v2607
        %v2617 = vsel %vm439, %v2607, %v2609
        %2630 = vrot.lane.b32.xlu0 %v2377, 92
        %v2631 = vpop.permute.xlu0 %2630
        %2632 = vrot.lane.b32.xlu0 %v2378, 92
        %v2633 = vpop.permute.xlu0 %2632
        %2634 = vrot.lane.b32.xlu0 %v2379, 92
        %v2635 = vpop.permute.xlu0 %2634
        %2636 = vrot.lane.b32.xlu0 %v2380, 92
        %v2637 = vpop.permute.xlu0 %2636
        %2638 = vrot.lane.b32.xlu0 %v2381, 92
        %v2639 = vpop.permute.xlu0 %2638
        %2640 = vrot.lane.b32.xlu0 %v2382, 92
        %v2641 = vpop.permute.xlu0 %2640
        %2642 = vrot.lane.b32.xlu0 %v2383, 92
        %v2643 = vpop.permute.xlu0 %2642
        %2644 = vrot.lane.b32.xlu0 %v2384, 92
        %v2645 = vpop.permute.xlu0 %2644
        %2646 = vrot.lane.b32.xlu0 %v2385, 92
        %v2647 = vpop.permute.xlu0 %2646
        %2648 = vrot.lane.b32.xlu0 %v2386, 92
        %v2649 = vpop.permute.xlu0 %2648
        %2650 = vrot.lane.b32.xlu0 %v2387, 92
        %v2651 = vpop.permute.xlu0 %2650
        %2652 = vrot.lane.b32.xlu0 %v2388, 92
        %v2653 = vpop.permute.xlu0 %2652
        %v2654 = vsel %vm451, %v2631, %v2633
        %v2655 = vsel %vm451, %v2633, %v2635
        %v2656 = vsel %vm451, %v2637, %v2639
        %v2657 = vsel %vm451, %v2639, %v2641
        %v2658 = vsel %vm451, %v2643, %v2645
        %v2659 = vsel %vm451, %v2645, %v2647
        %v2660 = vsel %vm451, %v2649, %v2651
        %v2661 = vsel %vm451, %v2651, %v2653
        %2674 = vrot.lane.b32.xlu0 %v2377, 91
        %v2675 = vpop.permute.xlu0 %2674
        %2676 = vrot.lane.b32.xlu0 %v2378, 91
        %v2677 = vpop.permute.xlu0 %2676
        %2678 = vrot.lane.b32.xlu0 %v2379, 91
        %v2679 = vpop.permute.xlu0 %2678
        %2680 = vrot.lane.b32.xlu0 %v2380, 91
        %v2681 = vpop.permute.xlu0 %2680
        %2682 = vrot.lane.b32.xlu0 %v2381, 91
        %v2683 = vpop.permute.xlu0 %2682
        %2684 = vrot.lane.b32.xlu0 %v2382, 91
        %v2685 = vpop.permute.xlu0 %2684
        %2686 = vrot.lane.b32.xlu0 %v2383, 91
        %v2687 = vpop.permute.xlu0 %2686
        %2688 = vrot.lane.b32.xlu0 %v2384, 91
        %v2689 = vpop.permute.xlu0 %2688
        %2690 = vrot.lane.b32.xlu0 %v2385, 91
        %v2691 = vpop.permute.xlu0 %2690
        %2692 = vrot.lane.b32.xlu0 %v2386, 91
        %v2693 = vpop.permute.xlu0 %2692
        %2694 = vrot.lane.b32.xlu0 %v2387, 91
        %v2695 = vpop.permute.xlu0 %2694
        %2696 = vrot.lane.b32.xlu0 %v2388, 91
        %v2697 = vpop.permute.xlu0 %2696
        %v2698 = vsel %vm463, %v2675, %v2677
        %v2699 = vsel %vm463, %v2677, %v2679
        %v2700 = vsel %vm463, %v2681, %v2683
        %v2701 = vsel %vm463, %v2683, %v2685
        %v2702 = vsel %vm463, %v2687, %v2689
        %v2703 = vsel %vm463, %v2689, %v2691
        %v2704 = vsel %vm463, %v2693, %v2695
        %v2705 = vsel %vm463, %v2695, %v2697
        %2718 = vrot.lane.b32.xlu0 %v2377, 90
        %v2719 = vpop.permute.xlu0 %2718
        %2720 = vrot.lane.b32.xlu0 %v2378, 90
        %v2721 = vpop.permute.xlu0 %2720
        %2722 = vrot.lane.b32.xlu0 %v2379, 90
        %v2723 = vpop.permute.xlu0 %2722
        %2724 = vrot.lane.b32.xlu0 %v2380, 90
        %v2725 = vpop.permute.xlu0 %2724
        %2726 = vrot.lane.b32.xlu0 %v2381, 90
        %v2727 = vpop.permute.xlu0 %2726
        %2728 = vrot.lane.b32.xlu0 %v2382, 90
        %v2729 = vpop.permute.xlu0 %2728
        %2730 = vrot.lane.b32.xlu0 %v2383, 90
        %v2731 = vpop.permute.xlu0 %2730
        %2732 = vrot.lane.b32.xlu0 %v2384, 90
        %v2733 = vpop.permute.xlu0 %2732
        %2734 = vrot.lane.b32.xlu0 %v2385, 90
        %v2735 = vpop.permute.xlu0 %2734
        %2736 = vrot.lane.b32.xlu0 %v2386, 90
        %v2737 = vpop.permute.xlu0 %2736
        %2738 = vrot.lane.b32.xlu0 %v2387, 90
        %v2739 = vpop.permute.xlu0 %2738
        %2740 = vrot.lane.b32.xlu0 %v2388, 90
        %v2741 = vpop.permute.xlu0 %2740
        %v2742 = vsel %vm475, %v2719, %v2721
        %v2743 = vsel %vm475, %v2721, %v2723
        %v2744 = vsel %vm475, %v2725, %v2727
        %v2745 = vsel %vm475, %v2727, %v2729
        %v2746 = vsel %vm475, %v2731, %v2733
        %v2747 = vsel %vm475, %v2733, %v2735
        %v2748 = vsel %vm475, %v2737, %v2739
        %v2749 = vsel %vm475, %v2739, %v2741
        %v2762 = vpack.c.bf16 %v2380, %v2377
        %v2763 = vpack.c.bf16 %v2381, %v2378
        %v2764 = vpack.c.bf16 %v2382, %v2379
        %v2765 = vpack.c.bf16 %v2386, %v2383
        %v2766 = vpack.c.bf16 %v2387, %v2384
        %v2767 = vpack.c.bf16 %v2388, %v2385
        %v2768 = vpack.c.bf16 %v2436, %v2434
        %v2769 = vpack.c.bf16 %v2437, %v2435
        %v2770 = vpack.c.bf16 %v2421, %v2415
        %v2771 = vpack.c.bf16 %v2440, %v2438
        %v2772 = vpack.c.bf16 %v2441, %v2439
        %v2773 = vpack.c.bf16 %v2433, %v2427
        %v2774 = vpack.c.bf16 %v2480, %v2478
        %v2775 = vpack.c.bf16 %v2481, %v2479
        %v2776 = vpack.c.bf16 %v2465, %v2459
        %v2777 = vpack.c.bf16 %v2484, %v2482
        %v2778 = vpack.c.bf16 %v2485, %v2483
        %v2779 = vpack.c.bf16 %v2477, %v2471
        %v2780 = vpack.c.bf16 %v2524, %v2522
        %v2781 = vpack.c.bf16 %v2525, %v2523
        %v2782 = vpack.c.bf16 %v2509, %v2503
        %v2783 = vpack.c.bf16 %v2528, %v2526
        %v2784 = vpack.c.bf16 %v2529, %v2527
        %v2785 = vpack.c.bf16 %v2521, %v2515
        %v2786 = vpack.c.bf16 %v2568, %v2566
        %v2787 = vpack.c.bf16 %v2569, %v2567
        %v2788 = vpack.c.bf16 %v2553, %v2547
        %v2789 = vpack.c.bf16 %v2572, %v2570
        %v2790 = vpack.c.bf16 %v2573, %v2571
        %v2791 = vpack.c.bf16 %v2565, %v2559
        %v2792 = vpack.c.bf16 %v2612, %v2610
        %v2793 = vpack.c.bf16 %v2613, %v2611
        %v2794 = vpack.c.bf16 %v2597, %v2591
        %v2795 = vpack.c.bf16 %v2616, %v2614
        %v2796 = vpack.c.bf16 %v2617, %v2615
        %v2797 = vpack.c.bf16 %v2609, %v2603
        %v2798 = vpack.c.bf16 %v2656, %v2654
        %v2799 = vpack.c.bf16 %v2657, %v2655
        %v2800 = vpack.c.bf16 %v2641, %v2635
        %v2801 = vpack.c.bf16 %v2660, %v2658
        %v2802 = vpack.c.bf16 %v2661, %v2659
        %v2803 = vpack.c.bf16 %v2653, %v2647
        %v2804 = vpack.c.bf16 %v2700, %v2698
        %v2805 = vpack.c.bf16 %v2701, %v2699
        %v2806 = vpack.c.bf16 %v2685, %v2679
        %v2807 = vpack.c.bf16 %v2704, %v2702
        %v2808 = vpack.c.bf16 %v2705, %v2703
        %v2809 = vpack.c.bf16 %v2697, %v2691
        %v2810 = vpack.c.bf16 %v2744, %v2742
        %v2811 = vpack.c.bf16 %v2745, %v2743
        %v2812 = vpack.c.bf16 %v2729, %v2723
        %v2813 = vpack.c.bf16 %v2748, %v2746
        %v2814 = vpack.c.bf16 %v2749, %v2747
        %v2815 = vpack.c.bf16 %v2741, %v2735
        %s2816 = scalar_lea.vmem %s6, 32
        %v2817 = vld [vmem:[%s2816] sm:$0xff]
        %v2818 = vld [vmem:[%s2816 + $0x8] sm:$0xff]
        %v2819 = vld [vmem:[%s2816 + $0x10] sm:$0xff]
        %v2820 = vld [vmem:[%s2816 + $0x18] sm:$0xff]
        %2822 = vset.pattern.permute.xlu0 0
        %2823 = vperm.xlu0 %2822, %v2817
        %v2824 = vpop.permute.xlu0 %2823
        %2827 = vset.pattern.permute.xlu0 0
        %2828 = vperm.xlu0 %2827, %v2818
        %v2829 = vpop.permute.xlu0 %2828
        %2832 = vset.pattern.permute.xlu0 0
        %2833 = vperm.xlu0 %2832, %v2819
        %v2834 = vpop.permute.xlu0 %2833
        %2837 = vset.pattern.permute.xlu0 0
        %2838 = vperm.xlu0 %2837, %v2820
        %v2839 = vpop.permute.xlu0 %2838
        %v2849 = vunpack.c.l.b16 %v2390
        %v2850 = vunpack.c.h.b16 %v2390
        %v2851 = vunpack.c.l.b16 %v2391
        %v2852 = vunpack.c.l.b16 %v2392
        %v2853 = vunpack.c.h.b16 %v2392
        %v2854 = vunpack.c.l.b16 %v2393
        %v2855 = vunpack.c.l.b16 %v2394
        %v2856 = vunpack.c.h.b16 %v2394
        %v2857 = vunpack.c.l.b16 %v2395
        %v2858 = vunpack.c.l.b16 %v2396
        %v2859 = vunpack.c.h.b16 %v2396
        %v2860 = vunpack.c.l.b16 %v2397
        %v2861 = vpack.c.b16 %v2852, %v2849
        %v2862 = vpack.c.b16 %v2853, %v2850
        %v2863 = vpack.c.b16 %v2854, %v2851
        %v2864 = vpack.c.b16 %v2858, %v2855
        %v2865 = vpack.c.b16 %v2859, %v2856
        %v2866 = vpack.c.b16 %v2860, %v2857
        %v2872 = vsel %vm1254, %v2863, 0
        %v2875 = vsel %vm1254, %v2866, 0
        %2877 = vmatprep.subr.bf16.mxu0 %v2763
        %2878 = vmatpush1.bf16.msra.mxu0 %v2762
        %2879 = vmatprep.subr.bf16.mxu0 %v2766
        %2880 = vmatpush1.bf16.msra.mxu0 %v2765
        %2881 = vmatprep.subr.bf16.mxu0 %v2769
        %2882 = vmatpush1.bf16.msra.mxu0 %v2768
        %2883 = vmatprep.subr.bf16.mxu0 %v2772
        %2884 = vmatpush1.bf16.msra.mxu0 %v2771
        %2885 = vmatprep.subr.bf16.mxu0 %v2775
        %2886 = vmatpush1.bf16.msra.mxu0 %v2774
        %2887 = vmatprep.subr.bf16.mxu0 %v2778
        %2888 = vmatpush1.bf16.msra.mxu0 %v2777
        %2889 = vmatprep.subr.bf16.mxu0 %v2781
        %2890 = vmatpush1.bf16.msra.mxu0 %v2780
        %2891 = vmatprep.subr.bf16.mxu0 %v2784
        %2892 = vmatpush1.bf16.msra.mxu0 %v2783
        %2893 = vmatprep.subr.bf16.mxu0 %v2787
        %2894 = vmatpush1.bf16.msra.mxu0 %v2786
        %2895 = vmatprep.subr.bf16.mxu0 %v2790
        %2896 = vmatpush1.bf16.msra.mxu0 %v2789
        %2897 = vmatprep.subr.bf16.mxu0 %v2793
        %2898 = vmatpush1.bf16.msra.mxu0 %v2792
        %2899 = vmatprep.subr.bf16.mxu0 %v2796
        %2900 = vmatpush1.bf16.msra.mxu0 %v2795
        %2901 = vmatprep.subr.bf16.mxu0 %v2799
        %2902 = vmatpush1.bf16.msra.mxu0 %v2798
        %2903 = vmatprep.subr.bf16.mxu0 %v2802
        %2904 = vmatpush1.bf16.msra.mxu0 %v2801
        %2905 = vmatprep.subr.bf16.mxu0 %v2805
        %2906 = vmatpush1.bf16.msra.mxu0 %v2804
        %2907 = vmatprep.subr.bf16.mxu0 %v2808
        %2908 = vmatpush1.bf16.msra.mxu0 %v2807
        %2909 = vmatprep.mubr.bf16.mxu0 %v2862
        %2910 = vmatmul.mubr.bf16.gmra.mrb[0].mxu0 %v2861
        %v2911 = vpop.f32.mrb[0].mxu0
        %v2912 = vadd.f32 %v2824, %v2911
        %v2913 = vpop.f32.mrb[0].mxu0
        %v2914 = vadd.f32 %v2824, %v2913
        %v2915 = vpop.f32.mrb[0].mxu0
        %v2916 = vadd.f32 %v2829, %v2915
        %v2917 = vpop.f32.mrb[0].mxu0
        %v2918 = vadd.f32 %v2829, %v2917
        %2919 = vmatprep.mubr.bf16.mxu0 %v2865
        %2920 = vmatmul.mubr.bf16.gmra.mrb[0].mxu0 %v2864
        %v2921 = vpop.f32.mrb[0].mxu0
        %v2922 = vadd.f32 %v2834, %v2921
        %v2923 = vpop.f32.mrb[0].mxu0
        %v2924 = vadd.f32 %v2834, %v2923
        %v2925 = vpop.f32.mrb[0].mxu0
        %v2926 = vadd.f32 %v2839, %v2925
        %v2927 = vpop.f32.mrb[0].mxu0
        %v2928 = vadd.f32 %v2839, %v2927
        %2929 = vdwg.mxu0
        %2930 = vmatprep.subr.bf16.mxu0 %v2811
        %2931 = vmatpush1.bf16.msra.mxu0 %v2810
        %2932 = vmatprep.subr.bf16.mxu0 %v2814
        %2933 = vmatpush1.bf16.msra.mxu0 %v2813
        %2934 = vmatprep.subr.bf16.mxu0 0
        %2935 = vmatpush1.bf16.msra.mxu0 0
        %2936 = vmatprep.subr.bf16.mxu0 0
        %2937 = vmatpush1.bf16.msra.mxu0 0
        %2938 = vmatprep.subr.bf16.mxu0 0
        %2939 = vmatpush1.bf16.msra.mxu0 0
        %2940 = vmatprep.subr.bf16.mxu0 0
        %2941 = vmatpush1.bf16.msra.mxu0 0
        %2942 = vmatprep.subr.bf16.mxu0 0
        %2943 = vmatpush1.bf16.msra.mxu0 0
        %2944 = vmatprep.subr.bf16.mxu0 0
        %2945 = vmatpush1.bf16.msra.mxu0 0
        %2946 = vmatprep.subr.bf16.mxu0 0
        %2947 = vmatpush1.bf16.msra.mxu0 0
        %2948 = vmatprep.subr.bf16.mxu0 0
        %2949 = vmatpush1.bf16.msra.mxu0 0
        %2950 = vmatprep.subr.bf16.mxu0 0
        %2951 = vmatpush1.bf16.msra.mxu0 0
        %2952 = vmatprep.subr.bf16.mxu0 0
        %2953 = vmatpush1.bf16.msra.mxu0 0
        %2954 = vmatprep.subr.bf16.mxu0 0
        %2955 = vmatpush1.bf16.msra.mxu0 0
        %2956 = vmatprep.subr.bf16.mxu0 0
        %2957 = vmatpush1.bf16.msra.mxu0 0
        %2958 = vmatprep.subr.bf16.mxu0 0
        %2959 = vmatpush1.bf16.msra.mxu0 0
        %2960 = vmatprep.subr.bf16.mxu0 0
        %2961 = vmatpush1.bf16.msra.mxu0 0
        %2962 = vmatprep.mubr.bf16.mxu0 0
        %2963 = vmatmul.mubr.bf16.gmra.mrb[0].mxu0 %v2872
        %v2964 = vpop.f32.mrb[0].mxu0
        %v2965 = vadd.f32 %v2912, %v2964
        %v2966 = vpop.f32.mrb[0].mxu0
        %v2967 = vadd.f32 %v2914, %v2966
        %v2968 = vpop.f32.mrb[0].mxu0
        %v2969 = vadd.f32 %v2916, %v2968
        %v2970 = vpop.f32.mrb[0].mxu0
        %v2971 = vadd.f32 %v2918, %v2970
        %2972 = vmatprep.mubr.bf16.mxu0 0
        %2973 = vmatmul.mubr.bf16.gmra.mrb[0].mxu0 %v2875
        %v2974 = vpop.f32.mrb[0].mxu0
        %v2975 = vadd.f32 %v2922, %v2974
        %v2976 = vpop.f32.mrb[0].mxu0
        %v2977 = vadd.f32 %v2924, %v2976
        %v2978 = vpop.f32.mrb[0].mxu0
        %v2979 = vadd.f32 %v2926, %v2978
        %v2980 = vpop.f32.mrb[0].mxu0
        %v2981 = vadd.f32 %v2928, %v2980
        %2982 = vdwg.mxu0
        %2983 = vmatprep.subr.bf16.mxu0 0
        %2984 = vmatpush1.bf16.msra.mxu0 %v2764
        %2985 = vmatprep.subr.bf16.mxu0 0
        %2986 = vmatpush1.bf16.msra.mxu0 %v2767
        %2987 = vmatprep.subr.bf16.mxu0 0
        %2988 = vmatpush1.bf16.msra.mxu0 %v2770
        %2989 = vmatprep.subr.bf16.mxu0 0
        %2990 = vmatpush1.bf16.msra.mxu0 %v2773
        %2991 = vmatprep.subr.bf16.mxu0 0
        %2992 = vmatpush1.bf16.msra.mxu0 %v2776
        %2993 = vmatprep.subr.bf16.mxu0 0
        %2994 = vmatpush1.bf16.msra.mxu0 %v2779
        %2995 = vmatprep.subr.bf16.mxu0 0
        %2996 = vmatpush1.bf16.msra.mxu0 %v2782
        %2997 = vmatprep.subr.bf16.mxu0 0
        %2998 = vmatpush1.bf16.msra.mxu0 %v2785
        %2999 = vmatprep.subr.bf16.mxu0 0
        %3000 = vmatpush1.bf16.msra.mxu0 %v2788
        %3001 = vmatprep.subr.bf16.mxu0 0
        %3002 = vmatpush1.bf16.msra.mxu0 %v2791
        %3003 = vmatprep.subr.bf16.mxu0 0
        %3004 = vmatpush1.bf16.msra.mxu0 %v2794
        %3005 = vmatprep.subr.bf16.mxu0 0
        %3006 = vmatpush1.bf16.msra.mxu0 %v2797
        %3007 = vmatprep.subr.bf16.mxu0 0
        %3008 = vmatpush1.bf16.msra.mxu0 %v2800
        %3009 = vmatprep.subr.bf16.mxu0 0
        %3010 = vmatpush1.bf16.msra.mxu0 %v2803
        %3011 = vmatprep.subr.bf16.mxu0 0
        %3012 = vmatpush1.bf16.msra.mxu0 %v2806
        %3013 = vmatprep.subr.bf16.mxu0 0
        %3014 = vmatpush1.bf16.msra.mxu0 %v2809
        %3015 = vmatprep.mubr.bf16.mxu0 %v2862
        %3016 = vmatmul.mubr.bf16.gmra.mrb[0].mxu0 %v2861
        %v3017 = vpop.f32.mrb[0].mxu0
        %v3018 = vadd.f32 %v2824, %v3017
        %v3019 = vpop.f32.mrb[0].mxu0
        %v3020 = vpop.f32.mrb[0].mxu0
        %v3021 = vadd.f32 %v2829, %v3020
        %v3022 = vpop.f32.mrb[0].mxu0
        %3023 = vmatprep.mubr.bf16.mxu0 %v2865
        %3024 = vmatmul.mubr.bf16.gmra.mrb[0].mxu0 %v2864
        %v3025 = vpop.f32.mrb[0].mxu0
        %v3026 = vadd.f32 %v2834, %v3025
        %v3027 = vpop.f32.mrb[0].mxu0
        %v3028 = vpop.f32.mrb[0].mxu0
        %v3029 = vadd.f32 %v2839, %v3028
        %v3030 = vpop.f32.mrb[0].mxu0
        %3031 = vdwg.mxu0
        %3032 = vmatprep.subr.bf16.mxu0 0
        %3033 = vmatpush1.bf16.msra.mxu0 %v2812
        %3034 = vmatprep.subr.bf16.mxu0 0
        %3035 = vmatpush1.bf16.msra.mxu0 %v2815
        %3036 = vmatprep.subr.bf16.mxu0 0
        %3037 = vmatpush1.bf16.msra.mxu0 0
        %3038 = vmatprep.subr.bf16.mxu0 0
        %3039 = vmatpush1.bf16.msra.mxu0 0
        %3040 = vmatprep.subr.bf16.mxu0 0
        %3041 = vmatpush1.bf16.msra.mxu0 0
        %3042 = vmatprep.subr.bf16.mxu0 0
        %3043 = vmatpush1.bf16.msra.mxu0 0
        %3044 = vmatprep.subr.bf16.mxu0 0
        %3045 = vmatpush1.bf16.msra.mxu0 0
        %3046 = vmatprep.subr.bf16.mxu0 0
        %3047 = vmatpush1.bf16.msra.mxu0 0
        %3048 = vmatprep.subr.bf16.mxu0 0
        %3049 = vmatpush1.bf16.msra.mxu0 0
        %3050 = vmatprep.subr.bf16.mxu0 0
        %3051 = vmatpush1.bf16.msra.mxu0 0
        %3052 = vmatprep.subr.bf16.mxu0 0
        %3053 = vmatpush1.bf16.msra.mxu0 0
        %3054 = vmatprep.subr.bf16.mxu0 0
        %3055 = vmatpush1.bf16.msra.mxu0 0
        %3056 = vmatprep.subr.bf16.mxu0 0
        %3057 = vmatpush1.bf16.msra.mxu0 0
        %3058 = vmatprep.subr.bf16.mxu0 0
        %3059 = vmatpush1.bf16.msra.mxu0 0
        %3060 = vmatprep.subr.bf16.mxu0 0
        %3061 = vmatpush1.bf16.msra.mxu0 0
        %3062 = vmatprep.subr.bf16.mxu0 0
        %3063 = vmatpush1.bf16.msra.mxu0 0
        %3064 = vmatprep.mubr.bf16.mxu0 0
        %3065 = vmatmul.mubr.bf16.gmra.mrb[0].mxu0 %v2872
        %v3066 = vpop.f32.mrb[0].mxu0
        %v3067 = vadd.f32 %v3018, %v3066
        %v3068 = vpop.f32.mrb[0].mxu0
        %v3069 = vpop.f32.mrb[0].mxu0
        %v3070 = vadd.f32 %v3021, %v3069
        %v3071 = vpop.f32.mrb[0].mxu0
        %3072 = vmatprep.mubr.bf16.mxu0 0
        %3073 = vmatmul.mubr.bf16.gmra.mrb[0].mxu0 %v2875
        %v3074 = vpop.f32.mrb[0].mxu0
        %v3075 = vadd.f32 %v3026, %v3074
        %v3076 = vpop.f32.mrb[0].mxu0
        %v3077 = vpop.f32.mrb[0].mxu0
        %v3078 = vadd.f32 %v3029, %v3077
        %v3079 = vpop.f32.mrb[0].mxu0
        %3080 = vdwg.mxu0
        %s3081 = sld [smem:[#allocation3 + $0x2]]
        %vm3082 = vcmp.ge.f32.partialorder %v2965, 0.0
        %vm3083 = vcmp.ge.f32.partialorder %v2967, 0.0
        %vm3084 = vcmp.ge.f32.partialorder %v3067, 0.0
        %vm3085 = vcmp.ge.f32.partialorder %v2969, 0.0
        %vm3086 = vcmp.ge.f32.partialorder %v2971, 0.0
        %vm3087 = vcmp.ge.f32.partialorder %v3070, 0.0
        %vm3088 = vcmp.ge.f32.partialorder %v2975, 0.0
        %vm3089 = vcmp.ge.f32.partialorder %v2977, 0.0
        %vm3090 = vcmp.ge.f32.partialorder %v3075, 0.0
        %vm3091 = vcmp.ge.f32.partialorder %v2979, 0.0
        %vm3092 = vcmp.ge.f32.partialorder %v2981, 0.0
        %vm3093 = vcmp.ge.f32.partialorder %v3078, 0.0
        %v3094 = vstv %s3081
        %v3095 = vmul.f32 %v3094, %v2965
        %v3096 = vmul.f32 %v3094, %v2967
        %v3097 = vmul.f32 %v3094, %v3067
        %v3098 = vmul.f32 %v3094, %v2969
        %v3099 = vmul.f32 %v3094, %v2971
        %v3100 = vmul.f32 %v3094, %v3070
        %v3101 = vmul.f32 %v3094, %v2975
        %v3102 = vmul.f32 %v3094, %v2977
        %v3103 = vmul.f32 %v3094, %v3075
        %v3104 = vmul.f32 %v3094, %v2979
        %v3105 = vmul.f32 %v3094, %v2981
        %v3106 = vmul.f32 %v3094, %v3078
        %v3107 = vsel %vm3082, %v2965, %v3095
        %v3108 = vsel %vm3083, %v2967, %v3096
        %v3109 = vsel %vm3084, %v3067, %v3097
        %v3110 = vsel %vm3085, %v2969, %v3098
        %v3111 = vsel %vm3086, %v2971, %v3099
        %v3112 = vsel %vm3087, %v3070, %v3100
        %v3113 = vsel %vm3088, %v2975, %v3101
        %v3114 = vsel %vm3089, %v2977, %v3102
        %v3115 = vsel %vm3090, %v3075, %v3103
        %v3116 = vsel %vm3091, %v2979, %v3104
        %v3117 = vsel %vm3092, %v2981, %v3105
        %v3118 = vsel %vm3093, %v3078, %v3106
        %v3119 = vmul.f32 %v3107, %v667
        %v3120 = vmul.f32 %v3108, %v671
        %v3121 = vmul.f32 %v3109, %v675
        %v3122 = vmul.f32 %v3110, %v667
        %v3123 = vmul.f32 %v3111, %v671
        %v3124 = vmul.f32 %v3112, %v675
        %v3125 = vmul.f32 %v3113, %v667
        %v3126 = vmul.f32 %v3114, %v671
        %v3127 = vmul.f32 %v3115, %v675
        %v3128 = vmul.f32 %v3116, %v667
        %v3129 = vmul.f32 %v3117, %v671
        %v3130 = vmul.f32 %v3118, %v675
        %3143 = vrot.lane.b32.xlu0 %v3119, 19
        %v3144 = vpop.permute.xlu0 %3143
        %3145 = vrot.lane.b32.xlu0 %v3120, 19
        %v3146 = vpop.permute.xlu0 %3145
        %3147 = vrot.lane.b32.xlu0 %v3121, 19
        %v3148 = vpop.permute.xlu0 %3147
        %3149 = vrot.lane.b32.xlu0 %v3122, 19
        %v3150 = vpop.permute.xlu0 %3149
        %3151 = vrot.lane.b32.xlu0 %v3123, 19
        %v3152 = vpop.permute.xlu0 %3151
        %3153 = vrot.lane.b32.xlu0 %v3124, 19
        %v3154 = vpop.permute.xlu0 %3153
        %3155 = vrot.lane.b32.xlu0 %v3125, 19
        %v3156 = vpop.permute.xlu0 %3155
        %3157 = vrot.lane.b32.xlu0 %v3126, 19
        %v3158 = vpop.permute.xlu0 %3157
        %3159 = vrot.lane.b32.xlu0 %v3127, 19
        %v3160 = vpop.permute.xlu0 %3159
        %3161 = vrot.lane.b32.xlu0 %v3128, 19
        %v3162 = vpop.permute.xlu0 %3161
        %3163 = vrot.lane.b32.xlu0 %v3129, 19
        %v3164 = vpop.permute.xlu0 %3163
        %3165 = vrot.lane.b32.xlu0 %v3130, 19
        %v3166 = vpop.permute.xlu0 %3165
        %v3167 = vsel %vm727, %v3144, %v3146
        %v3168 = vsel %vm727, %v3146, %v3148
        %v3169 = vsel %vm727, %v3150, %v3152
        %v3170 = vsel %vm727, %v3152, %v3154
        %v3171 = vsel %vm727, %v3156, %v3158
        %v3172 = vsel %vm727, %v3158, %v3160
        %v3173 = vsel %vm727, %v3162, %v3164
        %v3174 = vsel %vm727, %v3164, %v3166
        %3187 = vst.msk [vmem:[#allocation2] sm:$0xff] %vm748, %v3144
        %3188 = vst [vmem:[#allocation2 + $0x8] sm:$0xff] %v3167
        %3189 = vst.msk [vmem:[#allocation2 + $0x10] sm:$0xff] %vm751, %v3168
        %3190 = vst.msk [vmem:[#allocation2 + $0x18] sm:$0xff] %vm748, %v3150
        %3191 = vst [vmem:[#allocation2 + $0x20] sm:$0xff] %v3169
        %3192 = vst.msk [vmem:[#allocation2 + $0x28] sm:$0xff] %vm751, %v3170
        %3193 = vst.msk [vmem:[#allocation2 + $0x30] sm:$0xff] %vm748, %v3156
        %3194 = vst [vmem:[#allocation2 + $0x38] sm:$0xff] %v3171
        %3195 = vst.msk [vmem:[#allocation2 + $0x40] sm:$0xff] %vm751, %v3172
        %3196 = vst.msk [vmem:[#allocation2 + $0x48] sm:$0xff] %vm748, %v3162
        %3197 = vst [vmem:[#allocation2 + $0x50] sm:$0xff] %v3173
        %3198 = vst.msk [vmem:[#allocation2 + $0x58] sm:$0xff] %vm751, %v3174
        %v3199 = vld [vmem:[#allocation2] sm:$0xff]
        %v3200 = vld [vmem:[#allocation2 + $0x8] sm:$0xff]
        %v3201 = vld [vmem:[#allocation2 + $0x10] sm:$0xff]
        %v3202 = vld [vmem:[#allocation2 + $0x18] sm:$0xff]
        %v3203 = vld [vmem:[#allocation2 + $0x20] sm:$0xff]
        %v3204 = vld [vmem:[#allocation2 + $0x28] sm:$0xff]
        %v3205 = vld [vmem:[#allocation2 + $0x30] sm:$0xff]
        %v3206 = vld [vmem:[#allocation2 + $0x38] sm:$0xff]
        %v3207 = vld [vmem:[#allocation2 + $0x40] sm:$0xff]
        %v3208 = vld [vmem:[#allocation2 + $0x48] sm:$0xff]
        %v3209 = vld [vmem:[#allocation2 + $0x50] sm:$0xff]
        %v3210 = vld [vmem:[#allocation2 + $0x58] sm:$0xff]
        %s3211 = scalar_lea.vmem %s7, 48
        %v3212 = vld [vmem:[%s3211] sm:$0xff]
        %v3213 = vld [vmem:[%s3211 + $0x8] sm:$0xf]
        %v3214 = vld [vmem:[%s3211 + $0xc] sm:$0xff]
        %v3215 = vld [vmem:[%s3211 + $0x14] sm:$0xf]
        %v3216 = vld [vmem:[%s3211 + $0x18] sm:$0xff]
        %v3217 = vld [vmem:[%s3211 + $0x20] sm:$0xf]
        %v3218 = vld [vmem:[%s3211 + $0x24] sm:$0xff]
        %v3219 = vld [vmem:[%s3211 + $0x2c] sm:$0xf]
        %3232 = vrot.lane.b32.xlu0 %v3199, 127
        %v3233 = vpop.permute.xlu0 %3232
        %3234 = vrot.lane.b32.xlu0 %v3200, 127
        %v3235 = vpop.permute.xlu0 %3234
        %3236 = vrot.lane.b32.xlu0 %v3201, 127
        %v3237 = vpop.permute.xlu0 %3236
        %3238 = vrot.lane.b32.xlu0 %v3202, 127
        %v3239 = vpop.permute.xlu0 %3238
        %3240 = vrot.lane.b32.xlu0 %v3203, 127
        %v3241 = vpop.permute.xlu0 %3240
        %3242 = vrot.lane.b32.xlu0 %v3204, 127
        %v3243 = vpop.permute.xlu0 %3242
        %3244 = vrot.lane.b32.xlu0 %v3205, 127
        %v3245 = vpop.permute.xlu0 %3244
        %3246 = vrot.lane.b32.xlu0 %v3206, 127
        %v3247 = vpop.permute.xlu0 %3246
        %3248 = vrot.lane.b32.xlu0 %v3207, 127
        %v3249 = vpop.permute.xlu0 %3248
        %3250 = vrot.lane.b32.xlu0 %v3208, 127
        %v3251 = vpop.permute.xlu0 %3250
        %3252 = vrot.lane.b32.xlu0 %v3209, 127
        %v3253 = vpop.permute.xlu0 %3252
        %3254 = vrot.lane.b32.xlu0 %v3210, 127
        %v3255 = vpop.permute.xlu0 %3254
        %v3256 = vsel %vm391, %v3233, %v3235
        %v3257 = vsel %vm391, %v3235, %v3237
        %v3258 = vsel %vm391, %v3239, %v3241
        %v3259 = vsel %vm391, %v3241, %v3243
        %v3260 = vsel %vm391, %v3245, %v3247
        %v3261 = vsel %vm391, %v3247, %v3249
        %v3262 = vsel %vm391, %v3251, %v3253
        %v3263 = vsel %vm391, %v3253, %v3255
        %3276 = vrot.lane.b32.xlu0 %v3199, 126
        %v3277 = vpop.permute.xlu0 %3276
        %3278 = vrot.lane.b32.xlu0 %v3200, 126
        %v3279 = vpop.permute.xlu0 %3278
        %3280 = vrot.lane.b32.xlu0 %v3201, 126
        %v3281 = vpop.permute.xlu0 %3280
        %3282 = vrot.lane.b32.xlu0 %v3202, 126
        %v3283 = vpop.permute.xlu0 %3282
        %3284 = vrot.lane.b32.xlu0 %v3203, 126
        %v3285 = vpop.permute.xlu0 %3284
        %3286 = vrot.lane.b32.xlu0 %v3204, 126
        %v3287 = vpop.permute.xlu0 %3286
        %3288 = vrot.lane.b32.xlu0 %v3205, 126
        %v3289 = vpop.permute.xlu0 %3288
        %3290 = vrot.lane.b32.xlu0 %v3206, 126
        %v3291 = vpop.permute.xlu0 %3290
        %3292 = vrot.lane.b32.xlu0 %v3207, 126
        %v3293 = vpop.permute.xlu0 %3292
        %3294 = vrot.lane.b32.xlu0 %v3208, 126
        %v3295 = vpop.permute.xlu0 %3294
        %3296 = vrot.lane.b32.xlu0 %v3209, 126
        %v3297 = vpop.permute.xlu0 %3296
        %3298 = vrot.lane.b32.xlu0 %v3210, 126
        %v3299 = vpop.permute.xlu0 %3298
        %v3300 = vsel %vm403, %v3277, %v3279
        %v3301 = vsel %vm403, %v3279, %v3281
        %v3302 = vsel %vm403, %v3283, %v3285
        %v3303 = vsel %vm403, %v3285, %v3287
        %v3304 = vsel %vm403, %v3289, %v3291
        %v3305 = vsel %vm403, %v3291, %v3293
        %v3306 = vsel %vm403, %v3295, %v3297
        %v3307 = vsel %vm403, %v3297, %v3299
        %3320 = vrot.lane.b32.xlu0 %v3199, 110
        %v3321 = vpop.permute.xlu0 %3320
        %3322 = vrot.lane.b32.xlu0 %v3200, 110
        %v3323 = vpop.permute.xlu0 %3322
        %3324 = vrot.lane.b32.xlu0 %v3201, 110
        %v3325 = vpop.permute.xlu0 %3324
        %3326 = vrot.lane.b32.xlu0 %v3202, 110
        %v3327 = vpop.permute.xlu0 %3326
        %3328 = vrot.lane.b32.xlu0 %v3203, 110
        %v3329 = vpop.permute.xlu0 %3328
        %3330 = vrot.lane.b32.xlu0 %v3204, 110
        %v3331 = vpop.permute.xlu0 %3330
        %3332 = vrot.lane.b32.xlu0 %v3205, 110
        %v3333 = vpop.permute.xlu0 %3332
        %3334 = vrot.lane.b32.xlu0 %v3206, 110
        %v3335 = vpop.permute.xlu0 %3334
        %3336 = vrot.lane.b32.xlu0 %v3207, 110
        %v3337 = vpop.permute.xlu0 %3336
        %3338 = vrot.lane.b32.xlu0 %v3208, 110
        %v3339 = vpop.permute.xlu0 %3338
        %3340 = vrot.lane.b32.xlu0 %v3209, 110
        %v3341 = vpop.permute.xlu0 %3340
        %3342 = vrot.lane.b32.xlu0 %v3210, 110
        %v3343 = vpop.permute.xlu0 %3342
        %v3344 = vsel %vm415, %v3321, %v3323
        %v3345 = vsel %vm415, %v3323, %v3325
        %v3346 = vsel %vm415, %v3327, %v3329
        %v3347 = vsel %vm415, %v3329, %v3331
        %v3348 = vsel %vm415, %v3333, %v3335
        %v3349 = vsel %vm415, %v3335, %v3337
        %v3350 = vsel %vm415, %v3339, %v3341
        %v3351 = vsel %vm415, %v3341, %v3343
        %3364 = vrot.lane.b32.xlu0 %v3199, 109
        %v3365 = vpop.permute.xlu0 %3364
        %3366 = vrot.lane.b32.xlu0 %v3200, 109
        %v3367 = vpop.permute.xlu0 %3366
        %3368 = vrot.lane.b32.xlu0 %v3201, 109
        %v3369 = vpop.permute.xlu0 %3368
        %3370 = vrot.lane.b32.xlu0 %v3202, 109
        %v3371 = vpop.permute.xlu0 %3370
        %3372 = vrot.lane.b32.xlu0 %v3203, 109
        %v3373 = vpop.permute.xlu0 %3372
        %3374 = vrot.lane.b32.xlu0 %v3204, 109
        %v3375 = vpop.permute.xlu0 %3374
        %3376 = vrot.lane.b32.xlu0 %v3205, 109
        %v3377 = vpop.permute.xlu0 %3376
        %3378 = vrot.lane.b32.xlu0 %v3206, 109
        %v3379 = vpop.permute.xlu0 %3378
        %3380 = vrot.lane.b32.xlu0 %v3207, 109
        %v3381 = vpop.permute.xlu0 %3380
        %3382 = vrot.lane.b32.xlu0 %v3208, 109
        %v3383 = vpop.permute.xlu0 %3382
        %3384 = vrot.lane.b32.xlu0 %v3209, 109
        %v3385 = vpop.permute.xlu0 %3384
        %3386 = vrot.lane.b32.xlu0 %v3210, 109
        %v3387 = vpop.permute.xlu0 %3386
        %v3388 = vsel %vm427, %v3365, %v3367
        %v3389 = vsel %vm427, %v3367, %v3369
        %v3390 = vsel %vm427, %v3371, %v3373
        %v3391 = vsel %vm427, %v3373, %v3375
        %v3392 = vsel %vm427, %v3377, %v3379
        %v3393 = vsel %vm427, %v3379, %v3381
        %v3394 = vsel %vm427, %v3383, %v3385
        %v3395 = vsel %vm427, %v3385, %v3387
        %3408 = vrot.lane.b32.xlu0 %v3199, 108
        %v3409 = vpop.permute.xlu0 %3408
        %3410 = vrot.lane.b32.xlu0 %v3200, 108
        %v3411 = vpop.permute.xlu0 %3410
        %3412 = vrot.lane.b32.xlu0 %v3201, 108
        %v3413 = vpop.permute.xlu0 %3412
        %3414 = vrot.lane.b32.xlu0 %v3202, 108
        %v3415 = vpop.permute.xlu0 %3414
        %3416 = vrot.lane.b32.xlu0 %v3203, 108
        %v3417 = vpop.permute.xlu0 %3416
        %3418 = vrot.lane.b32.xlu0 %v3204, 108
        %v3419 = vpop.permute.xlu0 %3418
        %3420 = vrot.lane.b32.xlu0 %v3205, 108
        %v3421 = vpop.permute.xlu0 %3420
        %3422 = vrot.lane.b32.xlu0 %v3206, 108
        %v3423 = vpop.permute.xlu0 %3422
        %3424 = vrot.lane.b32.xlu0 %v3207, 108
        %v3425 = vpop.permute.xlu0 %3424
        %3426 = vrot.lane.b32.xlu0 %v3208, 108
        %v3427 = vpop.permute.xlu0 %3426
        %3428 = vrot.lane.b32.xlu0 %v3209, 108
        %v3429 = vpop.permute.xlu0 %3428
        %3430 = vrot.lane.b32.xlu0 %v3210, 108
        %v3431 = vpop.permute.xlu0 %3430
        %v3432 = vsel %vm439, %v3409, %v3411
        %v3433 = vsel %vm439, %v3411, %v3413
        %v3434 = vsel %vm439, %v3415, %v3417
        %v3435 = vsel %vm439, %v3417, %v3419
        %v3436 = vsel %vm439, %v3421, %v3423
        %v3437 = vsel %vm439, %v3423, %v3425
        %v3438 = vsel %vm439, %v3427, %v3429
        %v3439 = vsel %vm439, %v3429, %v3431
        %3452 = vrot.lane.b32.xlu0 %v3199, 92
        %v3453 = vpop.permute.xlu0 %3452
        %3454 = vrot.lane.b32.xlu0 %v3200, 92
        %v3455 = vpop.permute.xlu0 %3454
        %3456 = vrot.lane.b32.xlu0 %v3201, 92
        %v3457 = vpop.permute.xlu0 %3456
        %3458 = vrot.lane.b32.xlu0 %v3202, 92
        %v3459 = vpop.permute.xlu0 %3458
        %3460 = vrot.lane.b32.xlu0 %v3203, 92
        %v3461 = vpop.permute.xlu0 %3460
        %3462 = vrot.lane.b32.xlu0 %v3204, 92
        %v3463 = vpop.permute.xlu0 %3462
        %3464 = vrot.lane.b32.xlu0 %v3205, 92
        %v3465 = vpop.permute.xlu0 %3464
        %3466 = vrot.lane.b32.xlu0 %v3206, 92
        %v3467 = vpop.permute.xlu0 %3466
        %3468 = vrot.lane.b32.xlu0 %v3207, 92
        %v3469 = vpop.permute.xlu0 %3468
        %3470 = vrot.lane.b32.xlu0 %v3208, 92
        %v3471 = vpop.permute.xlu0 %3470
        %3472 = vrot.lane.b32.xlu0 %v3209, 92
        %v3473 = vpop.permute.xlu0 %3472
        %3474 = vrot.lane.b32.xlu0 %v3210, 92
        %v3475 = vpop.permute.xlu0 %3474
        %v3476 = vsel %vm451, %v3453, %v3455
        %v3477 = vsel %vm451, %v3455, %v3457
        %v3478 = vsel %vm451, %v3459, %v3461
        %v3479 = vsel %vm451, %v3461, %v3463
        %v3480 = vsel %vm451, %v3465, %v3467
        %v3481 = vsel %vm451, %v3467, %v3469
        %v3482 = vsel %vm451, %v3471, %v3473
        %v3483 = vsel %vm451, %v3473, %v3475
        %3496 = vrot.lane.b32.xlu0 %v3199, 91
        %v3497 = vpop.permute.xlu0 %3496
        %3498 = vrot.lane.b32.xlu0 %v3200, 91
        %v3499 = vpop.permute.xlu0 %3498
        %3500 = vrot.lane.b32.xlu0 %v3201, 91
        %v3501 = vpop.permute.xlu0 %3500
        %3502 = vrot.lane.b32.xlu0 %v3202, 91
        %v3503 = vpop.permute.xlu0 %3502
        %3504 = vrot.lane.b32.xlu0 %v3203, 91
        %v3505 = vpop.permute.xlu0 %3504
        %3506 = vrot.lane.b32.xlu0 %v3204, 91
        %v3507 = vpop.permute.xlu0 %3506
        %3508 = vrot.lane.b32.xlu0 %v3205, 91
        %v3509 = vpop.permute.xlu0 %3508
        %3510 = vrot.lane.b32.xlu0 %v3206, 91
        %v3511 = vpop.permute.xlu0 %3510
        %3512 = vrot.lane.b32.xlu0 %v3207, 91
        %v3513 = vpop.permute.xlu0 %3512
        %3514 = vrot.lane.b32.xlu0 %v3208, 91
        %v3515 = vpop.permute.xlu0 %3514
        %3516 = vrot.lane.b32.xlu0 %v3209, 91
        %v3517 = vpop.permute.xlu0 %3516
        %3518 = vrot.lane.b32.xlu0 %v3210, 91
        %v3519 = vpop.permute.xlu0 %3518
        %v3520 = vsel %vm463, %v3497, %v3499
        %v3521 = vsel %vm463, %v3499, %v3501
        %v3522 = vsel %vm463, %v3503, %v3505
        %v3523 = vsel %vm463, %v3505, %v3507
        %v3524 = vsel %vm463, %v3509, %v3511
        %v3525 = vsel %vm463, %v3511, %v3513
        %v3526 = vsel %vm463, %v3515, %v3517
        %v3527 = vsel %vm463, %v3517, %v3519
        %3540 = vrot.lane.b32.xlu0 %v3199, 90
        %v3541 = vpop.permute.xlu0 %3540
        %3542 = vrot.lane.b32.xlu0 %v3200, 90
        %v3543 = vpop.permute.xlu0 %3542
        %3544 = vrot.lane.b32.xlu0 %v3201, 90
        %v3545 = vpop.permute.xlu0 %3544
        %3546 = vrot.lane.b32.xlu0 %v3202, 90
        %v3547 = vpop.permute.xlu0 %3546
        %3548 = vrot.lane.b32.xlu0 %v3203, 90
        %v3549 = vpop.permute.xlu0 %3548
        %3550 = vrot.lane.b32.xlu0 %v3204, 90
        %v3551 = vpop.permute.xlu0 %3550
        %3552 = vrot.lane.b32.xlu0 %v3205, 90
        %v3553 = vpop.permute.xlu0 %3552
        %3554 = vrot.lane.b32.xlu0 %v3206, 90
        %v3555 = vpop.permute.xlu0 %3554
        %3556 = vrot.lane.b32.xlu0 %v3207, 90
        %v3557 = vpop.permute.xlu0 %3556
        %3558 = vrot.lane.b32.xlu0 %v3208, 90
        %v3559 = vpop.permute.xlu0 %3558
        %3560 = vrot.lane.b32.xlu0 %v3209, 90
        %v3561 = vpop.permute.xlu0 %3560
        %3562 = vrot.lane.b32.xlu0 %v3210, 90
        %v3563 = vpop.permute.xlu0 %3562
        %v3564 = vsel %vm475, %v3541, %v3543
        %v3565 = vsel %vm475, %v3543, %v3545
        %v3566 = vsel %vm475, %v3547, %v3549
        %v3567 = vsel %vm475, %v3549, %v3551
        %v3568 = vsel %vm475, %v3553, %v3555
        %v3569 = vsel %vm475, %v3555, %v3557
        %v3570 = vsel %vm475, %v3559, %v3561
        %v3571 = vsel %vm475, %v3561, %v3563
        %v3584 = vpack.c.bf16 %v3202, %v3199
        %v3585 = vpack.c.bf16 %v3203, %v3200
        %v3586 = vpack.c.bf16 %v3204, %v3201
        %v3587 = vpack.c.bf16 %v3208, %v3205
        %v3588 = vpack.c.bf16 %v3209, %v3206
        %v3589 = vpack.c.bf16 %v3210, %v3207
        %v3590 = vpack.c.bf16 %v3258, %v3256
        %v3591 = vpack.c.bf16 %v3259, %v3257
        %v3592 = vpack.c.bf16 %v3243, %v3237
        %v3593 = vpack.c.bf16 %v3262, %v3260
        %v3594 = vpack.c.bf16 %v3263, %v3261
        %v3595 = vpack.c.bf16 %v3255, %v3249
        %v3596 = vpack.c.bf16 %v3302, %v3300
        %v3597 = vpack.c.bf16 %v3303, %v3301
        %v3598 = vpack.c.bf16 %v3287, %v3281
        %v3599 = vpack.c.bf16 %v3306, %v3304
        %v3600 = vpack.c.bf16 %v3307, %v3305
        %v3601 = vpack.c.bf16 %v3299, %v3293
        %v3602 = vpack.c.bf16 %v3346, %v3344
        %v3603 = vpack.c.bf16 %v3347, %v3345
        %v3604 = vpack.c.bf16 %v3331, %v3325
        %v3605 = vpack.c.bf16 %v3350, %v3348
        %v3606 = vpack.c.bf16 %v3351, %v3349
        %v3607 = vpack.c.bf16 %v3343, %v3337
        %v3608 = vpack.c.bf16 %v3390, %v3388
        %v3609 = vpack.c.bf16 %v3391, %v3389
        %v3610 = vpack.c.bf16 %v3375, %v3369
        %v3611 = vpack.c.bf16 %v3394, %v3392
        %v3612 = vpack.c.bf16 %v3395, %v3393
        %v3613 = vpack.c.bf16 %v3387, %v3381
        %v3614 = vpack.c.bf16 %v3434, %v3432
        %v3615 = vpack.c.bf16 %v3435, %v3433
        %v3616 = vpack.c.bf16 %v3419, %v3413
        %v3617 = vpack.c.bf16 %v3438, %v3436
        %v3618 = vpack.c.bf16 %v3439, %v3437
        %v3619 = vpack.c.bf16 %v3431, %v3425
        %v3620 = vpack.c.bf16 %v3478, %v3476
        %v3621 = vpack.c.bf16 %v3479, %v3477
        %v3622 = vpack.c.bf16 %v3463, %v3457
        %v3623 = vpack.c.bf16 %v3482, %v3480
        %v3624 = vpack.c.bf16 %v3483, %v3481
        %v3625 = vpack.c.bf16 %v3475, %v3469
        %v3626 = vpack.c.bf16 %v3522, %v3520
        %v3627 = vpack.c.bf16 %v3523, %v3521
        %v3628 = vpack.c.bf16 %v3507, %v3501
        %v3629 = vpack.c.bf16 %v3526, %v3524
        %v3630 = vpack.c.bf16 %v3527, %v3525
        %v3631 = vpack.c.bf16 %v3519, %v3513
        %v3632 = vpack.c.bf16 %v3566, %v3564
        %v3633 = vpack.c.bf16 %v3567, %v3565
        %v3634 = vpack.c.bf16 %v3551, %v3545
        %v3635 = vpack.c.bf16 %v3570, %v3568
        %v3636 = vpack.c.bf16 %v3571, %v3569
        %v3637 = vpack.c.bf16 %v3563, %v3557
        %s3638 = scalar_lea.vmem %s8, 32
        %v3639 = vld [vmem:[%s3638] sm:$0xff]
        %v3640 = vld [vmem:[%s3638 + $0x8] sm:$0xff]
        %v3641 = vld [vmem:[%s3638 + $0x10] sm:$0xff]
        %v3642 = vld [vmem:[%s3638 + $0x18] sm:$0xff]
        %3644 = vset.pattern.permute.xlu0 0
        %3645 = vperm.xlu0 %3644, %v3639
        %v3646 = vpop.permute.xlu0 %3645
        %3649 = vset.pattern.permute.xlu0 0
        %3650 = vperm.xlu0 %3649, %v3640
        %v3651 = vpop.permute.xlu0 %3650
        %3654 = vset.pattern.permute.xlu0 0
        %3655 = vperm.xlu0 %3654, %v3641
        %v3656 = vpop.permute.xlu0 %3655
        %3659 = vset.pattern.permute.xlu0 0
        %3660 = vperm.xlu0 %3659, %v3642
        %v3661 = vpop.permute.xlu0 %3660
        %v3671 = vunpack.c.l.b16 %v3212
        %v3672 = vunpack.c.h.b16 %v3212
        %v3673 = vunpack.c.l.b16 %v3213
        %v3674 = vunpack.c.l.b16 %v3214
        %v3675 = vunpack.c.h.b16 %v3214
        %v3676 = vunpack.c.l.b16 %v3215
        %v3677 = vunpack.c.l.b16 %v3216
        %v3678 = vunpack.c.h.b16 %v3216
        %v3679 = vunpack.c.l.b16 %v3217
        %v3680 = vunpack.c.l.b16 %v3218
        %v3681 = vunpack.c.h.b16 %v3218
        %v3682 = vunpack.c.l.b16 %v3219
        %v3683 = vpack.c.b16 %v3674, %v3671
        %v3684 = vpack.c.b16 %v3675, %v3672
        %v3685 = vpack.c.b16 %v3676, %v3673
        %v3686 = vpack.c.b16 %v3680, %v3677
        %v3687 = vpack.c.b16 %v3681, %v3678
        %v3688 = vpack.c.b16 %v3682, %v3679
        %v3694 = vsel %vm1254, %v3685, 0
        %v3697 = vsel %vm1254, %v3688, 0
        %3699 = vmatprep.subr.bf16.mxu0 %v3585
        %3700 = vmatpush1.bf16.msra.mxu0 %v3584
        %3701 = vmatprep.subr.bf16.mxu0 %v3588
        %3702 = vmatpush1.bf16.msra.mxu0 %v3587
        %3703 = vmatprep.subr.bf16.mxu0 %v3591
        %3704 = vmatpush1.bf16.msra.mxu0 %v3590
        %3705 = vmatprep.subr.bf16.mxu0 %v3594
        %3706 = vmatpush1.bf16.msra.mxu0 %v3593
        %3707 = vmatprep.subr.bf16.mxu0 %v3597
        %3708 = vmatpush1.bf16.msra.mxu0 %v3596
        %3709 = vmatprep.subr.bf16.mxu0 %v3600
        %3710 = vmatpush1.bf16.msra.mxu0 %v3599
        %3711 = vmatprep.subr.bf16.mxu0 %v3603
        %3712 = vmatpush1.bf16.msra.mxu0 %v3602
        %3713 = vmatprep.subr.bf16.mxu0 %v3606
        %3714 = vmatpush1.bf16.msra.mxu0 %v3605
        %3715 = vmatprep.subr.bf16.mxu0 %v3609
        %3716 = vmatpush1.bf16.msra.mxu0 %v3608
        %3717 = vmatprep.subr.bf16.mxu0 %v3612
        %3718 = vmatpush1.bf16.msra.mxu0 %v3611
        %3719 = vmatprep.subr.bf16.mxu0 %v3615
        %3720 = vmatpush1.bf16.msra.mxu0 %v3614
        %3721 = vmatprep.subr.bf16.mxu0 %v3618
        %3722 = vmatpush1.bf16.msra.mxu0 %v3617
        %3723 = vmatprep.subr.bf16.mxu0 %v3621
        %3724 = vmatpush1.bf16.msra.mxu0 %v3620
        %3725 = vmatprep.subr.bf16.mxu0 %v3624
        %3726 = vmatpush1.bf16.msra.mxu0 %v3623
        %3727 = vmatprep.subr.bf16.mxu0 %v3627
        %3728 = vmatpush1.bf16.msra.mxu0 %v3626
        %3729 = vmatprep.subr.bf16.mxu0 %v3630
        %3730 = vmatpush1.bf16.msra.mxu0 %v3629
        %3731 = vmatprep.mubr.bf16.mxu0 %v3684
        %3732 = vmatmul.mubr.bf16.gmra.mrb[0].mxu0 %v3683
        %v3733 = vpop.f32.mrb[0].mxu0
        %v3734 = vadd.f32 %v3646, %v3733
        %v3735 = vpop.f32.mrb[0].mxu0
        %v3736 = vadd.f32 %v3646, %v3735
        %v3737 = vpop.f32.mrb[0].mxu0
        %v3738 = vadd.f32 %v3651, %v3737
        %v3739 = vpop.f32.mrb[0].mxu0
        %v3740 = vadd.f32 %v3651, %v3739
        %3741 = vmatprep.mubr.bf16.mxu0 %v3687
        %3742 = vmatmul.mubr.bf16.gmra.mrb[0].mxu0 %v3686
        %v3743 = vpop.f32.mrb[0].mxu0
        %v3744 = vadd.f32 %v3656, %v3743
        %v3745 = vpop.f32.mrb[0].mxu0
        %v3746 = vadd.f32 %v3656, %v3745
        %v3747 = vpop.f32.mrb[0].mxu0
        %v3748 = vadd.f32 %v3661, %v3747
        %v3749 = vpop.f32.mrb[0].mxu0
        %v3750 = vadd.f32 %v3661, %v3749
        %3751 = vdwg.mxu0
        %3752 = vmatprep.subr.bf16.mxu0 %v3633
        %3753 = vmatpush1.bf16.msra.mxu0 %v3632
        %3754 = vmatprep.subr.bf16.mxu0 %v3636
        %3755 = vmatpush1.bf16.msra.mxu0 %v3635
        %3756 = vmatprep.subr.bf16.mxu0 0
        %3757 = vmatpush1.bf16.msra.mxu0 0
        %3758 = vmatprep.subr.bf16.mxu0 0
        %3759 = vmatpush1.bf16.msra.mxu0 0
        %3760 = vmatprep.subr.bf16.mxu0 0
        %3761 = vmatpush1.bf16.msra.mxu0 0
        %3762 = vmatprep.subr.bf16.mxu0 0
        %3763 = vmatpush1.bf16.msra.mxu0 0
        %3764 = vmatprep.subr.bf16.mxu0 0
        %3765 = vmatpush1.bf16.msra.mxu0 0
        %3766 = vmatprep.subr.bf16.mxu0 0
        %3767 = vmatpush1.bf16.msra.mxu0 0
        %3768 = vmatprep.subr.bf16.mxu0 0
        %3769 = vmatpush1.bf16.msra.mxu0 0
        %3770 = vmatprep.subr.bf16.mxu0 0
        %3771 = vmatpush1.bf16.msra.mxu0 0
        %3772 = vmatprep.subr.bf16.mxu0 0
        %3773 = vmatpush1.bf16.msra.mxu0 0
        %3774 = vmatprep.subr.bf16.mxu0 0
        %3775 = vmatpush1.bf16.msra.mxu0 0
        %3776 = vmatprep.subr.bf16.mxu0 0
        %3777 = vmatpush1.bf16.msra.mxu0 0
        %3778 = vmatprep.subr.bf16.mxu0 0
        %3779 = vmatpush1.bf16.msra.mxu0 0
        %3780 = vmatprep.subr.bf16.mxu0 0
        %3781 = vmatpush1.bf16.msra.mxu0 0
        %3782 = vmatprep.subr.bf16.mxu0 0
        %3783 = vmatpush1.bf16.msra.mxu0 0
        %3784 = vmatprep.mubr.bf16.mxu0 0
        %3785 = vmatmul.mubr.bf16.gmra.mrb[0].mxu0 %v3694
        %v3786 = vpop.f32.mrb[0].mxu0
        %v3787 = vadd.f32 %v3734, %v3786
        %v3788 = vpop.f32.mrb[0].mxu0
        %v3789 = vadd.f32 %v3736, %v3788
        %v3790 = vpop.f32.mrb[0].mxu0
        %v3791 = vadd.f32 %v3738, %v3790
        %v3792 = vpop.f32.mrb[0].mxu0
        %v3793 = vadd.f32 %v3740, %v3792
        %3794 = vmatprep.mubr.bf16.mxu0 0
        %3795 = vmatmul.mubr.bf16.gmra.mrb[0].mxu0 %v3697
        %v3796 = vpop.f32.mrb[0].mxu0
        %v3797 = vadd.f32 %v3744, %v3796
        %v3798 = vpop.f32.mrb[0].mxu0
        %v3799 = vadd.f32 %v3746, %v3798
        %v3800 = vpop.f32.mrb[0].mxu0
        %v3801 = vadd.f32 %v3748, %v3800
        %v3802 = vpop.f32.mrb[0].mxu0
        %v3803 = vadd.f32 %v3750, %v3802
        %3804 = vdwg.mxu0
        %3805 = vmatprep.subr.bf16.mxu0 0
        %3806 = vmatpush1.bf16.msra.mxu0 %v3586
        %3807 = vmatprep.subr.bf16.mxu0 0
        %3808 = vmatpush1.bf16.msra.mxu0 %v3589
        %3809 = vmatprep.subr.bf16.mxu0 0
        %3810 = vmatpush1.bf16.msra.mxu0 %v3592
        %3811 = vmatprep.subr.bf16.mxu0 0
        %3812 = vmatpush1.bf16.msra.mxu0 %v3595
        %3813 = vmatprep.subr.bf16.mxu0 0
        %3814 = vmatpush1.bf16.msra.mxu0 %v3598
        %3815 = vmatprep.subr.bf16.mxu0 0
        %3816 = vmatpush1.bf16.msra.mxu0 %v3601
        %3817 = vmatprep.subr.bf16.mxu0 0
        %3818 = vmatpush1.bf16.msra.mxu0 %v3604
        %3819 = vmatprep.subr.bf16.mxu0 0
        %3820 = vmatpush1.bf16.msra.mxu0 %v3607
        %3821 = vmatprep.subr.bf16.mxu0 0
        %3822 = vmatpush1.bf16.msra.mxu0 %v3610
        %3823 = vmatprep.subr.bf16.mxu0 0
        %3824 = vmatpush1.bf16.msra.mxu0 %v3613
        %3825 = vmatprep.subr.bf16.mxu0 0
        %3826 = vmatpush1.bf16.msra.mxu0 %v3616
        %3827 = vmatprep.subr.bf16.mxu0 0
        %3828 = vmatpush1.bf16.msra.mxu0 %v3619
        %3829 = vmatprep.subr.bf16.mxu0 0
        %3830 = vmatpush1.bf16.msra.mxu0 %v3622
        %3831 = vmatprep.subr.bf16.mxu0 0
        %3832 = vmatpush1.bf16.msra.mxu0 %v3625
        %3833 = vmatprep.subr.bf16.mxu0 0
        %3834 = vmatpush1.bf16.msra.mxu0 %v3628
        %3835 = vmatprep.subr.bf16.mxu0 0
        %3836 = vmatpush1.bf16.msra.mxu0 %v3631
        %3837 = vmatprep.mubr.bf16.mxu0 %v3684
        %3838 = vmatmul.mubr.bf16.gmra.mrb[0].mxu0 %v3683
        %v3839 = vpop.f32.mrb[0].mxu0
        %v3840 = vadd.f32 %v3646, %v3839
        %v3841 = vpop.f32.mrb[0].mxu0
        %v3842 = vpop.f32.mrb[0].mxu0
        %v3843 = vadd.f32 %v3651, %v3842
        %v3844 = vpop.f32.mrb[0].mxu0
        %3845 = vmatprep.mubr.bf16.mxu0 %v3687
        %3846 = vmatmul.mubr.bf16.gmra.mrb[0].mxu0 %v3686
        %v3847 = vpop.f32.mrb[0].mxu0
        %v3848 = vadd.f32 %v3656, %v3847
        %v3849 = vpop.f32.mrb[0].mxu0
        %v3850 = vpop.f32.mrb[0].mxu0
        %v3851 = vadd.f32 %v3661, %v3850
        %v3852 = vpop.f32.mrb[0].mxu0
        %3853 = vdwg.mxu0
        %3854 = vmatprep.subr.bf16.mxu0 0
        %3855 = vmatpush1.bf16.msra.mxu0 %v3634
        %3856 = vmatprep.subr.bf16.mxu0 0
        %3857 = vmatpush1.bf16.msra.mxu0 %v3637
        %3858 = vmatprep.subr.bf16.mxu0 0
        %3859 = vmatpush1.bf16.msra.mxu0 0
        %3860 = vmatprep.subr.bf16.mxu0 0
        %3861 = vmatpush1.bf16.msra.mxu0 0
        %3862 = vmatprep.subr.bf16.mxu0 0
        %3863 = vmatpush1.bf16.msra.mxu0 0
        %3864 = vmatprep.subr.bf16.mxu0 0
        %3865 = vmatpush1.bf16.msra.mxu0 0
        %3866 = vmatprep.subr.bf16.mxu0 0
        %3867 = vmatpush1.bf16.msra.mxu0 0
        %3868 = vmatprep.subr.bf16.mxu0 0
        %3869 = vmatpush1.bf16.msra.mxu0 0
        %3870 = vmatprep.subr.bf16.mxu0 0
        %3871 = vmatpush1.bf16.msra.mxu0 0
        %3872 = vmatprep.subr.bf16.mxu0 0
        %3873 = vmatpush1.bf16.msra.mxu0 0
        %3874 = vmatprep.subr.bf16.mxu0 0
        %3875 = vmatpush1.bf16.msra.mxu0 0
        %3876 = vmatprep.subr.bf16.mxu0 0
        %3877 = vmatpush1.bf16.msra.mxu0 0
        %3878 = vmatprep.subr.bf16.mxu0 0
        %3879 = vmatpush1.bf16.msra.mxu0 0
        %3880 = vmatprep.subr.bf16.mxu0 0
        %3881 = vmatpush1.bf16.msra.mxu0 0
        %3882 = vmatprep.subr.bf16.mxu0 0
        %3883 = vmatpush1.bf16.msra.mxu0 0
        %3884 = vmatprep.subr.bf16.mxu0 0
        %3885 = vmatpush1.bf16.msra.mxu0 0
        %3886 = vmatprep.mubr.bf16.mxu0 0
        %3887 = vmatmul.mubr.bf16.gmra.mrb[0].mxu0 %v3694
        %v3888 = vpop.f32.mrb[0].mxu0
        %v3889 = vadd.f32 %v3840, %v3888
        %v3890 = vpop.f32.mrb[0].mxu0
        %v3891 = vpop.f32.mrb[0].mxu0
        %v3892 = vadd.f32 %v3843, %v3891
        %v3893 = vpop.f32.mrb[0].mxu0
        %3894 = vmatprep.mubr.bf16.mxu0 0
        %3895 = vmatmul.mubr.bf16.gmra.mrb[0].mxu0 %v3697
        %v3896 = vpop.f32.mrb[0].mxu0
        %v3897 = vadd.f32 %v3848, %v3896
        %v3898 = vpop.f32.mrb[0].mxu0
        %v3899 = vpop.f32.mrb[0].mxu0
        %v3900 = vadd.f32 %v3851, %v3899
        %v3901 = vpop.f32.mrb[0].mxu0
        %3902 = vdwg.mxu0
        %v3903 = vadd.f32 %v3787, %v2566
        %v3904 = vadd.f32 %v3789, %v2567
        %v3905 = vadd.f32 %v3889, %v2547
        %v3906 = vadd.f32 %v3791, %v2568
        %v3907 = vadd.f32 %v3793, %v2569
        %v3908 = vadd.f32 %v3892, %v2553
        %v3909 = vadd.f32 %v3797, %v2570
        %v3910 = vadd.f32 %v3799, %v2571
        %v3911 = vadd.f32 %v3897, %v2559
        %v3912 = vadd.f32 %v3801, %v2572
        %v3913 = vadd.f32 %v3803, %v2573
        %v3914 = vadd.f32 %v3900, %v2565
        %v3915 = vmul.f32 %v3903, %v667
        %v3916 = vmul.f32 %v3904, %v671
        %v3917 = vmul.f32 %v3905, %v675
        %v3918 = vmul.f32 %v3906, %v667
        %v3919 = vmul.f32 %v3907, %v671
        %v3920 = vmul.f32 %v3908, %v675
        %v3921 = vmul.f32 %v3909, %v667
        %v3922 = vmul.f32 %v3910, %v671
        %v3923 = vmul.f32 %v3911, %v675
        %v3924 = vmul.f32 %v3912, %v667
        %v3925 = vmul.f32 %v3913, %v671
        %v3926 = vmul.f32 %v3914, %v675
        %3939 = vrot.lane.b32.xlu0 %v3915, 19
        %v3940 = vpop.permute.xlu0 %3939
        %3941 = vrot.lane.b32.xlu0 %v3916, 19
        %v3942 = vpop.permute.xlu0 %3941
        %3943 = vrot.lane.b32.xlu0 %v3917, 19
        %v3944 = vpop.permute.xlu0 %3943
        %3945 = vrot.lane.b32.xlu0 %v3918, 19
        %v3946 = vpop.permute.xlu0 %3945
        %3947 = vrot.lane.b32.xlu0 %v3919, 19
        %v3948 = vpop.permute.xlu0 %3947
        %3949 = vrot.lane.b32.xlu0 %v3920, 19
        %v3950 = vpop.permute.xlu0 %3949
        %3951 = vrot.lane.b32.xlu0 %v3921, 19
        %v3952 = vpop.permute.xlu0 %3951
        %3953 = vrot.lane.b32.xlu0 %v3922, 19
        %v3954 = vpop.permute.xlu0 %3953
        %3955 = vrot.lane.b32.xlu0 %v3923, 19
        %v3956 = vpop.permute.xlu0 %3955
        %3957 = vrot.lane.b32.xlu0 %v3924, 19
        %v3958 = vpop.permute.xlu0 %3957
        %3959 = vrot.lane.b32.xlu0 %v3925, 19
        %v3960 = vpop.permute.xlu0 %3959
        %3961 = vrot.lane.b32.xlu0 %v3926, 19
        %v3962 = vpop.permute.xlu0 %3961
        %v3963 = vsel %vm727, %v3940, %v3942
        %v3964 = vsel %vm727, %v3942, %v3944
        %v3965 = vsel %vm727, %v3946, %v3948
        %v3966 = vsel %vm727, %v3948, %v3950
        %v3967 = vsel %vm727, %v3952, %v3954
        %v3968 = vsel %vm727, %v3954, %v3956
        %v3969 = vsel %vm727, %v3958, %v3960
        %v3970 = vsel %vm727, %v3960, %v3962
        %3983 = vst.msk [vmem:[#allocation2] sm:$0xff] %vm748, %v3940
        %3984 = vst [vmem:[#allocation2 + $0x8] sm:$0xff] %v3963
        %3985 = vst.msk [vmem:[#allocation2 + $0x10] sm:$0xff] %vm751, %v3964
        %3986 = vst.msk [vmem:[#allocation2 + $0x18] sm:$0xff] %vm748, %v3946
        %3987 = vst [vmem:[#allocation2 + $0x20] sm:$0xff] %v3965
        %3988 = vst.msk [vmem:[#allocation2 + $0x28] sm:$0xff] %vm751, %v3966
        %3989 = vst.msk [vmem:[#allocation2 + $0x30] sm:$0xff] %vm748, %v3952
        %3990 = vst [vmem:[#allocation2 + $0x38] sm:$0xff] %v3967
        %3991 = vst.msk [vmem:[#allocation2 + $0x40] sm:$0xff] %vm751, %v3968
        %3992 = vst.msk [vmem:[#allocation2 + $0x48] sm:$0xff] %vm748, %v3958
        %3993 = vst [vmem:[#allocation2 + $0x50] sm:$0xff] %v3969
        %3994 = vst.msk [vmem:[#allocation2 + $0x58] sm:$0xff] %vm751, %v3970
        %v3995 = vld [vmem:[#allocation2] sm:$0xff]
        %v3996 = vld [vmem:[#allocation2 + $0x8] sm:$0xff]
        %v3997 = vld [vmem:[#allocation2 + $0x10] sm:$0xff]
        %v3998 = vld [vmem:[#allocation2 + $0x18] sm:$0xff]
        %v3999 = vld [vmem:[#allocation2 + $0x20] sm:$0xff]
        %v4000 = vld [vmem:[#allocation2 + $0x28] sm:$0xff]
        %v4001 = vld [vmem:[#allocation2 + $0x30] sm:$0xff]
        %v4002 = vld [vmem:[#allocation2 + $0x38] sm:$0xff]
        %v4003 = vld [vmem:[#allocation2 + $0x40] sm:$0xff]
        %v4004 = vld [vmem:[#allocation2 + $0x48] sm:$0xff]
        %v4005 = vld [vmem:[#allocation2 + $0x50] sm:$0xff]
        %v4006 = vld [vmem:[#allocation2 + $0x58] sm:$0xff]
        %s4007 = scalar_lea.vmem %s5, 96
        %v4008 = vld [vmem:[%s4007] sm:$0xff]
        %v4009 = vld [vmem:[%s4007 + $0x8] sm:$0xf]
        %v4010 = vld [vmem:[%s4007 + $0xc] sm:$0xff]
        %v4011 = vld [vmem:[%s4007 + $0x14] sm:$0xf]
        %v4012 = vld [vmem:[%s4007 + $0x18] sm:$0xff]
        %v4013 = vld [vmem:[%s4007 + $0x20] sm:$0xf]
        %v4014 = vld [vmem:[%s4007 + $0x24] sm:$0xff]
        %v4015 = vld [vmem:[%s4007 + $0x2c] sm:$0xf]
        %4028 = vrot.lane.b32.xlu0 %v3995, 127
        %v4029 = vpop.permute.xlu0 %4028
        %4030 = vrot.lane.b32.xlu0 %v3996, 127
        %v4031 = vpop.permute.xlu0 %4030
        %4032 = vrot.lane.b32.xlu0 %v3997, 127
        %v4033 = vpop.permute.xlu0 %4032
        %4034 = vrot.lane.b32.xlu0 %v3998, 127
        %v4035 = vpop.permute.xlu0 %4034
        %4036 = vrot.lane.b32.xlu0 %v3999, 127
        %v4037 = vpop.permute.xlu0 %4036
        %4038 = vrot.lane.b32.xlu0 %v4000, 127
        %v4039 = vpop.permute.xlu0 %4038
        %4040 = vrot.lane.b32.xlu0 %v4001, 127
        %v4041 = vpop.permute.xlu0 %4040
        %4042 = vrot.lane.b32.xlu0 %v4002, 127
        %v4043 = vpop.permute.xlu0 %4042
        %4044 = vrot.lane.b32.xlu0 %v4003, 127
        %v4045 = vpop.permute.xlu0 %4044
        %4046 = vrot.lane.b32.xlu0 %v4004, 127
        %v4047 = vpop.permute.xlu0 %4046
        %4048 = vrot.lane.b32.xlu0 %v4005, 127
        %v4049 = vpop.permute.xlu0 %4048
        %4050 = vrot.lane.b32.xlu0 %v4006, 127
        %v4051 = vpop.permute.xlu0 %4050
        %v4052 = vsel %vm391, %v4029, %v4031
        %v4053 = vsel %vm391, %v4031, %v4033
        %v4054 = vsel %vm391, %v4035, %v4037
        %v4055 = vsel %vm391, %v4037, %v4039
        %v4056 = vsel %vm391, %v4041, %v4043
        %v4057 = vsel %vm391, %v4043, %v4045
        %v4058 = vsel %vm391, %v4047, %v4049
        %v4059 = vsel %vm391, %v4049, %v4051
        %4072 = vrot.lane.b32.xlu0 %v3995, 126
        %v4073 = vpop.permute.xlu0 %4072
        %4074 = vrot.lane.b32.xlu0 %v3996, 126
        %v4075 = vpop.permute.xlu0 %4074
        %4076 = vrot.lane.b32.xlu0 %v3997, 126
        %v4077 = vpop.permute.xlu0 %4076
        %4078 = vrot.lane.b32.xlu0 %v3998, 126
        %v4079 = vpop.permute.xlu0 %4078
        %4080 = vrot.lane.b32.xlu0 %v3999, 126
        %v4081 = vpop.permute.xlu0 %4080
        %4082 = vrot.lane.b32.xlu0 %v4000, 126
        %v4083 = vpop.permute.xlu0 %4082
        %4084 = vrot.lane.b32.xlu0 %v4001, 126
        %v4085 = vpop.permute.xlu0 %4084
        %4086 = vrot.lane.b32.xlu0 %v4002, 126
        %v4087 = vpop.permute.xlu0 %4086
        %4088 = vrot.lane.b32.xlu0 %v4003, 126
        %v4089 = vpop.permute.xlu0 %4088
        %4090 = vrot.lane.b32.xlu0 %v4004, 126
        %v4091 = vpop.permute.xlu0 %4090
        %4092 = vrot.lane.b32.xlu0 %v4005, 126
        %v4093 = vpop.permute.xlu0 %4092
        %4094 = vrot.lane.b32.xlu0 %v4006, 126
        %v4095 = vpop.permute.xlu0 %4094
        %v4096 = vsel %vm403, %v4073, %v4075
        %v4097 = vsel %vm403, %v4075, %v4077
        %v4098 = vsel %vm403, %v4079, %v4081
        %v4099 = vsel %vm403, %v4081, %v4083
        %v4100 = vsel %vm403, %v4085, %v4087
        %v4101 = vsel %vm403, %v4087, %v4089
        %v4102 = vsel %vm403, %v4091, %v4093
        %v4103 = vsel %vm403, %v4093, %v4095
        %4116 = vrot.lane.b32.xlu0 %v3995, 110
        %v4117 = vpop.permute.xlu0 %4116
        %4118 = vrot.lane.b32.xlu0 %v3996, 110
        %v4119 = vpop.permute.xlu0 %4118
        %4120 = vrot.lane.b32.xlu0 %v3997, 110
        %v4121 = vpop.permute.xlu0 %4120
        %4122 = vrot.lane.b32.xlu0 %v3998, 110
        %v4123 = vpop.permute.xlu0 %4122
        %4124 = vrot.lane.b32.xlu0 %v3999, 110
        %v4125 = vpop.permute.xlu0 %4124
        %4126 = vrot.lane.b32.xlu0 %v4000, 110
        %v4127 = vpop.permute.xlu0 %4126
        %4128 = vrot.lane.b32.xlu0 %v4001, 110
        %v4129 = vpop.permute.xlu0 %4128
        %4130 = vrot.lane.b32.xlu0 %v4002, 110
        %v4131 = vpop.permute.xlu0 %4130
        %4132 = vrot.lane.b32.xlu0 %v4003, 110
        %v4133 = vpop.permute.xlu0 %4132
        %4134 = vrot.lane.b32.xlu0 %v4004, 110
        %v4135 = vpop.permute.xlu0 %4134
        %4136 = vrot.lane.b32.xlu0 %v4005, 110
        %v4137 = vpop.permute.xlu0 %4136
        %4138 = vrot.lane.b32.xlu0 %v4006, 110
        %v4139 = vpop.permute.xlu0 %4138
        %v4140 = vsel %vm415, %v4117, %v4119
        %v4141 = vsel %vm415, %v4119, %v4121
        %v4142 = vsel %vm415, %v4123, %v4125
        %v4143 = vsel %vm415, %v4125, %v4127
        %v4144 = vsel %vm415, %v4129, %v4131
        %v4145 = vsel %vm415, %v4131, %v4133
        %v4146 = vsel %vm415, %v4135, %v4137
        %v4147 = vsel %vm415, %v4137, %v4139
        %4160 = vrot.lane.b32.xlu0 %v3995, 109
        %v4161 = vpop.permute.xlu0 %4160
        %4162 = vrot.lane.b32.xlu0 %v3996, 109
        %v4163 = vpop.permute.xlu0 %4162
        %4164 = vrot.lane.b32.xlu0 %v3997, 109
        %v4165 = vpop.permute.xlu0 %4164
        %4166 = vrot.lane.b32.xlu0 %v3998, 109
        %v4167 = vpop.permute.xlu0 %4166
        %4168 = vrot.lane.b32.xlu0 %v3999, 109
        %v4169 = vpop.permute.xlu0 %4168
        %4170 = vrot.lane.b32.xlu0 %v4000, 109
        %v4171 = vpop.permute.xlu0 %4170
        %4172 = vrot.lane.b32.xlu0 %v4001, 109
        %v4173 = vpop.permute.xlu0 %4172
        %4174 = vrot.lane.b32.xlu0 %v4002, 109
        %v4175 = vpop.permute.xlu0 %4174
        %4176 = vrot.lane.b32.xlu0 %v4003, 109
        %v4177 = vpop.permute.xlu0 %4176
        %4178 = vrot.lane.b32.xlu0 %v4004, 109
        %v4179 = vpop.permute.xlu0 %4178
        %4180 = vrot.lane.b32.xlu0 %v4005, 109
        %v4181 = vpop.permute.xlu0 %4180
        %4182 = vrot.lane.b32.xlu0 %v4006, 109
        %v4183 = vpop.permute.xlu0 %4182
        %v4184 = vsel %vm427, %v4161, %v4163
        %v4185 = vsel %vm427, %v4163, %v4165
        %v4186 = vsel %vm427, %v4167, %v4169
        %v4187 = vsel %vm427, %v4169, %v4171
        %v4188 = vsel %vm427, %v4173, %v4175
        %v4189 = vsel %vm427, %v4175, %v4177
        %v4190 = vsel %vm427, %v4179, %v4181
        %v4191 = vsel %vm427, %v4181, %v4183
        %4204 = vrot.lane.b32.xlu0 %v3995, 108
        %v4205 = vpop.permute.xlu0 %4204
        %4206 = vrot.lane.b32.xlu0 %v3996, 108
        %v4207 = vpop.permute.xlu0 %4206
        %4208 = vrot.lane.b32.xlu0 %v3997, 108
        %v4209 = vpop.permute.xlu0 %4208
        %4210 = vrot.lane.b32.xlu0 %v3998, 108
        %v4211 = vpop.permute.xlu0 %4210
        %4212 = vrot.lane.b32.xlu0 %v3999, 108
        %v4213 = vpop.permute.xlu0 %4212
        %4214 = vrot.lane.b32.xlu0 %v4000, 108
        %v4215 = vpop.permute.xlu0 %4214
        %4216 = vrot.lane.b32.xlu0 %v4001, 108
        %v4217 = vpop.permute.xlu0 %4216
        %4218 = vrot.lane.b32.xlu0 %v4002, 108
        %v4219 = vpop.permute.xlu0 %4218
        %4220 = vrot.lane.b32.xlu0 %v4003, 108
        %v4221 = vpop.permute.xlu0 %4220
        %4222 = vrot.lane.b32.xlu0 %v4004, 108
        %v4223 = vpop.permute.xlu0 %4222
        %4224 = vrot.lane.b32.xlu0 %v4005, 108
        %v4225 = vpop.permute.xlu0 %4224
        %4226 = vrot.lane.b32.xlu0 %v4006, 108
        %v4227 = vpop.permute.xlu0 %4226
        %v4228 = vsel %vm439, %v4205, %v4207
        %v4229 = vsel %vm439, %v4207, %v4209
        %v4230 = vsel %vm439, %v4211, %v4213
        %v4231 = vsel %vm439, %v4213, %v4215
        %v4232 = vsel %vm439, %v4217, %v4219
        %v4233 = vsel %vm439, %v4219, %v4221
        %v4234 = vsel %vm439, %v4223, %v4225
        %v4235 = vsel %vm439, %v4225, %v4227
        %4248 = vrot.lane.b32.xlu0 %v3995, 92
        %v4249 = vpop.permute.xlu0 %4248
        %4250 = vrot.lane.b32.xlu0 %v3996, 92
        %v4251 = vpop.permute.xlu0 %4250
        %4252 = vrot.lane.b32.xlu0 %v3997, 92
        %v4253 = vpop.permute.xlu0 %4252
        %4254 = vrot.lane.b32.xlu0 %v3998, 92
        %v4255 = vpop.permute.xlu0 %4254
        %4256 = vrot.lane.b32.xlu0 %v3999, 92
        %v4257 = vpop.permute.xlu0 %4256
        %4258 = vrot.lane.b32.xlu0 %v4000, 92
        %v4259 = vpop.permute.xlu0 %4258
        %4260 = vrot.lane.b32.xlu0 %v4001, 92
        %v4261 = vpop.permute.xlu0 %4260
        %4262 = vrot.lane.b32.xlu0 %v4002, 92
        %v4263 = vpop.permute.xlu0 %4262
        %4264 = vrot.lane.b32.xlu0 %v4003, 92
        %v4265 = vpop.permute.xlu0 %4264
        %4266 = vrot.lane.b32.xlu0 %v4004, 92
        %v4267 = vpop.permute.xlu0 %4266
        %4268 = vrot.lane.b32.xlu0 %v4005, 92
        %v4269 = vpop.permute.xlu0 %4268
        %4270 = vrot.lane.b32.xlu0 %v4006, 92
        %v4271 = vpop.permute.xlu0 %4270
        %v4272 = vsel %vm451, %v4249, %v4251
        %v4273 = vsel %vm451, %v4251, %v4253
        %v4274 = vsel %vm451, %v4255, %v4257
        %v4275 = vsel %vm451, %v4257, %v4259
        %v4276 = vsel %vm451, %v4261, %v4263
        %v4277 = vsel %vm451, %v4263, %v4265
        %v4278 = vsel %vm451, %v4267, %v4269
        %v4279 = vsel %vm451, %v4269, %v4271
        %4292 = vrot.lane.b32.xlu0 %v3995, 91
        %v4293 = vpop.permute.xlu0 %4292
        %4294 = vrot.lane.b32.xlu0 %v3996, 91
        %v4295 = vpop.permute.xlu0 %4294
        %4296 = vrot.lane.b32.xlu0 %v3997, 91
        %v4297 = vpop.permute.xlu0 %4296
        %4298 = vrot.lane.b32.xlu0 %v3998, 91
        %v4299 = vpop.permute.xlu0 %4298
        %4300 = vrot.lane.b32.xlu0 %v3999, 91
        %v4301 = vpop.permute.xlu0 %4300
        %4302 = vrot.lane.b32.xlu0 %v4000, 91
        %v4303 = vpop.permute.xlu0 %4302
        %4304 = vrot.lane.b32.xlu0 %v4001, 91
        %v4305 = vpop.permute.xlu0 %4304
        %4306 = vrot.lane.b32.xlu0 %v4002, 91
        %v4307 = vpop.permute.xlu0 %4306
        %4308 = vrot.lane.b32.xlu0 %v4003, 91
        %v4309 = vpop.permute.xlu0 %4308
        %4310 = vrot.lane.b32.xlu0 %v4004, 91
        %v4311 = vpop.permute.xlu0 %4310
        %4312 = vrot.lane.b32.xlu0 %v4005, 91
        %v4313 = vpop.permute.xlu0 %4312
        %4314 = vrot.lane.b32.xlu0 %v4006, 91
        %v4315 = vpop.permute.xlu0 %4314
        %v4316 = vsel %vm463, %v4293, %v4295
        %v4317 = vsel %vm463, %v4295, %v4297
        %v4318 = vsel %vm463, %v4299, %v4301
        %v4319 = vsel %vm463, %v4301, %v4303
        %v4320 = vsel %vm463, %v4305, %v4307
        %v4321 = vsel %vm463, %v4307, %v4309
        %v4322 = vsel %vm463, %v4311, %v4313
        %v4323 = vsel %vm463, %v4313, %v4315
        %4336 = vrot.lane.b32.xlu0 %v3995, 90
        %v4337 = vpop.permute.xlu0 %4336
        %4338 = vrot.lane.b32.xlu0 %v3996, 90
        %v4339 = vpop.permute.xlu0 %4338
        %4340 = vrot.lane.b32.xlu0 %v3997, 90
        %v4341 = vpop.permute.xlu0 %4340
        %4342 = vrot.lane.b32.xlu0 %v3998, 90
        %v4343 = vpop.permute.xlu0 %4342
        %4344 = vrot.lane.b32.xlu0 %v3999, 90
        %v4345 = vpop.permute.xlu0 %4344
        %4346 = vrot.lane.b32.xlu0 %v4000, 90
        %v4347 = vpop.permute.xlu0 %4346
        %4348 = vrot.lane.b32.xlu0 %v4001, 90
        %v4349 = vpop.permute.xlu0 %4348
        %4350 = vrot.lane.b32.xlu0 %v4002, 90
        %v4351 = vpop.permute.xlu0 %4350
        %4352 = vrot.lane.b32.xlu0 %v4003, 90
        %v4353 = vpop.permute.xlu0 %4352
        %4354 = vrot.lane.b32.xlu0 %v4004, 90
        %v4355 = vpop.permute.xlu0 %4354
        %4356 = vrot.lane.b32.xlu0 %v4005, 90
        %v4357 = vpop.permute.xlu0 %4356
        %4358 = vrot.lane.b32.xlu0 %v4006, 90
        %v4359 = vpop.permute.xlu0 %4358
        %v4360 = vsel %vm475, %v4337, %v4339
        %v4361 = vsel %vm475, %v4339, %v4341
        %v4362 = vsel %vm475, %v4343, %v4345
        %v4363 = vsel %vm475, %v4345, %v4347
        %v4364 = vsel %vm475, %v4349, %v4351
        %v4365 = vsel %vm475, %v4351, %v4353
        %v4366 = vsel %vm475, %v4355, %v4357
        %v4367 = vsel %vm475, %v4357, %v4359
        %v4380 = vpack.c.bf16 %v3998, %v3995
        %v4381 = vpack.c.bf16 %v3999, %v3996
        %v4382 = vpack.c.bf16 %v4000, %v3997
        %v4383 = vpack.c.bf16 %v4004, %v4001
        %v4384 = vpack.c.bf16 %v4005, %v4002
        %v4385 = vpack.c.bf16 %v4006, %v4003
        %v4386 = vpack.c.bf16 %v4054, %v4052
        %v4387 = vpack.c.bf16 %v4055, %v4053
        %v4388 = vpack.c.bf16 %v4039, %v4033
        %v4389 = vpack.c.bf16 %v4058, %v4056
        %v4390 = vpack.c.bf16 %v4059, %v4057
        %v4391 = vpack.c.bf16 %v4051, %v4045
        %v4392 = vpack.c.bf16 %v4098, %v4096
        %v4393 = vpack.c.bf16 %v4099, %v4097
        %v4394 = vpack.c.bf16 %v4083, %v4077
        %v4395 = vpack.c.bf16 %v4102, %v4100
        %v4396 = vpack.c.bf16 %v4103, %v4101
        %v4397 = vpack.c.bf16 %v4095, %v4089
        %v4398 = vpack.c.bf16 %v4142, %v4140
        %v4399 = vpack.c.bf16 %v4143, %v4141
        %v4400 = vpack.c.bf16 %v4127, %v4121
        %v4401 = vpack.c.bf16 %v4146, %v4144
        %v4402 = vpack.c.bf16 %v4147, %v4145
        %v4403 = vpack.c.bf16 %v4139, %v4133
        %v4404 = vpack.c.bf16 %v4186, %v4184
        %v4405 = vpack.c.bf16 %v4187, %v4185
        %v4406 = vpack.c.bf16 %v4171, %v4165
        %v4407 = vpack.c.bf16 %v4190, %v4188
        %v4408 = vpack.c.bf16 %v4191, %v4189
        %v4409 = vpack.c.bf16 %v4183, %v4177
        %v4410 = vpack.c.bf16 %v4230, %v4228
        %v4411 = vpack.c.bf16 %v4231, %v4229
        %v4412 = vpack.c.bf16 %v4215, %v4209
        %v4413 = vpack.c.bf16 %v4234, %v4232
        %v4414 = vpack.c.bf16 %v4235, %v4233
        %v4415 = vpack.c.bf16 %v4227, %v4221
        %v4416 = vpack.c.bf16 %v4274, %v4272
        %v4417 = vpack.c.bf16 %v4275, %v4273
        %v4418 = vpack.c.bf16 %v4259, %v4253
        %v4419 = vpack.c.bf16 %v4278, %v4276
        %v4420 = vpack.c.bf16 %v4279, %v4277
        %v4421 = vpack.c.bf16 %v4271, %v4265
        %v4422 = vpack.c.bf16 %v4318, %v4316
        %v4423 = vpack.c.bf16 %v4319, %v4317
        %v4424 = vpack.c.bf16 %v4303, %v4297
        %v4425 = vpack.c.bf16 %v4322, %v4320
        %v4426 = vpack.c.bf16 %v4323, %v4321
        %v4427 = vpack.c.bf16 %v4315, %v4309
        %v4428 = vpack.c.bf16 %v4362, %v4360
        %v4429 = vpack.c.bf16 %v4363, %v4361
        %v4430 = vpack.c.bf16 %v4347, %v4341
        %v4431 = vpack.c.bf16 %v4366, %v4364
        %v4432 = vpack.c.bf16 %v4367, %v4365
        %v4433 = vpack.c.bf16 %v4359, %v4353
        %s4434 = scalar_lea.vmem %s6, 64
        %v4435 = vld [vmem:[%s4434] sm:$0xff]
        %v4436 = vld [vmem:[%s4434 + $0x8] sm:$0xff]
        %v4437 = vld [vmem:[%s4434 + $0x10] sm:$0xff]
        %v4438 = vld [vmem:[%s4434 + $0x18] sm:$0xff]
        %4440 = vset.pattern.permute.xlu0 0
        %4441 = vperm.xlu0 %4440, %v4435
        %v4442 = vpop.permute.xlu0 %4441
        %4445 = vset.pattern.permute.xlu0 0
        %4446 = vperm.xlu0 %4445, %v4436
        %v4447 = vpop.permute.xlu0 %4446
        %4450 = vset.pattern.permute.xlu0 0
        %4451 = vperm.xlu0 %4450, %v4437
        %v4452 = vpop.permute.xlu0 %4451
        %4455 = vset.pattern.permute.xlu0 0
        %4456 = vperm.xlu0 %4455, %v4438
        %v4457 = vpop.permute.xlu0 %4456
        %v4467 = vunpack.c.l.b16 %v4008
        %v4468 = vunpack.c.h.b16 %v4008
        %v4469 = vunpack.c.l.b16 %v4009
        %v4470 = vunpack.c.l.b16 %v4010
        %v4471 = vunpack.c.h.b16 %v4010
        %v4472 = vunpack.c.l.b16 %v4011
        %v4473 = vunpack.c.l.b16 %v4012
        %v4474 = vunpack.c.h.b16 %v4012
        %v4475 = vunpack.c.l.b16 %v4013
        %v4476 = vunpack.c.l.b16 %v4014
        %v4477 = vunpack.c.h.b16 %v4014
        %v4478 = vunpack.c.l.b16 %v4015
        %v4479 = vpack.c.b16 %v4470, %v4467
        %v4480 = vpack.c.b16 %v4471, %v4468
        %v4481 = vpack.c.b16 %v4472, %v4469
        %v4482 = vpack.c.b16 %v4476, %v4473
        %v4483 = vpack.c.b16 %v4477, %v4474
        %v4484 = vpack.c.b16 %v4478, %v4475
        %v4490 = vsel %vm1254, %v4481, 0
        %v4493 = vsel %vm1254, %v4484, 0
        %4495 = vmatprep.subr.bf16.mxu0 %v4381
        %4496 = vmatpush1.bf16.msra.mxu0 %v4380
        %4497 = vmatprep.subr.bf16.mxu0 %v4384
        %4498 = vmatpush1.bf16.msra.mxu0 %v4383
        %4499 = vmatprep.subr.bf16.mxu0 %v4387
        %4500 = vmatpush1.bf16.msra.mxu0 %v4386
        %4501 = vmatprep.subr.bf16.mxu0 %v4390
        %4502 = vmatpush1.bf16.msra.mxu0 %v4389
        %4503 = vmatprep.subr.bf16.mxu0 %v4393
        %4504 = vmatpush1.bf16.msra.mxu0 %v4392
        %4505 = vmatprep.subr.bf16.mxu0 %v4396
        %4506 = vmatpush1.bf16.msra.mxu0 %v4395
        %4507 = vmatprep.subr.bf16.mxu0 %v4399
        %4508 = vmatpush1.bf16.msra.mxu0 %v4398
        %4509 = vmatprep.subr.bf16.mxu0 %v4402
        %4510 = vmatpush1.bf16.msra.mxu0 %v4401
        %4511 = vmatprep.subr.bf16.mxu0 %v4405
        %4512 = vmatpush1.bf16.msra.mxu0 %v4404
        %4513 = vmatprep.subr.bf16.mxu0 %v4408
        %4514 = vmatpush1.bf16.msra.mxu0 %v4407
        %4515 = vmatprep.subr.bf16.mxu0 %v4411
        %4516 = vmatpush1.bf16.msra.mxu0 %v4410
        %4517 = vmatprep.subr.bf16.mxu0 %v4414
        %4518 = vmatpush1.bf16.msra.mxu0 %v4413
        %4519 = vmatprep.subr.bf16.mxu0 %v4417
        %4520 = vmatpush1.bf16.msra.mxu0 %v4416
        %4521 = vmatprep.subr.bf16.mxu0 %v4420
        %4522 = vmatpush1.bf16.msra.mxu0 %v4419
        %4523 = vmatprep.subr.bf16.mxu0 %v4423
        %4524 = vmatpush1.bf16.msra.mxu0 %v4422
        %4525 = vmatprep.subr.bf16.mxu0 %v4426
        %4526 = vmatpush1.bf16.msra.mxu0 %v4425
        %4527 = vmatprep.mubr.bf16.mxu0 %v4480
        %4528 = vmatmul.mubr.bf16.gmra.mrb[0].mxu0 %v4479
        %v4529 = vpop.f32.mrb[0].mxu0
        %v4530 = vadd.f32 %v4442, %v4529
        %v4531 = vpop.f32.mrb[0].mxu0
        %v4532 = vadd.f32 %v4442, %v4531
        %v4533 = vpop.f32.mrb[0].mxu0
        %v4534 = vadd.f32 %v4447, %v4533
        %v4535 = vpop.f32.mrb[0].mxu0
        %v4536 = vadd.f32 %v4447, %v4535
        %4537 = vmatprep.mubr.bf16.mxu0 %v4483
        %4538 = vmatmul.mubr.bf16.gmra.mrb[0].mxu0 %v4482
        %v4539 = vpop.f32.mrb[0].mxu0
        %v4540 = vadd.f32 %v4452, %v4539
        %v4541 = vpop.f32.mrb[0].mxu0
        %v4542 = vadd.f32 %v4452, %v4541
        %v4543 = vpop.f32.mrb[0].mxu0
        %v4544 = vadd.f32 %v4457, %v4543
        %v4545 = vpop.f32.mrb[0].mxu0
        %v4546 = vadd.f32 %v4457, %v4545
        %4547 = vdwg.mxu0
        %4548 = vmatprep.subr.bf16.mxu0 %v4429
        %4549 = vmatpush1.bf16.msra.mxu0 %v4428
        %4550 = vmatprep.subr.bf16.mxu0 %v4432
        %4551 = vmatpush1.bf16.msra.mxu0 %v4431
        %4552 = vmatprep.subr.bf16.mxu0 0
        %4553 = vmatpush1.bf16.msra.mxu0 0
        %4554 = vmatprep.subr.bf16.mxu0 0
        %4555 = vmatpush1.bf16.msra.mxu0 0
        %4556 = vmatprep.subr.bf16.mxu0 0
        %4557 = vmatpush1.bf16.msra.mxu0 0
        %4558 = vmatprep.subr.bf16.mxu0 0
        %4559 = vmatpush1.bf16.msra.mxu0 0
        %4560 = vmatprep.subr.bf16.mxu0 0
        %4561 = vmatpush1.bf16.msra.mxu0 0
        %4562 = vmatprep.subr.bf16.mxu0 0
        %4563 = vmatpush1.bf16.msra.mxu0 0
        %4564 = vmatprep.subr.bf16.mxu0 0
        %4565 = vmatpush1.bf16.msra.mxu0 0
        %4566 = vmatprep.subr.bf16.mxu0 0
        %4567 = vmatpush1.bf16.msra.mxu0 0
        %4568 = vmatprep.subr.bf16.mxu0 0
        %4569 = vmatpush1.bf16.msra.mxu0 0
        %4570 = vmatprep.subr.bf16.mxu0 0
        %4571 = vmatpush1.bf16.msra.mxu0 0
        %4572 = vmatprep.subr.bf16.mxu0 0
        %4573 = vmatpush1.bf16.msra.mxu0 0
        %4574 = vmatprep.subr.bf16.mxu0 0
        %4575 = vmatpush1.bf16.msra.mxu0 0
        %4576 = vmatprep.subr.bf16.mxu0 0
        %4577 = vmatpush1.bf16.msra.mxu0 0
        %4578 = vmatprep.subr.bf16.mxu0 0
        %4579 = vmatpush1.bf16.msra.mxu0 0
        %4580 = vmatprep.mubr.bf16.mxu0 0
        %4581 = vmatmul.mubr.bf16.gmra.mrb[0].mxu0 %v4490
        %v4582 = vpop.f32.mrb[0].mxu0
        %v4583 = vadd.f32 %v4530, %v4582
        %v4584 = vpop.f32.mrb[0].mxu0
        %v4585 = vadd.f32 %v4532, %v4584
        %v4586 = vpop.f32.mrb[0].mxu0
        %v4587 = vadd.f32 %v4534, %v4586
        %v4588 = vpop.f32.mrb[0].mxu0
        %v4589 = vadd.f32 %v4536, %v4588
        %4590 = vmatprep.mubr.bf16.mxu0 0
        %4591 = vmatmul.mubr.bf16.gmra.mrb[0].mxu0 %v4493
        %v4592 = vpop.f32.mrb[0].mxu0
        %v4593 = vadd.f32 %v4540, %v4592
        %v4594 = vpop.f32.mrb[0].mxu0
        %v4595 = vadd.f32 %v4542, %v4594
        %v4596 = vpop.f32.mrb[0].mxu0
        %v4597 = vadd.f32 %v4544, %v4596
        %v4598 = vpop.f32.mrb[0].mxu0
        %v4599 = vadd.f32 %v4546, %v4598
        %4600 = vdwg.mxu0
        %4601 = vmatprep.subr.bf16.mxu0 0
        %4602 = vmatpush1.bf16.msra.mxu0 %v4382
        %4603 = vmatprep.subr.bf16.mxu0 0
        %4604 = vmatpush1.bf16.msra.mxu0 %v4385
        %4605 = vmatprep.subr.bf16.mxu0 0
        %4606 = vmatpush1.bf16.msra.mxu0 %v4388
        %4607 = vmatprep.subr.bf16.mxu0 0
        %4608 = vmatpush1.bf16.msra.mxu0 %v4391
        %4609 = vmatprep.subr.bf16.mxu0 0
        %4610 = vmatpush1.bf16.msra.mxu0 %v4394
        %4611 = vmatprep.subr.bf16.mxu0 0
        %4612 = vmatpush1.bf16.msra.mxu0 %v4397
        %4613 = vmatprep.subr.bf16.mxu0 0
        %4614 = vmatpush1.bf16.msra.mxu0 %v4400
        %4615 = vmatprep.subr.bf16.mxu0 0
        %4616 = vmatpush1.bf16.msra.mxu0 %v4403
        %4617 = vmatprep.subr.bf16.mxu0 0
        %4618 = vmatpush1.bf16.msra.mxu0 %v4406
        %4619 = vmatprep.subr.bf16.mxu0 0
        %4620 = vmatpush1.bf16.msra.mxu0 %v4409
        %4621 = vmatprep.subr.bf16.mxu0 0
        %4622 = vmatpush1.bf16.msra.mxu0 %v4412
        %4623 = vmatprep.subr.bf16.mxu0 0
        %4624 = vmatpush1.bf16.msra.mxu0 %v4415
        %4625 = vmatprep.subr.bf16.mxu0 0
        %4626 = vmatpush1.bf16.msra.mxu0 %v4418
        %4627 = vmatprep.subr.bf16.mxu0 0
        %4628 = vmatpush1.bf16.msra.mxu0 %v4421
        %4629 = vmatprep.subr.bf16.mxu0 0
        %4630 = vmatpush1.bf16.msra.mxu0 %v4424
        %4631 = vmatprep.subr.bf16.mxu0 0
        %4632 = vmatpush1.bf16.msra.mxu0 %v4427
        %4633 = vmatprep.mubr.bf16.mxu0 %v4480
        %4634 = vmatmul.mubr.bf16.gmra.mrb[0].mxu0 %v4479
        %v4635 = vpop.f32.mrb[0].mxu0
        %v4636 = vadd.f32 %v4442, %v4635
        %v4637 = vpop.f32.mrb[0].mxu0
        %v4638 = vpop.f32.mrb[0].mxu0
        %v4639 = vadd.f32 %v4447, %v4638
        %v4640 = vpop.f32.mrb[0].mxu0
        %4641 = vmatprep.mubr.bf16.mxu0 %v4483
        %4642 = vmatmul.mubr.bf16.gmra.mrb[0].mxu0 %v4482
        %v4643 = vpop.f32.mrb[0].mxu0
        %v4644 = vadd.f32 %v4452, %v4643
        %v4645 = vpop.f32.mrb[0].mxu0
        %v4646 = vpop.f32.mrb[0].mxu0
        %v4647 = vadd.f32 %v4457, %v4646
        %v4648 = vpop.f32.mrb[0].mxu0
        %4649 = vdwg.mxu0
        %4650 = vmatprep.subr.bf16.mxu0 0
        %4651 = vmatpush1.bf16.msra.mxu0 %v4430
        %4652 = vmatprep.subr.bf16.mxu0 0
        %4653 = vmatpush1.bf16.msra.mxu0 %v4433
        %4654 = vmatprep.subr.bf16.mxu0 0
        %4655 = vmatpush1.bf16.msra.mxu0 0
        %4656 = vmatprep.subr.bf16.mxu0 0
        %4657 = vmatpush1.bf16.msra.mxu0 0
        %4658 = vmatprep.subr.bf16.mxu0 0
        %4659 = vmatpush1.bf16.msra.mxu0 0
        %4660 = vmatprep.subr.bf16.mxu0 0
        %4661 = vmatpush1.bf16.msra.mxu0 0
        %4662 = vmatprep.subr.bf16.mxu0 0
        %4663 = vmatpush1.bf16.msra.mxu0 0
        %4664 = vmatprep.subr.bf16.mxu0 0
        %4665 = vmatpush1.bf16.msra.mxu0 0
        %4666 = vmatprep.subr.bf16.mxu0 0
        %4667 = vmatpush1.bf16.msra.mxu0 0
        %4668 = vmatprep.subr.bf16.mxu0 0
        %4669 = vmatpush1.bf16.msra.mxu0 0
        %4670 = vmatprep.subr.bf16.mxu0 0
        %4671 = vmatpush1.bf16.msra.mxu0 0
        %4672 = vmatprep.subr.bf16.mxu0 0
        %4673 = vmatpush1.bf16.msra.mxu0 0
        %4674 = vmatprep.subr.bf16.mxu0 0
        %4675 = vmatpush1.bf16.msra.mxu0 0
        %4676 = vmatprep.subr.bf16.mxu0 0
        %4677 = vmatpush1.bf16.msra.mxu0 0
        %4678 = vmatprep.subr.bf16.mxu0 0
        %4679 = vmatpush1.bf16.msra.mxu0 0
        %4680 = vmatprep.subr.bf16.mxu0 0
        %4681 = vmatpush1.bf16.msra.mxu0 0
        %4682 = vmatprep.mubr.bf16.mxu0 0
        %4683 = vmatmul.mubr.bf16.gmra.mrb[0].mxu0 %v4490
        %v4684 = vpop.f32.mrb[0].mxu0
        %v4685 = vadd.f32 %v4636, %v4684
        %v4686 = vpop.f32.mrb[0].mxu0
        %v4687 = vpop.f32.mrb[0].mxu0
        %v4688 = vadd.f32 %v4639, %v4687
        %v4689 = vpop.f32.mrb[0].mxu0
        %4690 = vmatprep.mubr.bf16.mxu0 0
        %4691 = vmatmul.mubr.bf16.gmra.mrb[0].mxu0 %v4493
        %v4692 = vpop.f32.mrb[0].mxu0
        %v4693 = vadd.f32 %v4644, %v4692
        %v4694 = vpop.f32.mrb[0].mxu0
        %v4695 = vpop.f32.mrb[0].mxu0
        %v4696 = vadd.f32 %v4647, %v4695
        %v4697 = vpop.f32.mrb[0].mxu0
        %4698 = vdwg.mxu0
        %s4699 = sld [smem:[#allocation3 + $0x3]]
        %vm4700 = vcmp.ge.f32.partialorder %v4583, 0.0
        %vm4701 = vcmp.ge.f32.partialorder %v4585, 0.0
        %vm4702 = vcmp.ge.f32.partialorder %v4685, 0.0
        %vm4703 = vcmp.ge.f32.partialorder %v4587, 0.0
        %vm4704 = vcmp.ge.f32.partialorder %v4589, 0.0
        %vm4705 = vcmp.ge.f32.partialorder %v4688, 0.0
        %vm4706 = vcmp.ge.f32.partialorder %v4593, 0.0
        %vm4707 = vcmp.ge.f32.partialorder %v4595, 0.0
        %vm4708 = vcmp.ge.f32.partialorder %v4693, 0.0
        %vm4709 = vcmp.ge.f32.partialorder %v4597, 0.0
        %vm4710 = vcmp.ge.f32.partialorder %v4599, 0.0
        %vm4711 = vcmp.ge.f32.partialorder %v4696, 0.0
        %v4712 = vstv %s4699
        %v4713 = vmul.f32 %v4712, %v4583
        %v4714 = vmul.f32 %v4712, %v4585
        %v4715 = vmul.f32 %v4712, %v4685
        %v4716 = vmul.f32 %v4712, %v4587
        %v4717 = vmul.f32 %v4712, %v4589
        %v4718 = vmul.f32 %v4712, %v4688
        %v4719 = vmul.f32 %v4712, %v4593
        %v4720 = vmul.f32 %v4712, %v4595
        %v4721 = vmul.f32 %v4712, %v4693
        %v4722 = vmul.f32 %v4712, %v4597
        %v4723 = vmul.f32 %v4712, %v4599
        %v4724 = vmul.f32 %v4712, %v4696
        %v4725 = vsel %vm4700, %v4583, %v4713
        %v4726 = vsel %vm4701, %v4585, %v4714
        %v4727 = vsel %vm4702, %v4685, %v4715
        %v4728 = vsel %vm4703, %v4587, %v4716
        %v4729 = vsel %vm4704, %v4589, %v4717
        %v4730 = vsel %vm4705, %v4688, %v4718
        %v4731 = vsel %vm4706, %v4593, %v4719
        %v4732 = vsel %vm4707, %v4595, %v4720
        %v4733 = vsel %vm4708, %v4693, %v4721
        %v4734 = vsel %vm4709, %v4597, %v4722
        %v4735 = vsel %vm4710, %v4599, %v4723
        %v4736 = vsel %vm4711, %v4696, %v4724
        %v4737 = vmul.f32 %v4725, %v667
        %v4738 = vmul.f32 %v4726, %v671
        %v4739 = vmul.f32 %v4727, %v675
        %v4740 = vmul.f32 %v4728, %v667
        %v4741 = vmul.f32 %v4729, %v671
        %v4742 = vmul.f32 %v4730, %v675
        %v4743 = vmul.f32 %v4731, %v667
        %v4744 = vmul.f32 %v4732, %v671
        %v4745 = vmul.f32 %v4733, %v675
        %v4746 = vmul.f32 %v4734, %v667
        %v4747 = vmul.f32 %v4735, %v671
        %v4748 = vmul.f32 %v4736, %v675
        %4761 = vrot.lane.b32.xlu0 %v4737, 19
        %v4762 = vpop.permute.xlu0 %4761
        %4763 = vrot.lane.b32.xlu0 %v4738, 19
        %v4764 = vpop.permute.xlu0 %4763
        %4765 = vrot.lane.b32.xlu0 %v4739, 19
        %v4766 = vpop.permute.xlu0 %4765
        %4767 = vrot.lane.b32.xlu0 %v4740, 19
        %v4768 = vpop.permute.xlu0 %4767
        %4769 = vrot.lane.b32.xlu0 %v4741, 19
        %v4770 = vpop.permute.xlu0 %4769
        %4771 = vrot.lane.b32.xlu0 %v4742, 19
        %v4772 = vpop.permute.xlu0 %4771
        %4773 = vrot.lane.b32.xlu0 %v4743, 19
        %v4774 = vpop.permute.xlu0 %4773
        %4775 = vrot.lane.b32.xlu0 %v4744, 19
        %v4776 = vpop.permute.xlu0 %4775
        %4777 = vrot.lane.b32.xlu0 %v4745, 19
        %v4778 = vpop.permute.xlu0 %4777
        %4779 = vrot.lane.b32.xlu0 %v4746, 19
        %v4780 = vpop.permute.xlu0 %4779
        %4781 = vrot.lane.b32.xlu0 %v4747, 19
        %v4782 = vpop.permute.xlu0 %4781
        %4783 = vrot.lane.b32.xlu0 %v4748, 19
        %v4784 = vpop.permute.xlu0 %4783
        %v4785 = vsel %vm727, %v4762, %v4764
        %v4786 = vsel %vm727, %v4764, %v4766
        %v4787 = vsel %vm727, %v4768, %v4770
        %v4788 = vsel %vm727, %v4770, %v4772
        %v4789 = vsel %vm727, %v4774, %v4776
        %v4790 = vsel %vm727, %v4776, %v4778
        %v4791 = vsel %vm727, %v4780, %v4782
        %v4792 = vsel %vm727, %v4782, %v4784
        %4805 = vst.msk [vmem:[#allocation2] sm:$0xff] %vm748, %v4762
        %4806 = vst [vmem:[#allocation2 + $0x8] sm:$0xff] %v4785
        %4807 = vst.msk [vmem:[#allocation2 + $0x10] sm:$0xff] %vm751, %v4786
        %4808 = vst.msk [vmem:[#allocation2 + $0x18] sm:$0xff] %vm748, %v4768
        %4809 = vst [vmem:[#allocation2 + $0x20] sm:$0xff] %v4787
        %4810 = vst.msk [vmem:[#allocation2 + $0x28] sm:$0xff] %vm751, %v4788
        %4811 = vst.msk [vmem:[#allocation2 + $0x30] sm:$0xff] %vm748, %v4774
        %4812 = vst [vmem:[#allocation2 + $0x38] sm:$0xff] %v4789
        %4813 = vst.msk [vmem:[#allocation2 + $0x40] sm:$0xff] %vm751, %v4790
        %4814 = vst.msk [vmem:[#allocation2 + $0x48] sm:$0xff] %vm748, %v4780
        %4815 = vst [vmem:[#allocation2 + $0x50] sm:$0xff] %v4791
        %4816 = vst.msk [vmem:[#allocation2 + $0x58] sm:$0xff] %vm751, %v4792
        %v4817 = vld [vmem:[#allocation2] sm:$0xff]
        %v4818 = vld [vmem:[#allocation2 + $0x8] sm:$0xff]
        %v4819 = vld [vmem:[#allocation2 + $0x10] sm:$0xff]
        %v4820 = vld [vmem:[#allocation2 + $0x18] sm:$0xff]
        %v4821 = vld [vmem:[#allocation2 + $0x20] sm:$0xff]
        %v4822 = vld [vmem:[#allocation2 + $0x28] sm:$0xff]
        %v4823 = vld [vmem:[#allocation2 + $0x30] sm:$0xff]
        %v4824 = vld [vmem:[#allocation2 + $0x38] sm:$0xff]
        %v4825 = vld [vmem:[#allocation2 + $0x40] sm:$0xff]
        %v4826 = vld [vmem:[#allocation2 + $0x48] sm:$0xff]
        %v4827 = vld [vmem:[#allocation2 + $0x50] sm:$0xff]
        %v4828 = vld [vmem:[#allocation2 + $0x58] sm:$0xff]
        %s4829 = scalar_lea.vmem %s7, 96
        %v4830 = vld [vmem:[%s4829] sm:$0xff]
        %v4831 = vld [vmem:[%s4829 + $0x8] sm:$0xf]
        %v4832 = vld [vmem:[%s4829 + $0xc] sm:$0xff]
        %v4833 = vld [vmem:[%s4829 + $0x14] sm:$0xf]
        %v4834 = vld [vmem:[%s4829 + $0x18] sm:$0xff]
        %v4835 = vld [vmem:[%s4829 + $0x20] sm:$0xf]
        %v4836 = vld [vmem:[%s4829 + $0x24] sm:$0xff]
        %v4837 = vld [vmem:[%s4829 + $0x2c] sm:$0xf]
        %4850 = vrot.lane.b32.xlu0 %v4817, 127
        %v4851 = vpop.permute.xlu0 %4850
        %4852 = vrot.lane.b32.xlu0 %v4818, 127
        %v4853 = vpop.permute.xlu0 %4852
        %4854 = vrot.lane.b32.xlu0 %v4819, 127
        %v4855 = vpop.permute.xlu0 %4854
        %4856 = vrot.lane.b32.xlu0 %v4820, 127
        %v4857 = vpop.permute.xlu0 %4856
        %4858 = vrot.lane.b32.xlu0 %v4821, 127
        %v4859 = vpop.permute.xlu0 %4858
        %4860 = vrot.lane.b32.xlu0 %v4822, 127
        %v4861 = vpop.permute.xlu0 %4860
        %4862 = vrot.lane.b32.xlu0 %v4823, 127
        %v4863 = vpop.permute.xlu0 %4862
        %4864 = vrot.lane.b32.xlu0 %v4824, 127
        %v4865 = vpop.permute.xlu0 %4864
        %4866 = vrot.lane.b32.xlu0 %v4825, 127
        %v4867 = vpop.permute.xlu0 %4866
        %4868 = vrot.lane.b32.xlu0 %v4826, 127
        %v4869 = vpop.permute.xlu0 %4868
        %4870 = vrot.lane.b32.xlu0 %v4827, 127
        %v4871 = vpop.permute.xlu0 %4870
        %4872 = vrot.lane.b32.xlu0 %v4828, 127
        %v4873 = vpop.permute.xlu0 %4872
        %v4874 = vsel %vm391, %v4851, %v4853
        %v4875 = vsel %vm391, %v4853, %v4855
        %v4876 = vsel %vm391, %v4857, %v4859
        %v4877 = vsel %vm391, %v4859, %v4861
        %v4878 = vsel %vm391, %v4863, %v4865
        %v4879 = vsel %vm391, %v4865, %v4867
        %v4880 = vsel %vm391, %v4869, %v4871
        %v4881 = vsel %vm391, %v4871, %v4873
        %4894 = vrot.lane.b32.xlu0 %v4817, 126
        %v4895 = vpop.permute.xlu0 %4894
        %4896 = vrot.lane.b32.xlu0 %v4818, 126
        %v4897 = vpop.permute.xlu0 %4896
        %4898 = vrot.lane.b32.xlu0 %v4819, 126
        %v4899 = vpop.permute.xlu0 %4898
        %4900 = vrot.lane.b32.xlu0 %v4820, 126
        %v4901 = vpop.permute.xlu0 %4900
        %4902 = vrot.lane.b32.xlu0 %v4821, 126
        %v4903 = vpop.permute.xlu0 %4902
        %4904 = vrot.lane.b32.xlu0 %v4822, 126
        %v4905 = vpop.permute.xlu0 %4904
        %4906 = vrot.lane.b32.xlu0 %v4823, 126
        %v4907 = vpop.permute.xlu0 %4906
        %4908 = vrot.lane.b32.xlu0 %v4824, 126
        %v4909 = vpop.permute.xlu0 %4908
        %4910 = vrot.lane.b32.xlu0 %v4825, 126
        %v4911 = vpop.permute.xlu0 %4910
        %4912 = vrot.lane.b32.xlu0 %v4826, 126
        %v4913 = vpop.permute.xlu0 %4912
        %4914 = vrot.lane.b32.xlu0 %v4827, 126
        %v4915 = vpop.permute.xlu0 %4914
        %4916 = vrot.lane.b32.xlu0 %v4828, 126
        %v4917 = vpop.permute.xlu0 %4916
        %v4918 = vsel %vm403, %v4895, %v4897
        %v4919 = vsel %vm403, %v4897, %v4899
        %v4920 = vsel %vm403, %v4901, %v4903
        %v4921 = vsel %vm403, %v4903, %v4905
        %v4922 = vsel %vm403, %v4907, %v4909
        %v4923 = vsel %vm403, %v4909, %v4911
        %v4924 = vsel %vm403, %v4913, %v4915
        %v4925 = vsel %vm403, %v4915, %v4917
        %4938 = vrot.lane.b32.xlu0 %v4817, 110
        %v4939 = vpop.permute.xlu0 %4938
        %4940 = vrot.lane.b32.xlu0 %v4818, 110
        %v4941 = vpop.permute.xlu0 %4940
        %4942 = vrot.lane.b32.xlu0 %v4819, 110
        %v4943 = vpop.permute.xlu0 %4942
        %4944 = vrot.lane.b32.xlu0 %v4820, 110
        %v4945 = vpop.permute.xlu0 %4944
        %4946 = vrot.lane.b32.xlu0 %v4821, 110
        %v4947 = vpop.permute.xlu0 %4946
        %4948 = vrot.lane.b32.xlu0 %v4822, 110
        %v4949 = vpop.permute.xlu0 %4948
        %4950 = vrot.lane.b32.xlu0 %v4823, 110
        %v4951 = vpop.permute.xlu0 %4950
        %4952 = vrot.lane.b32.xlu0 %v4824, 110
        %v4953 = vpop.permute.xlu0 %4952
        %4954 = vrot.lane.b32.xlu0 %v4825, 110
        %v4955 = vpop.permute.xlu0 %4954
        %4956 = vrot.lane.b32.xlu0 %v4826, 110
        %v4957 = vpop.permute.xlu0 %4956
        %4958 = vrot.lane.b32.xlu0 %v4827, 110
        %v4959 = vpop.permute.xlu0 %4958
        %4960 = vrot.lane.b32.xlu0 %v4828, 110
        %v4961 = vpop.permute.xlu0 %4960
        %v4962 = vsel %vm415, %v4939, %v4941
        %v4963 = vsel %vm415, %v4941, %v4943
        %v4964 = vsel %vm415, %v4945, %v4947
        %v4965 = vsel %vm415, %v4947, %v4949
        %v4966 = vsel %vm415, %v4951, %v4953
        %v4967 = vsel %vm415, %v4953, %v4955
        %v4968 = vsel %vm415, %v4957, %v4959
        %v4969 = vsel %vm415, %v4959, %v4961
        %4982 = vrot.lane.b32.xlu0 %v4817, 109
        %v4983 = vpop.permute.xlu0 %4982
        %4984 = vrot.lane.b32.xlu0 %v4818, 109
        %v4985 = vpop.permute.xlu0 %4984
        %4986 = vrot.lane.b32.xlu0 %v4819, 109
        %v4987 = vpop.permute.xlu0 %4986
        %4988 = vrot.lane.b32.xlu0 %v4820, 109
        %v4989 = vpop.permute.xlu0 %4988
        %4990 = vrot.lane.b32.xlu0 %v4821, 109
        %v4991 = vpop.permute.xlu0 %4990
        %4992 = vrot.lane.b32.xlu0 %v4822, 109
        %v4993 = vpop.permute.xlu0 %4992
        %4994 = vrot.lane.b32.xlu0 %v4823, 109
        %v4995 = vpop.permute.xlu0 %4994
        %4996 = vrot.lane.b32.xlu0 %v4824, 109
        %v4997 = vpop.permute.xlu0 %4996
        %4998 = vrot.lane.b32.xlu0 %v4825, 109
        %v4999 = vpop.permute.xlu0 %4998
        %5000 = vrot.lane.b32.xlu0 %v4826, 109
        %v5001 = vpop.permute.xlu0 %5000
        %5002 = vrot.lane.b32.xlu0 %v4827, 109
        %v5003 = vpop.permute.xlu0 %5002
        %5004 = vrot.lane.b32.xlu0 %v4828, 109
        %v5005 = vpop.permute.xlu0 %5004
        %v5006 = vsel %vm427, %v4983, %v4985
        %v5007 = vsel %vm427, %v4985, %v4987
        %v5008 = vsel %vm427, %v4989, %v4991
        %v5009 = vsel %vm427, %v4991, %v4993
        %v5010 = vsel %vm427, %v4995, %v4997
        %v5011 = vsel %vm427, %v4997, %v4999
        %v5012 = vsel %vm427, %v5001, %v5003
        %v5013 = vsel %vm427, %v5003, %v5005
        %5026 = vrot.lane.b32.xlu0 %v4817, 108
        %v5027 = vpop.permute.xlu0 %5026
        %5028 = vrot.lane.b32.xlu0 %v4818, 108
        %v5029 = vpop.permute.xlu0 %5028
        %5030 = vrot.lane.b32.xlu0 %v4819, 108
        %v5031 = vpop.permute.xlu0 %5030
        %5032 = vrot.lane.b32.xlu0 %v4820, 108
        %v5033 = vpop.permute.xlu0 %5032
        %5034 = vrot.lane.b32.xlu0 %v4821, 108
        %v5035 = vpop.permute.xlu0 %5034
        %5036 = vrot.lane.b32.xlu0 %v4822, 108
        %v5037 = vpop.permute.xlu0 %5036
        %5038 = vrot.lane.b32.xlu0 %v4823, 108
        %v5039 = vpop.permute.xlu0 %5038
        %5040 = vrot.lane.b32.xlu0 %v4824, 108
        %v5041 = vpop.permute.xlu0 %5040
        %5042 = vrot.lane.b32.xlu0 %v4825, 108
        %v5043 = vpop.permute.xlu0 %5042
        %5044 = vrot.lane.b32.xlu0 %v4826, 108
        %v5045 = vpop.permute.xlu0 %5044
        %5046 = vrot.lane.b32.xlu0 %v4827, 108
        %v5047 = vpop.permute.xlu0 %5046
        %5048 = vrot.lane.b32.xlu0 %v4828, 108
        %v5049 = vpop.permute.xlu0 %5048
        %v5050 = vsel %vm439, %v5027, %v5029
        %v5051 = vsel %vm439, %v5029, %v5031
        %v5052 = vsel %vm439, %v5033, %v5035
        %v5053 = vsel %vm439, %v5035, %v5037
        %v5054 = vsel %vm439, %v5039, %v5041
        %v5055 = vsel %vm439, %v5041, %v5043
        %v5056 = vsel %vm439, %v5045, %v5047
        %v5057 = vsel %vm439, %v5047, %v5049
        %5070 = vrot.lane.b32.xlu0 %v4817, 92
        %v5071 = vpop.permute.xlu0 %5070
        %5072 = vrot.lane.b32.xlu0 %v4818, 92
        %v5073 = vpop.permute.xlu0 %5072
        %5074 = vrot.lane.b32.xlu0 %v4819, 92
        %v5075 = vpop.permute.xlu0 %5074
        %5076 = vrot.lane.b32.xlu0 %v4820, 92
        %v5077 = vpop.permute.xlu0 %5076
        %5078 = vrot.lane.b32.xlu0 %v4821, 92
        %v5079 = vpop.permute.xlu0 %5078
        %5080 = vrot.lane.b32.xlu0 %v4822, 92
        %v5081 = vpop.permute.xlu0 %5080
        %5082 = vrot.lane.b32.xlu0 %v4823, 92
        %v5083 = vpop.permute.xlu0 %5082
        %5084 = vrot.lane.b32.xlu0 %v4824, 92
        %v5085 = vpop.permute.xlu0 %5084
        %5086 = vrot.lane.b32.xlu0 %v4825, 92
        %v5087 = vpop.permute.xlu0 %5086
        %5088 = vrot.lane.b32.xlu0 %v4826, 92
        %v5089 = vpop.permute.xlu0 %5088
        %5090 = vrot.lane.b32.xlu0 %v4827, 92
        %v5091 = vpop.permute.xlu0 %5090
        %5092 = vrot.lane.b32.xlu0 %v4828, 92
        %v5093 = vpop.permute.xlu0 %5092
        %v5094 = vsel %vm451, %v5071, %v5073
        %v5095 = vsel %vm451, %v5073, %v5075
        %v5096 = vsel %vm451, %v5077, %v5079
        %v5097 = vsel %vm451, %v5079, %v5081
        %v5098 = vsel %vm451, %v5083, %v5085
        %v5099 = vsel %vm451, %v5085, %v5087
        %v5100 = vsel %vm451, %v5089, %v5091
        %v5101 = vsel %vm451, %v5091, %v5093
        %5114 = vrot.lane.b32.xlu0 %v4817, 91
        %v5115 = vpop.permute.xlu0 %5114
        %5116 = vrot.lane.b32.xlu0 %v4818, 91
        %v5117 = vpop.permute.xlu0 %5116
        %5118 = vrot.lane.b32.xlu0 %v4819, 91
        %v5119 = vpop.permute.xlu0 %5118
        %5120 = vrot.lane.b32.xlu0 %v4820, 91
        %v5121 = vpop.permute.xlu0 %5120
        %5122 = vrot.lane.b32.xlu0 %v4821, 91
        %v5123 = vpop.permute.xlu0 %5122
        %5124 = vrot.lane.b32.xlu0 %v4822, 91
        %v5125 = vpop.permute.xlu0 %5124
        %5126 = vrot.lane.b32.xlu0 %v4823, 91
        %v5127 = vpop.permute.xlu0 %5126
        %5128 = vrot.lane.b32.xlu0 %v4824, 91
        %v5129 = vpop.permute.xlu0 %5128
        %5130 = vrot.lane.b32.xlu0 %v4825, 91
        %v5131 = vpop.permute.xlu0 %5130
        %5132 = vrot.lane.b32.xlu0 %v4826, 91
        %v5133 = vpop.permute.xlu0 %5132
        %5134 = vrot.lane.b32.xlu0 %v4827, 91
        %v5135 = vpop.permute.xlu0 %5134
        %5136 = vrot.lane.b32.xlu0 %v4828, 91
        %v5137 = vpop.permute.xlu0 %5136
        %v5138 = vsel %vm463, %v5115, %v5117
        %v5139 = vsel %vm463, %v5117, %v5119
        %v5140 = vsel %vm463, %v5121, %v5123
        %v5141 = vsel %vm463, %v5123, %v5125
        %v5142 = vsel %vm463, %v5127, %v5129
        %v5143 = vsel %vm463, %v5129, %v5131
        %v5144 = vsel %vm463, %v5133, %v5135
        %v5145 = vsel %vm463, %v5135, %v5137
        %5158 = vrot.lane.b32.xlu0 %v4817, 90
        %v5159 = vpop.permute.xlu0 %5158
        %5160 = vrot.lane.b32.xlu0 %v4818, 90
        %v5161 = vpop.permute.xlu0 %5160
        %5162 = vrot.lane.b32.xlu0 %v4819, 90
        %v5163 = vpop.permute.xlu0 %5162
        %5164 = vrot.lane.b32.xlu0 %v4820, 90
        %v5165 = vpop.permute.xlu0 %5164
        %5166 = vrot.lane.b32.xlu0 %v4821, 90
        %v5167 = vpop.permute.xlu0 %5166
        %5168 = vrot.lane.b32.xlu0 %v4822, 90
        %v5169 = vpop.permute.xlu0 %5168
        %5170 = vrot.lane.b32.xlu0 %v4823, 90
        %v5171 = vpop.permute.xlu0 %5170
        %5172 = vrot.lane.b32.xlu0 %v4824, 90
        %v5173 = vpop.permute.xlu0 %5172
        %5174 = vrot.lane.b32.xlu0 %v4825, 90
        %v5175 = vpop.permute.xlu0 %5174
        %5176 = vrot.lane.b32.xlu0 %v4826, 90
        %v5177 = vpop.permute.xlu0 %5176
        %5178 = vrot.lane.b32.xlu0 %v4827, 90
        %v5179 = vpop.permute.xlu0 %5178
        %5180 = vrot.lane.b32.xlu0 %v4828, 90
        %v5181 = vpop.permute.xlu0 %5180
        %v5182 = vsel %vm475, %v5159, %v5161
        %v5183 = vsel %vm475, %v5161, %v5163
        %v5184 = vsel %vm475, %v5165, %v5167
        %v5185 = vsel %vm475, %v5167, %v5169
        %v5186 = vsel %vm475, %v5171, %v5173
        %v5187 = vsel %vm475, %v5173, %v5175
        %v5188 = vsel %vm475, %v5177, %v5179
        %v5189 = vsel %vm475, %v5179, %v5181
        %v5202 = vpack.c.bf16 %v4820, %v4817
        %v5203 = vpack.c.bf16 %v4821, %v4818
        %v5204 = vpack.c.bf16 %v4822, %v4819
        %v5205 = vpack.c.bf16 %v4826, %v4823
        %v5206 = vpack.c.bf16 %v4827, %v4824
        %v5207 = vpack.c.bf16 %v4828, %v4825
        %v5208 = vpack.c.bf16 %v4876, %v4874
        %v5209 = vpack.c.bf16 %v4877, %v4875
        %v5210 = vpack.c.bf16 %v4861, %v4855
        %v5211 = vpack.c.bf16 %v4880, %v4878
        %v5212 = vpack.c.bf16 %v4881, %v4879
        %v5213 = vpack.c.bf16 %v4873, %v4867
        %v5214 = vpack.c.bf16 %v4920, %v4918
        %v5215 = vpack.c.bf16 %v4921, %v4919
        %v5216 = vpack.c.bf16 %v4905, %v4899
        %v5217 = vpack.c.bf16 %v4924, %v4922
        %v5218 = vpack.c.bf16 %v4925, %v4923
        %v5219 = vpack.c.bf16 %v4917, %v4911
        %v5220 = vpack.c.bf16 %v4964, %v4962
        %v5221 = vpack.c.bf16 %v4965, %v4963
        %v5222 = vpack.c.bf16 %v4949, %v4943
        %v5223 = vpack.c.bf16 %v4968, %v4966
        %v5224 = vpack.c.bf16 %v4969, %v4967
        %v5225 = vpack.c.bf16 %v4961, %v4955
        %v5226 = vpack.c.bf16 %v5008, %v5006
        %v5227 = vpack.c.bf16 %v5009, %v5007
        %v5228 = vpack.c.bf16 %v4993, %v4987
        %v5229 = vpack.c.bf16 %v5012, %v5010
        %v5230 = vpack.c.bf16 %v5013, %v5011
        %v5231 = vpack.c.bf16 %v5005, %v4999
        %v5232 = vpack.c.bf16 %v5052, %v5050
        %v5233 = vpack.c.bf16 %v5053, %v5051
        %v5234 = vpack.c.bf16 %v5037, %v5031
        %v5235 = vpack.c.bf16 %v5056, %v5054
        %v5236 = vpack.c.bf16 %v5057, %v5055
        %v5237 = vpack.c.bf16 %v5049, %v5043
        %v5238 = vpack.c.bf16 %v5096, %v5094
        %v5239 = vpack.c.bf16 %v5097, %v5095
        %v5240 = vpack.c.bf16 %v5081, %v5075
        %v5241 = vpack.c.bf16 %v5100, %v5098
        %v5242 = vpack.c.bf16 %v5101, %v5099
        %v5243 = vpack.c.bf16 %v5093, %v5087
        %v5244 = vpack.c.bf16 %v5140, %v5138
        %v5245 = vpack.c.bf16 %v5141, %v5139
        %v5246 = vpack.c.bf16 %v5125, %v5119
        %v5247 = vpack.c.bf16 %v5144, %v5142
        %v5248 = vpack.c.bf16 %v5145, %v5143
        %v5249 = vpack.c.bf16 %v5137, %v5131
        %v5250 = vpack.c.bf16 %v5184, %v5182
        %v5251 = vpack.c.bf16 %v5185, %v5183
        %v5252 = vpack.c.bf16 %v5169, %v5163
        %v5253 = vpack.c.bf16 %v5188, %v5186
        %v5254 = vpack.c.bf16 %v5189, %v5187
        %v5255 = vpack.c.bf16 %v5181, %v5175
        %s5256 = scalar_lea.vmem %s8, 64
        %v5257 = vld [vmem:[%s5256] sm:$0xff]
        %v5258 = vld [vmem:[%s5256 + $0x8] sm:$0xff]
        %v5259 = vld [vmem:[%s5256 + $0x10] sm:$0xff]
        %v5260 = vld [vmem:[%s5256 + $0x18] sm:$0xff]
        %5262 = vset.pattern.permute.xlu0 0
        %5263 = vperm.xlu0 %5262, %v5257
        %v5264 = vpop.permute.xlu0 %5263
        %5267 = vset.pattern.permute.xlu0 0
        %5268 = vperm.xlu0 %5267, %v5258
        %v5269 = vpop.permute.xlu0 %5268
        %5272 = vset.pattern.permute.xlu0 0
        %5273 = vperm.xlu0 %5272, %v5259
        %v5274 = vpop.permute.xlu0 %5273
        %5277 = vset.pattern.permute.xlu0 0
        %5278 = vperm.xlu0 %5277, %v5260
        %v5279 = vpop.permute.xlu0 %5278
        %v5289 = vunpack.c.l.b16 %v4830
        %v5290 = vunpack.c.h.b16 %v4830
        %v5291 = vunpack.c.l.b16 %v4831
        %v5292 = vunpack.c.l.b16 %v4832
        %v5293 = vunpack.c.h.b16 %v4832
        %v5294 = vunpack.c.l.b16 %v4833
        %v5295 = vunpack.c.l.b16 %v4834
        %v5296 = vunpack.c.h.b16 %v4834
        %v5297 = vunpack.c.l.b16 %v4835
        %v5298 = vunpack.c.l.b16 %v4836
        %v5299 = vunpack.c.h.b16 %v4836
        %v5300 = vunpack.c.l.b16 %v4837
        %v5301 = vpack.c.b16 %v5292, %v5289
        %v5302 = vpack.c.b16 %v5293, %v5290
        %v5303 = vpack.c.b16 %v5294, %v5291
        %v5304 = vpack.c.b16 %v5298, %v5295
        %v5305 = vpack.c.b16 %v5299, %v5296
        %v5306 = vpack.c.b16 %v5300, %v5297
        %v5312 = vsel %vm1254, %v5303, 0
        %v5315 = vsel %vm1254, %v5306, 0
        %5317 = vmatprep.subr.bf16.mxu0 %v5203
        %5318 = vmatpush1.bf16.msra.mxu0 %v5202
        %5319 = vmatprep.subr.bf16.mxu0 %v5206
        %5320 = vmatpush1.bf16.msra.mxu0 %v5205
        %5321 = vmatprep.subr.bf16.mxu0 %v5209
        %5322 = vmatpush1.bf16.msra.mxu0 %v5208
        %5323 = vmatprep.subr.bf16.mxu0 %v5212
        %5324 = vmatpush1.bf16.msra.mxu0 %v5211
        %5325 = vmatprep.subr.bf16.mxu0 %v5215
        %5326 = vmatpush1.bf16.msra.mxu0 %v5214
        %5327 = vmatprep.subr.bf16.mxu0 %v5218
        %5328 = vmatpush1.bf16.msra.mxu0 %v5217
        %5329 = vmatprep.subr.bf16.mxu0 %v5221
        %5330 = vmatpush1.bf16.msra.mxu0 %v5220
        %5331 = vmatprep.subr.bf16.mxu0 %v5224
        %5332 = vmatpush1.bf16.msra.mxu0 %v5223
        %5333 = vmatprep.subr.bf16.mxu0 %v5227
        %5334 = vmatpush1.bf16.msra.mxu0 %v5226
        %5335 = vmatprep.subr.bf16.mxu0 %v5230
        %5336 = vmatpush1.bf16.msra.mxu0 %v5229
        %5337 = vmatprep.subr.bf16.mxu0 %v5233
        %5338 = vmatpush1.bf16.msra.mxu0 %v5232
        %5339 = vmatprep.subr.bf16.mxu0 %v5236
        %5340 = vmatpush1.bf16.msra.mxu0 %v5235
        %5341 = vmatprep.subr.bf16.mxu0 %v5239
        %5342 = vmatpush1.bf16.msra.mxu0 %v5238
        %5343 = vmatprep.subr.bf16.mxu0 %v5242
        %5344 = vmatpush1.bf16.msra.mxu0 %v5241
        %5345 = vmatprep.subr.bf16.mxu0 %v5245
        %5346 = vmatpush1.bf16.msra.mxu0 %v5244
        %5347 = vmatprep.subr.bf16.mxu0 %v5248
        %5348 = vmatpush1.bf16.msra.mxu0 %v5247
        %5349 = vmatprep.mubr.bf16.mxu0 %v5302
        %5350 = vmatmul.mubr.bf16.gmra.mrb[0].mxu0 %v5301
        %v5351 = vpop.f32.mrb[0].mxu0
        %v5352 = vadd.f32 %v5264, %v5351
        %v5353 = vpop.f32.mrb[0].mxu0
        %v5354 = vadd.f32 %v5264, %v5353
        %v5355 = vpop.f32.mrb[0].mxu0
        %v5356 = vadd.f32 %v5269, %v5355
        %v5357 = vpop.f32.mrb[0].mxu0
        %v5358 = vadd.f32 %v5269, %v5357
        %5359 = vmatprep.mubr.bf16.mxu0 %v5305
        %5360 = vmatmul.mubr.bf16.gmra.mrb[0].mxu0 %v5304
        %v5361 = vpop.f32.mrb[0].mxu0
        %v5362 = vadd.f32 %v5274, %v5361
        %v5363 = vpop.f32.mrb[0].mxu0
        %v5364 = vadd.f32 %v5274, %v5363
        %v5365 = vpop.f32.mrb[0].mxu0
        %v5366 = vadd.f32 %v5279, %v5365
        %v5367 = vpop.f32.mrb[0].mxu0
        %v5368 = vadd.f32 %v5279, %v5367
        %5369 = vdwg.mxu0
        %5370 = vmatprep.subr.bf16.mxu0 %v5251
        %5371 = vmatpush1.bf16.msra.mxu0 %v5250
        %5372 = vmatprep.subr.bf16.mxu0 %v5254
        %5373 = vmatpush1.bf16.msra.mxu0 %v5253
        %5374 = vmatprep.subr.bf16.mxu0 0
        %5375 = vmatpush1.bf16.msra.mxu0 0
        %5376 = vmatprep.subr.bf16.mxu0 0
        %5377 = vmatpush1.bf16.msra.mxu0 0
        %5378 = vmatprep.subr.bf16.mxu0 0
        %5379 = vmatpush1.bf16.msra.mxu0 0
        %5380 = vmatprep.subr.bf16.mxu0 0
        %5381 = vmatpush1.bf16.msra.mxu0 0
        %5382 = vmatprep.subr.bf16.mxu0 0
        %5383 = vmatpush1.bf16.msra.mxu0 0
        %5384 = vmatprep.subr.bf16.mxu0 0
        %5385 = vmatpush1.bf16.msra.mxu0 0
        %5386 = vmatprep.subr.bf16.mxu0 0
        %5387 = vmatpush1.bf16.msra.mxu0 0
        %5388 = vmatprep.subr.bf16.mxu0 0
        %5389 = vmatpush1.bf16.msra.mxu0 0
        %5390 = vmatprep.subr.bf16.mxu0 0
        %5391 = vmatpush1.bf16.msra.mxu0 0
        %5392 = vmatprep.subr.bf16.mxu0 0
        %5393 = vmatpush1.bf16.msra.mxu0 0
        %5394 = vmatprep.subr.bf16.mxu0 0
        %5395 = vmatpush1.bf16.msra.mxu0 0
        %5396 = vmatprep.subr.bf16.mxu0 0
        %5397 = vmatpush1.bf16.msra.mxu0 0
        %5398 = vmatprep.subr.bf16.mxu0 0
        %5399 = vmatpush1.bf16.msra.mxu0 0
        %5400 = vmatprep.subr.bf16.mxu0 0
        %5401 = vmatpush1.bf16.msra.mxu0 0
        %5402 = vmatprep.mubr.bf16.mxu0 0
        %5403 = vmatmul.mubr.bf16.gmra.mrb[0].mxu0 %v5312
        %v5404 = vpop.f32.mrb[0].mxu0
        %v5405 = vadd.f32 %v5352, %v5404
        %v5406 = vpop.f32.mrb[0].mxu0
        %v5407 = vadd.f32 %v5354, %v5406
        %v5408 = vpop.f32.mrb[0].mxu0
        %v5409 = vadd.f32 %v5356, %v5408
        %v5410 = vpop.f32.mrb[0].mxu0
        %v5411 = vadd.f32 %v5358, %v5410
        %5412 = vmatprep.mubr.bf16.mxu0 0
        %5413 = vmatmul.mubr.bf16.gmra.mrb[0].mxu0 %v5315
        %v5414 = vpop.f32.mrb[0].mxu0
        %v5415 = vadd.f32 %v5362, %v5414
        %v5416 = vpop.f32.mrb[0].mxu0
        %v5417 = vadd.f32 %v5364, %v5416
        %v5418 = vpop.f32.mrb[0].mxu0
        %v5419 = vadd.f32 %v5366, %v5418
        %v5420 = vpop.f32.mrb[0].mxu0
        %v5421 = vadd.f32 %v5368, %v5420
        %5422 = vdwg.mxu0
        %5423 = vmatprep.subr.bf16.mxu0 0
        %5424 = vmatpush1.bf16.msra.mxu0 %v5204
        %5425 = vmatprep.subr.bf16.mxu0 0
        %5426 = vmatpush1.bf16.msra.mxu0 %v5207
        %5427 = vmatprep.subr.bf16.mxu0 0
        %5428 = vmatpush1.bf16.msra.mxu0 %v5210
        %5429 = vmatprep.subr.bf16.mxu0 0
        %5430 = vmatpush1.bf16.msra.mxu0 %v5213
        %5431 = vmatprep.subr.bf16.mxu0 0
        %5432 = vmatpush1.bf16.msra.mxu0 %v5216
        %5433 = vmatprep.subr.bf16.mxu0 0
        %5434 = vmatpush1.bf16.msra.mxu0 %v5219
        %5435 = vmatprep.subr.bf16.mxu0 0
        %5436 = vmatpush1.bf16.msra.mxu0 %v5222
        %5437 = vmatprep.subr.bf16.mxu0 0
        %5438 = vmatpush1.bf16.msra.mxu0 %v5225
        %5439 = vmatprep.subr.bf16.mxu0 0
        %5440 = vmatpush1.bf16.msra.mxu0 %v5228
        %5441 = vmatprep.subr.bf16.mxu0 0
        %5442 = vmatpush1.bf16.msra.mxu0 %v5231
        %5443 = vmatprep.subr.bf16.mxu0 0
        %5444 = vmatpush1.bf16.msra.mxu0 %v5234
        %5445 = vmatprep.subr.bf16.mxu0 0
        %5446 = vmatpush1.bf16.msra.mxu0 %v5237
        %5447 = vmatprep.subr.bf16.mxu0 0
        %5448 = vmatpush1.bf16.msra.mxu0 %v5240
        %5449 = vmatprep.subr.bf16.mxu0 0
        %5450 = vmatpush1.bf16.msra.mxu0 %v5243
        %5451 = vmatprep.subr.bf16.mxu0 0
        %5452 = vmatpush1.bf16.msra.mxu0 %v5246
        %5453 = vmatprep.subr.bf16.mxu0 0
        %5454 = vmatpush1.bf16.msra.mxu0 %v5249
        %5455 = vmatprep.mubr.bf16.mxu0 %v5302
        %5456 = vmatmul.mubr.bf16.gmra.mrb[0].mxu0 %v5301
        %v5457 = vpop.f32.mrb[0].mxu0
        %v5458 = vadd.f32 %v5264, %v5457
        %v5459 = vpop.f32.mrb[0].mxu0
        %v5460 = vpop.f32.mrb[0].mxu0
        %v5461 = vadd.f32 %v5269, %v5460
        %v5462 = vpop.f32.mrb[0].mxu0
        %5463 = vmatprep.mubr.bf16.mxu0 %v5305
        %5464 = vmatmul.mubr.bf16.gmra.mrb[0].mxu0 %v5304
        %v5465 = vpop.f32.mrb[0].mxu0
        %v5466 = vadd.f32 %v5274, %v5465
        %v5467 = vpop.f32.mrb[0].mxu0
        %v5468 = vpop.f32.mrb[0].mxu0
        %v5469 = vadd.f32 %v5279, %v5468
        %v5470 = vpop.f32.mrb[0].mxu0
        %5471 = vdwg.mxu0
        %5472 = vmatprep.subr.bf16.mxu0 0
        %5473 = vmatpush1.bf16.msra.mxu0 %v5252
        %5474 = vmatprep.subr.bf16.mxu0 0
        %5475 = vmatpush1.bf16.msra.mxu0 %v5255
        %5476 = vmatprep.subr.bf16.mxu0 0
        %5477 = vmatpush1.bf16.msra.mxu0 0
        %5478 = vmatprep.subr.bf16.mxu0 0
        %5479 = vmatpush1.bf16.msra.mxu0 0
        %5480 = vmatprep.subr.bf16.mxu0 0
        %5481 = vmatpush1.bf16.msra.mxu0 0
        %5482 = vmatprep.subr.bf16.mxu0 0
        %5483 = vmatpush1.bf16.msra.mxu0 0
        %5484 = vmatprep.subr.bf16.mxu0 0
        %5485 = vmatpush1.bf16.msra.mxu0 0
        %5486 = vmatprep.subr.bf16.mxu0 0
        %5487 = vmatpush1.bf16.msra.mxu0 0
        %5488 = vmatprep.subr.bf16.mxu0 0
        %5489 = vmatpush1.bf16.msra.mxu0 0
        %5490 = vmatprep.subr.bf16.mxu0 0
        %5491 = vmatpush1.bf16.msra.mxu0 0
        %5492 = vmatprep.subr.bf16.mxu0 0
        %5493 = vmatpush1.bf16.msra.mxu0 0
        %5494 = vmatprep.subr.bf16.mxu0 0
        %5495 = vmatpush1.bf16.msra.mxu0 0
        %5496 = vmatprep.subr.bf16.mxu0 0
        %5497 = vmatpush1.bf16.msra.mxu0 0
        %5498 = vmatprep.subr.bf16.mxu0 0
        %5499 = vmatpush1.bf16.msra.mxu0 0
        %5500 = vmatprep.subr.bf16.mxu0 0
        %5501 = vmatpush1.bf16.msra.mxu0 0
        %5502 = vmatprep.subr.bf16.mxu0 0
        %5503 = vmatpush1.bf16.msra.mxu0 0
        %5504 = vmatprep.mubr.bf16.mxu0 0
        %5505 = vmatmul.mubr.bf16.gmra.mrb[0].mxu0 %v5312
        %v5506 = vpop.f32.mrb[0].mxu0
        %v5507 = vadd.f32 %v5458, %v5506
        %v5508 = vpop.f32.mrb[0].mxu0
        %v5509 = vpop.f32.mrb[0].mxu0
        %v5510 = vadd.f32 %v5461, %v5509
        %v5511 = vpop.f32.mrb[0].mxu0
        %5512 = vmatprep.mubr.bf16.mxu0 0
        %5513 = vmatmul.mubr.bf16.gmra.mrb[0].mxu0 %v5315
        %v5514 = vpop.f32.mrb[0].mxu0
        %v5515 = vadd.f32 %v5466, %v5514
        %v5516 = vpop.f32.mrb[0].mxu0
        %v5517 = vpop.f32.mrb[0].mxu0
        %v5518 = vadd.f32 %v5469, %v5517
        %v5519 = vpop.f32.mrb[0].mxu0
        %5520 = vdwg.mxu0
        %v5521 = vadd.f32 %v5405, %v4184
        %v5522 = vadd.f32 %v5407, %v4185
        %v5523 = vadd.f32 %v5507, %v4165
        %v5524 = vadd.f32 %v5409, %v4186
        %v5525 = vadd.f32 %v5411, %v4187
        %v5526 = vadd.f32 %v5510, %v4171
        %v5527 = vadd.f32 %v5415, %v4188
        %v5528 = vadd.f32 %v5417, %v4189
        %v5529 = vadd.f32 %v5515, %v4177
        %v5530 = vadd.f32 %v5419, %v4190
        %v5531 = vadd.f32 %v5421, %v4191
        %v5532 = vadd.f32 %v5518, %v4183
        %v5533 = vmul.f32 %v5521, %v667
        %v5534 = vmul.f32 %v5522, %v671
        %v5535 = vmul.f32 %v5523, %v675
        %v5536 = vmul.f32 %v5524, %v667
        %v5537 = vmul.f32 %v5525, %v671
        %v5538 = vmul.f32 %v5526, %v675
        %v5539 = vmul.f32 %v5527, %v667
        %v5540 = vmul.f32 %v5528, %v671
        %v5541 = vmul.f32 %v5529, %v675
        %v5542 = vmul.f32 %v5530, %v667
        %v5543 = vmul.f32 %v5531, %v671
        %v5544 = vmul.f32 %v5532, %v675
        %5557 = vrot.lane.b32.xlu0 %v5533, 19
        %v5558 = vpop.permute.xlu0 %5557
        %5559 = vrot.lane.b32.xlu0 %v5534, 19
        %v5560 = vpop.permute.xlu0 %5559
        %5561 = vrot.lane.b32.xlu0 %v5535, 19
        %v5562 = vpop.permute.xlu0 %5561
        %5563 = vrot.lane.b32.xlu0 %v5536, 19
        %v5564 = vpop.permute.xlu0 %5563
        %5565 = vrot.lane.b32.xlu0 %v5537, 19
        %v5566 = vpop.permute.xlu0 %5565
        %5567 = vrot.lane.b32.xlu0 %v5538, 19
        %v5568 = vpop.permute.xlu0 %5567
        %5569 = vrot.lane.b32.xlu0 %v5539, 19
        %v5570 = vpop.permute.xlu0 %5569
        %5571 = vrot.lane.b32.xlu0 %v5540, 19
        %v5572 = vpop.permute.xlu0 %5571
        %5573 = vrot.lane.b32.xlu0 %v5541, 19
        %v5574 = vpop.permute.xlu0 %5573
        %5575 = vrot.lane.b32.xlu0 %v5542, 19
        %v5576 = vpop.permute.xlu0 %5575
        %5577 = vrot.lane.b32.xlu0 %v5543, 19
        %v5578 = vpop.permute.xlu0 %5577
        %5579 = vrot.lane.b32.xlu0 %v5544, 19
        %v5580 = vpop.permute.xlu0 %5579
        %v5581 = vsel %vm727, %v5558, %v5560
        %v5582 = vsel %vm727, %v5560, %v5562
        %v5583 = vsel %vm727, %v5564, %v5566
        %v5584 = vsel %vm727, %v5566, %v5568
        %v5585 = vsel %vm727, %v5570, %v5572
        %v5586 = vsel %vm727, %v5572, %v5574
        %v5587 = vsel %vm727, %v5576, %v5578
        %v5588 = vsel %vm727, %v5578, %v5580
        %5601 = vst.msk [vmem:[#allocation2] sm:$0xff] %vm748, %v5558
        %5602 = vst [vmem:[#allocation2 + $0x8] sm:$0xff] %v5581
        %5603 = vst.msk [vmem:[#allocation2 + $0x10] sm:$0xff] %vm751, %v5582
        %5604 = vst.msk [vmem:[#allocation2 + $0x18] sm:$0xff] %vm748, %v5564
        %5605 = vst [vmem:[#allocation2 + $0x20] sm:$0xff] %v5583
        %5606 = vst.msk [vmem:[#allocation2 + $0x28] sm:$0xff] %vm751, %v5584
        %5607 = vst.msk [vmem:[#allocation2 + $0x30] sm:$0xff] %vm748, %v5570
        %5608 = vst [vmem:[#allocation2 + $0x38] sm:$0xff] %v5585
        %5609 = vst.msk [vmem:[#allocation2 + $0x40] sm:$0xff] %vm751, %v5586
        %5610 = vst.msk [vmem:[#allocation2 + $0x48] sm:$0xff] %vm748, %v5576
        %5611 = vst [vmem:[#allocation2 + $0x50] sm:$0xff] %v5587
        %5612 = vst.msk [vmem:[#allocation2 + $0x58] sm:$0xff] %vm751, %v5588
        %v5613 = vld [vmem:[#allocation2] sm:$0xff]
        %v5614 = vld [vmem:[#allocation2 + $0x8] sm:$0xff]
        %v5615 = vld [vmem:[#allocation2 + $0x10] sm:$0xff]
        %v5616 = vld [vmem:[#allocation2 + $0x18] sm:$0xff]
        %v5617 = vld [vmem:[#allocation2 + $0x20] sm:$0xff]
        %v5618 = vld [vmem:[#allocation2 + $0x28] sm:$0xff]
        %v5619 = vld [vmem:[#allocation2 + $0x30] sm:$0xff]
        %v5620 = vld [vmem:[#allocation2 + $0x38] sm:$0xff]
        %v5621 = vld [vmem:[#allocation2 + $0x40] sm:$0xff]
        %v5622 = vld [vmem:[#allocation2 + $0x48] sm:$0xff]
        %v5623 = vld [vmem:[#allocation2 + $0x50] sm:$0xff]
        %v5624 = vld [vmem:[#allocation2 + $0x58] sm:$0xff]
        %s5625 = scalar_lea.vmem %s5, 144
        %v5626 = vld [vmem:[%s5625] sm:$0xff]
        %v5627 = vld [vmem:[%s5625 + $0x8] sm:$0xf]
        %v5628 = vld [vmem:[%s5625 + $0xc] sm:$0xff]
        %v5629 = vld [vmem:[%s5625 + $0x14] sm:$0xf]
        %v5630 = vld [vmem:[%s5625 + $0x18] sm:$0xff]
        %v5631 = vld [vmem:[%s5625 + $0x20] sm:$0xf]
        %v5632 = vld [vmem:[%s5625 + $0x24] sm:$0xff]
        %v5633 = vld [vmem:[%s5625 + $0x2c] sm:$0xf]
        %5646 = vrot.lane.b32.xlu0 %v5613, 127
        %v5647 = vpop.permute.xlu0 %5646
        %5648 = vrot.lane.b32.xlu0 %v5614, 127
        %v5649 = vpop.permute.xlu0 %5648
        %5650 = vrot.lane.b32.xlu0 %v5615, 127
        %v5651 = vpop.permute.xlu0 %5650
        %5652 = vrot.lane.b32.xlu0 %v5616, 127
        %v5653 = vpop.permute.xlu0 %5652
        %5654 = vrot.lane.b32.xlu0 %v5617, 127
        %v5655 = vpop.permute.xlu0 %5654
        %5656 = vrot.lane.b32.xlu0 %v5618, 127
        %v5657 = vpop.permute.xlu0 %5656
        %5658 = vrot.lane.b32.xlu0 %v5619, 127
        %v5659 = vpop.permute.xlu0 %5658
        %5660 = vrot.lane.b32.xlu0 %v5620, 127
        %v5661 = vpop.permute.xlu0 %5660
        %5662 = vrot.lane.b32.xlu0 %v5621, 127
        %v5663 = vpop.permute.xlu0 %5662
        %5664 = vrot.lane.b32.xlu0 %v5622, 127
        %v5665 = vpop.permute.xlu0 %5664
        %5666 = vrot.lane.b32.xlu0 %v5623, 127
        %v5667 = vpop.permute.xlu0 %5666
        %5668 = vrot.lane.b32.xlu0 %v5624, 127
        %v5669 = vpop.permute.xlu0 %5668
        %v5670 = vsel %vm391, %v5647, %v5649
        %v5671 = vsel %vm391, %v5649, %v5651
        %v5672 = vsel %vm391, %v5653, %v5655
        %v5673 = vsel %vm391, %v5655, %v5657
        %v5674 = vsel %vm391, %v5659, %v5661
        %v5675 = vsel %vm391, %v5661, %v5663
        %v5676 = vsel %vm391, %v5665, %v5667
        %v5677 = vsel %vm391, %v5667, %v5669
        %5690 = vrot.lane.b32.xlu0 %v5613, 126
        %v5691 = vpop.permute.xlu0 %5690
        %5692 = vrot.lane.b32.xlu0 %v5614, 126
        %v5693 = vpop.permute.xlu0 %5692
        %5694 = vrot.lane.b32.xlu0 %v5615, 126
        %v5695 = vpop.permute.xlu0 %5694
        %5696 = vrot.lane.b32.xlu0 %v5616, 126
        %v5697 = vpop.permute.xlu0 %5696
        %5698 = vrot.lane.b32.xlu0 %v5617, 126
        %v5699 = vpop.permute.xlu0 %5698
        %5700 = vrot.lane.b32.xlu0 %v5618, 126
        %v5701 = vpop.permute.xlu0 %5700
        %5702 = vrot.lane.b32.xlu0 %v5619, 126
        %v5703 = vpop.permute.xlu0 %5702
        %5704 = vrot.lane.b32.xlu0 %v5620, 126
        %v5705 = vpop.permute.xlu0 %5704
        %5706 = vrot.lane.b32.xlu0 %v5621, 126
        %v5707 = vpop.permute.xlu0 %5706
        %5708 = vrot.lane.b32.xlu0 %v5622, 126
        %v5709 = vpop.permute.xlu0 %5708
        %5710 = vrot.lane.b32.xlu0 %v5623, 126
        %v5711 = vpop.permute.xlu0 %5710
        %5712 = vrot.lane.b32.xlu0 %v5624, 126
        %v5713 = vpop.permute.xlu0 %5712
        %v5714 = vsel %vm403, %v5691, %v5693
        %v5715 = vsel %vm403, %v5693, %v5695
        %v5716 = vsel %vm403, %v5697, %v5699
        %v5717 = vsel %vm403, %v5699, %v5701
        %v5718 = vsel %vm403, %v5703, %v5705
        %v5719 = vsel %vm403, %v5705, %v5707
        %v5720 = vsel %vm403, %v5709, %v5711
        %v5721 = vsel %vm403, %v5711, %v5713
        %5734 = vrot.lane.b32.xlu0 %v5613, 110
        %v5735 = vpop.permute.xlu0 %5734
        %5736 = vrot.lane.b32.xlu0 %v5614, 110
        %v5737 = vpop.permute.xlu0 %5736
        %5738 = vrot.lane.b32.xlu0 %v5615, 110
        %v5739 = vpop.permute.xlu0 %5738
        %5740 = vrot.lane.b32.xlu0 %v5616, 110
        %v5741 = vpop.permute.xlu0 %5740
        %5742 = vrot.lane.b32.xlu0 %v5617, 110
        %v5743 = vpop.permute.xlu0 %5742
        %5744 = vrot.lane.b32.xlu0 %v5618, 110
        %v5745 = vpop.permute.xlu0 %5744
        %5746 = vrot.lane.b32.xlu0 %v5619, 110
        %v5747 = vpop.permute.xlu0 %5746
        %5748 = vrot.lane.b32.xlu0 %v5620, 110
        %v5749 = vpop.permute.xlu0 %5748
        %5750 = vrot.lane.b32.xlu0 %v5621, 110
        %v5751 = vpop.permute.xlu0 %5750
        %5752 = vrot.lane.b32.xlu0 %v5622, 110
        %v5753 = vpop.permute.xlu0 %5752
        %5754 = vrot.lane.b32.xlu0 %v5623, 110
        %v5755 = vpop.permute.xlu0 %5754
        %5756 = vrot.lane.b32.xlu0 %v5624, 110
        %v5757 = vpop.permute.xlu0 %5756
        %v5758 = vsel %vm415, %v5735, %v5737
        %v5759 = vsel %vm415, %v5737, %v5739
        %v5760 = vsel %vm415, %v5741, %v5743
        %v5761 = vsel %vm415, %v5743, %v5745
        %v5762 = vsel %vm415, %v5747, %v5749
        %v5763 = vsel %vm415, %v5749, %v5751
        %v5764 = vsel %vm415, %v5753, %v5755
        %v5765 = vsel %vm415, %v5755, %v5757
        %5778 = vrot.lane.b32.xlu0 %v5613, 109
        %v5779 = vpop.permute.xlu0 %5778
        %5780 = vrot.lane.b32.xlu0 %v5614, 109
        %v5781 = vpop.permute.xlu0 %5780
        %5782 = vrot.lane.b32.xlu0 %v5615, 109
        %v5783 = vpop.permute.xlu0 %5782
        %5784 = vrot.lane.b32.xlu0 %v5616, 109
        %v5785 = vpop.permute.xlu0 %5784
        %5786 = vrot.lane.b32.xlu0 %v5617, 109
        %v5787 = vpop.permute.xlu0 %5786
        %5788 = vrot.lane.b32.xlu0 %v5618, 109
        %v5789 = vpop.permute.xlu0 %5788
        %5790 = vrot.lane.b32.xlu0 %v5619, 109
        %v5791 = vpop.permute.xlu0 %5790
        %5792 = vrot.lane.b32.xlu0 %v5620, 109
        %v5793 = vpop.permute.xlu0 %5792
        %5794 = vrot.lane.b32.xlu0 %v5621, 109
        %v5795 = vpop.permute.xlu0 %5794
        %5796 = vrot.lane.b32.xlu0 %v5622, 109
        %v5797 = vpop.permute.xlu0 %5796
        %5798 = vrot.lane.b32.xlu0 %v5623, 109
        %v5799 = vpop.permute.xlu0 %5798
        %5800 = vrot.lane.b32.xlu0 %v5624, 109
        %v5801 = vpop.permute.xlu0 %5800
        %v5802 = vsel %vm427, %v5779, %v5781
        %v5803 = vsel %vm427, %v5781, %v5783
        %v5804 = vsel %vm427, %v5785, %v5787
        %v5805 = vsel %vm427, %v5787, %v5789
        %v5806 = vsel %vm427, %v5791, %v5793
        %v5807 = vsel %vm427, %v5793, %v5795
        %v5808 = vsel %vm427, %v5797, %v5799
        %v5809 = vsel %vm427, %v5799, %v5801
        %5822 = vrot.lane.b32.xlu0 %v5613, 108
        %v5823 = vpop.permute.xlu0 %5822
        %5824 = vrot.lane.b32.xlu0 %v5614, 108
        %v5825 = vpop.permute.xlu0 %5824
        %5826 = vrot.lane.b32.xlu0 %v5615, 108
        %v5827 = vpop.permute.xlu0 %5826
        %5828 = vrot.lane.b32.xlu0 %v5616, 108
        %v5829 = vpop.permute.xlu0 %5828
        %5830 = vrot.lane.b32.xlu0 %v5617, 108
        %v5831 = vpop.permute.xlu0 %5830
        %5832 = vrot.lane.b32.xlu0 %v5618, 108
        %v5833 = vpop.permute.xlu0 %5832
        %5834 = vrot.lane.b32.xlu0 %v5619, 108
        %v5835 = vpop.permute.xlu0 %5834
        %5836 = vrot.lane.b32.xlu0 %v5620, 108
        %v5837 = vpop.permute.xlu0 %5836
        %5838 = vrot.lane.b32.xlu0 %v5621, 108
        %v5839 = vpop.permute.xlu0 %5838
        %5840 = vrot.lane.b32.xlu0 %v5622, 108
        %v5841 = vpop.permute.xlu0 %5840
        %5842 = vrot.lane.b32.xlu0 %v5623, 108
        %v5843 = vpop.permute.xlu0 %5842
        %5844 = vrot.lane.b32.xlu0 %v5624, 108
        %v5845 = vpop.permute.xlu0 %5844
        %v5846 = vsel %vm439, %v5823, %v5825
        %v5847 = vsel %vm439, %v5825, %v5827
        %v5848 = vsel %vm439, %v5829, %v5831
        %v5849 = vsel %vm439, %v5831, %v5833
        %v5850 = vsel %vm439, %v5835, %v5837
        %v5851 = vsel %vm439, %v5837, %v5839
        %v5852 = vsel %vm439, %v5841, %v5843
        %v5853 = vsel %vm439, %v5843, %v5845
        %5866 = vrot.lane.b32.xlu0 %v5613, 92
        %v5867 = vpop.permute.xlu0 %5866
        %5868 = vrot.lane.b32.xlu0 %v5614, 92
        %v5869 = vpop.permute.xlu0 %5868
        %5870 = vrot.lane.b32.xlu0 %v5615, 92
        %v5871 = vpop.permute.xlu0 %5870
        %5872 = vrot.lane.b32.xlu0 %v5616, 92
        %v5873 = vpop.permute.xlu0 %5872
        %5874 = vrot.lane.b32.xlu0 %v5617, 92
        %v5875 = vpop.permute.xlu0 %5874
        %5876 = vrot.lane.b32.xlu0 %v5618, 92
        %v5877 = vpop.permute.xlu0 %5876
        %5878 = vrot.lane.b32.xlu0 %v5619, 92
        %v5879 = vpop.permute.xlu0 %5878
        %5880 = vrot.lane.b32.xlu0 %v5620, 92
        %v5881 = vpop.permute.xlu0 %5880
        %5882 = vrot.lane.b32.xlu0 %v5621, 92
        %v5883 = vpop.permute.xlu0 %5882
        %5884 = vrot.lane.b32.xlu0 %v5622, 92
        %v5885 = vpop.permute.xlu0 %5884
        %5886 = vrot.lane.b32.xlu0 %v5623, 92
        %v5887 = vpop.permute.xlu0 %5886
        %5888 = vrot.lane.b32.xlu0 %v5624, 92
        %v5889 = vpop.permute.xlu0 %5888
        %v5890 = vsel %vm451, %v5867, %v5869
        %v5891 = vsel %vm451, %v5869, %v5871
        %v5892 = vsel %vm451, %v5873, %v5875
        %v5893 = vsel %vm451, %v5875, %v5877
        %v5894 = vsel %vm451, %v5879, %v5881
        %v5895 = vsel %vm451, %v5881, %v5883
        %v5896 = vsel %vm451, %v5885, %v5887
        %v5897 = vsel %vm451, %v5887, %v5889
        %5910 = vrot.lane.b32.xlu0 %v5613, 91
        %v5911 = vpop.permute.xlu0 %5910
        %5912 = vrot.lane.b32.xlu0 %v5614, 91
        %v5913 = vpop.permute.xlu0 %5912
        %5914 = vrot.lane.b32.xlu0 %v5615, 91
        %v5915 = vpop.permute.xlu0 %5914
        %5916 = vrot.lane.b32.xlu0 %v5616, 91
        %v5917 = vpop.permute.xlu0 %5916
        %5918 = vrot.lane.b32.xlu0 %v5617, 91
        %v5919 = vpop.permute.xlu0 %5918
        %5920 = vrot.lane.b32.xlu0 %v5618, 91
        %v5921 = vpop.permute.xlu0 %5920
        %5922 = vrot.lane.b32.xlu0 %v5619, 91
        %v5923 = vpop.permute.xlu0 %5922
        %5924 = vrot.lane.b32.xlu0 %v5620, 91
        %v5925 = vpop.permute.xlu0 %5924
        %5926 = vrot.lane.b32.xlu0 %v5621, 91
        %v5927 = vpop.permute.xlu0 %5926
        %5928 = vrot.lane.b32.xlu0 %v5622, 91
        %v5929 = vpop.permute.xlu0 %5928
        %5930 = vrot.lane.b32.xlu0 %v5623, 91
        %v5931 = vpop.permute.xlu0 %5930
        %5932 = vrot.lane.b32.xlu0 %v5624, 91
        %v5933 = vpop.permute.xlu0 %5932
        %v5934 = vsel %vm463, %v5911, %v5913
        %v5935 = vsel %vm463, %v5913, %v5915
        %v5936 = vsel %vm463, %v5917, %v5919
        %v5937 = vsel %vm463, %v5919, %v5921
        %v5938 = vsel %vm463, %v5923, %v5925
        %v5939 = vsel %vm463, %v5925, %v5927
        %v5940 = vsel %vm463, %v5929, %v5931
        %v5941 = vsel %vm463, %v5931, %v5933
        %5954 = vrot.lane.b32.xlu0 %v5613, 90
        %v5955 = vpop.permute.xlu0 %5954
        %5956 = vrot.lane.b32.xlu0 %v5614, 90
        %v5957 = vpop.permute.xlu0 %5956
        %5958 = vrot.lane.b32.xlu0 %v5615, 90
        %v5959 = vpop.permute.xlu0 %5958
        %5960 = vrot.lane.b32.xlu0 %v5616, 90
        %v5961 = vpop.permute.xlu0 %5960
        %5962 = vrot.lane.b32.xlu0 %v5617, 90
        %v5963 = vpop.permute.xlu0 %5962
        %5964 = vrot.lane.b32.xlu0 %v5618, 90
        %v5965 = vpop.permute.xlu0 %5964
        %5966 = vrot.lane.b32.xlu0 %v5619, 90
        %v5967 = vpop.permute.xlu0 %5966
        %5968 = vrot.lane.b32.xlu0 %v5620, 90
        %v5969 = vpop.permute.xlu0 %5968
        %5970 = vrot.lane.b32.xlu0 %v5621, 90
        %v5971 = vpop.permute.xlu0 %5970
        %5972 = vrot.lane.b32.xlu0 %v5622, 90
        %v5973 = vpop.permute.xlu0 %5972
        %5974 = vrot.lane.b32.xlu0 %v5623, 90
        %v5975 = vpop.permute.xlu0 %5974
        %5976 = vrot.lane.b32.xlu0 %v5624, 90
        %v5977 = vpop.permute.xlu0 %5976
        %v5978 = vsel %vm475, %v5955, %v5957
        %v5979 = vsel %vm475, %v5957, %v5959
        %v5980 = vsel %vm475, %v5961, %v5963
        %v5981 = vsel %vm475, %v5963, %v5965
        %v5982 = vsel %vm475, %v5967, %v5969
        %v5983 = vsel %vm475, %v5969, %v5971
        %v5984 = vsel %vm475, %v5973, %v5975
        %v5985 = vsel %vm475, %v5975, %v5977
        %v5998 = vpack.c.bf16 %v5616, %v5613
        %v5999 = vpack.c.bf16 %v5617, %v5614
        %v6000 = vpack.c.bf16 %v5618, %v5615
        %v6001 = vpack.c.bf16 %v5622, %v5619
        %v6002 = vpack.c.bf16 %v5623, %v5620
        %v6003 = vpack.c.bf16 %v5624, %v5621
        %v6004 = vpack.c.bf16 %v5672, %v5670
        %v6005 = vpack.c.bf16 %v5673, %v5671
        %v6006 = vpack.c.bf16 %v5657, %v5651
        %v6007 = vpack.c.bf16 %v5676, %v5674
        %v6008 = vpack.c.bf16 %v5677, %v5675
        %v6009 = vpack.c.bf16 %v5669, %v5663
        %v6010 = vpack.c.bf16 %v5716, %v5714
        %v6011 = vpack.c.bf16 %v5717, %v5715
        %v6012 = vpack.c.bf16 %v5701, %v5695
        %v6013 = vpack.c.bf16 %v5720, %v5718
        %v6014 = vpack.c.bf16 %v5721, %v5719
        %v6015 = vpack.c.bf16 %v5713, %v5707
        %v6016 = vpack.c.bf16 %v5760, %v5758
        %v6017 = vpack.c.bf16 %v5761, %v5759
        %v6018 = vpack.c.bf16 %v5745, %v5739
        %v6019 = vpack.c.bf16 %v5764, %v5762
        %v6020 = vpack.c.bf16 %v5765, %v5763
        %v6021 = vpack.c.bf16 %v5757, %v5751
        %v6022 = vpack.c.bf16 %v5804, %v5802
        %v6023 = vpack.c.bf16 %v5805, %v5803
        %v6024 = vpack.c.bf16 %v5789, %v5783
        %v6025 = vpack.c.bf16 %v5808, %v5806
        %v6026 = vpack.c.bf16 %v5809, %v5807
        %v6027 = vpack.c.bf16 %v5801, %v5795
        %v6028 = vpack.c.bf16 %v5848, %v5846
        %v6029 = vpack.c.bf16 %v5849, %v5847
        %v6030 = vpack.c.bf16 %v5833, %v5827
        %v6031 = vpack.c.bf16 %v5852, %v5850
        %v6032 = vpack.c.bf16 %v5853, %v5851
        %v6033 = vpack.c.bf16 %v5845, %v5839
        %v6034 = vpack.c.bf16 %v5892, %v5890
        %v6035 = vpack.c.bf16 %v5893, %v5891
        %v6036 = vpack.c.bf16 %v5877, %v5871
        %v6037 = vpack.c.bf16 %v5896, %v5894
        %v6038 = vpack.c.bf16 %v5897, %v5895
        %v6039 = vpack.c.bf16 %v5889, %v5883
        %v6040 = vpack.c.bf16 %v5936, %v5934
        %v6041 = vpack.c.bf16 %v5937, %v5935
        %v6042 = vpack.c.bf16 %v5921, %v5915
        %v6043 = vpack.c.bf16 %v5940, %v5938
        %v6044 = vpack.c.bf16 %v5941, %v5939
        %v6045 = vpack.c.bf16 %v5933, %v5927
        %v6046 = vpack.c.bf16 %v5980, %v5978
        %v6047 = vpack.c.bf16 %v5981, %v5979
        %v6048 = vpack.c.bf16 %v5965, %v5959
        %v6049 = vpack.c.bf16 %v5984, %v5982
        %v6050 = vpack.c.bf16 %v5985, %v5983
        %v6051 = vpack.c.bf16 %v5977, %v5971
        %s6052 = scalar_lea.vmem %s6, 96
        %v6053 = vld [vmem:[%s6052] sm:$0xff]
        %v6054 = vld [vmem:[%s6052 + $0x8] sm:$0xff]
        %v6055 = vld [vmem:[%s6052 + $0x10] sm:$0xff]
        %v6056 = vld [vmem:[%s6052 + $0x18] sm:$0xff]
        %6058 = vset.pattern.permute.xlu0 0
        %6059 = vperm.xlu0 %6058, %v6053
        %v6060 = vpop.permute.xlu0 %6059
        %6063 = vset.pattern.permute.xlu0 0
        %6064 = vperm.xlu0 %6063, %v6054
        %v6065 = vpop.permute.xlu0 %6064
        %6068 = vset.pattern.permute.xlu0 0
        %6069 = vperm.xlu0 %6068, %v6055
        %v6070 = vpop.permute.xlu0 %6069
        %6073 = vset.pattern.permute.xlu0 0
        %6074 = vperm.xlu0 %6073, %v6056
        %v6075 = vpop.permute.xlu0 %6074
        %v6085 = vunpack.c.l.b16 %v5626
        %v6086 = vunpack.c.h.b16 %v5626
        %v6087 = vunpack.c.l.b16 %v5627
        %v6088 = vunpack.c.l.b16 %v5628
        %v6089 = vunpack.c.h.b16 %v5628
        %v6090 = vunpack.c.l.b16 %v5629
        %v6091 = vunpack.c.l.b16 %v5630
        %v6092 = vunpack.c.h.b16 %v5630
        %v6093 = vunpack.c.l.b16 %v5631
        %v6094 = vunpack.c.l.b16 %v5632
        %v6095 = vunpack.c.h.b16 %v5632
        %v6096 = vunpack.c.l.b16 %v5633
        %v6097 = vpack.c.b16 %v6088, %v6085
        %v6098 = vpack.c.b16 %v6089, %v6086
        %v6099 = vpack.c.b16 %v6090, %v6087
        %v6100 = vpack.c.b16 %v6094, %v6091
        %v6101 = vpack.c.b16 %v6095, %v6092
        %v6102 = vpack.c.b16 %v6096, %v6093
        %v6108 = vsel %vm1254, %v6099, 0
        %v6111 = vsel %vm1254, %v6102, 0
        %6113 = vmatprep.subr.bf16.mxu0 %v5999
        %6114 = vmatpush1.bf16.msra.mxu0 %v5998
        %6115 = vmatprep.subr.bf16.mxu0 %v6002
        %6116 = vmatpush1.bf16.msra.mxu0 %v6001
        %6117 = vmatprep.subr.bf16.mxu0 %v6005
        %6118 = vmatpush1.bf16.msra.mxu0 %v6004
        %6119 = vmatprep.subr.bf16.mxu0 %v6008
        %6120 = vmatpush1.bf16.msra.mxu0 %v6007
        %6121 = vmatprep.subr.bf16.mxu0 %v6011
        %6122 = vmatpush1.bf16.msra.mxu0 %v6010
        %6123 = vmatprep.subr.bf16.mxu0 %v6014
        %6124 = vmatpush1.bf16.msra.mxu0 %v6013
        %6125 = vmatprep.subr.bf16.mxu0 %v6017
        %6126 = vmatpush1.bf16.msra.mxu0 %v6016
        %6127 = vmatprep.subr.bf16.mxu0 %v6020
        %6128 = vmatpush1.bf16.msra.mxu0 %v6019
        %6129 = vmatprep.subr.bf16.mxu0 %v6023
        %6130 = vmatpush1.bf16.msra.mxu0 %v6022
        %6131 = vmatprep.subr.bf16.mxu0 %v6026
        %6132 = vmatpush1.bf16.msra.mxu0 %v6025
        %6133 = vmatprep.subr.bf16.mxu0 %v6029
        %6134 = vmatpush1.bf16.msra.mxu0 %v6028
        %6135 = vmatprep.subr.bf16.mxu0 %v6032
        %6136 = vmatpush1.bf16.msra.mxu0 %v6031
        %6137 = vmatprep.subr.bf16.mxu0 %v6035
        %6138 = vmatpush1.bf16.msra.mxu0 %v6034
        %6139 = vmatprep.subr.bf16.mxu0 %v6038
        %6140 = vmatpush1.bf16.msra.mxu0 %v6037
        %6141 = vmatprep.subr.bf16.mxu0 %v6041
        %6142 = vmatpush1.bf16.msra.mxu0 %v6040
        %6143 = vmatprep.subr.bf16.mxu0 %v6044
        %6144 = vmatpush1.bf16.msra.mxu0 %v6043
        %6145 = vmatprep.mubr.bf16.mxu0 %v6098
        %6146 = vmatmul.mubr.bf16.gmra.mrb[0].mxu0 %v6097
        %v6147 = vpop.f32.mrb[0].mxu0
        %v6148 = vadd.f32 %v6060, %v6147
        %v6149 = vpop.f32.mrb[0].mxu0
        %v6150 = vadd.f32 %v6060, %v6149
        %v6151 = vpop.f32.mrb[0].mxu0
        %v6152 = vadd.f32 %v6065, %v6151
        %v6153 = vpop.f32.mrb[0].mxu0
        %v6154 = vadd.f32 %v6065, %v6153
        %6155 = vmatprep.mubr.bf16.mxu0 %v6101
        %6156 = vmatmul.mubr.bf16.gmra.mrb[0].mxu0 %v6100
        %v6157 = vpop.f32.mrb[0].mxu0
        %v6158 = vadd.f32 %v6070, %v6157
        %v6159 = vpop.f32.mrb[0].mxu0
        %v6160 = vadd.f32 %v6070, %v6159
        %v6161 = vpop.f32.mrb[0].mxu0
        %v6162 = vadd.f32 %v6075, %v6161
        %v6163 = vpop.f32.mrb[0].mxu0
        %v6164 = vadd.f32 %v6075, %v6163
        %6165 = vdwg.mxu0
        %6166 = vmatprep.subr.bf16.mxu0 %v6047
        %6167 = vmatpush1.bf16.msra.mxu0 %v6046
        %6168 = vmatprep.subr.bf16.mxu0 %v6050
        %6169 = vmatpush1.bf16.msra.mxu0 %v6049
        %6170 = vmatprep.subr.bf16.mxu0 0
        %6171 = vmatpush1.bf16.msra.mxu0 0
        %6172 = vmatprep.subr.bf16.mxu0 0
        %6173 = vmatpush1.bf16.msra.mxu0 0
        %6174 = vmatprep.subr.bf16.mxu0 0
        %6175 = vmatpush1.bf16.msra.mxu0 0
        %6176 = vmatprep.subr.bf16.mxu0 0
        %6177 = vmatpush1.bf16.msra.mxu0 0
        %6178 = vmatprep.subr.bf16.mxu0 0
        %6179 = vmatpush1.bf16.msra.mxu0 0
        %6180 = vmatprep.subr.bf16.mxu0 0
        %6181 = vmatpush1.bf16.msra.mxu0 0
        %6182 = vmatprep.subr.bf16.mxu0 0
        %6183 = vmatpush1.bf16.msra.mxu0 0
        %6184 = vmatprep.subr.bf16.mxu0 0
        %6185 = vmatpush1.bf16.msra.mxu0 0
        %6186 = vmatprep.subr.bf16.mxu0 0
        %6187 = vmatpush1.bf16.msra.mxu0 0
        %6188 = vmatprep.subr.bf16.mxu0 0
        %6189 = vmatpush1.bf16.msra.mxu0 0
        %6190 = vmatprep.subr.bf16.mxu0 0
        %6191 = vmatpush1.bf16.msra.mxu0 0
        %6192 = vmatprep.subr.bf16.mxu0 0
        %6193 = vmatpush1.bf16.msra.mxu0 0
        %6194 = vmatprep.subr.bf16.mxu0 0
        %6195 = vmatpush1.bf16.msra.mxu0 0
        %6196 = vmatprep.subr.bf16.mxu0 0
        %6197 = vmatpush1.bf16.msra.mxu0 0
        %6198 = vmatprep.mubr.bf16.mxu0 0
        %6199 = vmatmul.mubr.bf16.gmra.mrb[0].mxu0 %v6108
        %v6200 = vpop.f32.mrb[0].mxu0
        %v6201 = vadd.f32 %v6148, %v6200
        %v6202 = vpop.f32.mrb[0].mxu0
        %v6203 = vadd.f32 %v6150, %v6202
        %v6204 = vpop.f32.mrb[0].mxu0
        %v6205 = vadd.f32 %v6152, %v6204
        %v6206 = vpop.f32.mrb[0].mxu0
        %v6207 = vadd.f32 %v6154, %v6206
        %6208 = vmatprep.mubr.bf16.mxu0 0
        %6209 = vmatmul.mubr.bf16.gmra.mrb[0].mxu0 %v6111
        %v6210 = vpop.f32.mrb[0].mxu0
        %v6211 = vadd.f32 %v6158, %v6210
        %v6212 = vpop.f32.mrb[0].mxu0
        %v6213 = vadd.f32 %v6160, %v6212
        %v6214 = vpop.f32.mrb[0].mxu0
        %v6215 = vadd.f32 %v6162, %v6214
        %v6216 = vpop.f32.mrb[0].mxu0
        %v6217 = vadd.f32 %v6164, %v6216
        %6218 = vdwg.mxu0
        %6219 = vmatprep.subr.bf16.mxu0 0
        %6220 = vmatpush1.bf16.msra.mxu0 %v6000
        %6221 = vmatprep.subr.bf16.mxu0 0
        %6222 = vmatpush1.bf16.msra.mxu0 %v6003
        %6223 = vmatprep.subr.bf16.mxu0 0
        %6224 = vmatpush1.bf16.msra.mxu0 %v6006
        %6225 = vmatprep.subr.bf16.mxu0 0
        %6226 = vmatpush1.bf16.msra.mxu0 %v6009
        %6227 = vmatprep.subr.bf16.mxu0 0
        %6228 = vmatpush1.bf16.msra.mxu0 %v6012
        %6229 = vmatprep.subr.bf16.mxu0 0
        %6230 = vmatpush1.bf16.msra.mxu0 %v6015
        %6231 = vmatprep.subr.bf16.mxu0 0
        %6232 = vmatpush1.bf16.msra.mxu0 %v6018
        %6233 = vmatprep.subr.bf16.mxu0 0
        %6234 = vmatpush1.bf16.msra.mxu0 %v6021
        %6235 = vmatprep.subr.bf16.mxu0 0
        %6236 = vmatpush1.bf16.msra.mxu0 %v6024
        %6237 = vmatprep.subr.bf16.mxu0 0
        %6238 = vmatpush1.bf16.msra.mxu0 %v6027
        %6239 = vmatprep.subr.bf16.mxu0 0
        %6240 = vmatpush1.bf16.msra.mxu0 %v6030
        %6241 = vmatprep.subr.bf16.mxu0 0
        %6242 = vmatpush1.bf16.msra.mxu0 %v6033
        %6243 = vmatprep.subr.bf16.mxu0 0
        %6244 = vmatpush1.bf16.msra.mxu0 %v6036
        %6245 = vmatprep.subr.bf16.mxu0 0
        %6246 = vmatpush1.bf16.msra.mxu0 %v6039
        %6247 = vmatprep.subr.bf16.mxu0 0
        %6248 = vmatpush1.bf16.msra.mxu0 %v6042
        %6249 = vmatprep.subr.bf16.mxu0 0
        %6250 = vmatpush1.bf16.msra.mxu0 %v6045
        %6251 = vmatprep.mubr.bf16.mxu0 %v6098
        %6252 = vmatmul.mubr.bf16.gmra.mrb[0].mxu0 %v6097
        %v6253 = vpop.f32.mrb[0].mxu0
        %v6254 = vadd.f32 %v6060, %v6253
        %v6255 = vpop.f32.mrb[0].mxu0
        %v6256 = vpop.f32.mrb[0].mxu0
        %v6257 = vadd.f32 %v6065, %v6256
        %v6258 = vpop.f32.mrb[0].mxu0
        %6259 = vmatprep.mubr.bf16.mxu0 %v6101
        %6260 = vmatmul.mubr.bf16.gmra.mrb[0].mxu0 %v6100
        %v6261 = vpop.f32.mrb[0].mxu0
        %v6262 = vadd.f32 %v6070, %v6261
        %v6263 = vpop.f32.mrb[0].mxu0
        %v6264 = vpop.f32.mrb[0].mxu0
        %v6265 = vadd.f32 %v6075, %v6264
        %v6266 = vpop.f32.mrb[0].mxu0
        %6267 = vdwg.mxu0
        %6268 = vmatprep.subr.bf16.mxu0 0
        %6269 = vmatpush1.bf16.msra.mxu0 %v6048
        %6270 = vmatprep.subr.bf16.mxu0 0
        %6271 = vmatpush1.bf16.msra.mxu0 %v6051
        %6272 = vmatprep.subr.bf16.mxu0 0
        %6273 = vmatpush1.bf16.msra.mxu0 0
        %6274 = vmatprep.subr.bf16.mxu0 0
        %6275 = vmatpush1.bf16.msra.mxu0 0
        %6276 = vmatprep.subr.bf16.mxu0 0
        %6277 = vmatpush1.bf16.msra.mxu0 0
        %6278 = vmatprep.subr.bf16.mxu0 0
        %6279 = vmatpush1.bf16.msra.mxu0 0
        %6280 = vmatprep.subr.bf16.mxu0 0
        %6281 = vmatpush1.bf16.msra.mxu0 0
        %6282 = vmatprep.subr.bf16.mxu0 0
        %6283 = vmatpush1.bf16.msra.mxu0 0
        %6284 = vmatprep.subr.bf16.mxu0 0
        %6285 = vmatpush1.bf16.msra.mxu0 0
        %6286 = vmatprep.subr.bf16.mxu0 0
        %6287 = vmatpush1.bf16.msra.mxu0 0
        %6288 = vmatprep.subr.bf16.mxu0 0
        %6289 = vmatpush1.bf16.msra.mxu0 0
        %6290 = vmatprep.subr.bf16.mxu0 0
        %6291 = vmatpush1.bf16.msra.mxu0 0
        %6292 = vmatprep.subr.bf16.mxu0 0
        %6293 = vmatpush1.bf16.msra.mxu0 0
        %6294 = vmatprep.subr.bf16.mxu0 0
        %6295 = vmatpush1.bf16.msra.mxu0 0
        %6296 = vmatprep.subr.bf16.mxu0 0
        %6297 = vmatpush1.bf16.msra.mxu0 0
        %6298 = vmatprep.subr.bf16.mxu0 0
        %6299 = vmatpush1.bf16.msra.mxu0 0
        %6300 = vmatprep.mubr.bf16.mxu0 0
        %6301 = vmatmul.mubr.bf16.gmra.mrb[0].mxu0 %v6108
        %v6302 = vpop.f32.mrb[0].mxu0
        %v6303 = vadd.f32 %v6254, %v6302
        %v6304 = vpop.f32.mrb[0].mxu0
        %v6305 = vpop.f32.mrb[0].mxu0
        %v6306 = vadd.f32 %v6257, %v6305
        %v6307 = vpop.f32.mrb[0].mxu0
        %6308 = vmatprep.mubr.bf16.mxu0 0
        %6309 = vmatmul.mubr.bf16.gmra.mrb[0].mxu0 %v6111
        %v6310 = vpop.f32.mrb[0].mxu0
        %v6311 = vadd.f32 %v6262, %v6310
        %v6312 = vpop.f32.mrb[0].mxu0
        %v6313 = vpop.f32.mrb[0].mxu0
        %v6314 = vadd.f32 %v6265, %v6313
        %v6315 = vpop.f32.mrb[0].mxu0
        %6316 = vdwg.mxu0
        %s6317 = sld [smem:[#allocation3 + $0x4]]
        %vm6318 = vcmp.ge.f32.partialorder %v6201, 0.0
        %vm6319 = vcmp.ge.f32.partialorder %v6203, 0.0
        %vm6320 = vcmp.ge.f32.partialorder %v6303, 0.0
        %vm6321 = vcmp.ge.f32.partialorder %v6205, 0.0
        %vm6322 = vcmp.ge.f32.partialorder %v6207, 0.0
        %vm6323 = vcmp.ge.f32.partialorder %v6306, 0.0
        %vm6324 = vcmp.ge.f32.partialorder %v6211, 0.0
        %vm6325 = vcmp.ge.f32.partialorder %v6213, 0.0
        %vm6326 = vcmp.ge.f32.partialorder %v6311, 0.0
        %vm6327 = vcmp.ge.f32.partialorder %v6215, 0.0
        %vm6328 = vcmp.ge.f32.partialorder %v6217, 0.0
        %vm6329 = vcmp.ge.f32.partialorder %v6314, 0.0
        %v6330 = vstv %s6317
        %v6331 = vmul.f32 %v6330, %v6201
        %v6332 = vmul.f32 %v6330, %v6203
        %v6333 = vmul.f32 %v6330, %v6303
        %v6334 = vmul.f32 %v6330, %v6205
        %v6335 = vmul.f32 %v6330, %v6207
        %v6336 = vmul.f32 %v6330, %v6306
        %v6337 = vmul.f32 %v6330, %v6211
        %v6338 = vmul.f32 %v6330, %v6213
        %v6339 = vmul.f32 %v6330, %v6311
        %v6340 = vmul.f32 %v6330, %v6215
        %v6341 = vmul.f32 %v6330, %v6217
        %v6342 = vmul.f32 %v6330, %v6314
        %v6343 = vsel %vm6318, %v6201, %v6331
        %v6344 = vsel %vm6319, %v6203, %v6332
        %v6345 = vsel %vm6320, %v6303, %v6333
        %v6346 = vsel %vm6321, %v6205, %v6334
        %v6347 = vsel %vm6322, %v6207, %v6335
        %v6348 = vsel %vm6323, %v6306, %v6336
        %v6349 = vsel %vm6324, %v6211, %v6337
        %v6350 = vsel %vm6325, %v6213, %v6338
        %v6351 = vsel %vm6326, %v6311, %v6339
        %v6352 = vsel %vm6327, %v6215, %v6340
        %v6353 = vsel %vm6328, %v6217, %v6341
        %v6354 = vsel %vm6329, %v6314, %v6342
        %v6355 = vmul.f32 %v6343, %v667
        %v6356 = vmul.f32 %v6344, %v671
        %v6357 = vmul.f32 %v6345, %v675
        %v6358 = vmul.f32 %v6346, %v667
        %v6359 = vmul.f32 %v6347, %v671
        %v6360 = vmul.f32 %v6348, %v675
        %v6361 = vmul.f32 %v6349, %v667
        %v6362 = vmul.f32 %v6350, %v671
        %v6363 = vmul.f32 %v6351, %v675
        %v6364 = vmul.f32 %v6352, %v667
        %v6365 = vmul.f32 %v6353, %v671
        %v6366 = vmul.f32 %v6354, %v675
        %6379 = vrot.lane.b32.xlu0 %v6355, 19
        %v6380 = vpop.permute.xlu0 %6379
        %6381 = vrot.lane.b32.xlu0 %v6356, 19
        %v6382 = vpop.permute.xlu0 %6381
        %6383 = vrot.lane.b32.xlu0 %v6357, 19
        %v6384 = vpop.permute.xlu0 %6383
        %6385 = vrot.lane.b32.xlu0 %v6358, 19
        %v6386 = vpop.permute.xlu0 %6385
        %6387 = vrot.lane.b32.xlu0 %v6359, 19
        %v6388 = vpop.permute.xlu0 %6387
        %6389 = vrot.lane.b32.xlu0 %v6360, 19
        %v6390 = vpop.permute.xlu0 %6389
        %6391 = vrot.lane.b32.xlu0 %v6361, 19
        %v6392 = vpop.permute.xlu0 %6391
        %6393 = vrot.lane.b32.xlu0 %v6362, 19
        %v6394 = vpop.permute.xlu0 %6393
        %6395 = vrot.lane.b32.xlu0 %v6363, 19
        %v6396 = vpop.permute.xlu0 %6395
        %6397 = vrot.lane.b32.xlu0 %v6364, 19
        %v6398 = vpop.permute.xlu0 %6397
        %6399 = vrot.lane.b32.xlu0 %v6365, 19
        %v6400 = vpop.permute.xlu0 %6399
        %6401 = vrot.lane.b32.xlu0 %v6366, 19
        %v6402 = vpop.permute.xlu0 %6401
        %v6403 = vsel %vm727, %v6380, %v6382
        %v6404 = vsel %vm727, %v6382, %v6384
        %v6405 = vsel %vm727, %v6386, %v6388
        %v6406 = vsel %vm727, %v6388, %v6390
        %v6407 = vsel %vm727, %v6392, %v6394
        %v6408 = vsel %vm727, %v6394, %v6396
        %v6409 = vsel %vm727, %v6398, %v6400
        %v6410 = vsel %vm727, %v6400, %v6402
        %6423 = vst.msk [vmem:[#allocation2] sm:$0xff] %vm748, %v6380
        %6424 = vst [vmem:[#allocation2 + $0x8] sm:$0xff] %v6403
        %6425 = vst.msk [vmem:[#allocation2 + $0x10] sm:$0xff] %vm751, %v6404
        %6426 = vst.msk [vmem:[#allocation2 + $0x18] sm:$0xff] %vm748, %v6386
        %6427 = vst [vmem:[#allocation2 + $0x20] sm:$0xff] %v6405
        %6428 = vst.msk [vmem:[#allocation2 + $0x28] sm:$0xff] %vm751, %v6406
        %6429 = vst.msk [vmem:[#allocation2 + $0x30] sm:$0xff] %vm748, %v6392
        %6430 = vst [vmem:[#allocation2 + $0x38] sm:$0xff] %v6407
        %6431 = vst.msk [vmem:[#allocation2 + $0x40] sm:$0xff] %vm751, %v6408
        %6432 = vst.msk [vmem:[#allocation2 + $0x48] sm:$0xff] %vm748, %v6398
        %6433 = vst [vmem:[#allocation2 + $0x50] sm:$0xff] %v6409
        %6434 = vst.msk [vmem:[#allocation2 + $0x58] sm:$0xff] %vm751, %v6410
        %v6435 = vld [vmem:[#allocation2] sm:$0xff]
        %v6436 = vld [vmem:[#allocation2 + $0x8] sm:$0xff]
        %v6437 = vld [vmem:[#allocation2 + $0x10] sm:$0xff]
        %v6438 = vld [vmem:[#allocation2 + $0x18] sm:$0xff]
        %v6439 = vld [vmem:[#allocation2 + $0x20] sm:$0xff]
        %v6440 = vld [vmem:[#allocation2 + $0x28] sm:$0xff]
        %v6441 = vld [vmem:[#allocation2 + $0x30] sm:$0xff]
        %v6442 = vld [vmem:[#allocation2 + $0x38] sm:$0xff]
        %v6443 = vld [vmem:[#allocation2 + $0x40] sm:$0xff]
        %v6444 = vld [vmem:[#allocation2 + $0x48] sm:$0xff]
        %v6445 = vld [vmem:[#allocation2 + $0x50] sm:$0xff]
        %v6446 = vld [vmem:[#allocation2 + $0x58] sm:$0xff]
        %s6447 = scalar_lea.vmem %s7, 144
        %v6448 = vld [vmem:[%s6447] sm:$0xff]
        %v6449 = vld [vmem:[%s6447 + $0x8] sm:$0xf]
        %v6450 = vld [vmem:[%s6447 + $0xc] sm:$0xff]
        %v6451 = vld [vmem:[%s6447 + $0x14] sm:$0xf]
        %v6452 = vld [vmem:[%s6447 + $0x18] sm:$0xff]
        %v6453 = vld [vmem:[%s6447 + $0x20] sm:$0xf]
        %v6454 = vld [vmem:[%s6447 + $0x24] sm:$0xff]
        %v6455 = vld [vmem:[%s6447 + $0x2c] sm:$0xf]
        %6468 = vrot.lane.b32.xlu0 %v6435, 127
        %v6469 = vpop.permute.xlu0 %6468
        %6470 = vrot.lane.b32.xlu0 %v6436, 127
        %v6471 = vpop.permute.xlu0 %6470
        %6472 = vrot.lane.b32.xlu0 %v6437, 127
        %v6473 = vpop.permute.xlu0 %6472
        %6474 = vrot.lane.b32.xlu0 %v6438, 127
        %v6475 = vpop.permute.xlu0 %6474
        %6476 = vrot.lane.b32.xlu0 %v6439, 127
        %v6477 = vpop.permute.xlu0 %6476
        %6478 = vrot.lane.b32.xlu0 %v6440, 127
        %v6479 = vpop.permute.xlu0 %6478
        %6480 = vrot.lane.b32.xlu0 %v6441, 127
        %v6481 = vpop.permute.xlu0 %6480
        %6482 = vrot.lane.b32.xlu0 %v6442, 127
        %v6483 = vpop.permute.xlu0 %6482
        %6484 = vrot.lane.b32.xlu0 %v6443, 127
        %v6485 = vpop.permute.xlu0 %6484
        %6486 = vrot.lane.b32.xlu0 %v6444, 127
        %v6487 = vpop.permute.xlu0 %6486
        %6488 = vrot.lane.b32.xlu0 %v6445, 127
        %v6489 = vpop.permute.xlu0 %6488
        %6490 = vrot.lane.b32.xlu0 %v6446, 127
        %v6491 = vpop.permute.xlu0 %6490
        %v6492 = vsel %vm391, %v6469, %v6471
        %v6493 = vsel %vm391, %v6471, %v6473
        %v6494 = vsel %vm391, %v6475, %v6477
        %v6495 = vsel %vm391, %v6477, %v6479
        %v6496 = vsel %vm391, %v6481, %v6483
        %v6497 = vsel %vm391, %v6483, %v6485
        %v6498 = vsel %vm391, %v6487, %v6489
        %v6499 = vsel %vm391, %v6489, %v6491
        %6512 = vrot.lane.b32.xlu0 %v6435, 126
        %v6513 = vpop.permute.xlu0 %6512
        %6514 = vrot.lane.b32.xlu0 %v6436, 126
        %v6515 = vpop.permute.xlu0 %6514
        %6516 = vrot.lane.b32.xlu0 %v6437, 126
        %v6517 = vpop.permute.xlu0 %6516
        %6518 = vrot.lane.b32.xlu0 %v6438, 126
        %v6519 = vpop.permute.xlu0 %6518
        %6520 = vrot.lane.b32.xlu0 %v6439, 126
        %v6521 = vpop.permute.xlu0 %6520
        %6522 = vrot.lane.b32.xlu0 %v6440, 126
        %v6523 = vpop.permute.xlu0 %6522
        %6524 = vrot.lane.b32.xlu0 %v6441, 126
        %v6525 = vpop.permute.xlu0 %6524
        %6526 = vrot.lane.b32.xlu0 %v6442, 126
        %v6527 = vpop.permute.xlu0 %6526
        %6528 = vrot.lane.b32.xlu0 %v6443, 126
        %v6529 = vpop.permute.xlu0 %6528
        %6530 = vrot.lane.b32.xlu0 %v6444, 126
        %v6531 = vpop.permute.xlu0 %6530
        %6532 = vrot.lane.b32.xlu0 %v6445, 126
        %v6533 = vpop.permute.xlu0 %6532
        %6534 = vrot.lane.b32.xlu0 %v6446, 126
        %v6535 = vpop.permute.xlu0 %6534
        %v6536 = vsel %vm403, %v6513, %v6515
        %v6537 = vsel %vm403, %v6515, %v6517
        %v6538 = vsel %vm403, %v6519, %v6521
        %v6539 = vsel %vm403, %v6521, %v6523
        %v6540 = vsel %vm403, %v6525, %v6527
        %v6541 = vsel %vm403, %v6527, %v6529
        %v6542 = vsel %vm403, %v6531, %v6533
        %v6543 = vsel %vm403, %v6533, %v6535
        %6556 = vrot.lane.b32.xlu0 %v6435, 110
        %v6557 = vpop.permute.xlu0 %6556
        %6558 = vrot.lane.b32.xlu0 %v6436, 110
        %v6559 = vpop.permute.xlu0 %6558
        %6560 = vrot.lane.b32.xlu0 %v6437, 110
        %v6561 = vpop.permute.xlu0 %6560
        %6562 = vrot.lane.b32.xlu0 %v6438, 110
        %v6563 = vpop.permute.xlu0 %6562
        %6564 = vrot.lane.b32.xlu0 %v6439, 110
        %v6565 = vpop.permute.xlu0 %6564
        %6566 = vrot.lane.b32.xlu0 %v6440, 110
        %v6567 = vpop.permute.xlu0 %6566
        %6568 = vrot.lane.b32.xlu0 %v6441, 110
        %v6569 = vpop.permute.xlu0 %6568
        %6570 = vrot.lane.b32.xlu0 %v6442, 110
        %v6571 = vpop.permute.xlu0 %6570
        %6572 = vrot.lane.b32.xlu0 %v6443, 110
        %v6573 = vpop.permute.xlu0 %6572
        %6574 = vrot.lane.b32.xlu0 %v6444, 110
        %v6575 = vpop.permute.xlu0 %6574
        %6576 = vrot.lane.b32.xlu0 %v6445, 110
        %v6577 = vpop.permute.xlu0 %6576
        %6578 = vrot.lane.b32.xlu0 %v6446, 110
        %v6579 = vpop.permute.xlu0 %6578
        %v6580 = vsel %vm415, %v6557, %v6559
        %v6581 = vsel %vm415, %v6559, %v6561
        %v6582 = vsel %vm415, %v6563, %v6565
        %v6583 = vsel %vm415, %v6565, %v6567
        %v6584 = vsel %vm415, %v6569, %v6571
        %v6585 = vsel %vm415, %v6571, %v6573
        %v6586 = vsel %vm415, %v6575, %v6577
        %v6587 = vsel %vm415, %v6577, %v6579
        %6600 = vrot.lane.b32.xlu0 %v6435, 109
        %v6601 = vpop.permute.xlu0 %6600
        %6602 = vrot.lane.b32.xlu0 %v6436, 109
        %v6603 = vpop.permute.xlu0 %6602
        %6604 = vrot.lane.b32.xlu0 %v6437, 109
        %v6605 = vpop.permute.xlu0 %6604
        %6606 = vrot.lane.b32.xlu0 %v6438, 109
        %v6607 = vpop.permute.xlu0 %6606
        %6608 = vrot.lane.b32.xlu0 %v6439, 109
        %v6609 = vpop.permute.xlu0 %6608
        %6610 = vrot.lane.b32.xlu0 %v6440, 109
        %v6611 = vpop.permute.xlu0 %6610
        %6612 = vrot.lane.b32.xlu0 %v6441, 109
        %v6613 = vpop.permute.xlu0 %6612
        %6614 = vrot.lane.b32.xlu0 %v6442, 109
        %v6615 = vpop.permute.xlu0 %6614
        %6616 = vrot.lane.b32.xlu0 %v6443, 109
        %v6617 = vpop.permute.xlu0 %6616
        %6618 = vrot.lane.b32.xlu0 %v6444, 109
        %v6619 = vpop.permute.xlu0 %6618
        %6620 = vrot.lane.b32.xlu0 %v6445, 109
        %v6621 = vpop.permute.xlu0 %6620
        %6622 = vrot.lane.b32.xlu0 %v6446, 109
        %v6623 = vpop.permute.xlu0 %6622
        %v6624 = vsel %vm427, %v6601, %v6603
        %v6625 = vsel %vm427, %v6603, %v6605
        %v6626 = vsel %vm427, %v6607, %v6609
        %v6627 = vsel %vm427, %v6609, %v6611
        %v6628 = vsel %vm427, %v6613, %v6615
        %v6629 = vsel %vm427, %v6615, %v6617
        %v6630 = vsel %vm427, %v6619, %v6621
        %v6631 = vsel %vm427, %v6621, %v6623
        %6644 = vrot.lane.b32.xlu0 %v6435, 108
        %v6645 = vpop.permute.xlu0 %6644
        %6646 = vrot.lane.b32.xlu0 %v6436, 108
        %v6647 = vpop.permute.xlu0 %6646
        %6648 = vrot.lane.b32.xlu0 %v6437, 108
        %v6649 = vpop.permute.xlu0 %6648
        %6650 = vrot.lane.b32.xlu0 %v6438, 108
        %v6651 = vpop.permute.xlu0 %6650
        %6652 = vrot.lane.b32.xlu0 %v6439, 108
        %v6653 = vpop.permute.xlu0 %6652
        %6654 = vrot.lane.b32.xlu0 %v6440, 108
        %v6655 = vpop.permute.xlu0 %6654
        %6656 = vrot.lane.b32.xlu0 %v6441, 108
        %v6657 = vpop.permute.xlu0 %6656
        %6658 = vrot.lane.b32.xlu0 %v6442, 108
        %v6659 = vpop.permute.xlu0 %6658
        %6660 = vrot.lane.b32.xlu0 %v6443, 108
        %v6661 = vpop.permute.xlu0 %6660
        %6662 = vrot.lane.b32.xlu0 %v6444, 108
        %v6663 = vpop.permute.xlu0 %6662
        %6664 = vrot.lane.b32.xlu0 %v6445, 108
        %v6665 = vpop.permute.xlu0 %6664
        %6666 = vrot.lane.b32.xlu0 %v6446, 108
        %v6667 = vpop.permute.xlu0 %6666
        %v6668 = vsel %vm439, %v6645, %v6647
        %v6669 = vsel %vm439, %v6647, %v6649
        %v6670 = vsel %vm439, %v6651, %v6653
        %v6671 = vsel %vm439, %v6653, %v6655
        %v6672 = vsel %vm439, %v6657, %v6659
        %v6673 = vsel %vm439, %v6659, %v6661
        %v6674 = vsel %vm439, %v6663, %v6665
        %v6675 = vsel %vm439, %v6665, %v6667
        %6688 = vrot.lane.b32.xlu0 %v6435, 92
        %v6689 = vpop.permute.xlu0 %6688
        %6690 = vrot.lane.b32.xlu0 %v6436, 92
        %v6691 = vpop.permute.xlu0 %6690
        %6692 = vrot.lane.b32.xlu0 %v6437, 92
        %v6693 = vpop.permute.xlu0 %6692
        %6694 = vrot.lane.b32.xlu0 %v6438, 92
        %v6695 = vpop.permute.xlu0 %6694
        %6696 = vrot.lane.b32.xlu0 %v6439, 92
        %v6697 = vpop.permute.xlu0 %6696
        %6698 = vrot.lane.b32.xlu0 %v6440, 92
        %v6699 = vpop.permute.xlu0 %6698
        %6700 = vrot.lane.b32.xlu0 %v6441, 92
        %v6701 = vpop.permute.xlu0 %6700
        %6702 = vrot.lane.b32.xlu0 %v6442, 92
        %v6703 = vpop.permute.xlu0 %6702
        %6704 = vrot.lane.b32.xlu0 %v6443, 92
        %v6705 = vpop.permute.xlu0 %6704
        %6706 = vrot.lane.b32.xlu0 %v6444, 92
        %v6707 = vpop.permute.xlu0 %6706
        %6708 = vrot.lane.b32.xlu0 %v6445, 92
        %v6709 = vpop.permute.xlu0 %6708
        %6710 = vrot.lane.b32.xlu0 %v6446, 92
        %v6711 = vpop.permute.xlu0 %6710
        %v6712 = vsel %vm451, %v6689, %v6691
        %v6713 = vsel %vm451, %v6691, %v6693
        %v6714 = vsel %vm451, %v6695, %v6697
        %v6715 = vsel %vm451, %v6697, %v6699
        %v6716 = vsel %vm451, %v6701, %v6703
        %v6717 = vsel %vm451, %v6703, %v6705
        %v6718 = vsel %vm451, %v6707, %v6709
        %v6719 = vsel %vm451, %v6709, %v6711
        %6732 = vrot.lane.b32.xlu0 %v6435, 91
        %v6733 = vpop.permute.xlu0 %6732
        %6734 = vrot.lane.b32.xlu0 %v6436, 91
        %v6735 = vpop.permute.xlu0 %6734
        %6736 = vrot.lane.b32.xlu0 %v6437, 91
        %v6737 = vpop.permute.xlu0 %6736
        %6738 = vrot.lane.b32.xlu0 %v6438, 91
        %v6739 = vpop.permute.xlu0 %6738
        %6740 = vrot.lane.b32.xlu0 %v6439, 91
        %v6741 = vpop.permute.xlu0 %6740
        %6742 = vrot.lane.b32.xlu0 %v6440, 91
        %v6743 = vpop.permute.xlu0 %6742
        %6744 = vrot.lane.b32.xlu0 %v6441, 91
        %v6745 = vpop.permute.xlu0 %6744
        %6746 = vrot.lane.b32.xlu0 %v6442, 91
        %v6747 = vpop.permute.xlu0 %6746
        %6748 = vrot.lane.b32.xlu0 %v6443, 91
        %v6749 = vpop.permute.xlu0 %6748
        %6750 = vrot.lane.b32.xlu0 %v6444, 91
        %v6751 = vpop.permute.xlu0 %6750
        %6752 = vrot.lane.b32.xlu0 %v6445, 91
        %v6753 = vpop.permute.xlu0 %6752
        %6754 = vrot.lane.b32.xlu0 %v6446, 91
        %v6755 = vpop.permute.xlu0 %6754
        %v6756 = vsel %vm463, %v6733, %v6735
        %v6757 = vsel %vm463, %v6735, %v6737
        %v6758 = vsel %vm463, %v6739, %v6741
        %v6759 = vsel %vm463, %v6741, %v6743
        %v6760 = vsel %vm463, %v6745, %v6747
        %v6761 = vsel %vm463, %v6747, %v6749
        %v6762 = vsel %vm463, %v6751, %v6753
        %v6763 = vsel %vm463, %v6753, %v6755
        %6776 = vrot.lane.b32.xlu0 %v6435, 90
        %v6777 = vpop.permute.xlu0 %6776
        %6778 = vrot.lane.b32.xlu0 %v6436, 90
        %v6779 = vpop.permute.xlu0 %6778
        %6780 = vrot.lane.b32.xlu0 %v6437, 90
        %v6781 = vpop.permute.xlu0 %6780
        %6782 = vrot.lane.b32.xlu0 %v6438, 90
        %v6783 = vpop.permute.xlu0 %6782
        %6784 = vrot.lane.b32.xlu0 %v6439, 90
        %v6785 = vpop.permute.xlu0 %6784
        %6786 = vrot.lane.b32.xlu0 %v6440, 90
        %v6787 = vpop.permute.xlu0 %6786
        %6788 = vrot.lane.b32.xlu0 %v6441, 90
        %v6789 = vpop.permute.xlu0 %6788
        %6790 = vrot.lane.b32.xlu0 %v6442, 90
        %v6791 = vpop.permute.xlu0 %6790
        %6792 = vrot.lane.b32.xlu0 %v6443, 90
        %v6793 = vpop.permute.xlu0 %6792
        %6794 = vrot.lane.b32.xlu0 %v6444, 90
        %v6795 = vpop.permute.xlu0 %6794
        %6796 = vrot.lane.b32.xlu0 %v6445, 90
        %v6797 = vpop.permute.xlu0 %6796
        %6798 = vrot.lane.b32.xlu0 %v6446, 90
        %v6799 = vpop.permute.xlu0 %6798
        %v6800 = vsel %vm475, %v6777, %v6779
        %v6801 = vsel %vm475, %v6779, %v6781
        %v6802 = vsel %vm475, %v6783, %v6785
        %v6803 = vsel %vm475, %v6785, %v6787
        %v6804 = vsel %vm475, %v6789, %v6791
        %v6805 = vsel %vm475, %v6791, %v6793
        %v6806 = vsel %vm475, %v6795, %v6797
        %v6807 = vsel %vm475, %v6797, %v6799
        %v6820 = vpack.c.bf16 %v6438, %v6435
        %v6821 = vpack.c.bf16 %v6439, %v6436
        %v6822 = vpack.c.bf16 %v6440, %v6437
        %v6823 = vpack.c.bf16 %v6444, %v6441
        %v6824 = vpack.c.bf16 %v6445, %v6442
        %v6825 = vpack.c.bf16 %v6446, %v6443
        %v6826 = vpack.c.bf16 %v6494, %v6492
        %v6827 = vpack.c.bf16 %v6495, %v6493
        %v6828 = vpack.c.bf16 %v6479, %v6473
        %v6829 = vpack.c.bf16 %v6498, %v6496
        %v6830 = vpack.c.bf16 %v6499, %v6497
        %v6831 = vpack.c.bf16 %v6491, %v6485
        %v6832 = vpack.c.bf16 %v6538, %v6536
        %v6833 = vpack.c.bf16 %v6539, %v6537
        %v6834 = vpack.c.bf16 %v6523, %v6517
        %v6835 = vpack.c.bf16 %v6542, %v6540
        %v6836 = vpack.c.bf16 %v6543, %v6541
        %v6837 = vpack.c.bf16 %v6535, %v6529
        %v6838 = vpack.c.bf16 %v6582, %v6580
        %v6839 = vpack.c.bf16 %v6583, %v6581
        %v6840 = vpack.c.bf16 %v6567, %v6561
        %v6841 = vpack.c.bf16 %v6586, %v6584
        %v6842 = vpack.c.bf16 %v6587, %v6585
        %v6843 = vpack.c.bf16 %v6579, %v6573
        %v6844 = vpack.c.bf16 %v6626, %v6624
        %v6845 = vpack.c.bf16 %v6627, %v6625
        %v6846 = vpack.c.bf16 %v6611, %v6605
        %v6847 = vpack.c.bf16 %v6630, %v6628
        %v6848 = vpack.c.bf16 %v6631, %v6629
        %v6849 = vpack.c.bf16 %v6623, %v6617
        %v6850 = vpack.c.bf16 %v6670, %v6668
        %v6851 = vpack.c.bf16 %v6671, %v6669
        %v6852 = vpack.c.bf16 %v6655, %v6649
        %v6853 = vpack.c.bf16 %v6674, %v6672
        %v6854 = vpack.c.bf16 %v6675, %v6673
        %v6855 = vpack.c.bf16 %v6667, %v6661
        %v6856 = vpack.c.bf16 %v6714, %v6712
        %v6857 = vpack.c.bf16 %v6715, %v6713
        %v6858 = vpack.c.bf16 %v6699, %v6693
        %v6859 = vpack.c.bf16 %v6718, %v6716
        %v6860 = vpack.c.bf16 %v6719, %v6717
        %v6861 = vpack.c.bf16 %v6711, %v6705
        %v6862 = vpack.c.bf16 %v6758, %v6756
        %v6863 = vpack.c.bf16 %v6759, %v6757
        %v6864 = vpack.c.bf16 %v6743, %v6737
        %v6865 = vpack.c.bf16 %v6762, %v6760
        %v6866 = vpack.c.bf16 %v6763, %v6761
        %v6867 = vpack.c.bf16 %v6755, %v6749
        %v6868 = vpack.c.bf16 %v6802, %v6800
        %v6869 = vpack.c.bf16 %v6803, %v6801
        %v6870 = vpack.c.bf16 %v6787, %v6781
        %v6871 = vpack.c.bf16 %v6806, %v6804
        %v6872 = vpack.c.bf16 %v6807, %v6805
        %v6873 = vpack.c.bf16 %v6799, %v6793
        %s6874 = scalar_lea.vmem %s8, 96
        %v6875 = vld [vmem:[%s6874] sm:$0xff]
        %v6876 = vld [vmem:[%s6874 + $0x8] sm:$0xff]
        %v6877 = vld [vmem:[%s6874 + $0x10] sm:$0xff]
        %v6878 = vld [vmem:[%s6874 + $0x18] sm:$0xff]
        %6880 = vset.pattern.permute.xlu0 0
        %6881 = vperm.xlu0 %6880, %v6875
        %v6882 = vpop.permute.xlu0 %6881
        %6885 = vset.pattern.permute.xlu0 0
        %6886 = vperm.xlu0 %6885, %v6876
        %v6887 = vpop.permute.xlu0 %6886
        %6890 = vset.pattern.permute.xlu0 0
        %6891 = vperm.xlu0 %6890, %v6877
        %v6892 = vpop.permute.xlu0 %6891
        %6895 = vset.pattern.permute.xlu0 0
        %6896 = vperm.xlu0 %6895, %v6878
        %v6897 = vpop.permute.xlu0 %6896
        %v6907 = vunpack.c.l.b16 %v6448
        %v6908 = vunpack.c.h.b16 %v6448
        %v6909 = vunpack.c.l.b16 %v6449
        %v6910 = vunpack.c.l.b16 %v6450
        %v6911 = vunpack.c.h.b16 %v6450
        %v6912 = vunpack.c.l.b16 %v6451
        %v6913 = vunpack.c.l.b16 %v6452
        %v6914 = vunpack.c.h.b16 %v6452
        %v6915 = vunpack.c.l.b16 %v6453
        %v6916 = vunpack.c.l.b16 %v6454
        %v6917 = vunpack.c.h.b16 %v6454
        %v6918 = vunpack.c.l.b16 %v6455
        %v6919 = vpack.c.b16 %v6910, %v6907
        %v6920 = vpack.c.b16 %v6911, %v6908
        %v6921 = vpack.c.b16 %v6912, %v6909
        %v6922 = vpack.c.b16 %v6916, %v6913
        %v6923 = vpack.c.b16 %v6917, %v6914
        %v6924 = vpack.c.b16 %v6918, %v6915
        %v6930 = vsel %vm1254, %v6921, 0
        %v6933 = vsel %vm1254, %v6924, 0
        %6935 = vmatprep.subr.bf16.mxu0 %v6821
        %6936 = vmatpush1.bf16.msra.mxu0 %v6820
        %6937 = vmatprep.subr.bf16.mxu0 %v6824
        %6938 = vmatpush1.bf16.msra.mxu0 %v6823
        %6939 = vmatprep.subr.bf16.mxu0 %v6827
        %6940 = vmatpush1.bf16.msra.mxu0 %v6826
        %6941 = vmatprep.subr.bf16.mxu0 %v6830
        %6942 = vmatpush1.bf16.msra.mxu0 %v6829
        %6943 = vmatprep.subr.bf16.mxu0 %v6833
        %6944 = vmatpush1.bf16.msra.mxu0 %v6832
        %6945 = vmatprep.subr.bf16.mxu0 %v6836
        %6946 = vmatpush1.bf16.msra.mxu0 %v6835
        %6947 = vmatprep.subr.bf16.mxu0 %v6839
        %6948 = vmatpush1.bf16.msra.mxu0 %v6838
        %6949 = vmatprep.subr.bf16.mxu0 %v6842
        %6950 = vmatpush1.bf16.msra.mxu0 %v6841
        %6951 = vmatprep.subr.bf16.mxu0 %v6845
        %6952 = vmatpush1.bf16.msra.mxu0 %v6844
        %6953 = vmatprep.subr.bf16.mxu0 %v6848
        %6954 = vmatpush1.bf16.msra.mxu0 %v6847
        %6955 = vmatprep.subr.bf16.mxu0 %v6851
        %6956 = vmatpush1.bf16.msra.mxu0 %v6850
        %6957 = vmatprep.subr.bf16.mxu0 %v6854
        %6958 = vmatpush1.bf16.msra.mxu0 %v6853
        %6959 = vmatprep.subr.bf16.mxu0 %v6857
        %6960 = vmatpush1.bf16.msra.mxu0 %v6856
        %6961 = vmatprep.subr.bf16.mxu0 %v6860
        %6962 = vmatpush1.bf16.msra.mxu0 %v6859
        %6963 = vmatprep.subr.bf16.mxu0 %v6863
        %6964 = vmatpush1.bf16.msra.mxu0 %v6862
        %6965 = vmatprep.subr.bf16.mxu0 %v6866
        %6966 = vmatpush1.bf16.msra.mxu0 %v6865
        %6967 = vmatprep.mubr.bf16.mxu0 %v6920
        %6968 = vmatmul.mubr.bf16.gmra.mrb[0].mxu0 %v6919
        %v6969 = vpop.f32.mrb[0].mxu0
        %v6970 = vadd.f32 %v6882, %v6969
        %v6971 = vpop.f32.mrb[0].mxu0
        %v6972 = vadd.f32 %v6882, %v6971
        %v6973 = vpop.f32.mrb[0].mxu0
        %v6974 = vadd.f32 %v6887, %v6973
        %v6975 = vpop.f32.mrb[0].mxu0
        %v6976 = vadd.f32 %v6887, %v6975
        %6977 = vmatprep.mubr.bf16.mxu0 %v6923
        %6978 = vmatmul.mubr.bf16.gmra.mrb[0].mxu0 %v6922
        %v6979 = vpop.f32.mrb[0].mxu0
        %v6980 = vadd.f32 %v6892, %v6979
        %v6981 = vpop.f32.mrb[0].mxu0
        %v6982 = vadd.f32 %v6892, %v6981
        %v6983 = vpop.f32.mrb[0].mxu0
        %v6984 = vadd.f32 %v6897, %v6983
        %v6985 = vpop.f32.mrb[0].mxu0
        %v6986 = vadd.f32 %v6897, %v6985
        %6987 = vdwg.mxu0
        %6988 = vmatprep.subr.bf16.mxu0 %v6869
        %6989 = vmatpush1.bf16.msra.mxu0 %v6868
        %6990 = vmatprep.subr.bf16.mxu0 %v6872
        %6991 = vmatpush1.bf16.msra.mxu0 %v6871
        %6992 = vmatprep.subr.bf16.mxu0 0
        %6993 = vmatpush1.bf16.msra.mxu0 0
        %6994 = vmatprep.subr.bf16.mxu0 0
        %6995 = vmatpush1.bf16.msra.mxu0 0
        %6996 = vmatprep.subr.bf16.mxu0 0
        %6997 = vmatpush1.bf16.msra.mxu0 0
        %6998 = vmatprep.subr.bf16.mxu0 0
        %6999 = vmatpush1.bf16.msra.mxu0 0
        %7000 = vmatprep.subr.bf16.mxu0 0
        %7001 = vmatpush1.bf16.msra.mxu0 0
        %7002 = vmatprep.subr.bf16.mxu0 0
        %7003 = vmatpush1.bf16.msra.mxu0 0
        %7004 = vmatprep.subr.bf16.mxu0 0
        %7005 = vmatpush1.bf16.msra.mxu0 0
        %7006 = vmatprep.subr.bf16.mxu0 0
        %7007 = vmatpush1.bf16.msra.mxu0 0
        %7008 = vmatprep.subr.bf16.mxu0 0
        %7009 = vmatpush1.bf16.msra.mxu0 0
        %7010 = vmatprep.subr.bf16.mxu0 0
        %7011 = vmatpush1.bf16.msra.mxu0 0
        %7012 = vmatprep.subr.bf16.mxu0 0
        %7013 = vmatpush1.bf16.msra.mxu0 0
        %7014 = vmatprep.subr.bf16.mxu0 0
        %7015 = vmatpush1.bf16.msra.mxu0 0
        %7016 = vmatprep.subr.bf16.mxu0 0
        %7017 = vmatpush1.bf16.msra.mxu0 0
        %7018 = vmatprep.subr.bf16.mxu0 0
        %7019 = vmatpush1.bf16.msra.mxu0 0
        %7020 = vmatprep.mubr.bf16.mxu0 0
        %7021 = vmatmul.mubr.bf16.gmra.mrb[0].mxu0 %v6930
        %v7022 = vpop.f32.mrb[0].mxu0
        %v7023 = vadd.f32 %v6970, %v7022
        %v7024 = vpop.f32.mrb[0].mxu0
        %v7025 = vadd.f32 %v6972, %v7024
        %v7026 = vpop.f32.mrb[0].mxu0
        %v7027 = vadd.f32 %v6974, %v7026
        %v7028 = vpop.f32.mrb[0].mxu0
        %v7029 = vadd.f32 %v6976, %v7028
        %7030 = vmatprep.mubr.bf16.mxu0 0
        %7031 = vmatmul.mubr.bf16.gmra.mrb[0].mxu0 %v6933
        %v7032 = vpop.f32.mrb[0].mxu0
        %v7033 = vadd.f32 %v6980, %v7032
        %v7034 = vpop.f32.mrb[0].mxu0
        %v7035 = vadd.f32 %v6982, %v7034
        %v7036 = vpop.f32.mrb[0].mxu0
        %v7037 = vadd.f32 %v6984, %v7036
        %v7038 = vpop.f32.mrb[0].mxu0
        %v7039 = vadd.f32 %v6986, %v7038
        %7040 = vdwg.mxu0
        %7041 = vmatprep.subr.bf16.mxu0 0
        %7042 = vmatpush1.bf16.msra.mxu0 %v6822
        %7043 = vmatprep.subr.bf16.mxu0 0
        %7044 = vmatpush1.bf16.msra.mxu0 %v6825
        %7045 = vmatprep.subr.bf16.mxu0 0
        %7046 = vmatpush1.bf16.msra.mxu0 %v6828
        %7047 = vmatprep.subr.bf16.mxu0 0
        %7048 = vmatpush1.bf16.msra.mxu0 %v6831
        %7049 = vmatprep.subr.bf16.mxu0 0
        %7050 = vmatpush1.bf16.msra.mxu0 %v6834
        %7051 = vmatprep.subr.bf16.mxu0 0
        %7052 = vmatpush1.bf16.msra.mxu0 %v6837
        %7053 = vmatprep.subr.bf16.mxu0 0
        %7054 = vmatpush1.bf16.msra.mxu0 %v6840
        %7055 = vmatprep.subr.bf16.mxu0 0
        %7056 = vmatpush1.bf16.msra.mxu0 %v6843
        %7057 = vmatprep.subr.bf16.mxu0 0
        %7058 = vmatpush1.bf16.msra.mxu0 %v6846
        %7059 = vmatprep.subr.bf16.mxu0 0
        %7060 = vmatpush1.bf16.msra.mxu0 %v6849
        %7061 = vmatprep.subr.bf16.mxu0 0
        %7062 = vmatpush1.bf16.msra.mxu0 %v6852
        %7063 = vmatprep.subr.bf16.mxu0 0
        %7064 = vmatpush1.bf16.msra.mxu0 %v6855
        %7065 = vmatprep.subr.bf16.mxu0 0
        %7066 = vmatpush1.bf16.msra.mxu0 %v6858
        %7067 = vmatprep.subr.bf16.mxu0 0
        %7068 = vmatpush1.bf16.msra.mxu0 %v6861
        %7069 = vmatprep.subr.bf16.mxu0 0
        %7070 = vmatpush1.bf16.msra.mxu0 %v6864
        %7071 = vmatprep.subr.bf16.mxu0 0
        %7072 = vmatpush1.bf16.msra.mxu0 %v6867
        %7073 = vmatprep.mubr.bf16.mxu0 %v6920
        %7074 = vmatmul.mubr.bf16.gmra.mrb[0].mxu0 %v6919
        %v7075 = vpop.f32.mrb[0].mxu0
        %v7076 = vadd.f32 %v6882, %v7075
        %v7077 = vpop.f32.mrb[0].mxu0
        %v7078 = vpop.f32.mrb[0].mxu0
        %v7079 = vadd.f32 %v6887, %v7078
        %v7080 = vpop.f32.mrb[0].mxu0
        %7081 = vmatprep.mubr.bf16.mxu0 %v6923
        %7082 = vmatmul.mubr.bf16.gmra.mrb[0].mxu0 %v6922
        %v7083 = vpop.f32.mrb[0].mxu0
        %v7084 = vadd.f32 %v6892, %v7083
        %v7085 = vpop.f32.mrb[0].mxu0
        %v7086 = vpop.f32.mrb[0].mxu0
        %v7087 = vadd.f32 %v6897, %v7086
        %v7088 = vpop.f32.mrb[0].mxu0
        %7089 = vdwg.mxu0
        %7090 = vmatprep.subr.bf16.mxu0 0
        %7091 = vmatpush1.bf16.msra.mxu0 %v6870
        %7092 = vmatprep.subr.bf16.mxu0 0
        %7093 = vmatpush1.bf16.msra.mxu0 %v6873
        %7094 = vmatprep.subr.bf16.mxu0 0
        %7095 = vmatpush1.bf16.msra.mxu0 0
        %7096 = vmatprep.subr.bf16.mxu0 0
        %7097 = vmatpush1.bf16.msra.mxu0 0
        %7098 = vmatprep.subr.bf16.mxu0 0
        %7099 = vmatpush1.bf16.msra.mxu0 0
        %7100 = vmatprep.subr.bf16.mxu0 0
        %7101 = vmatpush1.bf16.msra.mxu0 0
        %7102 = vmatprep.subr.bf16.mxu0 0
        %7103 = vmatpush1.bf16.msra.mxu0 0
        %7104 = vmatprep.subr.bf16.mxu0 0
        %7105 = vmatpush1.bf16.msra.mxu0 0
        %7106 = vmatprep.subr.bf16.mxu0 0
        %7107 = vmatpush1.bf16.msra.mxu0 0
        %7108 = vmatprep.subr.bf16.mxu0 0
        %7109 = vmatpush1.bf16.msra.mxu0 0
        %7110 = vmatprep.subr.bf16.mxu0 0
        %7111 = vmatpush1.bf16.msra.mxu0 0
        %7112 = vmatprep.subr.bf16.mxu0 0
        %7113 = vmatpush1.bf16.msra.mxu0 0
        %7114 = vmatprep.subr.bf16.mxu0 0
        %7115 = vmatpush1.bf16.msra.mxu0 0
        %7116 = vmatprep.subr.bf16.mxu0 0
        %7117 = vmatpush1.bf16.msra.mxu0 0
        %7118 = vmatprep.subr.bf16.mxu0 0
        %7119 = vmatpush1.bf16.msra.mxu0 0
        %7120 = vmatprep.subr.bf16.mxu0 0
        %7121 = vmatpush1.bf16.msra.mxu0 0
        %7122 = vmatprep.mubr.bf16.mxu0 0
        %7123 = vmatmul.mubr.bf16.gmra.mrb[0].mxu0 %v6930
        %v7124 = vpop.f32.mrb[0].mxu0
        %v7125 = vadd.f32 %v7076, %v7124
        %v7126 = vpop.f32.mrb[0].mxu0
        %v7127 = vpop.f32.mrb[0].mxu0
        %v7128 = vadd.f32 %v7079, %v7127
        %v7129 = vpop.f32.mrb[0].mxu0
        %7130 = vmatprep.mubr.bf16.mxu0 0
        %7131 = vmatmul.mubr.bf16.gmra.mrb[0].mxu0 %v6933
        %v7132 = vpop.f32.mrb[0].mxu0
        %v7133 = vadd.f32 %v7084, %v7132
        %v7134 = vpop.f32.mrb[0].mxu0
        %v7135 = vpop.f32.mrb[0].mxu0
        %v7136 = vadd.f32 %v7087, %v7135
        %v7137 = vpop.f32.mrb[0].mxu0
        %7138 = vdwg.mxu0
        %v7139 = vadd.f32 %v7023, %v5802
        %v7140 = vadd.f32 %v7025, %v5803
        %v7141 = vadd.f32 %v7125, %v5783
        %v7142 = vadd.f32 %v7027, %v5804
        %v7143 = vadd.f32 %v7029, %v5805
        %v7144 = vadd.f32 %v7128, %v5789
        %v7145 = vadd.f32 %v7033, %v5806
        %v7146 = vadd.f32 %v7035, %v5807
        %v7147 = vadd.f32 %v7133, %v5795
        %v7148 = vadd.f32 %v7037, %v5808
        %v7149 = vadd.f32 %v7039, %v5809
        %v7150 = vadd.f32 %v7136, %v5801
        %v7151 = vmul.f32 %v7139, %v667
        %v7152 = vmul.f32 %v7140, %v671
        %v7153 = vmul.f32 %v7141, %v675
        %v7154 = vmul.f32 %v7142, %v667
        %v7155 = vmul.f32 %v7143, %v671
        %v7156 = vmul.f32 %v7144, %v675
        %v7157 = vmul.f32 %v7145, %v667
        %v7158 = vmul.f32 %v7146, %v671
        %v7159 = vmul.f32 %v7147, %v675
        %v7160 = vmul.f32 %v7148, %v667
        %v7161 = vmul.f32 %v7149, %v671
        %v7162 = vmul.f32 %v7150, %v675
        %7175 = vrot.lane.b32.xlu0 %v7151, 19
        %v7176 = vpop.permute.xlu0 %7175
        %7177 = vrot.lane.b32.xlu0 %v7152, 19
        %v7178 = vpop.permute.xlu0 %7177
        %7179 = vrot.lane.b32.xlu0 %v7153, 19
        %v7180 = vpop.permute.xlu0 %7179
        %7181 = vrot.lane.b32.xlu0 %v7154, 19
        %v7182 = vpop.permute.xlu0 %7181
        %7183 = vrot.lane.b32.xlu0 %v7155, 19
        %v7184 = vpop.permute.xlu0 %7183
        %7185 = vrot.lane.b32.xlu0 %v7156, 19
        %v7186 = vpop.permute.xlu0 %7185
        %7187 = vrot.lane.b32.xlu0 %v7157, 19
        %v7188 = vpop.permute.xlu0 %7187
        %7189 = vrot.lane.b32.xlu0 %v7158, 19
        %v7190 = vpop.permute.xlu0 %7189
        %7191 = vrot.lane.b32.xlu0 %v7159, 19
        %v7192 = vpop.permute.xlu0 %7191
        %7193 = vrot.lane.b32.xlu0 %v7160, 19
        %v7194 = vpop.permute.xlu0 %7193
        %7195 = vrot.lane.b32.xlu0 %v7161, 19
        %v7196 = vpop.permute.xlu0 %7195
        %7197 = vrot.lane.b32.xlu0 %v7162, 19
        %v7198 = vpop.permute.xlu0 %7197
        %v7199 = vsel %vm727, %v7176, %v7178
        %v7200 = vsel %vm727, %v7178, %v7180
        %v7201 = vsel %vm727, %v7182, %v7184
        %v7202 = vsel %vm727, %v7184, %v7186
        %v7203 = vsel %vm727, %v7188, %v7190
        %v7204 = vsel %vm727, %v7190, %v7192
        %v7205 = vsel %vm727, %v7194, %v7196
        %v7206 = vsel %vm727, %v7196, %v7198
        %7219 = vst.msk [vmem:[#allocation2] sm:$0xff] %vm748, %v7176
        %7220 = vst [vmem:[#allocation2 + $0x8] sm:$0xff] %v7199
        %7221 = vst.msk [vmem:[#allocation2 + $0x10] sm:$0xff] %vm751, %v7200
        %7222 = vst.msk [vmem:[#allocation2 + $0x18] sm:$0xff] %vm748, %v7182
        %7223 = vst [vmem:[#allocation2 + $0x20] sm:$0xff] %v7201
        %7224 = vst.msk [vmem:[#allocation2 + $0x28] sm:$0xff] %vm751, %v7202
        %7225 = vst.msk [vmem:[#allocation2 + $0x30] sm:$0xff] %vm748, %v7188
        %7226 = vst [vmem:[#allocation2 + $0x38] sm:$0xff] %v7203
        %7227 = vst.msk [vmem:[#allocation2 + $0x40] sm:$0xff] %vm751, %v7204
        %7228 = vst.msk [vmem:[#allocation2 + $0x48] sm:$0xff] %vm748, %v7194
        %7229 = vst [vmem:[#allocation2 + $0x50] sm:$0xff] %v7205
        %7230 = vst.msk [vmem:[#allocation2 + $0x58] sm:$0xff] %vm751, %v7206
        %v7231 = vld [vmem:[#allocation2] sm:$0xff]
        %v7232 = vld [vmem:[#allocation2 + $0x8] sm:$0xff]
        %v7233 = vld [vmem:[#allocation2 + $0x10] sm:$0xff]
        %v7234 = vld [vmem:[#allocation2 + $0x18] sm:$0xff]
        %v7235 = vld [vmem:[#allocation2 + $0x20] sm:$0xff]
        %v7236 = vld [vmem:[#allocation2 + $0x28] sm:$0xff]
        %v7237 = vld [vmem:[#allocation2 + $0x30] sm:$0xff]
        %v7238 = vld [vmem:[#allocation2 + $0x38] sm:$0xff]
        %v7239 = vld [vmem:[#allocation2 + $0x40] sm:$0xff]
        %v7240 = vld [vmem:[#allocation2 + $0x48] sm:$0xff]
        %v7241 = vld [vmem:[#allocation2 + $0x50] sm:$0xff]
        %v7242 = vld [vmem:[#allocation2 + $0x58] sm:$0xff]
        %s7243 = scalar_lea.vmem %s5, 192
        %v7244 = vld [vmem:[%s7243] sm:$0xff]
        %v7245 = vld [vmem:[%s7243 + $0x8] sm:$0xf]
        %v7246 = vld [vmem:[%s7243 + $0xc] sm:$0xff]
        %v7247 = vld [vmem:[%s7243 + $0x14] sm:$0xf]
        %v7248 = vld [vmem:[%s7243 + $0x18] sm:$0xff]
        %v7249 = vld [vmem:[%s7243 + $0x20] sm:$0xf]
        %v7250 = vld [vmem:[%s7243 + $0x24] sm:$0xff]
        %v7251 = vld [vmem:[%s7243 + $0x2c] sm:$0xf]
        %7264 = vrot.lane.b32.xlu0 %v7231, 127
        %v7265 = vpop.permute.xlu0 %7264
        %7266 = vrot.lane.b32.xlu0 %v7232, 127
        %v7267 = vpop.permute.xlu0 %7266
        %7268 = vrot.lane.b32.xlu0 %v7233, 127
        %v7269 = vpop.permute.xlu0 %7268
        %7270 = vrot.lane.b32.xlu0 %v7234, 127
        %v7271 = vpop.permute.xlu0 %7270
        %7272 = vrot.lane.b32.xlu0 %v7235, 127
        %v7273 = vpop.permute.xlu0 %7272
        %7274 = vrot.lane.b32.xlu0 %v7236, 127
        %v7275 = vpop.permute.xlu0 %7274
        %7276 = vrot.lane.b32.xlu0 %v7237, 127
        %v7277 = vpop.permute.xlu0 %7276
        %7278 = vrot.lane.b32.xlu0 %v7238, 127
        %v7279 = vpop.permute.xlu0 %7278
        %7280 = vrot.lane.b32.xlu0 %v7239, 127
        %v7281 = vpop.permute.xlu0 %7280
        %7282 = vrot.lane.b32.xlu0 %v7240, 127
        %v7283 = vpop.permute.xlu0 %7282
        %7284 = vrot.lane.b32.xlu0 %v7241, 127
        %v7285 = vpop.permute.xlu0 %7284
        %7286 = vrot.lane.b32.xlu0 %v7242, 127
        %v7287 = vpop.permute.xlu0 %7286
        %v7288 = vsel %vm391, %v7265, %v7267
        %v7289 = vsel %vm391, %v7267, %v7269
        %v7290 = vsel %vm391, %v7271, %v7273
        %v7291 = vsel %vm391, %v7273, %v7275
        %v7292 = vsel %vm391, %v7277, %v7279
        %v7293 = vsel %vm391, %v7279, %v7281
        %v7294 = vsel %vm391, %v7283, %v7285
        %v7295 = vsel %vm391, %v7285, %v7287
        %7308 = vrot.lane.b32.xlu0 %v7231, 126
        %v7309 = vpop.permute.xlu0 %7308
        %7310 = vrot.lane.b32.xlu0 %v7232, 126
        %v7311 = vpop.permute.xlu0 %7310
        %7312 = vrot.lane.b32.xlu0 %v7233, 126
        %v7313 = vpop.permute.xlu0 %7312
        %7314 = vrot.lane.b32.xlu0 %v7234, 126
        %v7315 = vpop.permute.xlu0 %7314
        %7316 = vrot.lane.b32.xlu0 %v7235, 126
        %v7317 = vpop.permute.xlu0 %7316
        %7318 = vrot.lane.b32.xlu0 %v7236, 126
        %v7319 = vpop.permute.xlu0 %7318
        %7320 = vrot.lane.b32.xlu0 %v7237, 126
        %v7321 = vpop.permute.xlu0 %7320
        %7322 = vrot.lane.b32.xlu0 %v7238, 126
        %v7323 = vpop.permute.xlu0 %7322
        %7324 = vrot.lane.b32.xlu0 %v7239, 126
        %v7325 = vpop.permute.xlu0 %7324
        %7326 = vrot.lane.b32.xlu0 %v7240, 126
        %v7327 = vpop.permute.xlu0 %7326
        %7328 = vrot.lane.b32.xlu0 %v7241, 126
        %v7329 = vpop.permute.xlu0 %7328
        %7330 = vrot.lane.b32.xlu0 %v7242, 126
        %v7331 = vpop.permute.xlu0 %7330
        %v7332 = vsel %vm403, %v7309, %v7311
        %v7333 = vsel %vm403, %v7311, %v7313
        %v7334 = vsel %vm403, %v7315, %v7317
        %v7335 = vsel %vm403, %v7317, %v7319
        %v7336 = vsel %vm403, %v7321, %v7323
        %v7337 = vsel %vm403, %v7323, %v7325
        %v7338 = vsel %vm403, %v7327, %v7329
        %v7339 = vsel %vm403, %v7329, %v7331
        %7352 = vrot.lane.b32.xlu0 %v7231, 110
        %v7353 = vpop.permute.xlu0 %7352
        %7354 = vrot.lane.b32.xlu0 %v7232, 110
        %v7355 = vpop.permute.xlu0 %7354
        %7356 = vrot.lane.b32.xlu0 %v7233, 110
        %v7357 = vpop.permute.xlu0 %7356
        %7358 = vrot.lane.b32.xlu0 %v7234, 110
        %v7359 = vpop.permute.xlu0 %7358
        %7360 = vrot.lane.b32.xlu0 %v7235, 110
        %v7361 = vpop.permute.xlu0 %7360
        %7362 = vrot.lane.b32.xlu0 %v7236, 110
        %v7363 = vpop.permute.xlu0 %7362
        %7364 = vrot.lane.b32.xlu0 %v7237, 110
        %v7365 = vpop.permute.xlu0 %7364
        %7366 = vrot.lane.b32.xlu0 %v7238, 110
        %v7367 = vpop.permute.xlu0 %7366
        %7368 = vrot.lane.b32.xlu0 %v7239, 110
        %v7369 = vpop.permute.xlu0 %7368
        %7370 = vrot.lane.b32.xlu0 %v7240, 110
        %v7371 = vpop.permute.xlu0 %7370
        %7372 = vrot.lane.b32.xlu0 %v7241, 110
        %v7373 = vpop.permute.xlu0 %7372
        %7374 = vrot.lane.b32.xlu0 %v7242, 110
        %v7375 = vpop.permute.xlu0 %7374
        %v7376 = vsel %vm415, %v7353, %v7355
        %v7377 = vsel %vm415, %v7355, %v7357
        %v7378 = vsel %vm415, %v7359, %v7361
        %v7379 = vsel %vm415, %v7361, %v7363
        %v7380 = vsel %vm415, %v7365, %v7367
        %v7381 = vsel %vm415, %v7367, %v7369
        %v7382 = vsel %vm415, %v7371, %v7373
        %v7383 = vsel %vm415, %v7373, %v7375
        %7396 = vrot.lane.b32.xlu0 %v7231, 109
        %v7397 = vpop.permute.xlu0 %7396
        %7398 = vrot.lane.b32.xlu0 %v7232, 109
        %v7399 = vpop.permute.xlu0 %7398
        %7400 = vrot.lane.b32.xlu0 %v7233, 109
        %v7401 = vpop.permute.xlu0 %7400
        %7402 = vrot.lane.b32.xlu0 %v7234, 109
        %v7403 = vpop.permute.xlu0 %7402
        %7404 = vrot.lane.b32.xlu0 %v7235, 109
        %v7405 = vpop.permute.xlu0 %7404
        %7406 = vrot.lane.b32.xlu0 %v7236, 109
        %v7407 = vpop.permute.xlu0 %7406
        %7408 = vrot.lane.b32.xlu0 %v7237, 109
        %v7409 = vpop.permute.xlu0 %7408
        %7410 = vrot.lane.b32.xlu0 %v7238, 109
        %v7411 = vpop.permute.xlu0 %7410
        %7412 = vrot.lane.b32.xlu0 %v7239, 109
        %v7413 = vpop.permute.xlu0 %7412
        %7414 = vrot.lane.b32.xlu0 %v7240, 109
        %v7415 = vpop.permute.xlu0 %7414
        %7416 = vrot.lane.b32.xlu0 %v7241, 109
        %v7417 = vpop.permute.xlu0 %7416
        %7418 = vrot.lane.b32.xlu0 %v7242, 109
        %v7419 = vpop.permute.xlu0 %7418
        %v7420 = vsel %vm427, %v7397, %v7399
        %v7421 = vsel %vm427, %v7399, %v7401
        %v7422 = vsel %vm427, %v7403, %v7405
        %v7423 = vsel %vm427, %v7405, %v7407
        %v7424 = vsel %vm427, %v7409, %v7411
        %v7425 = vsel %vm427, %v7411, %v7413
        %v7426 = vsel %vm427, %v7415, %v7417
        %v7427 = vsel %vm427, %v7417, %v7419
        %7440 = vrot.lane.b32.xlu0 %v7231, 108
        %v7441 = vpop.permute.xlu0 %7440
        %7442 = vrot.lane.b32.xlu0 %v7232, 108
        %v7443 = vpop.permute.xlu0 %7442
        %7444 = vrot.lane.b32.xlu0 %v7233, 108
        %v7445 = vpop.permute.xlu0 %7444
        %7446 = vrot.lane.b32.xlu0 %v7234, 108
        %v7447 = vpop.permute.xlu0 %7446
        %7448 = vrot.lane.b32.xlu0 %v7235, 108
        %v7449 = vpop.permute.xlu0 %7448
        %7450 = vrot.lane.b32.xlu0 %v7236, 108
        %v7451 = vpop.permute.xlu0 %7450
        %7452 = vrot.lane.b32.xlu0 %v7237, 108
        %v7453 = vpop.permute.xlu0 %7452
        %7454 = vrot.lane.b32.xlu0 %v7238, 108
        %v7455 = vpop.permute.xlu0 %7454
        %7456 = vrot.lane.b32.xlu0 %v7239, 108
        %v7457 = vpop.permute.xlu0 %7456
        %7458 = vrot.lane.b32.xlu0 %v7240, 108
        %v7459 = vpop.permute.xlu0 %7458
        %7460 = vrot.lane.b32.xlu0 %v7241, 108
        %v7461 = vpop.permute.xlu0 %7460
        %7462 = vrot.lane.b32.xlu0 %v7242, 108
        %v7463 = vpop.permute.xlu0 %7462
        %v7464 = vsel %vm439, %v7441, %v7443
        %v7465 = vsel %vm439, %v7443, %v7445
        %v7466 = vsel %vm439, %v7447, %v7449
        %v7467 = vsel %vm439, %v7449, %v7451
        %v7468 = vsel %vm439, %v7453, %v7455
        %v7469 = vsel %vm439, %v7455, %v7457
        %v7470 = vsel %vm439, %v7459, %v7461
        %v7471 = vsel %vm439, %v7461, %v7463
        %7484 = vrot.lane.b32.xlu0 %v7231, 92
        %v7485 = vpop.permute.xlu0 %7484
        %7486 = vrot.lane.b32.xlu0 %v7232, 92
        %v7487 = vpop.permute.xlu0 %7486
        %7488 = vrot.lane.b32.xlu0 %v7233, 92
        %v7489 = vpop.permute.xlu0 %7488
        %7490 = vrot.lane.b32.xlu0 %v7234, 92
        %v7491 = vpop.permute.xlu0 %7490
        %7492 = vrot.lane.b32.xlu0 %v7235, 92
        %v7493 = vpop.permute.xlu0 %7492
        %7494 = vrot.lane.b32.xlu0 %v7236, 92
        %v7495 = vpop.permute.xlu0 %7494
        %7496 = vrot.lane.b32.xlu0 %v7237, 92
        %v7497 = vpop.permute.xlu0 %7496
        %7498 = vrot.lane.b32.xlu0 %v7238, 92
        %v7499 = vpop.permute.xlu0 %7498
        %7500 = vrot.lane.b32.xlu0 %v7239, 92
        %v7501 = vpop.permute.xlu0 %7500
        %7502 = vrot.lane.b32.xlu0 %v7240, 92
        %v7503 = vpop.permute.xlu0 %7502
        %7504 = vrot.lane.b32.xlu0 %v7241, 92
        %v7505 = vpop.permute.xlu0 %7504
        %7506 = vrot.lane.b32.xlu0 %v7242, 92
        %v7507 = vpop.permute.xlu0 %7506
        %v7508 = vsel %vm451, %v7485, %v7487
        %v7509 = vsel %vm451, %v7487, %v7489
        %v7510 = vsel %vm451, %v7491, %v7493
        %v7511 = vsel %vm451, %v7493, %v7495
        %v7512 = vsel %vm451, %v7497, %v7499
        %v7513 = vsel %vm451, %v7499, %v7501
        %v7514 = vsel %vm451, %v7503, %v7505
        %v7515 = vsel %vm451, %v7505, %v7507
        %7528 = vrot.lane.b32.xlu0 %v7231, 91
        %v7529 = vpop.permute.xlu0 %7528
        %7530 = vrot.lane.b32.xlu0 %v7232, 91
        %v7531 = vpop.permute.xlu0 %7530
        %7532 = vrot.lane.b32.xlu0 %v7233, 91
        %v7533 = vpop.permute.xlu0 %7532
        %7534 = vrot.lane.b32.xlu0 %v7234, 91
        %v7535 = vpop.permute.xlu0 %7534
        %7536 = vrot.lane.b32.xlu0 %v7235, 91
        %v7537 = vpop.permute.xlu0 %7536
        %7538 = vrot.lane.b32.xlu0 %v7236, 91
        %v7539 = vpop.permute.xlu0 %7538
        %7540 = vrot.lane.b32.xlu0 %v7237, 91
        %v7541 = vpop.permute.xlu0 %7540
        %7542 = vrot.lane.b32.xlu0 %v7238, 91
        %v7543 = vpop.permute.xlu0 %7542
        %7544 = vrot.lane.b32.xlu0 %v7239, 91
        %v7545 = vpop.permute.xlu0 %7544
        %7546 = vrot.lane.b32.xlu0 %v7240, 91
        %v7547 = vpop.permute.xlu0 %7546
        %7548 = vrot.lane.b32.xlu0 %v7241, 91
        %v7549 = vpop.permute.xlu0 %7548
        %7550 = vrot.lane.b32.xlu0 %v7242, 91
        %v7551 = vpop.permute.xlu0 %7550
        %v7552 = vsel %vm463, %v7529, %v7531
        %v7553 = vsel %vm463, %v7531, %v7533
        %v7554 = vsel %vm463, %v7535, %v7537
        %v7555 = vsel %vm463, %v7537, %v7539
        %v7556 = vsel %vm463, %v7541, %v7543
        %v7557 = vsel %vm463, %v7543, %v7545
        %v7558 = vsel %vm463, %v7547, %v7549
        %v7559 = vsel %vm463, %v7549, %v7551
        %7572 = vrot.lane.b32.xlu0 %v7231, 90
        %v7573 = vpop.permute.xlu0 %7572
        %7574 = vrot.lane.b32.xlu0 %v7232, 90
        %v7575 = vpop.permute.xlu0 %7574
        %7576 = vrot.lane.b32.xlu0 %v7233, 90
        %v7577 = vpop.permute.xlu0 %7576
        %7578 = vrot.lane.b32.xlu0 %v7234, 90
        %v7579 = vpop.permute.xlu0 %7578
        %7580 = vrot.lane.b32.xlu0 %v7235, 90
        %v7581 = vpop.permute.xlu0 %7580
        %7582 = vrot.lane.b32.xlu0 %v7236, 90
        %v7583 = vpop.permute.xlu0 %7582
        %7584 = vrot.lane.b32.xlu0 %v7237, 90
        %v7585 = vpop.permute.xlu0 %7584
        %7586 = vrot.lane.b32.xlu0 %v7238, 90
        %v7587 = vpop.permute.xlu0 %7586
        %7588 = vrot.lane.b32.xlu0 %v7239, 90
        %v7589 = vpop.permute.xlu0 %7588
        %7590 = vrot.lane.b32.xlu0 %v7240, 90
        %v7591 = vpop.permute.xlu0 %7590
        %7592 = vrot.lane.b32.xlu0 %v7241, 90
        %v7593 = vpop.permute.xlu0 %7592
        %7594 = vrot.lane.b32.xlu0 %v7242, 90
        %v7595 = vpop.permute.xlu0 %7594
        %v7596 = vsel %vm475, %v7573, %v7575
        %v7597 = vsel %vm475, %v7575, %v7577
        %v7598 = vsel %vm475, %v7579, %v7581
        %v7599 = vsel %vm475, %v7581, %v7583
        %v7600 = vsel %vm475, %v7585, %v7587
        %v7601 = vsel %vm475, %v7587, %v7589
        %v7602 = vsel %vm475, %v7591, %v7593
        %v7603 = vsel %vm475, %v7593, %v7595
        %v7616 = vpack.c.bf16 %v7234, %v7231
        %v7617 = vpack.c.bf16 %v7235, %v7232
        %v7618 = vpack.c.bf16 %v7236, %v7233
        %v7619 = vpack.c.bf16 %v7240, %v7237
        %v7620 = vpack.c.bf16 %v7241, %v7238
        %v7621 = vpack.c.bf16 %v7242, %v7239
        %v7622 = vpack.c.bf16 %v7290, %v7288
        %v7623 = vpack.c.bf16 %v7291, %v7289
        %v7624 = vpack.c.bf16 %v7275, %v7269
        %v7625 = vpack.c.bf16 %v7294, %v7292
        %v7626 = vpack.c.bf16 %v7295, %v7293
        %v7627 = vpack.c.bf16 %v7287, %v7281
        %v7628 = vpack.c.bf16 %v7334, %v7332
        %v7629 = vpack.c.bf16 %v7335, %v7333
        %v7630 = vpack.c.bf16 %v7319, %v7313
        %v7631 = vpack.c.bf16 %v7338, %v7336
        %v7632 = vpack.c.bf16 %v7339, %v7337
        %v7633 = vpack.c.bf16 %v7331, %v7325
        %v7634 = vpack.c.bf16 %v7378, %v7376
        %v7635 = vpack.c.bf16 %v7379, %v7377
        %v7636 = vpack.c.bf16 %v7363, %v7357
        %v7637 = vpack.c.bf16 %v7382, %v7380
        %v7638 = vpack.c.bf16 %v7383, %v7381
        %v7639 = vpack.c.bf16 %v7375, %v7369
        %v7640 = vpack.c.bf16 %v7422, %v7420
        %v7641 = vpack.c.bf16 %v7423, %v7421
        %v7642 = vpack.c.bf16 %v7407, %v7401
        %v7643 = vpack.c.bf16 %v7426, %v7424
        %v7644 = vpack.c.bf16 %v7427, %v7425
        %v7645 = vpack.c.bf16 %v7419, %v7413
        %v7646 = vpack.c.bf16 %v7466, %v7464
        %v7647 = vpack.c.bf16 %v7467, %v7465
        %v7648 = vpack.c.bf16 %v7451, %v7445
        %v7649 = vpack.c.bf16 %v7470, %v7468
        %v7650 = vpack.c.bf16 %v7471, %v7469
        %v7651 = vpack.c.bf16 %v7463, %v7457
        %v7652 = vpack.c.bf16 %v7510, %v7508
        %v7653 = vpack.c.bf16 %v7511, %v7509
        %v7654 = vpack.c.bf16 %v7495, %v7489
        %v7655 = vpack.c.bf16 %v7514, %v7512
        %v7656 = vpack.c.bf16 %v7515, %v7513
        %v7657 = vpack.c.bf16 %v7507, %v7501
        %v7658 = vpack.c.bf16 %v7554, %v7552
        %v7659 = vpack.c.bf16 %v7555, %v7553
        %v7660 = vpack.c.bf16 %v7539, %v7533
        %v7661 = vpack.c.bf16 %v7558, %v7556
        %v7662 = vpack.c.bf16 %v7559, %v7557
        %v7663 = vpack.c.bf16 %v7551, %v7545
        %v7664 = vpack.c.bf16 %v7598, %v7596
        %v7665 = vpack.c.bf16 %v7599, %v7597
        %v7666 = vpack.c.bf16 %v7583, %v7577
        %v7667 = vpack.c.bf16 %v7602, %v7600
        %v7668 = vpack.c.bf16 %v7603, %v7601
        %v7669 = vpack.c.bf16 %v7595, %v7589
        %s7670 = scalar_lea.vmem %s6, 128
        %v7671 = vld [vmem:[%s7670] sm:$0xff]
        %v7672 = vld [vmem:[%s7670 + $0x8] sm:$0xff]
        %v7673 = vld [vmem:[%s7670 + $0x10] sm:$0xff]
        %v7674 = vld [vmem:[%s7670 + $0x18] sm:$0xff]
        %7676 = vset.pattern.permute.xlu0 0
        %7677 = vperm.xlu0 %7676, %v7671
        %v7678 = vpop.permute.xlu0 %7677
        %7681 = vset.pattern.permute.xlu0 0
        %7682 = vperm.xlu0 %7681, %v7672
        %v7683 = vpop.permute.xlu0 %7682
        %7686 = vset.pattern.permute.xlu0 0
        %7687 = vperm.xlu0 %7686, %v7673
        %v7688 = vpop.permute.xlu0 %7687
        %7691 = vset.pattern.permute.xlu0 0
        %7692 = vperm.xlu0 %7691, %v7674
        %v7693 = vpop.permute.xlu0 %7692
        %v7703 = vunpack.c.l.b16 %v7244
        %v7704 = vunpack.c.h.b16 %v7244
        %v7705 = vunpack.c.l.b16 %v7245
        %v7706 = vunpack.c.l.b16 %v7246
        %v7707 = vunpack.c.h.b16 %v7246
        %v7708 = vunpack.c.l.b16 %v7247
        %v7709 = vunpack.c.l.b16 %v7248
        %v7710 = vunpack.c.h.b16 %v7248
        %v7711 = vunpack.c.l.b16 %v7249
        %v7712 = vunpack.c.l.b16 %v7250
        %v7713 = vunpack.c.h.b16 %v7250
        %v7714 = vunpack.c.l.b16 %v7251
        %v7715 = vpack.c.b16 %v7706, %v7703
        %v7716 = vpack.c.b16 %v7707, %v7704
        %v7717 = vpack.c.b16 %v7708, %v7705
        %v7718 = vpack.c.b16 %v7712, %v7709
        %v7719 = vpack.c.b16 %v7713, %v7710
        %v7720 = vpack.c.b16 %v7714, %v7711
        %v7726 = vsel %vm1254, %v7717, 0
        %v7729 = vsel %vm1254, %v7720, 0
        %7731 = vmatprep.subr.bf16.mxu0 %v7617
        %7732 = vmatpush1.bf16.msra.mxu0 %v7616
        %7733 = vmatprep.subr.bf16.mxu0 %v7620
        %7734 = vmatpush1.bf16.msra.mxu0 %v7619
        %7735 = vmatprep.subr.bf16.mxu0 %v7623
        %7736 = vmatpush1.bf16.msra.mxu0 %v7622
        %7737 = vmatprep.subr.bf16.mxu0 %v7626
        %7738 = vmatpush1.bf16.msra.mxu0 %v7625
        %7739 = vmatprep.subr.bf16.mxu0 %v7629
        %7740 = vmatpush1.bf16.msra.mxu0 %v7628
        %7741 = vmatprep.subr.bf16.mxu0 %v7632
        %7742 = vmatpush1.bf16.msra.mxu0 %v7631
        %7743 = vmatprep.subr.bf16.mxu0 %v7635
        %7744 = vmatpush1.bf16.msra.mxu0 %v7634
        %7745 = vmatprep.subr.bf16.mxu0 %v7638
        %7746 = vmatpush1.bf16.msra.mxu0 %v7637
        %7747 = vmatprep.subr.bf16.mxu0 %v7641
        %7748 = vmatpush1.bf16.msra.mxu0 %v7640
        %7749 = vmatprep.subr.bf16.mxu0 %v7644
        %7750 = vmatpush1.bf16.msra.mxu0 %v7643
        %7751 = vmatprep.subr.bf16.mxu0 %v7647
        %7752 = vmatpush1.bf16.msra.mxu0 %v7646
        %7753 = vmatprep.subr.bf16.mxu0 %v7650
        %7754 = vmatpush1.bf16.msra.mxu0 %v7649
        %7755 = vmatprep.subr.bf16.mxu0 %v7653
        %7756 = vmatpush1.bf16.msra.mxu0 %v7652
        %7757 = vmatprep.subr.bf16.mxu0 %v7656
        %7758 = vmatpush1.bf16.msra.mxu0 %v7655
        %7759 = vmatprep.subr.bf16.mxu0 %v7659
        %7760 = vmatpush1.bf16.msra.mxu0 %v7658
        %7761 = vmatprep.subr.bf16.mxu0 %v7662
        %7762 = vmatpush1.bf16.msra.mxu0 %v7661
        %7763 = vmatprep.mubr.bf16.mxu0 %v7716
        %7764 = vmatmul.mubr.bf16.gmra.mrb[0].mxu0 %v7715
        %v7765 = vpop.f32.mrb[0].mxu0
        %v7766 = vadd.f32 %v7678, %v7765
        %v7767 = vpop.f32.mrb[0].mxu0
        %v7768 = vadd.f32 %v7678, %v7767
        %v7769 = vpop.f32.mrb[0].mxu0
        %v7770 = vadd.f32 %v7683, %v7769
        %v7771 = vpop.f32.mrb[0].mxu0
        %v7772 = vadd.f32 %v7683, %v7771
        %7773 = vmatprep.mubr.bf16.mxu0 %v7719
        %7774 = vmatmul.mubr.bf16.gmra.mrb[0].mxu0 %v7718
        %v7775 = vpop.f32.mrb[0].mxu0
        %v7776 = vadd.f32 %v7688, %v7775
        %v7777 = vpop.f32.mrb[0].mxu0
        %v7778 = vadd.f32 %v7688, %v7777
        %v7779 = vpop.f32.mrb[0].mxu0
        %v7780 = vadd.f32 %v7693, %v7779
        %v7781 = vpop.f32.mrb[0].mxu0
        %v7782 = vadd.f32 %v7693, %v7781
        %7783 = vdwg.mxu0
        %7784 = vmatprep.subr.bf16.mxu0 %v7665
        %7785 = vmatpush1.bf16.msra.mxu0 %v7664
        %7786 = vmatprep.subr.bf16.mxu0 %v7668
        %7787 = vmatpush1.bf16.msra.mxu0 %v7667
        %7788 = vmatprep.subr.bf16.mxu0 0
        %7789 = vmatpush1.bf16.msra.mxu0 0
        %7790 = vmatprep.subr.bf16.mxu0 0
        %7791 = vmatpush1.bf16.msra.mxu0 0
        %7792 = vmatprep.subr.bf16.mxu0 0
        %7793 = vmatpush1.bf16.msra.mxu0 0
        %7794 = vmatprep.subr.bf16.mxu0 0
        %7795 = vmatpush1.bf16.msra.mxu0 0
        %7796 = vmatprep.subr.bf16.mxu0 0
        %7797 = vmatpush1.bf16.msra.mxu0 0
        %7798 = vmatprep.subr.bf16.mxu0 0
        %7799 = vmatpush1.bf16.msra.mxu0 0
        %7800 = vmatprep.subr.bf16.mxu0 0
        %7801 = vmatpush1.bf16.msra.mxu0 0
        %7802 = vmatprep.subr.bf16.mxu0 0
        %7803 = vmatpush1.bf16.msra.mxu0 0
        %7804 = vmatprep.subr.bf16.mxu0 0
        %7805 = vmatpush1.bf16.msra.mxu0 0
        %7806 = vmatprep.subr.bf16.mxu0 0
        %7807 = vmatpush1.bf16.msra.mxu0 0
        %7808 = vmatprep.subr.bf16.mxu0 0
        %7809 = vmatpush1.bf16.msra.mxu0 0
        %7810 = vmatprep.subr.bf16.mxu0 0
        %7811 = vmatpush1.bf16.msra.mxu0 0
        %7812 = vmatprep.subr.bf16.mxu0 0
        %7813 = vmatpush1.bf16.msra.mxu0 0
        %7814 = vmatprep.subr.bf16.mxu0 0
        %7815 = vmatpush1.bf16.msra.mxu0 0
        %7816 = vmatprep.mubr.bf16.mxu0 0
        %7817 = vmatmul.mubr.bf16.gmra.mrb[0].mxu0 %v7726
        %v7818 = vpop.f32.mrb[0].mxu0
        %v7819 = vadd.f32 %v7766, %v7818
        %v7820 = vpop.f32.mrb[0].mxu0
        %v7821 = vadd.f32 %v7768, %v7820
        %v7822 = vpop.f32.mrb[0].mxu0
        %v7823 = vadd.f32 %v7770, %v7822
        %v7824 = vpop.f32.mrb[0].mxu0
        %v7825 = vadd.f32 %v7772, %v7824
        %7826 = vmatprep.mubr.bf16.mxu0 0
        %7827 = vmatmul.mubr.bf16.gmra.mrb[0].mxu0 %v7729
        %v7828 = vpop.f32.mrb[0].mxu0
        %v7829 = vadd.f32 %v7776, %v7828
        %v7830 = vpop.f32.mrb[0].mxu0
        %v7831 = vadd.f32 %v7778, %v7830
        %v7832 = vpop.f32.mrb[0].mxu0
        %v7833 = vadd.f32 %v7780, %v7832
        %v7834 = vpop.f32.mrb[0].mxu0
        %v7835 = vadd.f32 %v7782, %v7834
        %7836 = vdwg.mxu0
        %7837 = vmatprep.subr.bf16.mxu0 0
        %7838 = vmatpush1.bf16.msra.mxu0 %v7618
        %7839 = vmatprep.subr.bf16.mxu0 0
        %7840 = vmatpush1.bf16.msra.mxu0 %v7621
        %7841 = vmatprep.subr.bf16.mxu0 0
        %7842 = vmatpush1.bf16.msra.mxu0 %v7624
        %7843 = vmatprep.subr.bf16.mxu0 0
        %7844 = vmatpush1.bf16.msra.mxu0 %v7627
        %7845 = vmatprep.subr.bf16.mxu0 0
        %7846 = vmatpush1.bf16.msra.mxu0 %v7630
        %7847 = vmatprep.subr.bf16.mxu0 0
        %7848 = vmatpush1.bf16.msra.mxu0 %v7633
        %7849 = vmatprep.subr.bf16.mxu0 0
        %7850 = vmatpush1.bf16.msra.mxu0 %v7636
        %7851 = vmatprep.subr.bf16.mxu0 0
        %7852 = vmatpush1.bf16.msra.mxu0 %v7639
        %7853 = vmatprep.subr.bf16.mxu0 0
        %7854 = vmatpush1.bf16.msra.mxu0 %v7642
        %7855 = vmatprep.subr.bf16.mxu0 0
        %7856 = vmatpush1.bf16.msra.mxu0 %v7645
        %7857 = vmatprep.subr.bf16.mxu0 0
        %7858 = vmatpush1.bf16.msra.mxu0 %v7648
        %7859 = vmatprep.subr.bf16.mxu0 0
        %7860 = vmatpush1.bf16.msra.mxu0 %v7651
        %7861 = vmatprep.subr.bf16.mxu0 0
        %7862 = vmatpush1.bf16.msra.mxu0 %v7654
        %7863 = vmatprep.subr.bf16.mxu0 0
        %7864 = vmatpush1.bf16.msra.mxu0 %v7657
        %7865 = vmatprep.subr.bf16.mxu0 0
        %7866 = vmatpush1.bf16.msra.mxu0 %v7660
        %7867 = vmatprep.subr.bf16.mxu0 0
        %7868 = vmatpush1.bf16.msra.mxu0 %v7663
        %7869 = vmatprep.mubr.bf16.mxu0 %v7716
        %7870 = vmatmul.mubr.bf16.gmra.mrb[0].mxu0 %v7715
        %v7871 = vpop.f32.mrb[0].mxu0
        %v7872 = vadd.f32 %v7678, %v7871
        %v7873 = vpop.f32.mrb[0].mxu0
        %v7874 = vpop.f32.mrb[0].mxu0
        %v7875 = vadd.f32 %v7683, %v7874
        %v7876 = vpop.f32.mrb[0].mxu0
        %7877 = vmatprep.mubr.bf16.mxu0 %v7719
        %7878 = vmatmul.mubr.bf16.gmra.mrb[0].mxu0 %v7718
        %v7879 = vpop.f32.mrb[0].mxu0
        %v7880 = vadd.f32 %v7688, %v7879
        %v7881 = vpop.f32.mrb[0].mxu0
        %v7882 = vpop.f32.mrb[0].mxu0
        %v7883 = vadd.f32 %v7693, %v7882
        %v7884 = vpop.f32.mrb[0].mxu0
        %7885 = vdwg.mxu0
        %7886 = vmatprep.subr.bf16.mxu0 0
        %7887 = vmatpush1.bf16.msra.mxu0 %v7666
        %7888 = vmatprep.subr.bf16.mxu0 0
        %7889 = vmatpush1.bf16.msra.mxu0 %v7669
        %7890 = vmatprep.subr.bf16.mxu0 0
        %7891 = vmatpush1.bf16.msra.mxu0 0
        %7892 = vmatprep.subr.bf16.mxu0 0
        %7893 = vmatpush1.bf16.msra.mxu0 0
        %7894 = vmatprep.subr.bf16.mxu0 0
        %7895 = vmatpush1.bf16.msra.mxu0 0
        %7896 = vmatprep.subr.bf16.mxu0 0
        %7897 = vmatpush1.bf16.msra.mxu0 0
        %7898 = vmatprep.subr.bf16.mxu0 0
        %7899 = vmatpush1.bf16.msra.mxu0 0
        %7900 = vmatprep.subr.bf16.mxu0 0
        %7901 = vmatpush1.bf16.msra.mxu0 0
        %7902 = vmatprep.subr.bf16.mxu0 0
        %7903 = vmatpush1.bf16.msra.mxu0 0
        %7904 = vmatprep.subr.bf16.mxu0 0
        %7905 = vmatpush1.bf16.msra.mxu0 0
        %7906 = vmatprep.subr.bf16.mxu0 0
        %7907 = vmatpush1.bf16.msra.mxu0 0
        %7908 = vmatprep.subr.bf16.mxu0 0
        %7909 = vmatpush1.bf16.msra.mxu0 0
        %7910 = vmatprep.subr.bf16.mxu0 0
        %7911 = vmatpush1.bf16.msra.mxu0 0
        %7912 = vmatprep.subr.bf16.mxu0 0
        %7913 = vmatpush1.bf16.msra.mxu0 0
        %7914 = vmatprep.subr.bf16.mxu0 0
        %7915 = vmatpush1.bf16.msra.mxu0 0
        %7916 = vmatprep.subr.bf16.mxu0 0
        %7917 = vmatpush1.bf16.msra.mxu0 0
        %7918 = vmatprep.mubr.bf16.mxu0 0
        %7919 = vmatmul.mubr.bf16.gmra.mrb[0].mxu0 %v7726
        %v7920 = vpop.f32.mrb[0].mxu0
        %v7921 = vadd.f32 %v7872, %v7920
        %v7922 = vpop.f32.mrb[0].mxu0
        %v7923 = vpop.f32.mrb[0].mxu0
        %v7924 = vadd.f32 %v7875, %v7923
        %v7925 = vpop.f32.mrb[0].mxu0
        %7926 = vmatprep.mubr.bf16.mxu0 0
        %7927 = vmatmul.mubr.bf16.gmra.mrb[0].mxu0 %v7729
        %v7928 = vpop.f32.mrb[0].mxu0
        %v7929 = vadd.f32 %v7880, %v7928
        %v7930 = vpop.f32.mrb[0].mxu0
        %v7931 = vpop.f32.mrb[0].mxu0
        %v7932 = vadd.f32 %v7883, %v7931
        %v7933 = vpop.f32.mrb[0].mxu0
        %7934 = vdwg.mxu0
        %s7935 = sld [smem:[#allocation3 + $0x5]]
        %vm7936 = vcmp.ge.f32.partialorder %v7819, 0.0
        %vm7937 = vcmp.ge.f32.partialorder %v7821, 0.0
        %vm7938 = vcmp.ge.f32.partialorder %v7921, 0.0
        %vm7939 = vcmp.ge.f32.partialorder %v7823, 0.0
        %vm7940 = vcmp.ge.f32.partialorder %v7825, 0.0
        %vm7941 = vcmp.ge.f32.partialorder %v7924, 0.0
        %vm7942 = vcmp.ge.f32.partialorder %v7829, 0.0
        %vm7943 = vcmp.ge.f32.partialorder %v7831, 0.0
        %vm7944 = vcmp.ge.f32.partialorder %v7929, 0.0
        %vm7945 = vcmp.ge.f32.partialorder %v7833, 0.0
        %vm7946 = vcmp.ge.f32.partialorder %v7835, 0.0
        %vm7947 = vcmp.ge.f32.partialorder %v7932, 0.0
        %v7948 = vstv %s7935
        %v7949 = vmul.f32 %v7948, %v7819
        %v7950 = vmul.f32 %v7948, %v7821
        %v7951 = vmul.f32 %v7948, %v7921
        %v7952 = vmul.f32 %v7948, %v7823
        %v7953 = vmul.f32 %v7948, %v7825
        %v7954 = vmul.f32 %v7948, %v7924
        %v7955 = vmul.f32 %v7948, %v7829
        %v7956 = vmul.f32 %v7948, %v7831
        %v7957 = vmul.f32 %v7948, %v7929
        %v7958 = vmul.f32 %v7948, %v7833
        %v7959 = vmul.f32 %v7948, %v7835
        %v7960 = vmul.f32 %v7948, %v7932
        %v7961 = vsel %vm7936, %v7819, %v7949
        %v7962 = vsel %vm7937, %v7821, %v7950
        %v7963 = vsel %vm7938, %v7921, %v7951
        %v7964 = vsel %vm7939, %v7823, %v7952
        %v7965 = vsel %vm7940, %v7825, %v7953
        %v7966 = vsel %vm7941, %v7924, %v7954
        %v7967 = vsel %vm7942, %v7829, %v7955
        %v7968 = vsel %vm7943, %v7831, %v7956
        %v7969 = vsel %vm7944, %v7929, %v7957
        %v7970 = vsel %vm7945, %v7833, %v7958
        %v7971 = vsel %vm7946, %v7835, %v7959
        %v7972 = vsel %vm7947, %v7932, %v7960
        %v7973 = vmul.f32 %v7961, %v667
        %v7974 = vmul.f32 %v7962, %v671
        %v7975 = vmul.f32 %v7963, %v675
        %v7976 = vmul.f32 %v7964, %v667
        %v7977 = vmul.f32 %v7965, %v671
        %v7978 = vmul.f32 %v7966, %v675
        %v7979 = vmul.f32 %v7967, %v667
        %v7980 = vmul.f32 %v7968, %v671
        %v7981 = vmul.f32 %v7969, %v675
        %v7982 = vmul.f32 %v7970, %v667
        %v7983 = vmul.f32 %v7971, %v671
        %v7984 = vmul.f32 %v7972, %v675
        %7997 = vrot.lane.b32.xlu0 %v7973, 19
        %v7998 = vpop.permute.xlu0 %7997
        %7999 = vrot.lane.b32.xlu0 %v7974, 19
        %v8000 = vpop.permute.xlu0 %7999
        %8001 = vrot.lane.b32.xlu0 %v7975, 19
        %v8002 = vpop.permute.xlu0 %8001
        %8003 = vrot.lane.b32.xlu0 %v7976, 19
        %v8004 = vpop.permute.xlu0 %8003
        %8005 = vrot.lane.b32.xlu0 %v7977, 19
        %v8006 = vpop.permute.xlu0 %8005
        %8007 = vrot.lane.b32.xlu0 %v7978, 19
        %v8008 = vpop.permute.xlu0 %8007
        %8009 = vrot.lane.b32.xlu0 %v7979, 19
        %v8010 = vpop.permute.xlu0 %8009
        %8011 = vrot.lane.b32.xlu0 %v7980, 19
        %v8012 = vpop.permute.xlu0 %8011
        %8013 = vrot.lane.b32.xlu0 %v7981, 19
        %v8014 = vpop.permute.xlu0 %8013
        %8015 = vrot.lane.b32.xlu0 %v7982, 19
        %v8016 = vpop.permute.xlu0 %8015
        %8017 = vrot.lane.b32.xlu0 %v7983, 19
        %v8018 = vpop.permute.xlu0 %8017
        %8019 = vrot.lane.b32.xlu0 %v7984, 19
        %v8020 = vpop.permute.xlu0 %8019
        %v8021 = vsel %vm727, %v7998, %v8000
        %v8022 = vsel %vm727, %v8000, %v8002
        %v8023 = vsel %vm727, %v8004, %v8006
        %v8024 = vsel %vm727, %v8006, %v8008
        %v8025 = vsel %vm727, %v8010, %v8012
        %v8026 = vsel %vm727, %v8012, %v8014
        %v8027 = vsel %vm727, %v8016, %v8018
        %v8028 = vsel %vm727, %v8018, %v8020
        %8041 = vst.msk [vmem:[#allocation2] sm:$0xff] %vm748, %v7998
        %8042 = vst [vmem:[#allocation2 + $0x8] sm:$0xff] %v8021
        %8043 = vst.msk [vmem:[#allocation2 + $0x10] sm:$0xff] %vm751, %v8022
        %8044 = vst.msk [vmem:[#allocation2 + $0x18] sm:$0xff] %vm748, %v8004
        %8045 = vst [vmem:[#allocation2 + $0x20] sm:$0xff] %v8023
        %8046 = vst.msk [vmem:[#allocation2 + $0x28] sm:$0xff] %vm751, %v8024
        %8047 = vst.msk [vmem:[#allocation2 + $0x30] sm:$0xff] %vm748, %v8010
        %8048 = vst [vmem:[#allocation2 + $0x38] sm:$0xff] %v8025
        %8049 = vst.msk [vmem:[#allocation2 + $0x40] sm:$0xff] %vm751, %v8026
        %8050 = vst.msk [vmem:[#allocation2 + $0x48] sm:$0xff] %vm748, %v8016
        %8051 = vst [vmem:[#allocation2 + $0x50] sm:$0xff] %v8027
        %8052 = vst.msk [vmem:[#allocation2 + $0x58] sm:$0xff] %vm751, %v8028
        %v8053 = vld [vmem:[#allocation2] sm:$0xff]
        %v8054 = vld [vmem:[#allocation2 + $0x8] sm:$0xff]
        %v8055 = vld [vmem:[#allocation2 + $0x10] sm:$0xff]
        %v8056 = vld [vmem:[#allocation2 + $0x18] sm:$0xff]
        %v8057 = vld [vmem:[#allocation2 + $0x20] sm:$0xff]
        %v8058 = vld [vmem:[#allocation2 + $0x28] sm:$0xff]
        %v8059 = vld [vmem:[#allocation2 + $0x30] sm:$0xff]
        %v8060 = vld [vmem:[#allocation2 + $0x38] sm:$0xff]
        %v8061 = vld [vmem:[#allocation2 + $0x40] sm:$0xff]
        %v8062 = vld [vmem:[#allocation2 + $0x48] sm:$0xff]
        %v8063 = vld [vmem:[#allocation2 + $0x50] sm:$0xff]
        %v8064 = vld [vmem:[#allocation2 + $0x58] sm:$0xff]
        %s8065 = scalar_lea.vmem %s7, 192
        %v8066 = vld [vmem:[%s8065] sm:$0xff]
        %v8067 = vld [vmem:[%s8065 + $0x8] sm:$0xf]
        %v8068 = vld [vmem:[%s8065 + $0xc] sm:$0xff]
        %v8069 = vld [vmem:[%s8065 + $0x14] sm:$0xf]
        %v8070 = vld [vmem:[%s8065 + $0x18] sm:$0xff]
        %v8071 = vld [vmem:[%s8065 + $0x20] sm:$0xf]
        %v8072 = vld [vmem:[%s8065 + $0x24] sm:$0xff]
        %v8073 = vld [vmem:[%s8065 + $0x2c] sm:$0xf]
        %8086 = vrot.lane.b32.xlu0 %v8053, 127
        %v8087 = vpop.permute.xlu0 %8086
        %8088 = vrot.lane.b32.xlu0 %v8054, 127
        %v8089 = vpop.permute.xlu0 %8088
        %8090 = vrot.lane.b32.xlu0 %v8055, 127
        %v8091 = vpop.permute.xlu0 %8090
        %8092 = vrot.lane.b32.xlu0 %v8056, 127
        %v8093 = vpop.permute.xlu0 %8092
        %8094 = vrot.lane.b32.xlu0 %v8057, 127
        %v8095 = vpop.permute.xlu0 %8094
        %8096 = vrot.lane.b32.xlu0 %v8058, 127
        %v8097 = vpop.permute.xlu0 %8096
        %8098 = vrot.lane.b32.xlu0 %v8059, 127
        %v8099 = vpop.permute.xlu0 %8098
        %8100 = vrot.lane.b32.xlu0 %v8060, 127
        %v8101 = vpop.permute.xlu0 %8100
        %8102 = vrot.lane.b32.xlu0 %v8061, 127
        %v8103 = vpop.permute.xlu0 %8102
        %8104 = vrot.lane.b32.xlu0 %v8062, 127
        %v8105 = vpop.permute.xlu0 %8104
        %8106 = vrot.lane.b32.xlu0 %v8063, 127
        %v8107 = vpop.permute.xlu0 %8106
        %8108 = vrot.lane.b32.xlu0 %v8064, 127
        %v8109 = vpop.permute.xlu0 %8108
        %v8110 = vsel %vm391, %v8087, %v8089
        %v8111 = vsel %vm391, %v8089, %v8091
        %v8112 = vsel %vm391, %v8093, %v8095
        %v8113 = vsel %vm391, %v8095, %v8097
        %v8114 = vsel %vm391, %v8099, %v8101
        %v8115 = vsel %vm391, %v8101, %v8103
        %v8116 = vsel %vm391, %v8105, %v8107
        %v8117 = vsel %vm391, %v8107, %v8109
        %8130 = vrot.lane.b32.xlu0 %v8053, 126
        %v8131 = vpop.permute.xlu0 %8130
        %8132 = vrot.lane.b32.xlu0 %v8054, 126
        %v8133 = vpop.permute.xlu0 %8132
        %8134 = vrot.lane.b32.xlu0 %v8055, 126
        %v8135 = vpop.permute.xlu0 %8134
        %8136 = vrot.lane.b32.xlu0 %v8056, 126
        %v8137 = vpop.permute.xlu0 %8136
        %8138 = vrot.lane.b32.xlu0 %v8057, 126
        %v8139 = vpop.permute.xlu0 %8138
        %8140 = vrot.lane.b32.xlu0 %v8058, 126
        %v8141 = vpop.permute.xlu0 %8140
        %8142 = vrot.lane.b32.xlu0 %v8059, 126
        %v8143 = vpop.permute.xlu0 %8142
        %8144 = vrot.lane.b32.xlu0 %v8060, 126
        %v8145 = vpop.permute.xlu0 %8144
        %8146 = vrot.lane.b32.xlu0 %v8061, 126
        %v8147 = vpop.permute.xlu0 %8146
        %8148 = vrot.lane.b32.xlu0 %v8062, 126
        %v8149 = vpop.permute.xlu0 %8148
        %8150 = vrot.lane.b32.xlu0 %v8063, 126
        %v8151 = vpop.permute.xlu0 %8150
        %8152 = vrot.lane.b32.xlu0 %v8064, 126
        %v8153 = vpop.permute.xlu0 %8152
        %v8154 = vsel %vm403, %v8131, %v8133
        %v8155 = vsel %vm403, %v8133, %v8135
        %v8156 = vsel %vm403, %v8137, %v8139
        %v8157 = vsel %vm403, %v8139, %v8141
        %v8158 = vsel %vm403, %v8143, %v8145
        %v8159 = vsel %vm403, %v8145, %v8147
        %v8160 = vsel %vm403, %v8149, %v8151
        %v8161 = vsel %vm403, %v8151, %v8153
        %8174 = vrot.lane.b32.xlu0 %v8053, 110
        %v8175 = vpop.permute.xlu0 %8174
        %8176 = vrot.lane.b32.xlu0 %v8054, 110
        %v8177 = vpop.permute.xlu0 %8176
        %8178 = vrot.lane.b32.xlu0 %v8055, 110
        %v8179 = vpop.permute.xlu0 %8178
        %8180 = vrot.lane.b32.xlu0 %v8056, 110
        %v8181 = vpop.permute.xlu0 %8180
        %8182 = vrot.lane.b32.xlu0 %v8057, 110
        %v8183 = vpop.permute.xlu0 %8182
        %8184 = vrot.lane.b32.xlu0 %v8058, 110
        %v8185 = vpop.permute.xlu0 %8184
        %8186 = vrot.lane.b32.xlu0 %v8059, 110
        %v8187 = vpop.permute.xlu0 %8186
        %8188 = vrot.lane.b32.xlu0 %v8060, 110
        %v8189 = vpop.permute.xlu0 %8188
        %8190 = vrot.lane.b32.xlu0 %v8061, 110
        %v8191 = vpop.permute.xlu0 %8190
        %8192 = vrot.lane.b32.xlu0 %v8062, 110
        %v8193 = vpop.permute.xlu0 %8192
        %8194 = vrot.lane.b32.xlu0 %v8063, 110
        %v8195 = vpop.permute.xlu0 %8194
        %8196 = vrot.lane.b32.xlu0 %v8064, 110
        %v8197 = vpop.permute.xlu0 %8196
        %v8198 = vsel %vm415, %v8175, %v8177
        %v8199 = vsel %vm415, %v8177, %v8179
        %v8200 = vsel %vm415, %v8181, %v8183
        %v8201 = vsel %vm415, %v8183, %v8185
        %v8202 = vsel %vm415, %v8187, %v8189
        %v8203 = vsel %vm415, %v8189, %v8191
        %v8204 = vsel %vm415, %v8193, %v8195
        %v8205 = vsel %vm415, %v8195, %v8197
        %8218 = vrot.lane.b32.xlu0 %v8053, 109
        %v8219 = vpop.permute.xlu0 %8218
        %8220 = vrot.lane.b32.xlu0 %v8054, 109
        %v8221 = vpop.permute.xlu0 %8220
        %8222 = vrot.lane.b32.xlu0 %v8055, 109
        %v8223 = vpop.permute.xlu0 %8222
        %8224 = vrot.lane.b32.xlu0 %v8056, 109
        %v8225 = vpop.permute.xlu0 %8224
        %8226 = vrot.lane.b32.xlu0 %v8057, 109
        %v8227 = vpop.permute.xlu0 %8226
        %8228 = vrot.lane.b32.xlu0 %v8058, 109
        %v8229 = vpop.permute.xlu0 %8228
        %8230 = vrot.lane.b32.xlu0 %v8059, 109
        %v8231 = vpop.permute.xlu0 %8230
        %8232 = vrot.lane.b32.xlu0 %v8060, 109
        %v8233 = vpop.permute.xlu0 %8232
        %8234 = vrot.lane.b32.xlu0 %v8061, 109
        %v8235 = vpop.permute.xlu0 %8234
        %8236 = vrot.lane.b32.xlu0 %v8062, 109
        %v8237 = vpop.permute.xlu0 %8236
        %8238 = vrot.lane.b32.xlu0 %v8063, 109
        %v8239 = vpop.permute.xlu0 %8238
        %8240 = vrot.lane.b32.xlu0 %v8064, 109
        %v8241 = vpop.permute.xlu0 %8240
        %v8242 = vsel %vm427, %v8219, %v8221
        %v8243 = vsel %vm427, %v8221, %v8223
        %v8244 = vsel %vm427, %v8225, %v8227
        %v8245 = vsel %vm427, %v8227, %v8229
        %v8246 = vsel %vm427, %v8231, %v8233
        %v8247 = vsel %vm427, %v8233, %v8235
        %v8248 = vsel %vm427, %v8237, %v8239
        %v8249 = vsel %vm427, %v8239, %v8241
        %8262 = vrot.lane.b32.xlu0 %v8053, 108
        %v8263 = vpop.permute.xlu0 %8262
        %8264 = vrot.lane.b32.xlu0 %v8054, 108
        %v8265 = vpop.permute.xlu0 %8264
        %8266 = vrot.lane.b32.xlu0 %v8055, 108
        %v8267 = vpop.permute.xlu0 %8266
        %8268 = vrot.lane.b32.xlu0 %v8056, 108
        %v8269 = vpop.permute.xlu0 %8268
        %8270 = vrot.lane.b32.xlu0 %v8057, 108
        %v8271 = vpop.permute.xlu0 %8270
        %8272 = vrot.lane.b32.xlu0 %v8058, 108
        %v8273 = vpop.permute.xlu0 %8272
        %8274 = vrot.lane.b32.xlu0 %v8059, 108
        %v8275 = vpop.permute.xlu0 %8274
        %8276 = vrot.lane.b32.xlu0 %v8060, 108
        %v8277 = vpop.permute.xlu0 %8276
        %8278 = vrot.lane.b32.xlu0 %v8061, 108
        %v8279 = vpop.permute.xlu0 %8278
        %8280 = vrot.lane.b32.xlu0 %v8062, 108
        %v8281 = vpop.permute.xlu0 %8280
        %8282 = vrot.lane.b32.xlu0 %v8063, 108
        %v8283 = vpop.permute.xlu0 %8282
        %8284 = vrot.lane.b32.xlu0 %v8064, 108
        %v8285 = vpop.permute.xlu0 %8284
        %v8286 = vsel %vm439, %v8263, %v8265
        %v8287 = vsel %vm439, %v8265, %v8267
        %v8288 = vsel %vm439, %v8269, %v8271
        %v8289 = vsel %vm439, %v8271, %v8273
        %v8290 = vsel %vm439, %v8275, %v8277
        %v8291 = vsel %vm439, %v8277, %v8279
        %v8292 = vsel %vm439, %v8281, %v8283
        %v8293 = vsel %vm439, %v8283, %v8285
        %8306 = vrot.lane.b32.xlu0 %v8053, 92
        %v8307 = vpop.permute.xlu0 %8306
        %8308 = vrot.lane.b32.xlu0 %v8054, 92
        %v8309 = vpop.permute.xlu0 %8308
        %8310 = vrot.lane.b32.xlu0 %v8055, 92
        %v8311 = vpop.permute.xlu0 %8310
        %8312 = vrot.lane.b32.xlu0 %v8056, 92
        %v8313 = vpop.permute.xlu0 %8312
        %8314 = vrot.lane.b32.xlu0 %v8057, 92
        %v8315 = vpop.permute.xlu0 %8314
        %8316 = vrot.lane.b32.xlu0 %v8058, 92
        %v8317 = vpop.permute.xlu0 %8316
        %8318 = vrot.lane.b32.xlu0 %v8059, 92
        %v8319 = vpop.permute.xlu0 %8318
        %8320 = vrot.lane.b32.xlu0 %v8060, 92
        %v8321 = vpop.permute.xlu0 %8320
        %8322 = vrot.lane.b32.xlu0 %v8061, 92
        %v8323 = vpop.permute.xlu0 %8322
        %8324 = vrot.lane.b32.xlu0 %v8062, 92
        %v8325 = vpop.permute.xlu0 %8324
        %8326 = vrot.lane.b32.xlu0 %v8063, 92
        %v8327 = vpop.permute.xlu0 %8326
        %8328 = vrot.lane.b32.xlu0 %v8064, 92
        %v8329 = vpop.permute.xlu0 %8328
        %v8330 = vsel %vm451, %v8307, %v8309
        %v8331 = vsel %vm451, %v8309, %v8311
        %v8332 = vsel %vm451, %v8313, %v8315
        %v8333 = vsel %vm451, %v8315, %v8317
        %v8334 = vsel %vm451, %v8319, %v8321
        %v8335 = vsel %vm451, %v8321, %v8323
        %v8336 = vsel %vm451, %v8325, %v8327
        %v8337 = vsel %vm451, %v8327, %v8329
        %8350 = vrot.lane.b32.xlu0 %v8053, 91
        %v8351 = vpop.permute.xlu0 %8350
        %8352 = vrot.lane.b32.xlu0 %v8054, 91
        %v8353 = vpop.permute.xlu0 %8352
        %8354 = vrot.lane.b32.xlu0 %v8055, 91
        %v8355 = vpop.permute.xlu0 %8354
        %8356 = vrot.lane.b32.xlu0 %v8056, 91
        %v8357 = vpop.permute.xlu0 %8356
        %8358 = vrot.lane.b32.xlu0 %v8057, 91
        %v8359 = vpop.permute.xlu0 %8358
        %8360 = vrot.lane.b32.xlu0 %v8058, 91
        %v8361 = vpop.permute.xlu0 %8360
        %8362 = vrot.lane.b32.xlu0 %v8059, 91
        %v8363 = vpop.permute.xlu0 %8362
        %8364 = vrot.lane.b32.xlu0 %v8060, 91
        %v8365 = vpop.permute.xlu0 %8364
        %8366 = vrot.lane.b32.xlu0 %v8061, 91
        %v8367 = vpop.permute.xlu0 %8366
        %8368 = vrot.lane.b32.xlu0 %v8062, 91
        %v8369 = vpop.permute.xlu0 %8368
        %8370 = vrot.lane.b32.xlu0 %v8063, 91
        %v8371 = vpop.permute.xlu0 %8370
        %8372 = vrot.lane.b32.xlu0 %v8064, 91
        %v8373 = vpop.permute.xlu0 %8372
        %v8374 = vsel %vm463, %v8351, %v8353
        %v8375 = vsel %vm463, %v8353, %v8355
        %v8376 = vsel %vm463, %v8357, %v8359
        %v8377 = vsel %vm463, %v8359, %v8361
        %v8378 = vsel %vm463, %v8363, %v8365
        %v8379 = vsel %vm463, %v8365, %v8367
        %v8380 = vsel %vm463, %v8369, %v8371
        %v8381 = vsel %vm463, %v8371, %v8373
        %8394 = vrot.lane.b32.xlu0 %v8053, 90
        %v8395 = vpop.permute.xlu0 %8394
        %8396 = vrot.lane.b32.xlu0 %v8054, 90
        %v8397 = vpop.permute.xlu0 %8396
        %8398 = vrot.lane.b32.xlu0 %v8055, 90
        %v8399 = vpop.permute.xlu0 %8398
        %8400 = vrot.lane.b32.xlu0 %v8056, 90
        %v8401 = vpop.permute.xlu0 %8400
        %8402 = vrot.lane.b32.xlu0 %v8057, 90
        %v8403 = vpop.permute.xlu0 %8402
        %8404 = vrot.lane.b32.xlu0 %v8058, 90
        %v8405 = vpop.permute.xlu0 %8404
        %8406 = vrot.lane.b32.xlu0 %v8059, 90
        %v8407 = vpop.permute.xlu0 %8406
        %8408 = vrot.lane.b32.xlu0 %v8060, 90
        %v8409 = vpop.permute.xlu0 %8408
        %8410 = vrot.lane.b32.xlu0 %v8061, 90
        %v8411 = vpop.permute.xlu0 %8410
        %8412 = vrot.lane.b32.xlu0 %v8062, 90
        %v8413 = vpop.permute.xlu0 %8412
        %8414 = vrot.lane.b32.xlu0 %v8063, 90
        %v8415 = vpop.permute.xlu0 %8414
        %8416 = vrot.lane.b32.xlu0 %v8064, 90
        %v8417 = vpop.permute.xlu0 %8416
        %v8418 = vsel %vm475, %v8395, %v8397
        %v8419 = vsel %vm475, %v8397, %v8399
        %v8420 = vsel %vm475, %v8401, %v8403
        %v8421 = vsel %vm475, %v8403, %v8405
        %v8422 = vsel %vm475, %v8407, %v8409
        %v8423 = vsel %vm475, %v8409, %v8411
        %v8424 = vsel %vm475, %v8413, %v8415
        %v8425 = vsel %vm475, %v8415, %v8417
        %v8438 = vpack.c.bf16 %v8056, %v8053
        %v8439 = vpack.c.bf16 %v8057, %v8054
        %v8440 = vpack.c.bf16 %v8058, %v8055
        %v8441 = vpack.c.bf16 %v8062, %v8059
        %v8442 = vpack.c.bf16 %v8063, %v8060
        %v8443 = vpack.c.bf16 %v8064, %v8061
        %v8444 = vpack.c.bf16 %v8112, %v8110
        %v8445 = vpack.c.bf16 %v8113, %v8111
        %v8446 = vpack.c.bf16 %v8097, %v8091
        %v8447 = vpack.c.bf16 %v8116, %v8114
        %v8448 = vpack.c.bf16 %v8117, %v8115
        %v8449 = vpack.c.bf16 %v8109, %v8103
        %v8450 = vpack.c.bf16 %v8156, %v8154
        %v8451 = vpack.c.bf16 %v8157, %v8155
        %v8452 = vpack.c.bf16 %v8141, %v8135
        %v8453 = vpack.c.bf16 %v8160, %v8158
        %v8454 = vpack.c.bf16 %v8161, %v8159
        %v8455 = vpack.c.bf16 %v8153, %v8147
        %v8456 = vpack.c.bf16 %v8200, %v8198
        %v8457 = vpack.c.bf16 %v8201, %v8199
        %v8458 = vpack.c.bf16 %v8185, %v8179
        %v8459 = vpack.c.bf16 %v8204, %v8202
        %v8460 = vpack.c.bf16 %v8205, %v8203
        %v8461 = vpack.c.bf16 %v8197, %v8191
        %v8462 = vpack.c.bf16 %v8244, %v8242
        %v8463 = vpack.c.bf16 %v8245, %v8243
        %v8464 = vpack.c.bf16 %v8229, %v8223
        %v8465 = vpack.c.bf16 %v8248, %v8246
        %v8466 = vpack.c.bf16 %v8249, %v8247
        %v8467 = vpack.c.bf16 %v8241, %v8235
        %v8468 = vpack.c.bf16 %v8288, %v8286
        %v8469 = vpack.c.bf16 %v8289, %v8287
        %v8470 = vpack.c.bf16 %v8273, %v8267
        %v8471 = vpack.c.bf16 %v8292, %v8290
        %v8472 = vpack.c.bf16 %v8293, %v8291
        %v8473 = vpack.c.bf16 %v8285, %v8279
        %v8474 = vpack.c.bf16 %v8332, %v8330
        %v8475 = vpack.c.bf16 %v8333, %v8331
        %v8476 = vpack.c.bf16 %v8317, %v8311
        %v8477 = vpack.c.bf16 %v8336, %v8334
        %v8478 = vpack.c.bf16 %v8337, %v8335
        %v8479 = vpack.c.bf16 %v8329, %v8323
        %v8480 = vpack.c.bf16 %v8376, %v8374
        %v8481 = vpack.c.bf16 %v8377, %v8375
        %v8482 = vpack.c.bf16 %v8361, %v8355
        %v8483 = vpack.c.bf16 %v8380, %v8378
        %v8484 = vpack.c.bf16 %v8381, %v8379
        %v8485 = vpack.c.bf16 %v8373, %v8367
        %v8486 = vpack.c.bf16 %v8420, %v8418
        %v8487 = vpack.c.bf16 %v8421, %v8419
        %v8488 = vpack.c.bf16 %v8405, %v8399
        %v8489 = vpack.c.bf16 %v8424, %v8422
        %v8490 = vpack.c.bf16 %v8425, %v8423
        %v8491 = vpack.c.bf16 %v8417, %v8411
        %s8492 = scalar_lea.vmem %s8, 128
        %v8493 = vld [vmem:[%s8492] sm:$0xff]
        %v8494 = vld [vmem:[%s8492 + $0x8] sm:$0xff]
        %v8495 = vld [vmem:[%s8492 + $0x10] sm:$0xff]
        %v8496 = vld [vmem:[%s8492 + $0x18] sm:$0xff]
        %8498 = vset.pattern.permute.xlu0 0
        %8499 = vperm.xlu0 %8498, %v8493
        %v8500 = vpop.permute.xlu0 %8499
        %8503 = vset.pattern.permute.xlu0 0
        %8504 = vperm.xlu0 %8503, %v8494
        %v8505 = vpop.permute.xlu0 %8504
        %8508 = vset.pattern.permute.xlu0 0
        %8509 = vperm.xlu0 %8508, %v8495
        %v8510 = vpop.permute.xlu0 %8509
        %8513 = vset.pattern.permute.xlu0 0
        %8514 = vperm.xlu0 %8513, %v8496
        %v8515 = vpop.permute.xlu0 %8514
        %v8525 = vunpack.c.l.b16 %v8066
        %v8526 = vunpack.c.h.b16 %v8066
        %v8527 = vunpack.c.l.b16 %v8067
        %v8528 = vunpack.c.l.b16 %v8068
        %v8529 = vunpack.c.h.b16 %v8068
        %v8530 = vunpack.c.l.b16 %v8069
        %v8531 = vunpack.c.l.b16 %v8070
        %v8532 = vunpack.c.h.b16 %v8070
        %v8533 = vunpack.c.l.b16 %v8071
        %v8534 = vunpack.c.l.b16 %v8072
        %v8535 = vunpack.c.h.b16 %v8072
        %v8536 = vunpack.c.l.b16 %v8073
        %v8537 = vpack.c.b16 %v8528, %v8525
        %v8538 = vpack.c.b16 %v8529, %v8526
        %v8539 = vpack.c.b16 %v8530, %v8527
        %v8540 = vpack.c.b16 %v8534, %v8531
        %v8541 = vpack.c.b16 %v8535, %v8532
        %v8542 = vpack.c.b16 %v8536, %v8533
        %v8548 = vsel %vm1254, %v8539, 0
        %v8551 = vsel %vm1254, %v8542, 0
        %8553 = vmatprep.subr.bf16.mxu0 %v8439
        %8554 = vmatpush1.bf16.msra.mxu0 %v8438
        %8555 = vmatprep.subr.bf16.mxu0 %v8442
        %8556 = vmatpush1.bf16.msra.mxu0 %v8441
        %8557 = vmatprep.subr.bf16.mxu0 %v8445
        %8558 = vmatpush1.bf16.msra.mxu0 %v8444
        %8559 = vmatprep.subr.bf16.mxu0 %v8448
        %8560 = vmatpush1.bf16.msra.mxu0 %v8447
        %8561 = vmatprep.subr.bf16.mxu0 %v8451
        %8562 = vmatpush1.bf16.msra.mxu0 %v8450
        %8563 = vmatprep.subr.bf16.mxu0 %v8454
        %8564 = vmatpush1.bf16.msra.mxu0 %v8453
        %8565 = vmatprep.subr.bf16.mxu0 %v8457
        %8566 = vmatpush1.bf16.msra.mxu0 %v8456
        %8567 = vmatprep.subr.bf16.mxu0 %v8460
        %8568 = vmatpush1.bf16.msra.mxu0 %v8459
        %8569 = vmatprep.subr.bf16.mxu0 %v8463
        %8570 = vmatpush1.bf16.msra.mxu0 %v8462
        %8571 = vmatprep.subr.bf16.mxu0 %v8466
        %8572 = vmatpush1.bf16.msra.mxu0 %v8465
        %8573 = vmatprep.subr.bf16.mxu0 %v8469
        %8574 = vmatpush1.bf16.msra.mxu0 %v8468
        %8575 = vmatprep.subr.bf16.mxu0 %v8472
        %8576 = vmatpush1.bf16.msra.mxu0 %v8471
        %8577 = vmatprep.subr.bf16.mxu0 %v8475
        %8578 = vmatpush1.bf16.msra.mxu0 %v8474
        %8579 = vmatprep.subr.bf16.mxu0 %v8478
        %8580 = vmatpush1.bf16.msra.mxu0 %v8477
        %8581 = vmatprep.subr.bf16.mxu0 %v8481
        %8582 = vmatpush1.bf16.msra.mxu0 %v8480
        %8583 = vmatprep.subr.bf16.mxu0 %v8484
        %8584 = vmatpush1.bf16.msra.mxu0 %v8483
        %8585 = vmatprep.mubr.bf16.mxu0 %v8538
        %8586 = vmatmul.mubr.bf16.gmra.mrb[0].mxu0 %v8537
        %v8587 = vpop.f32.mrb[0].mxu0
        %v8588 = vadd.f32 %v8500, %v8587
        %v8589 = vpop.f32.mrb[0].mxu0
        %v8590 = vadd.f32 %v8500, %v8589
        %v8591 = vpop.f32.mrb[0].mxu0
        %v8592 = vadd.f32 %v8505, %v8591
        %v8593 = vpop.f32.mrb[0].mxu0
        %v8594 = vadd.f32 %v8505, %v8593
        %8595 = vmatprep.mubr.bf16.mxu0 %v8541
        %8596 = vmatmul.mubr.bf16.gmra.mrb[0].mxu0 %v8540
        %v8597 = vpop.f32.mrb[0].mxu0
        %v8598 = vadd.f32 %v8510, %v8597
        %v8599 = vpop.f32.mrb[0].mxu0
        %v8600 = vadd.f32 %v8510, %v8599
        %v8601 = vpop.f32.mrb[0].mxu0
        %v8602 = vadd.f32 %v8515, %v8601
        %v8603 = vpop.f32.mrb[0].mxu0
        %v8604 = vadd.f32 %v8515, %v8603
        %8605 = vdwg.mxu0
        %8606 = vmatprep.subr.bf16.mxu0 %v8487
        %8607 = vmatpush1.bf16.msra.mxu0 %v8486
        %8608 = vmatprep.subr.bf16.mxu0 %v8490
        %8609 = vmatpush1.bf16.msra.mxu0 %v8489
        %8610 = vmatprep.subr.bf16.mxu0 0
        %8611 = vmatpush1.bf16.msra.mxu0 0
        %8612 = vmatprep.subr.bf16.mxu0 0
        %8613 = vmatpush1.bf16.msra.mxu0 0
        %8614 = vmatprep.subr.bf16.mxu0 0
        %8615 = vmatpush1.bf16.msra.mxu0 0
        %8616 = vmatprep.subr.bf16.mxu0 0
        %8617 = vmatpush1.bf16.msra.mxu0 0
        %8618 = vmatprep.subr.bf16.mxu0 0
        %8619 = vmatpush1.bf16.msra.mxu0 0
        %8620 = vmatprep.subr.bf16.mxu0 0
        %8621 = vmatpush1.bf16.msra.mxu0 0
        %8622 = vmatprep.subr.bf16.mxu0 0
        %8623 = vmatpush1.bf16.msra.mxu0 0
        %8624 = vmatprep.subr.bf16.mxu0 0
        %8625 = vmatpush1.bf16.msra.mxu0 0
        %8626 = vmatprep.subr.bf16.mxu0 0
        %8627 = vmatpush1.bf16.msra.mxu0 0
        %8628 = vmatprep.subr.bf16.mxu0 0
        %8629 = vmatpush1.bf16.msra.mxu0 0
        %8630 = vmatprep.subr.bf16.mxu0 0
        %8631 = vmatpush1.bf16.msra.mxu0 0
        %8632 = vmatprep.subr.bf16.mxu0 0
        %8633 = vmatpush1.bf16.msra.mxu0 0
        %8634 = vmatprep.subr.bf16.mxu0 0
        %8635 = vmatpush1.bf16.msra.mxu0 0
        %8636 = vmatprep.subr.bf16.mxu0 0
        %8637 = vmatpush1.bf16.msra.mxu0 0
        %8638 = vmatprep.mubr.bf16.mxu0 0
        %8639 = vmatmul.mubr.bf16.gmra.mrb[0].mxu0 %v8548
        %v8640 = vpop.f32.mrb[0].mxu0
        %v8641 = vadd.f32 %v8588, %v8640
        %v8642 = vpop.f32.mrb[0].mxu0
        %v8643 = vadd.f32 %v8590, %v8642
        %v8644 = vpop.f32.mrb[0].mxu0
        %v8645 = vadd.f32 %v8592, %v8644
        %v8646 = vpop.f32.mrb[0].mxu0
        %v8647 = vadd.f32 %v8594, %v8646
        %8648 = vmatprep.mubr.bf16.mxu0 0
        %8649 = vmatmul.mubr.bf16.gmra.mrb[0].mxu0 %v8551
        %v8650 = vpop.f32.mrb[0].mxu0
        %v8651 = vadd.f32 %v8598, %v8650
        %v8652 = vpop.f32.mrb[0].mxu0
        %v8653 = vadd.f32 %v8600, %v8652
        %v8654 = vpop.f32.mrb[0].mxu0
        %v8655 = vadd.f32 %v8602, %v8654
        %v8656 = vpop.f32.mrb[0].mxu0
        %v8657 = vadd.f32 %v8604, %v8656
        %8658 = vdwg.mxu0
        %8659 = vmatprep.subr.bf16.mxu0 0
        %8660 = vmatpush1.bf16.msra.mxu0 %v8440
        %8661 = vmatprep.subr.bf16.mxu0 0
        %8662 = vmatpush1.bf16.msra.mxu0 %v8443
        %8663 = vmatprep.subr.bf16.mxu0 0
        %8664 = vmatpush1.bf16.msra.mxu0 %v8446
        %8665 = vmatprep.subr.bf16.mxu0 0
        %8666 = vmatpush1.bf16.msra.mxu0 %v8449
        %8667 = vmatprep.subr.bf16.mxu0 0
        %8668 = vmatpush1.bf16.msra.mxu0 %v8452
        %8669 = vmatprep.subr.bf16.mxu0 0
        %8670 = vmatpush1.bf16.msra.mxu0 %v8455
        %8671 = vmatprep.subr.bf16.mxu0 0
        %8672 = vmatpush1.bf16.msra.mxu0 %v8458
        %8673 = vmatprep.subr.bf16.mxu0 0
        %8674 = vmatpush1.bf16.msra.mxu0 %v8461
        %8675 = vmatprep.subr.bf16.mxu0 0
        %8676 = vmatpush1.bf16.msra.mxu0 %v8464
        %8677 = vmatprep.subr.bf16.mxu0 0
        %8678 = vmatpush1.bf16.msra.mxu0 %v8467
        %8679 = vmatprep.subr.bf16.mxu0 0
        %8680 = vmatpush1.bf16.msra.mxu0 %v8470
        %8681 = vmatprep.subr.bf16.mxu0 0
        %8682 = vmatpush1.bf16.msra.mxu0 %v8473
        %8683 = vmatprep.subr.bf16.mxu0 0
        %8684 = vmatpush1.bf16.msra.mxu0 %v8476
        %8685 = vmatprep.subr.bf16.mxu0 0
        %8686 = vmatpush1.bf16.msra.mxu0 %v8479
        %8687 = vmatprep.subr.bf16.mxu0 0
        %8688 = vmatpush1.bf16.msra.mxu0 %v8482
        %8689 = vmatprep.subr.bf16.mxu0 0
        %8690 = vmatpush1.bf16.msra.mxu0 %v8485
        %8691 = vmatprep.mubr.bf16.mxu0 %v8538
        %8692 = vmatmul.mubr.bf16.gmra.mrb[0].mxu0 %v8537
        %v8693 = vpop.f32.mrb[0].mxu0
        %v8694 = vadd.f32 %v8500, %v8693
        %v8695 = vpop.f32.mrb[0].mxu0
        %v8696 = vpop.f32.mrb[0].mxu0
        %v8697 = vadd.f32 %v8505, %v8696
        %v8698 = vpop.f32.mrb[0].mxu0
        %8699 = vmatprep.mubr.bf16.mxu0 %v8541
        %8700 = vmatmul.mubr.bf16.gmra.mrb[0].mxu0 %v8540
        %v8701 = vpop.f32.mrb[0].mxu0
        %v8702 = vadd.f32 %v8510, %v8701
        %v8703 = vpop.f32.mrb[0].mxu0
        %v8704 = vpop.f32.mrb[0].mxu0
        %v8705 = vadd.f32 %v8515, %v8704
        %v8706 = vpop.f32.mrb[0].mxu0
        %8707 = vdwg.mxu0
        %8708 = vmatprep.subr.bf16.mxu0 0
        %8709 = vmatpush1.bf16.msra.mxu0 %v8488
        %8710 = vmatprep.subr.bf16.mxu0 0
        %8711 = vmatpush1.bf16.msra.mxu0 %v8491
        %8712 = vmatprep.subr.bf16.mxu0 0
        %8713 = vmatpush1.bf16.msra.mxu0 0
        %8714 = vmatprep.subr.bf16.mxu0 0
        %8715 = vmatpush1.bf16.msra.mxu0 0
        %8716 = vmatprep.subr.bf16.mxu0 0
        %8717 = vmatpush1.bf16.msra.mxu0 0
        %8718 = vmatprep.subr.bf16.mxu0 0
        %8719 = vmatpush1.bf16.msra.mxu0 0
        %8720 = vmatprep.subr.bf16.mxu0 0
        %8721 = vmatpush1.bf16.msra.mxu0 0
        %8722 = vmatprep.subr.bf16.mxu0 0
        %8723 = vmatpush1.bf16.msra.mxu0 0
        %8724 = vmatprep.subr.bf16.mxu0 0
        %8725 = vmatpush1.bf16.msra.mxu0 0
        %8726 = vmatprep.subr.bf16.mxu0 0
        %8727 = vmatpush1.bf16.msra.mxu0 0
        %8728 = vmatprep.subr.bf16.mxu0 0
        %8729 = vmatpush1.bf16.msra.mxu0 0
        %8730 = vmatprep.subr.bf16.mxu0 0
        %8731 = vmatpush1.bf16.msra.mxu0 0
        %8732 = vmatprep.subr.bf16.mxu0 0
        %8733 = vmatpush1.bf16.msra.mxu0 0
        %8734 = vmatprep.subr.bf16.mxu0 0
        %8735 = vmatpush1.bf16.msra.mxu0 0
        %8736 = vmatprep.subr.bf16.mxu0 0
        %8737 = vmatpush1.bf16.msra.mxu0 0
        %8738 = vmatprep.subr.bf16.mxu0 0
        %8739 = vmatpush1.bf16.msra.mxu0 0
        %8740 = vmatprep.mubr.bf16.mxu0 0
        %8741 = vmatmul.mubr.bf16.gmra.mrb[0].mxu0 %v8548
        %v8742 = vpop.f32.mrb[0].mxu0
        %v8743 = vadd.f32 %v8694, %v8742
        %v8744 = vpop.f32.mrb[0].mxu0
        %v8745 = vpop.f32.mrb[0].mxu0
        %v8746 = vadd.f32 %v8697, %v8745
        %v8747 = vpop.f32.mrb[0].mxu0
        %8748 = vmatprep.mubr.bf16.mxu0 0
        %8749 = vmatmul.mubr.bf16.gmra.mrb[0].mxu0 %v8551
        %v8750 = vpop.f32.mrb[0].mxu0
        %v8751 = vadd.f32 %v8702, %v8750
        %v8752 = vpop.f32.mrb[0].mxu0
        %v8753 = vpop.f32.mrb[0].mxu0
        %v8754 = vadd.f32 %v8705, %v8753
        %v8755 = vpop.f32.mrb[0].mxu0
        %8756 = vdwg.mxu0
        %v8757 = vadd.f32 %v8641, %v7420
        %v8758 = vadd.f32 %v8643, %v7421
        %v8759 = vadd.f32 %v8743, %v7401
        %v8760 = vadd.f32 %v8645, %v7422
        %v8761 = vadd.f32 %v8647, %v7423
        %v8762 = vadd.f32 %v8746, %v7407
        %v8763 = vadd.f32 %v8651, %v7424
        %v8764 = vadd.f32 %v8653, %v7425
        %v8765 = vadd.f32 %v8751, %v7413
        %v8766 = vadd.f32 %v8655, %v7426
        %v8767 = vadd.f32 %v8657, %v7427
        %v8768 = vadd.f32 %v8754, %v7419
        %v8769 = vmul.f32 %v8757, %v667
        %v8770 = vmul.f32 %v8758, %v671
        %v8771 = vmul.f32 %v8759, %v675
        %v8772 = vmul.f32 %v8760, %v667
        %v8773 = vmul.f32 %v8761, %v671
        %v8774 = vmul.f32 %v8762, %v675
        %v8775 = vmul.f32 %v8763, %v667
        %v8776 = vmul.f32 %v8764, %v671
        %v8777 = vmul.f32 %v8765, %v675
        %v8778 = vmul.f32 %v8766, %v667
        %v8779 = vmul.f32 %v8767, %v671
        %v8780 = vmul.f32 %v8768, %v675
        %8793 = vrot.lane.b32.xlu0 %v8769, 19
        %v8794 = vpop.permute.xlu0 %8793
        %8795 = vrot.lane.b32.xlu0 %v8770, 19
        %v8796 = vpop.permute.xlu0 %8795
        %8797 = vrot.lane.b32.xlu0 %v8771, 19
        %v8798 = vpop.permute.xlu0 %8797
        %8799 = vrot.lane.b32.xlu0 %v8772, 19
        %v8800 = vpop.permute.xlu0 %8799
        %8801 = vrot.lane.b32.xlu0 %v8773, 19
        %v8802 = vpop.permute.xlu0 %8801
        %8803 = vrot.lane.b32.xlu0 %v8774, 19
        %v8804 = vpop.permute.xlu0 %8803
        %8805 = vrot.lane.b32.xlu0 %v8775, 19
        %v8806 = vpop.permute.xlu0 %8805
        %8807 = vrot.lane.b32.xlu0 %v8776, 19
        %v8808 = vpop.permute.xlu0 %8807
        %8809 = vrot.lane.b32.xlu0 %v8777, 19
        %v8810 = vpop.permute.xlu0 %8809
        %8811 = vrot.lane.b32.xlu0 %v8778, 19
        %v8812 = vpop.permute.xlu0 %8811
        %8813 = vrot.lane.b32.xlu0 %v8779, 19
        %v8814 = vpop.permute.xlu0 %8813
        %8815 = vrot.lane.b32.xlu0 %v8780, 19
        %v8816 = vpop.permute.xlu0 %8815
        %v8817 = vsel %vm727, %v8794, %v8796
        %v8818 = vsel %vm727, %v8796, %v8798
        %v8819 = vsel %vm727, %v8800, %v8802
        %v8820 = vsel %vm727, %v8802, %v8804
        %v8821 = vsel %vm727, %v8806, %v8808
        %v8822 = vsel %vm727, %v8808, %v8810
        %v8823 = vsel %vm727, %v8812, %v8814
        %v8824 = vsel %vm727, %v8814, %v8816
        %8837 = vst.msk [vmem:[#allocation2] sm:$0xff] %vm748, %v8794
        %8838 = vst [vmem:[#allocation2 + $0x8] sm:$0xff] %v8817
        %8839 = vst.msk [vmem:[#allocation2 + $0x10] sm:$0xff] %vm751, %v8818
        %8840 = vst.msk [vmem:[#allocation2 + $0x18] sm:$0xff] %vm748, %v8800
        %8841 = vst [vmem:[#allocation2 + $0x20] sm:$0xff] %v8819
        %8842 = vst.msk [vmem:[#allocation2 + $0x28] sm:$0xff] %vm751, %v8820
        %8843 = vst.msk [vmem:[#allocation2 + $0x30] sm:$0xff] %vm748, %v8806
        %8844 = vst [vmem:[#allocation2 + $0x38] sm:$0xff] %v8821
        %8845 = vst.msk [vmem:[#allocation2 + $0x40] sm:$0xff] %vm751, %v8822
        %8846 = vst.msk [vmem:[#allocation2 + $0x48] sm:$0xff] %vm748, %v8812
        %8847 = vst [vmem:[#allocation2 + $0x50] sm:$0xff] %v8823
        %8848 = vst.msk [vmem:[#allocation2 + $0x58] sm:$0xff] %vm751, %v8824
        %v8849 = vld [vmem:[#allocation2] sm:$0xff]
        %v8850 = vld [vmem:[#allocation2 + $0x8] sm:$0xff]
        %v8851 = vld [vmem:[#allocation2 + $0x10] sm:$0xff]
        %v8852 = vld [vmem:[#allocation2 + $0x18] sm:$0xff]
        %v8853 = vld [vmem:[#allocation2 + $0x20] sm:$0xff]
        %v8854 = vld [vmem:[#allocation2 + $0x28] sm:$0xff]
        %v8855 = vld [vmem:[#allocation2 + $0x30] sm:$0xff]
        %v8856 = vld [vmem:[#allocation2 + $0x38] sm:$0xff]
        %v8857 = vld [vmem:[#allocation2 + $0x40] sm:$0xff]
        %v8858 = vld [vmem:[#allocation2 + $0x48] sm:$0xff]
        %v8859 = vld [vmem:[#allocation2 + $0x50] sm:$0xff]
        %v8860 = vld [vmem:[#allocation2 + $0x58] sm:$0xff]
        %s8861 = scalar_lea.vmem %s5, 240
        %v8862 = vld [vmem:[%s8861] sm:$0xff]
        %v8863 = vld [vmem:[%s8861 + $0x8] sm:$0xf]
        %v8864 = vld [vmem:[%s8861 + $0xc] sm:$0xff]
        %v8865 = vld [vmem:[%s8861 + $0x14] sm:$0xf]
        %v8866 = vld [vmem:[%s8861 + $0x18] sm:$0xff]
        %v8867 = vld [vmem:[%s8861 + $0x20] sm:$0xf]
        %v8868 = vld [vmem:[%s8861 + $0x24] sm:$0xff]
        %v8869 = vld [vmem:[%s8861 + $0x2c] sm:$0xf]
        %8882 = vrot.lane.b32.xlu0 %v8849, 127
        %v8883 = vpop.permute.xlu0 %8882
        %8884 = vrot.lane.b32.xlu0 %v8850, 127
        %v8885 = vpop.permute.xlu0 %8884
        %8886 = vrot.lane.b32.xlu0 %v8851, 127
        %v8887 = vpop.permute.xlu0 %8886
        %8888 = vrot.lane.b32.xlu0 %v8852, 127
        %v8889 = vpop.permute.xlu0 %8888
        %8890 = vrot.lane.b32.xlu0 %v8853, 127
        %v8891 = vpop.permute.xlu0 %8890
        %8892 = vrot.lane.b32.xlu0 %v8854, 127
        %v8893 = vpop.permute.xlu0 %8892
        %8894 = vrot.lane.b32.xlu0 %v8855, 127
        %v8895 = vpop.permute.xlu0 %8894
        %8896 = vrot.lane.b32.xlu0 %v8856, 127
        %v8897 = vpop.permute.xlu0 %8896
        %8898 = vrot.lane.b32.xlu0 %v8857, 127
        %v8899 = vpop.permute.xlu0 %8898
        %8900 = vrot.lane.b32.xlu0 %v8858, 127
        %v8901 = vpop.permute.xlu0 %8900
        %8902 = vrot.lane.b32.xlu0 %v8859, 127
        %v8903 = vpop.permute.xlu0 %8902
        %8904 = vrot.lane.b32.xlu0 %v8860, 127
        %v8905 = vpop.permute.xlu0 %8904
        %v8906 = vsel %vm391, %v8883, %v8885
        %v8907 = vsel %vm391, %v8885, %v8887
        %v8908 = vsel %vm391, %v8889, %v8891
        %v8909 = vsel %vm391, %v8891, %v8893
        %v8910 = vsel %vm391, %v8895, %v8897
        %v8911 = vsel %vm391, %v8897, %v8899
        %v8912 = vsel %vm391, %v8901, %v8903
        %v8913 = vsel %vm391, %v8903, %v8905
        %8926 = vrot.lane.b32.xlu0 %v8849, 126
        %v8927 = vpop.permute.xlu0 %8926
        %8928 = vrot.lane.b32.xlu0 %v8850, 126
        %v8929 = vpop.permute.xlu0 %8928
        %8930 = vrot.lane.b32.xlu0 %v8851, 126
        %v8931 = vpop.permute.xlu0 %8930
        %8932 = vrot.lane.b32.xlu0 %v8852, 126
        %v8933 = vpop.permute.xlu0 %8932
        %8934 = vrot.lane.b32.xlu0 %v8853, 126
        %v8935 = vpop.permute.xlu0 %8934
        %8936 = vrot.lane.b32.xlu0 %v8854, 126
        %v8937 = vpop.permute.xlu0 %8936
        %8938 = vrot.lane.b32.xlu0 %v8855, 126
        %v8939 = vpop.permute.xlu0 %8938
        %8940 = vrot.lane.b32.xlu0 %v8856, 126
        %v8941 = vpop.permute.xlu0 %8940
        %8942 = vrot.lane.b32.xlu0 %v8857, 126
        %v8943 = vpop.permute.xlu0 %8942
        %8944 = vrot.lane.b32.xlu0 %v8858, 126
        %v8945 = vpop.permute.xlu0 %8944
        %8946 = vrot.lane.b32.xlu0 %v8859, 126
        %v8947 = vpop.permute.xlu0 %8946
        %8948 = vrot.lane.b32.xlu0 %v8860, 126
        %v8949 = vpop.permute.xlu0 %8948
        %v8950 = vsel %vm403, %v8927, %v8929
        %v8951 = vsel %vm403, %v8929, %v8931
        %v8952 = vsel %vm403, %v8933, %v8935
        %v8953 = vsel %vm403, %v8935, %v8937
        %v8954 = vsel %vm403, %v8939, %v8941
        %v8955 = vsel %vm403, %v8941, %v8943
        %v8956 = vsel %vm403, %v8945, %v8947
        %v8957 = vsel %vm403, %v8947, %v8949
        %8970 = vrot.lane.b32.xlu0 %v8849, 110
        %v8971 = vpop.permute.xlu0 %8970
        %8972 = vrot.lane.b32.xlu0 %v8850, 110
        %v8973 = vpop.permute.xlu0 %8972
        %8974 = vrot.lane.b32.xlu0 %v8851, 110
        %v8975 = vpop.permute.xlu0 %8974
        %8976 = vrot.lane.b32.xlu0 %v8852, 110
        %v8977 = vpop.permute.xlu0 %8976
        %8978 = vrot.lane.b32.xlu0 %v8853, 110
        %v8979 = vpop.permute.xlu0 %8978
        %8980 = vrot.lane.b32.xlu0 %v8854, 110
        %v8981 = vpop.permute.xlu0 %8980
        %8982 = vrot.lane.b32.xlu0 %v8855, 110
        %v8983 = vpop.permute.xlu0 %8982
        %8984 = vrot.lane.b32.xlu0 %v8856, 110
        %v8985 = vpop.permute.xlu0 %8984
        %8986 = vrot.lane.b32.xlu0 %v8857, 110
        %v8987 = vpop.permute.xlu0 %8986
        %8988 = vrot.lane.b32.xlu0 %v8858, 110
        %v8989 = vpop.permute.xlu0 %8988
        %8990 = vrot.lane.b32.xlu0 %v8859, 110
        %v8991 = vpop.permute.xlu0 %8990
        %8992 = vrot.lane.b32.xlu0 %v8860, 110
        %v8993 = vpop.permute.xlu0 %8992
        %v8994 = vsel %vm415, %v8971, %v8973
        %v8995 = vsel %vm415, %v8973, %v8975
        %v8996 = vsel %vm415, %v8977, %v8979
        %v8997 = vsel %vm415, %v8979, %v8981
        %v8998 = vsel %vm415, %v8983, %v8985
        %v8999 = vsel %vm415, %v8985, %v8987
        %v9000 = vsel %vm415, %v8989, %v8991
        %v9001 = vsel %vm415, %v8991, %v8993
        %9014 = vrot.lane.b32.xlu0 %v8849, 109
        %v9015 = vpop.permute.xlu0 %9014
        %9016 = vrot.lane.b32.xlu0 %v8850, 109
        %v9017 = vpop.permute.xlu0 %9016
        %9018 = vrot.lane.b32.xlu0 %v8851, 109
        %v9019 = vpop.permute.xlu0 %9018
        %9020 = vrot.lane.b32.xlu0 %v8852, 109
        %v9021 = vpop.permute.xlu0 %9020
        %9022 = vrot.lane.b32.xlu0 %v8853, 109
        %v9023 = vpop.permute.xlu0 %9022
        %9024 = vrot.lane.b32.xlu0 %v8854, 109
        %v9025 = vpop.permute.xlu0 %9024
        %9026 = vrot.lane.b32.xlu0 %v8855, 109
        %v9027 = vpop.permute.xlu0 %9026
        %9028 = vrot.lane.b32.xlu0 %v8856, 109
        %v9029 = vpop.permute.xlu0 %9028
        %9030 = vrot.lane.b32.xlu0 %v8857, 109
        %v9031 = vpop.permute.xlu0 %9030
        %9032 = vrot.lane.b32.xlu0 %v8858, 109
        %v9033 = vpop.permute.xlu0 %9032
        %9034 = vrot.lane.b32.xlu0 %v8859, 109
        %v9035 = vpop.permute.xlu0 %9034
        %9036 = vrot.lane.b32.xlu0 %v8860, 109
        %v9037 = vpop.permute.xlu0 %9036
        %v9038 = vsel %vm427, %v9015, %v9017
        %v9039 = vsel %vm427, %v9017, %v9019
        %v9040 = vsel %vm427, %v9021, %v9023
        %v9041 = vsel %vm427, %v9023, %v9025
        %v9042 = vsel %vm427, %v9027, %v9029
        %v9043 = vsel %vm427, %v9029, %v9031
        %v9044 = vsel %vm427, %v9033, %v9035
        %v9045 = vsel %vm427, %v9035, %v9037
        %9058 = vrot.lane.b32.xlu0 %v8849, 108
        %v9059 = vpop.permute.xlu0 %9058
        %9060 = vrot.lane.b32.xlu0 %v8850, 108
        %v9061 = vpop.permute.xlu0 %9060
        %9062 = vrot.lane.b32.xlu0 %v8851, 108
        %v9063 = vpop.permute.xlu0 %9062
        %9064 = vrot.lane.b32.xlu0 %v8852, 108
        %v9065 = vpop.permute.xlu0 %9064
        %9066 = vrot.lane.b32.xlu0 %v8853, 108
        %v9067 = vpop.permute.xlu0 %9066
        %9068 = vrot.lane.b32.xlu0 %v8854, 108
        %v9069 = vpop.permute.xlu0 %9068
        %9070 = vrot.lane.b32.xlu0 %v8855, 108
        %v9071 = vpop.permute.xlu0 %9070
        %9072 = vrot.lane.b32.xlu0 %v8856, 108
        %v9073 = vpop.permute.xlu0 %9072
        %9074 = vrot.lane.b32.xlu0 %v8857, 108
        %v9075 = vpop.permute.xlu0 %9074
        %9076 = vrot.lane.b32.xlu0 %v8858, 108
        %v9077 = vpop.permute.xlu0 %9076
        %9078 = vrot.lane.b32.xlu0 %v8859, 108
        %v9079 = vpop.permute.xlu0 %9078
        %9080 = vrot.lane.b32.xlu0 %v8860, 108
        %v9081 = vpop.permute.xlu0 %9080
        %v9082 = vsel %vm439, %v9059, %v9061
        %v9083 = vsel %vm439, %v9061, %v9063
        %v9084 = vsel %vm439, %v9065, %v9067
        %v9085 = vsel %vm439, %v9067, %v9069
        %v9086 = vsel %vm439, %v9071, %v9073
        %v9087 = vsel %vm439, %v9073, %v9075
        %v9088 = vsel %vm439, %v9077, %v9079
        %v9089 = vsel %vm439, %v9079, %v9081
        %9102 = vrot.lane.b32.xlu0 %v8849, 92
        %v9103 = vpop.permute.xlu0 %9102
        %9104 = vrot.lane.b32.xlu0 %v8850, 92
        %v9105 = vpop.permute.xlu0 %9104
        %9106 = vrot.lane.b32.xlu0 %v8851, 92
        %v9107 = vpop.permute.xlu0 %9106
        %9108 = vrot.lane.b32.xlu0 %v8852, 92
        %v9109 = vpop.permute.xlu0 %9108
        %9110 = vrot.lane.b32.xlu0 %v8853, 92
        %v9111 = vpop.permute.xlu0 %9110
        %9112 = vrot.lane.b32.xlu0 %v8854, 92
        %v9113 = vpop.permute.xlu0 %9112
        %9114 = vrot.lane.b32.xlu0 %v8855, 92
        %v9115 = vpop.permute.xlu0 %9114
        %9116 = vrot.lane.b32.xlu0 %v8856, 92
        %v9117 = vpop.permute.xlu0 %9116
        %9118 = vrot.lane.b32.xlu0 %v8857, 92
        %v9119 = vpop.permute.xlu0 %9118
        %9120 = vrot.lane.b32.xlu0 %v8858, 92
        %v9121 = vpop.permute.xlu0 %9120
        %9122 = vrot.lane.b32.xlu0 %v8859, 92
        %v9123 = vpop.permute.xlu0 %9122
        %9124 = vrot.lane.b32.xlu0 %v8860, 92
        %v9125 = vpop.permute.xlu0 %9124
        %v9126 = vsel %vm451, %v9103, %v9105
        %v9127 = vsel %vm451, %v9105, %v9107
        %v9128 = vsel %vm451, %v9109, %v9111
        %v9129 = vsel %vm451, %v9111, %v9113
        %v9130 = vsel %vm451, %v9115, %v9117
        %v9131 = vsel %vm451, %v9117, %v9119
        %v9132 = vsel %vm451, %v9121, %v9123
        %v9133 = vsel %vm451, %v9123, %v9125
        %9146 = vrot.lane.b32.xlu0 %v8849, 91
        %v9147 = vpop.permute.xlu0 %9146
        %9148 = vrot.lane.b32.xlu0 %v8850, 91
        %v9149 = vpop.permute.xlu0 %9148
        %9150 = vrot.lane.b32.xlu0 %v8851, 91
        %v9151 = vpop.permute.xlu0 %9150
        %9152 = vrot.lane.b32.xlu0 %v8852, 91
        %v9153 = vpop.permute.xlu0 %9152
        %9154 = vrot.lane.b32.xlu0 %v8853, 91
        %v9155 = vpop.permute.xlu0 %9154
        %9156 = vrot.lane.b32.xlu0 %v8854, 91
        %v9157 = vpop.permute.xlu0 %9156
        %9158 = vrot.lane.b32.xlu0 %v8855, 91
        %v9159 = vpop.permute.xlu0 %9158
        %9160 = vrot.lane.b32.xlu0 %v8856, 91
        %v9161 = vpop.permute.xlu0 %9160
        %9162 = vrot.lane.b32.xlu0 %v8857, 91
        %v9163 = vpop.permute.xlu0 %9162
        %9164 = vrot.lane.b32.xlu0 %v8858, 91
        %v9165 = vpop.permute.xlu0 %9164
        %9166 = vrot.lane.b32.xlu0 %v8859, 91
        %v9167 = vpop.permute.xlu0 %9166
        %9168 = vrot.lane.b32.xlu0 %v8860, 91
        %v9169 = vpop.permute.xlu0 %9168
        %v9170 = vsel %vm463, %v9147, %v9149
        %v9171 = vsel %vm463, %v9149, %v9151
        %v9172 = vsel %vm463, %v9153, %v9155
        %v9173 = vsel %vm463, %v9155, %v9157
        %v9174 = vsel %vm463, %v9159, %v9161
        %v9175 = vsel %vm463, %v9161, %v9163
        %v9176 = vsel %vm463, %v9165, %v9167
        %v9177 = vsel %vm463, %v9167, %v9169
        %9190 = vrot.lane.b32.xlu0 %v8849, 90
        %v9191 = vpop.permute.xlu0 %9190
        %9192 = vrot.lane.b32.xlu0 %v8850, 90
        %v9193 = vpop.permute.xlu0 %9192
        %9194 = vrot.lane.b32.xlu0 %v8851, 90
        %v9195 = vpop.permute.xlu0 %9194
        %9196 = vrot.lane.b32.xlu0 %v8852, 90
        %v9197 = vpop.permute.xlu0 %9196
        %9198 = vrot.lane.b32.xlu0 %v8853, 90
        %v9199 = vpop.permute.xlu0 %9198
        %9200 = vrot.lane.b32.xlu0 %v8854, 90
        %v9201 = vpop.permute.xlu0 %9200
        %9202 = vrot.lane.b32.xlu0 %v8855, 90
        %v9203 = vpop.permute.xlu0 %9202
        %9204 = vrot.lane.b32.xlu0 %v8856, 90
        %v9205 = vpop.permute.xlu0 %9204
        %9206 = vrot.lane.b32.xlu0 %v8857, 90
        %v9207 = vpop.permute.xlu0 %9206
        %9208 = vrot.lane.b32.xlu0 %v8858, 90
        %v9209 = vpop.permute.xlu0 %9208
        %9210 = vrot.lane.b32.xlu0 %v8859, 90
        %v9211 = vpop.permute.xlu0 %9210
        %9212 = vrot.lane.b32.xlu0 %v8860, 90
        %v9213 = vpop.permute.xlu0 %9212
        %v9214 = vsel %vm475, %v9191, %v9193
        %v9215 = vsel %vm475, %v9193, %v9195
        %v9216 = vsel %vm475, %v9197, %v9199
        %v9217 = vsel %vm475, %v9199, %v9201
        %v9218 = vsel %vm475, %v9203, %v9205
        %v9219 = vsel %vm475, %v9205, %v9207
        %v9220 = vsel %vm475, %v9209, %v9211
        %v9221 = vsel %vm475, %v9211, %v9213
        %v9234 = vpack.c.bf16 %v8852, %v8849
        %v9235 = vpack.c.bf16 %v8853, %v8850
        %v9236 = vpack.c.bf16 %v8854, %v8851
        %v9237 = vpack.c.bf16 %v8858, %v8855
        %v9238 = vpack.c.bf16 %v8859, %v8856
        %v9239 = vpack.c.bf16 %v8860, %v8857
        %v9240 = vpack.c.bf16 %v8908, %v8906
        %v9241 = vpack.c.bf16 %v8909, %v8907
        %v9242 = vpack.c.bf16 %v8893, %v8887
        %v9243 = vpack.c.bf16 %v8912, %v8910
        %v9244 = vpack.c.bf16 %v8913, %v8911
        %v9245 = vpack.c.bf16 %v8905, %v8899
        %v9246 = vpack.c.bf16 %v8952, %v8950
        %v9247 = vpack.c.bf16 %v8953, %v8951
        %v9248 = vpack.c.bf16 %v8937, %v8931
        %v9249 = vpack.c.bf16 %v8956, %v8954
        %v9250 = vpack.c.bf16 %v8957, %v8955
        %v9251 = vpack.c.bf16 %v8949, %v8943
        %v9252 = vpack.c.bf16 %v8996, %v8994
        %v9253 = vpack.c.bf16 %v8997, %v8995
        %v9254 = vpack.c.bf16 %v8981, %v8975
        %v9255 = vpack.c.bf16 %v9000, %v8998
        %v9256 = vpack.c.bf16 %v9001, %v8999
        %v9257 = vpack.c.bf16 %v8993, %v8987
        %v9258 = vpack.c.bf16 %v9040, %v9038
        %v9259 = vpack.c.bf16 %v9041, %v9039
        %v9260 = vpack.c.bf16 %v9025, %v9019
        %v9261 = vpack.c.bf16 %v9044, %v9042
        %v9262 = vpack.c.bf16 %v9045, %v9043
        %v9263 = vpack.c.bf16 %v9037, %v9031
        %v9264 = vpack.c.bf16 %v9084, %v9082
        %v9265 = vpack.c.bf16 %v9085, %v9083
        %v9266 = vpack.c.bf16 %v9069, %v9063
        %v9267 = vpack.c.bf16 %v9088, %v9086
        %v9268 = vpack.c.bf16 %v9089, %v9087
        %v9269 = vpack.c.bf16 %v9081, %v9075
        %v9270 = vpack.c.bf16 %v9128, %v9126
        %v9271 = vpack.c.bf16 %v9129, %v9127
        %v9272 = vpack.c.bf16 %v9113, %v9107
        %v9273 = vpack.c.bf16 %v9132, %v9130
        %v9274 = vpack.c.bf16 %v9133, %v9131
        %v9275 = vpack.c.bf16 %v9125, %v9119
        %v9276 = vpack.c.bf16 %v9172, %v9170
        %v9277 = vpack.c.bf16 %v9173, %v9171
        %v9278 = vpack.c.bf16 %v9157, %v9151
        %v9279 = vpack.c.bf16 %v9176, %v9174
        %v9280 = vpack.c.bf16 %v9177, %v9175
        %v9281 = vpack.c.bf16 %v9169, %v9163
        %v9282 = vpack.c.bf16 %v9216, %v9214
        %v9283 = vpack.c.bf16 %v9217, %v9215
        %v9284 = vpack.c.bf16 %v9201, %v9195
        %v9285 = vpack.c.bf16 %v9220, %v9218
        %v9286 = vpack.c.bf16 %v9221, %v9219
        %v9287 = vpack.c.bf16 %v9213, %v9207
        %s9288 = scalar_lea.vmem %s6, 160
        %v9289 = vld [vmem:[%s9288] sm:$0xff]
        %v9290 = vld [vmem:[%s9288 + $0x8] sm:$0xff]
        %v9291 = vld [vmem:[%s9288 + $0x10] sm:$0xff]
        %v9292 = vld [vmem:[%s9288 + $0x18] sm:$0xff]
        %9294 = vset.pattern.permute.xlu0 0
        %9295 = vperm.xlu0 %9294, %v9289
        %v9296 = vpop.permute.xlu0 %9295
        %9299 = vset.pattern.permute.xlu0 0
        %9300 = vperm.xlu0 %9299, %v9290
        %v9301 = vpop.permute.xlu0 %9300
        %9304 = vset.pattern.permute.xlu0 0
        %9305 = vperm.xlu0 %9304, %v9291
        %v9306 = vpop.permute.xlu0 %9305
        %9309 = vset.pattern.permute.xlu0 0
        %9310 = vperm.xlu0 %9309, %v9292
        %v9311 = vpop.permute.xlu0 %9310
        %v9321 = vunpack.c.l.b16 %v8862
        %v9322 = vunpack.c.h.b16 %v8862
        %v9323 = vunpack.c.l.b16 %v8863
        %v9324 = vunpack.c.l.b16 %v8864
        %v9325 = vunpack.c.h.b16 %v8864
        %v9326 = vunpack.c.l.b16 %v8865
        %v9327 = vunpack.c.l.b16 %v8866
        %v9328 = vunpack.c.h.b16 %v8866
        %v9329 = vunpack.c.l.b16 %v8867
        %v9330 = vunpack.c.l.b16 %v8868
        %v9331 = vunpack.c.h.b16 %v8868
        %v9332 = vunpack.c.l.b16 %v8869
        %v9333 = vpack.c.b16 %v9324, %v9321
        %v9334 = vpack.c.b16 %v9325, %v9322
        %v9335 = vpack.c.b16 %v9326, %v9323
        %v9336 = vpack.c.b16 %v9330, %v9327
        %v9337 = vpack.c.b16 %v9331, %v9328
        %v9338 = vpack.c.b16 %v9332, %v9329
        %v9344 = vsel %vm1254, %v9335, 0
        %v9347 = vsel %vm1254, %v9338, 0
        %9349 = vmatprep.subr.bf16.mxu0 %v9235
        %9350 = vmatpush1.bf16.msra.mxu0 %v9234
        %9351 = vmatprep.subr.bf16.mxu0 %v9238
        %9352 = vmatpush1.bf16.msra.mxu0 %v9237
        %9353 = vmatprep.subr.bf16.mxu0 %v9241
        %9354 = vmatpush1.bf16.msra.mxu0 %v9240
        %9355 = vmatprep.subr.bf16.mxu0 %v9244
        %9356 = vmatpush1.bf16.msra.mxu0 %v9243
        %9357 = vmatprep.subr.bf16.mxu0 %v9247
        %9358 = vmatpush1.bf16.msra.mxu0 %v9246
        %9359 = vmatprep.subr.bf16.mxu0 %v9250
        %9360 = vmatpush1.bf16.msra.mxu0 %v9249
        %9361 = vmatprep.subr.bf16.mxu0 %v9253
        %9362 = vmatpush1.bf16.msra.mxu0 %v9252
        %9363 = vmatprep.subr.bf16.mxu0 %v9256
        %9364 = vmatpush1.bf16.msra.mxu0 %v9255
        %9365 = vmatprep.subr.bf16.mxu0 %v9259
        %9366 = vmatpush1.bf16.msra.mxu0 %v9258
        %9367 = vmatprep.subr.bf16.mxu0 %v9262
        %9368 = vmatpush1.bf16.msra.mxu0 %v9261
        %9369 = vmatprep.subr.bf16.mxu0 %v9265
        %9370 = vmatpush1.bf16.msra.mxu0 %v9264
        %9371 = vmatprep.subr.bf16.mxu0 %v9268
        %9372 = vmatpush1.bf16.msra.mxu0 %v9267
        %9373 = vmatprep.subr.bf16.mxu0 %v9271
        %9374 = vmatpush1.bf16.msra.mxu0 %v9270
        %9375 = vmatprep.subr.bf16.mxu0 %v9274
        %9376 = vmatpush1.bf16.msra.mxu0 %v9273
        %9377 = vmatprep.subr.bf16.mxu0 %v9277
        %9378 = vmatpush1.bf16.msra.mxu0 %v9276
        %9379 = vmatprep.subr.bf16.mxu0 %v9280
        %9380 = vmatpush1.bf16.msra.mxu0 %v9279
        %9381 = vmatprep.mubr.bf16.mxu0 %v9334
        %9382 = vmatmul.mubr.bf16.gmra.mrb[0].mxu0 %v9333
        %v9383 = vpop.f32.mrb[0].mxu0
        %v9384 = vadd.f32 %v9296, %v9383
        %v9385 = vpop.f32.mrb[0].mxu0
        %v9386 = vadd.f32 %v9296, %v9385
        %v9387 = vpop.f32.mrb[0].mxu0
        %v9388 = vadd.f32 %v9301, %v9387
        %v9389 = vpop.f32.mrb[0].mxu0
        %v9390 = vadd.f32 %v9301, %v9389
        %9391 = vmatprep.mubr.bf16.mxu0 %v9337
        %9392 = vmatmul.mubr.bf16.gmra.mrb[0].mxu0 %v9336
        %v9393 = vpop.f32.mrb[0].mxu0
        %v9394 = vadd.f32 %v9306, %v9393
        %v9395 = vpop.f32.mrb[0].mxu0
        %v9396 = vadd.f32 %v9306, %v9395
        %v9397 = vpop.f32.mrb[0].mxu0
        %v9398 = vadd.f32 %v9311, %v9397
        %v9399 = vpop.f32.mrb[0].mxu0
        %v9400 = vadd.f32 %v9311, %v9399
        %9401 = vdwg.mxu0
        %9402 = vmatprep.subr.bf16.mxu0 %v9283
        %9403 = vmatpush1.bf16.msra.mxu0 %v9282
        %9404 = vmatprep.subr.bf16.mxu0 %v9286
        %9405 = vmatpush1.bf16.msra.mxu0 %v9285
        %9406 = vmatprep.subr.bf16.mxu0 0
        %9407 = vmatpush1.bf16.msra.mxu0 0
        %9408 = vmatprep.subr.bf16.mxu0 0
        %9409 = vmatpush1.bf16.msra.mxu0 0
        %9410 = vmatprep.subr.bf16.mxu0 0
        %9411 = vmatpush1.bf16.msra.mxu0 0
        %9412 = vmatprep.subr.bf16.mxu0 0
        %9413 = vmatpush1.bf16.msra.mxu0 0
        %9414 = vmatprep.subr.bf16.mxu0 0
        %9415 = vmatpush1.bf16.msra.mxu0 0
        %9416 = vmatprep.subr.bf16.mxu0 0
        %9417 = vmatpush1.bf16.msra.mxu0 0
        %9418 = vmatprep.subr.bf16.mxu0 0
        %9419 = vmatpush1.bf16.msra.mxu0 0
        %9420 = vmatprep.subr.bf16.mxu0 0
        %9421 = vmatpush1.bf16.msra.mxu0 0
        %9422 = vmatprep.subr.bf16.mxu0 0
        %9423 = vmatpush1.bf16.msra.mxu0 0
        %9424 = vmatprep.subr.bf16.mxu0 0
        %9425 = vmatpush1.bf16.msra.mxu0 0
        %9426 = vmatprep.subr.bf16.mxu0 0
        %9427 = vmatpush1.bf16.msra.mxu0 0
        %9428 = vmatprep.subr.bf16.mxu0 0
        %9429 = vmatpush1.bf16.msra.mxu0 0
        %9430 = vmatprep.subr.bf16.mxu0 0
        %9431 = vmatpush1.bf16.msra.mxu0 0
        %9432 = vmatprep.subr.bf16.mxu0 0
        %9433 = vmatpush1.bf16.msra.mxu0 0
        %9434 = vmatprep.mubr.bf16.mxu0 0
        %9435 = vmatmul.mubr.bf16.gmra.mrb[0].mxu0 %v9344
        %v9436 = vpop.f32.mrb[0].mxu0
        %v9437 = vadd.f32 %v9384, %v9436
        %v9438 = vpop.f32.mrb[0].mxu0
        %v9439 = vadd.f32 %v9386, %v9438
        %v9440 = vpop.f32.mrb[0].mxu0
        %v9441 = vadd.f32 %v9388, %v9440
        %v9442 = vpop.f32.mrb[0].mxu0
        %v9443 = vadd.f32 %v9390, %v9442
        %9444 = vmatprep.mubr.bf16.mxu0 0
        %9445 = vmatmul.mubr.bf16.gmra.mrb[0].mxu0 %v9347
        %v9446 = vpop.f32.mrb[0].mxu0
        %v9447 = vadd.f32 %v9394, %v9446
        %v9448 = vpop.f32.mrb[0].mxu0
        %v9449 = vadd.f32 %v9396, %v9448
        %v9450 = vpop.f32.mrb[0].mxu0
        %v9451 = vadd.f32 %v9398, %v9450
        %v9452 = vpop.f32.mrb[0].mxu0
        %v9453 = vadd.f32 %v9400, %v9452
        %9454 = vdwg.mxu0
        %9455 = vmatprep.subr.bf16.mxu0 0
        %9456 = vmatpush1.bf16.msra.mxu0 %v9236
        %9457 = vmatprep.subr.bf16.mxu0 0
        %9458 = vmatpush1.bf16.msra.mxu0 %v9239
        %9459 = vmatprep.subr.bf16.mxu0 0
        %9460 = vmatpush1.bf16.msra.mxu0 %v9242
        %9461 = vmatprep.subr.bf16.mxu0 0
        %9462 = vmatpush1.bf16.msra.mxu0 %v9245
        %9463 = vmatprep.subr.bf16.mxu0 0
        %9464 = vmatpush1.bf16.msra.mxu0 %v9248
        %9465 = vmatprep.subr.bf16.mxu0 0
        %9466 = vmatpush1.bf16.msra.mxu0 %v9251
        %9467 = vmatprep.subr.bf16.mxu0 0
        %9468 = vmatpush1.bf16.msra.mxu0 %v9254
        %9469 = vmatprep.subr.bf16.mxu0 0
        %9470 = vmatpush1.bf16.msra.mxu0 %v9257
        %9471 = vmatprep.subr.bf16.mxu0 0
        %9472 = vmatpush1.bf16.msra.mxu0 %v9260
        %9473 = vmatprep.subr.bf16.mxu0 0
        %9474 = vmatpush1.bf16.msra.mxu0 %v9263
        %9475 = vmatprep.subr.bf16.mxu0 0
        %9476 = vmatpush1.bf16.msra.mxu0 %v9266
        %9477 = vmatprep.subr.bf16.mxu0 0
        %9478 = vmatpush1.bf16.msra.mxu0 %v9269
        %9479 = vmatprep.subr.bf16.mxu0 0
        %9480 = vmatpush1.bf16.msra.mxu0 %v9272
        %9481 = vmatprep.subr.bf16.mxu0 0
        %9482 = vmatpush1.bf16.msra.mxu0 %v9275
        %9483 = vmatprep.subr.bf16.mxu0 0
        %9484 = vmatpush1.bf16.msra.mxu0 %v9278
        %9485 = vmatprep.subr.bf16.mxu0 0
        %9486 = vmatpush1.bf16.msra.mxu0 %v9281
        %9487 = vmatprep.mubr.bf16.mxu0 %v9334
        %9488 = vmatmul.mubr.bf16.gmra.mrb[0].mxu0 %v9333
        %v9489 = vpop.f32.mrb[0].mxu0
        %v9490 = vadd.f32 %v9296, %v9489
        %v9491 = vpop.f32.mrb[0].mxu0
        %v9492 = vpop.f32.mrb[0].mxu0
        %v9493 = vadd.f32 %v9301, %v9492
        %v9494 = vpop.f32.mrb[0].mxu0
        %9495 = vmatprep.mubr.bf16.mxu0 %v9337
        %9496 = vmatmul.mubr.bf16.gmra.mrb[0].mxu0 %v9336
        %v9497 = vpop.f32.mrb[0].mxu0
        %v9498 = vadd.f32 %v9306, %v9497
        %v9499 = vpop.f32.mrb[0].mxu0
        %v9500 = vpop.f32.mrb[0].mxu0
        %v9501 = vadd.f32 %v9311, %v9500
        %v9502 = vpop.f32.mrb[0].mxu0
        %9503 = vdwg.mxu0
        %9504 = vmatprep.subr.bf16.mxu0 0
        %9505 = vmatpush1.bf16.msra.mxu0 %v9284
        %9506 = vmatprep.subr.bf16.mxu0 0
        %9507 = vmatpush1.bf16.msra.mxu0 %v9287
        %9508 = vmatprep.subr.bf16.mxu0 0
        %9509 = vmatpush1.bf16.msra.mxu0 0
        %9510 = vmatprep.subr.bf16.mxu0 0
        %9511 = vmatpush1.bf16.msra.mxu0 0
        %9512 = vmatprep.subr.bf16.mxu0 0
        %9513 = vmatpush1.bf16.msra.mxu0 0
        %9514 = vmatprep.subr.bf16.mxu0 0
        %9515 = vmatpush1.bf16.msra.mxu0 0
        %9516 = vmatprep.subr.bf16.mxu0 0
        %9517 = vmatpush1.bf16.msra.mxu0 0
        %9518 = vmatprep.subr.bf16.mxu0 0
        %9519 = vmatpush1.bf16.msra.mxu0 0
        %9520 = vmatprep.subr.bf16.mxu0 0
        %9521 = vmatpush1.bf16.msra.mxu0 0
        %9522 = vmatprep.subr.bf16.mxu0 0
        %9523 = vmatpush1.bf16.msra.mxu0 0
        %9524 = vmatprep.subr.bf16.mxu0 0
        %9525 = vmatpush1.bf16.msra.mxu0 0
        %9526 = vmatprep.subr.bf16.mxu0 0
        %9527 = vmatpush1.bf16.msra.mxu0 0
        %9528 = vmatprep.subr.bf16.mxu0 0
        %9529 = vmatpush1.bf16.msra.mxu0 0
        %9530 = vmatprep.subr.bf16.mxu0 0
        %9531 = vmatpush1.bf16.msra.mxu0 0
        %9532 = vmatprep.subr.bf16.mxu0 0
        %9533 = vmatpush1.bf16.msra.mxu0 0
        %9534 = vmatprep.subr.bf16.mxu0 0
        %9535 = vmatpush1.bf16.msra.mxu0 0
        %9536 = vmatprep.mubr.bf16.mxu0 0
        %9537 = vmatmul.mubr.bf16.gmra.mrb[0].mxu0 %v9344
        %v9538 = vpop.f32.mrb[0].mxu0
        %v9539 = vadd.f32 %v9490, %v9538
        %v9540 = vpop.f32.mrb[0].mxu0
        %v9541 = vpop.f32.mrb[0].mxu0
        %v9542 = vadd.f32 %v9493, %v9541
        %v9543 = vpop.f32.mrb[0].mxu0
        %9544 = vmatprep.mubr.bf16.mxu0 0
        %9545 = vmatmul.mubr.bf16.gmra.mrb[0].mxu0 %v9347
        %v9546 = vpop.f32.mrb[0].mxu0
        %v9547 = vadd.f32 %v9498, %v9546
        %v9548 = vpop.f32.mrb[0].mxu0
        %v9549 = vpop.f32.mrb[0].mxu0
        %v9550 = vadd.f32 %v9501, %v9549
        %v9551 = vpop.f32.mrb[0].mxu0
        %9552 = vdwg.mxu0
        %s9553 = sld [smem:[#allocation3 + $0x6]]
        %vm9554 = vcmp.ge.f32.partialorder %v9437, 0.0
        %vm9555 = vcmp.ge.f32.partialorder %v9439, 0.0
        %vm9556 = vcmp.ge.f32.partialorder %v9539, 0.0
        %vm9557 = vcmp.ge.f32.partialorder %v9441, 0.0
        %vm9558 = vcmp.ge.f32.partialorder %v9443, 0.0
        %vm9559 = vcmp.ge.f32.partialorder %v9542, 0.0
        %vm9560 = vcmp.ge.f32.partialorder %v9447, 0.0
        %vm9561 = vcmp.ge.f32.partialorder %v9449, 0.0
        %vm9562 = vcmp.ge.f32.partialorder %v9547, 0.0
        %vm9563 = vcmp.ge.f32.partialorder %v9451, 0.0
        %vm9564 = vcmp.ge.f32.partialorder %v9453, 0.0
        %vm9565 = vcmp.ge.f32.partialorder %v9550, 0.0
        %v9566 = vstv %s9553
        %v9567 = vmul.f32 %v9566, %v9437
        %v9568 = vmul.f32 %v9566, %v9439
        %v9569 = vmul.f32 %v9566, %v9539
        %v9570 = vmul.f32 %v9566, %v9441
        %v9571 = vmul.f32 %v9566, %v9443
        %v9572 = vmul.f32 %v9566, %v9542
        %v9573 = vmul.f32 %v9566, %v9447
        %v9574 = vmul.f32 %v9566, %v9449
        %v9575 = vmul.f32 %v9566, %v9547
        %v9576 = vmul.f32 %v9566, %v9451
        %v9577 = vmul.f32 %v9566, %v9453
        %v9578 = vmul.f32 %v9566, %v9550
        %v9579 = vsel %vm9554, %v9437, %v9567
        %v9580 = vsel %vm9555, %v9439, %v9568
        %v9581 = vsel %vm9556, %v9539, %v9569
        %v9582 = vsel %vm9557, %v9441, %v9570
        %v9583 = vsel %vm9558, %v9443, %v9571
        %v9584 = vsel %vm9559, %v9542, %v9572
        %v9585 = vsel %vm9560, %v9447, %v9573
        %v9586 = vsel %vm9561, %v9449, %v9574
        %v9587 = vsel %vm9562, %v9547, %v9575
        %v9588 = vsel %vm9563, %v9451, %v9576
        %v9589 = vsel %vm9564, %v9453, %v9577
        %v9590 = vsel %vm9565, %v9550, %v9578
        %v9591 = vmul.f32 %v9579, %v667
        %v9592 = vmul.f32 %v9580, %v671
        %v9593 = vmul.f32 %v9581, %v675
        %v9594 = vmul.f32 %v9582, %v667
        %v9595 = vmul.f32 %v9583, %v671
        %v9596 = vmul.f32 %v9584, %v675
        %v9597 = vmul.f32 %v9585, %v667
        %v9598 = vmul.f32 %v9586, %v671
        %v9599 = vmul.f32 %v9587, %v675
        %v9600 = vmul.f32 %v9588, %v667
        %v9601 = vmul.f32 %v9589, %v671
        %v9602 = vmul.f32 %v9590, %v675
        %9615 = vrot.lane.b32.xlu0 %v9591, 19
        %v9616 = vpop.permute.xlu0 %9615
        %9617 = vrot.lane.b32.xlu0 %v9592, 19
        %v9618 = vpop.permute.xlu0 %9617
        %9619 = vrot.lane.b32.xlu0 %v9593, 19
        %v9620 = vpop.permute.xlu0 %9619
        %9621 = vrot.lane.b32.xlu0 %v9594, 19
        %v9622 = vpop.permute.xlu0 %9621
        %9623 = vrot.lane.b32.xlu0 %v9595, 19
        %v9624 = vpop.permute.xlu0 %9623
        %9625 = vrot.lane.b32.xlu0 %v9596, 19
        %v9626 = vpop.permute.xlu0 %9625
        %9627 = vrot.lane.b32.xlu0 %v9597, 19
        %v9628 = vpop.permute.xlu0 %9627
        %9629 = vrot.lane.b32.xlu0 %v9598, 19
        %v9630 = vpop.permute.xlu0 %9629
        %9631 = vrot.lane.b32.xlu0 %v9599, 19
        %v9632 = vpop.permute.xlu0 %9631
        %9633 = vrot.lane.b32.xlu0 %v9600, 19
        %v9634 = vpop.permute.xlu0 %9633
        %9635 = vrot.lane.b32.xlu0 %v9601, 19
        %v9636 = vpop.permute.xlu0 %9635
        %9637 = vrot.lane.b32.xlu0 %v9602, 19
        %v9638 = vpop.permute.xlu0 %9637
        %v9639 = vsel %vm727, %v9616, %v9618
        %v9640 = vsel %vm727, %v9618, %v9620
        %v9641 = vsel %vm727, %v9622, %v9624
        %v9642 = vsel %vm727, %v9624, %v9626
        %v9643 = vsel %vm727, %v9628, %v9630
        %v9644 = vsel %vm727, %v9630, %v9632
        %v9645 = vsel %vm727, %v9634, %v9636
        %v9646 = vsel %vm727, %v9636, %v9638
        %9659 = vst.msk [vmem:[#allocation2] sm:$0xff] %vm748, %v9616
        %9660 = vst [vmem:[#allocation2 + $0x8] sm:$0xff] %v9639
        %9661 = vst.msk [vmem:[#allocation2 + $0x10] sm:$0xff] %vm751, %v9640
        %9662 = vst.msk [vmem:[#allocation2 + $0x18] sm:$0xff] %vm748, %v9622
        %9663 = vst [vmem:[#allocation2 + $0x20] sm:$0xff] %v9641
        %9664 = vst.msk [vmem:[#allocation2 + $0x28] sm:$0xff] %vm751, %v9642
        %9665 = vst.msk [vmem:[#allocation2 + $0x30] sm:$0xff] %vm748, %v9628
        %9666 = vst [vmem:[#allocation2 + $0x38] sm:$0xff] %v9643
        %9667 = vst.msk [vmem:[#allocation2 + $0x40] sm:$0xff] %vm751, %v9644
        %9668 = vst.msk [vmem:[#allocation2 + $0x48] sm:$0xff] %vm748, %v9634
        %9669 = vst [vmem:[#allocation2 + $0x50] sm:$0xff] %v9645
        %9670 = vst.msk [vmem:[#allocation2 + $0x58] sm:$0xff] %vm751, %v9646
        %v9671 = vld [vmem:[#allocation2] sm:$0xff]
        %v9672 = vld [vmem:[#allocation2 + $0x8] sm:$0xff]
        %v9673 = vld [vmem:[#allocation2 + $0x10] sm:$0xff]
        %v9674 = vld [vmem:[#allocation2 + $0x18] sm:$0xff]
        %v9675 = vld [vmem:[#allocation2 + $0x20] sm:$0xff]
        %v9676 = vld [vmem:[#allocation2 + $0x28] sm:$0xff]
        %v9677 = vld [vmem:[#allocation2 + $0x30] sm:$0xff]
        %v9678 = vld [vmem:[#allocation2 + $0x38] sm:$0xff]
        %v9679 = vld [vmem:[#allocation2 + $0x40] sm:$0xff]
        %v9680 = vld [vmem:[#allocation2 + $0x48] sm:$0xff]
        %v9681 = vld [vmem:[#allocation2 + $0x50] sm:$0xff]
        %v9682 = vld [vmem:[#allocation2 + $0x58] sm:$0xff]
        %s9683 = scalar_lea.vmem %s7, 240
        %v9684 = vld [vmem:[%s9683] sm:$0xff]
        %v9685 = vld [vmem:[%s9683 + $0x8] sm:$0xf]
        %v9686 = vld [vmem:[%s9683 + $0xc] sm:$0xff]
        %v9687 = vld [vmem:[%s9683 + $0x14] sm:$0xf]
        %v9688 = vld [vmem:[%s9683 + $0x18] sm:$0xff]
        %v9689 = vld [vmem:[%s9683 + $0x20] sm:$0xf]
        %v9690 = vld [vmem:[%s9683 + $0x24] sm:$0xff]
        %v9691 = vld [vmem:[%s9683 + $0x2c] sm:$0xf]
        %9704 = vrot.lane.b32.xlu0 %v9671, 127
        %v9705 = vpop.permute.xlu0 %9704
        %9706 = vrot.lane.b32.xlu0 %v9672, 127
        %v9707 = vpop.permute.xlu0 %9706
        %9708 = vrot.lane.b32.xlu0 %v9673, 127
        %v9709 = vpop.permute.xlu0 %9708
        %9710 = vrot.lane.b32.xlu0 %v9674, 127
        %v9711 = vpop.permute.xlu0 %9710
        %9712 = vrot.lane.b32.xlu0 %v9675, 127
        %v9713 = vpop.permute.xlu0 %9712
        %9714 = vrot.lane.b32.xlu0 %v9676, 127
        %v9715 = vpop.permute.xlu0 %9714
        %9716 = vrot.lane.b32.xlu0 %v9677, 127
        %v9717 = vpop.permute.xlu0 %9716
        %9718 = vrot.lane.b32.xlu0 %v9678, 127
        %v9719 = vpop.permute.xlu0 %9718
        %9720 = vrot.lane.b32.xlu0 %v9679, 127
        %v9721 = vpop.permute.xlu0 %9720
        %9722 = vrot.lane.b32.xlu0 %v9680, 127
        %v9723 = vpop.permute.xlu0 %9722
        %9724 = vrot.lane.b32.xlu0 %v9681, 127
        %v9725 = vpop.permute.xlu0 %9724
        %9726 = vrot.lane.b32.xlu0 %v9682, 127
        %v9727 = vpop.permute.xlu0 %9726
        %v9728 = vsel %vm391, %v9705, %v9707
        %v9729 = vsel %vm391, %v9707, %v9709
        %v9730 = vsel %vm391, %v9711, %v9713
        %v9731 = vsel %vm391, %v9713, %v9715
        %v9732 = vsel %vm391, %v9717, %v9719
        %v9733 = vsel %vm391, %v9719, %v9721
        %v9734 = vsel %vm391, %v9723, %v9725
        %v9735 = vsel %vm391, %v9725, %v9727
        %9748 = vrot.lane.b32.xlu0 %v9671, 126
        %v9749 = vpop.permute.xlu0 %9748
        %9750 = vrot.lane.b32.xlu0 %v9672, 126
        %v9751 = vpop.permute.xlu0 %9750
        %9752 = vrot.lane.b32.xlu0 %v9673, 126
        %v9753 = vpop.permute.xlu0 %9752
        %9754 = vrot.lane.b32.xlu0 %v9674, 126
        %v9755 = vpop.permute.xlu0 %9754
        %9756 = vrot.lane.b32.xlu0 %v9675, 126
        %v9757 = vpop.permute.xlu0 %9756
        %9758 = vrot.lane.b32.xlu0 %v9676, 126
        %v9759 = vpop.permute.xlu0 %9758
        %9760 = vrot.lane.b32.xlu0 %v9677, 126
        %v9761 = vpop.permute.xlu0 %9760
        %9762 = vrot.lane.b32.xlu0 %v9678, 126
        %v9763 = vpop.permute.xlu0 %9762
        %9764 = vrot.lane.b32.xlu0 %v9679, 126
        %v9765 = vpop.permute.xlu0 %9764
        %9766 = vrot.lane.b32.xlu0 %v9680, 126
        %v9767 = vpop.permute.xlu0 %9766
        %9768 = vrot.lane.b32.xlu0 %v9681, 126
        %v9769 = vpop.permute.xlu0 %9768
        %9770 = vrot.lane.b32.xlu0 %v9682, 126
        %v9771 = vpop.permute.xlu0 %9770
        %v9772 = vsel %vm403, %v9749, %v9751
        %v9773 = vsel %vm403, %v9751, %v9753
        %v9774 = vsel %vm403, %v9755, %v9757
        %v9775 = vsel %vm403, %v9757, %v9759
        %v9776 = vsel %vm403, %v9761, %v9763
        %v9777 = vsel %vm403, %v9763, %v9765
        %v9778 = vsel %vm403, %v9767, %v9769
        %v9779 = vsel %vm403, %v9769, %v9771
        %9792 = vrot.lane.b32.xlu0 %v9671, 110
        %v9793 = vpop.permute.xlu0 %9792
        %9794 = vrot.lane.b32.xlu0 %v9672, 110
        %v9795 = vpop.permute.xlu0 %9794
        %9796 = vrot.lane.b32.xlu0 %v9673, 110
        %v9797 = vpop.permute.xlu0 %9796
        %9798 = vrot.lane.b32.xlu0 %v9674, 110
        %v9799 = vpop.permute.xlu0 %9798
        %9800 = vrot.lane.b32.xlu0 %v9675, 110
        %v9801 = vpop.permute.xlu0 %9800
        %9802 = vrot.lane.b32.xlu0 %v9676, 110
        %v9803 = vpop.permute.xlu0 %9802
        %9804 = vrot.lane.b32.xlu0 %v9677, 110
        %v9805 = vpop.permute.xlu0 %9804
        %9806 = vrot.lane.b32.xlu0 %v9678, 110
        %v9807 = vpop.permute.xlu0 %9806
        %9808 = vrot.lane.b32.xlu0 %v9679, 110
        %v9809 = vpop.permute.xlu0 %9808
        %9810 = vrot.lane.b32.xlu0 %v9680, 110
        %v9811 = vpop.permute.xlu0 %9810
        %9812 = vrot.lane.b32.xlu0 %v9681, 110
        %v9813 = vpop.permute.xlu0 %9812
        %9814 = vrot.lane.b32.xlu0 %v9682, 110
        %v9815 = vpop.permute.xlu0 %9814
        %v9816 = vsel %vm415, %v9793, %v9795
        %v9817 = vsel %vm415, %v9795, %v9797
        %v9818 = vsel %vm415, %v9799, %v9801
        %v9819 = vsel %vm415, %v9801, %v9803
        %v9820 = vsel %vm415, %v9805, %v9807
        %v9821 = vsel %vm415, %v9807, %v9809
        %v9822 = vsel %vm415, %v9811, %v9813
        %v9823 = vsel %vm415, %v9813, %v9815
        %9836 = vrot.lane.b32.xlu0 %v9671, 109
        %v9837 = vpop.permute.xlu0 %9836
        %9838 = vrot.lane.b32.xlu0 %v9672, 109
        %v9839 = vpop.permute.xlu0 %9838
        %9840 = vrot.lane.b32.xlu0 %v9673, 109
        %v9841 = vpop.permute.xlu0 %9840
        %9842 = vrot.lane.b32.xlu0 %v9674, 109
        %v9843 = vpop.permute.xlu0 %9842
        %9844 = vrot.lane.b32.xlu0 %v9675, 109
        %v9845 = vpop.permute.xlu0 %9844
        %9846 = vrot.lane.b32.xlu0 %v9676, 109
        %v9847 = vpop.permute.xlu0 %9846
        %9848 = vrot.lane.b32.xlu0 %v9677, 109
        %v9849 = vpop.permute.xlu0 %9848
        %9850 = vrot.lane.b32.xlu0 %v9678, 109
        %v9851 = vpop.permute.xlu0 %9850
        %9852 = vrot.lane.b32.xlu0 %v9679, 109
        %v9853 = vpop.permute.xlu0 %9852
        %9854 = vrot.lane.b32.xlu0 %v9680, 109
        %v9855 = vpop.permute.xlu0 %9854
        %9856 = vrot.lane.b32.xlu0 %v9681, 109
        %v9857 = vpop.permute.xlu0 %9856
        %9858 = vrot.lane.b32.xlu0 %v9682, 109
        %v9859 = vpop.permute.xlu0 %9858
        %v9860 = vsel %vm427, %v9837, %v9839
        %v9861 = vsel %vm427, %v9839, %v9841
        %v9862 = vsel %vm427, %v9843, %v9845
        %v9863 = vsel %vm427, %v9845, %v9847
        %v9864 = vsel %vm427, %v9849, %v9851
        %v9865 = vsel %vm427, %v9851, %v9853
        %v9866 = vsel %vm427, %v9855, %v9857
        %v9867 = vsel %vm427, %v9857, %v9859
        %9880 = vrot.lane.b32.xlu0 %v9671, 108
        %v9881 = vpop.permute.xlu0 %9880
        %9882 = vrot.lane.b32.xlu0 %v9672, 108
        %v9883 = vpop.permute.xlu0 %9882
        %9884 = vrot.lane.b32.xlu0 %v9673, 108
        %v9885 = vpop.permute.xlu0 %9884
        %9886 = vrot.lane.b32.xlu0 %v9674, 108
        %v9887 = vpop.permute.xlu0 %9886
        %9888 = vrot.lane.b32.xlu0 %v9675, 108
        %v9889 = vpop.permute.xlu0 %9888
        %9890 = vrot.lane.b32.xlu0 %v9676, 108
        %v9891 = vpop.permute.xlu0 %9890
        %9892 = vrot.lane.b32.xlu0 %v9677, 108
        %v9893 = vpop.permute.xlu0 %9892
        %9894 = vrot.lane.b32.xlu0 %v9678, 108
        %v9895 = vpop.permute.xlu0 %9894
        %9896 = vrot.lane.b32.xlu0 %v9679, 108
        %v9897 = vpop.permute.xlu0 %9896
        %9898 = vrot.lane.b32.xlu0 %v9680, 108
        %v9899 = vpop.permute.xlu0 %9898
        %9900 = vrot.lane.b32.xlu0 %v9681, 108
        %v9901 = vpop.permute.xlu0 %9900
        %9902 = vrot.lane.b32.xlu0 %v9682, 108
        %v9903 = vpop.permute.xlu0 %9902
        %v9904 = vsel %vm439, %v9881, %v9883
        %v9905 = vsel %vm439, %v9883, %v9885
        %v9906 = vsel %vm439, %v9887, %v9889
        %v9907 = vsel %vm439, %v9889, %v9891
        %v9908 = vsel %vm439, %v9893, %v9895
        %v9909 = vsel %vm439, %v9895, %v9897
        %v9910 = vsel %vm439, %v9899, %v9901
        %v9911 = vsel %vm439, %v9901, %v9903
        %9924 = vrot.lane.b32.xlu0 %v9671, 92
        %v9925 = vpop.permute.xlu0 %9924
        %9926 = vrot.lane.b32.xlu0 %v9672, 92
        %v9927 = vpop.permute.xlu0 %9926
        %9928 = vrot.lane.b32.xlu0 %v9673, 92
        %v9929 = vpop.permute.xlu0 %9928
        %9930 = vrot.lane.b32.xlu0 %v9674, 92
        %v9931 = vpop.permute.xlu0 %9930
        %9932 = vrot.lane.b32.xlu0 %v9675, 92
        %v9933 = vpop.permute.xlu0 %9932
        %9934 = vrot.lane.b32.xlu0 %v9676, 92
        %v9935 = vpop.permute.xlu0 %9934
        %9936 = vrot.lane.b32.xlu0 %v9677, 92
        %v9937 = vpop.permute.xlu0 %9936
        %9938 = vrot.lane.b32.xlu0 %v9678, 92
        %v9939 = vpop.permute.xlu0 %9938
        %9940 = vrot.lane.b32.xlu0 %v9679, 92
        %v9941 = vpop.permute.xlu0 %9940
        %9942 = vrot.lane.b32.xlu0 %v9680, 92
        %v9943 = vpop.permute.xlu0 %9942
        %9944 = vrot.lane.b32.xlu0 %v9681, 92
        %v9945 = vpop.permute.xlu0 %9944
        %9946 = vrot.lane.b32.xlu0 %v9682, 92
        %v9947 = vpop.permute.xlu0 %9946
        %v9948 = vsel %vm451, %v9925, %v9927
        %v9949 = vsel %vm451, %v9927, %v9929
        %v9950 = vsel %vm451, %v9931, %v9933
        %v9951 = vsel %vm451, %v9933, %v9935
        %v9952 = vsel %vm451, %v9937, %v9939
        %v9953 = vsel %vm451, %v9939, %v9941
        %v9954 = vsel %vm451, %v9943, %v9945
        %v9955 = vsel %vm451, %v9945, %v9947
        %9968 = vrot.lane.b32.xlu0 %v9671, 91
        %v9969 = vpop.permute.xlu0 %9968
        %9970 = vrot.lane.b32.xlu0 %v9672, 91
        %v9971 = vpop.permute.xlu0 %9970
        %9972 = vrot.lane.b32.xlu0 %v9673, 91
        %v9973 = vpop.permute.xlu0 %9972
        %9974 = vrot.lane.b32.xlu0 %v9674, 91
        %v9975 = vpop.permute.xlu0 %9974
        %9976 = vrot.lane.b32.xlu0 %v9675, 91
        %v9977 = vpop.permute.xlu0 %9976
        %9978 = vrot.lane.b32.xlu0 %v9676, 91
        %v9979 = vpop.permute.xlu0 %9978
        %9980 = vrot.lane.b32.xlu0 %v9677, 91
        %v9981 = vpop.permute.xlu0 %9980
        %9982 = vrot.lane.b32.xlu0 %v9678, 91
        %v9983 = vpop.permute.xlu0 %9982
        %9984 = vrot.lane.b32.xlu0 %v9679, 91
        %v9985 = vpop.permute.xlu0 %9984
        %9986 = vrot.lane.b32.xlu0 %v9680, 91
        %v9987 = vpop.permute.xlu0 %9986
        %9988 = vrot.lane.b32.xlu0 %v9681, 91
        %v9989 = vpop.permute.xlu0 %9988
        %9990 = vrot.lane.b32.xlu0 %v9682, 91
        %v9991 = vpop.permute.xlu0 %9990
        %v9992 = vsel %vm463, %v9969, %v9971
        %v9993 = vsel %vm463, %v9971, %v9973
        %v9994 = vsel %vm463, %v9975, %v9977
        %v9995 = vsel %vm463, %v9977, %v9979
        %v9996 = vsel %vm463, %v9981, %v9983
        %v9997 = vsel %vm463, %v9983, %v9985
        %v9998 = vsel %vm463, %v9987, %v9989
        %v9999 = vsel %vm463, %v9989, %v9991
        %10012 = vrot.lane.b32.xlu0 %v9671, 90
        %v10013 = vpop.permute.xlu0 %10012
        %10014 = vrot.lane.b32.xlu0 %v9672, 90
        %v10015 = vpop.permute.xlu0 %10014
        %10016 = vrot.lane.b32.xlu0 %v9673, 90
        %v10017 = vpop.permute.xlu0 %10016
        %10018 = vrot.lane.b32.xlu0 %v9674, 90
        %v10019 = vpop.permute.xlu0 %10018
        %10020 = vrot.lane.b32.xlu0 %v9675, 90
        %v10021 = vpop.permute.xlu0 %10020
        %10022 = vrot.lane.b32.xlu0 %v9676, 90
        %v10023 = vpop.permute.xlu0 %10022
        %10024 = vrot.lane.b32.xlu0 %v9677, 90
        %v10025 = vpop.permute.xlu0 %10024
        %10026 = vrot.lane.b32.xlu0 %v9678, 90
        %v10027 = vpop.permute.xlu0 %10026
        %10028 = vrot.lane.b32.xlu0 %v9679, 90
        %v10029 = vpop.permute.xlu0 %10028
        %10030 = vrot.lane.b32.xlu0 %v9680, 90
        %v10031 = vpop.permute.xlu0 %10030
        %10032 = vrot.lane.b32.xlu0 %v9681, 90
        %v10033 = vpop.permute.xlu0 %10032
        %10034 = vrot.lane.b32.xlu0 %v9682, 90
        %v10035 = vpop.permute.xlu0 %10034
        %v10036 = vsel %vm475, %v10013, %v10015
        %v10037 = vsel %vm475, %v10015, %v10017
        %v10038 = vsel %vm475, %v10019, %v10021
        %v10039 = vsel %vm475, %v10021, %v10023
        %v10040 = vsel %vm475, %v10025, %v10027
        %v10041 = vsel %vm475, %v10027, %v10029
        %v10042 = vsel %vm475, %v10031, %v10033
        %v10043 = vsel %vm475, %v10033, %v10035
        %v10056 = vpack.c.bf16 %v9674, %v9671
        %v10057 = vpack.c.bf16 %v9675, %v9672
        %v10058 = vpack.c.bf16 %v9676, %v9673
        %v10059 = vpack.c.bf16 %v9680, %v9677
        %v10060 = vpack.c.bf16 %v9681, %v9678
        %v10061 = vpack.c.bf16 %v9682, %v9679
        %v10062 = vpack.c.bf16 %v9730, %v9728
        %v10063 = vpack.c.bf16 %v9731, %v9729
        %v10064 = vpack.c.bf16 %v9715, %v9709
        %v10065 = vpack.c.bf16 %v9734, %v9732
        %v10066 = vpack.c.bf16 %v9735, %v9733
        %v10067 = vpack.c.bf16 %v9727, %v9721
        %v10068 = vpack.c.bf16 %v9774, %v9772
        %v10069 = vpack.c.bf16 %v9775, %v9773
        %v10070 = vpack.c.bf16 %v9759, %v9753
        %v10071 = vpack.c.bf16 %v9778, %v9776
        %v10072 = vpack.c.bf16 %v9779, %v9777
        %v10073 = vpack.c.bf16 %v9771, %v9765
        %v10074 = vpack.c.bf16 %v9818, %v9816
        %v10075 = vpack.c.bf16 %v9819, %v9817
        %v10076 = vpack.c.bf16 %v9803, %v9797
        %v10077 = vpack.c.bf16 %v9822, %v9820
        %v10078 = vpack.c.bf16 %v9823, %v9821
        %v10079 = vpack.c.bf16 %v9815, %v9809
        %v10080 = vpack.c.bf16 %v9862, %v9860
        %v10081 = vpack.c.bf16 %v9863, %v9861
        %v10082 = vpack.c.bf16 %v9847, %v9841
        %v10083 = vpack.c.bf16 %v9866, %v9864
        %v10084 = vpack.c.bf16 %v9867, %v9865
        %v10085 = vpack.c.bf16 %v9859, %v9853
        %v10086 = vpack.c.bf16 %v9906, %v9904
        %v10087 = vpack.c.bf16 %v9907, %v9905
        %v10088 = vpack.c.bf16 %v9891, %v9885
        %v10089 = vpack.c.bf16 %v9910, %v9908
        %v10090 = vpack.c.bf16 %v9911, %v9909
        %v10091 = vpack.c.bf16 %v9903, %v9897
        %v10092 = vpack.c.bf16 %v9950, %v9948
        %v10093 = vpack.c.bf16 %v9951, %v9949
        %v10094 = vpack.c.bf16 %v9935, %v9929
        %v10095 = vpack.c.bf16 %v9954, %v9952
        %v10096 = vpack.c.bf16 %v9955, %v9953
        %v10097 = vpack.c.bf16 %v9947, %v9941
        %v10098 = vpack.c.bf16 %v9994, %v9992
        %v10099 = vpack.c.bf16 %v9995, %v9993
        %v10100 = vpack.c.bf16 %v9979, %v9973
        %v10101 = vpack.c.bf16 %v9998, %v9996
        %v10102 = vpack.c.bf16 %v9999, %v9997
        %v10103 = vpack.c.bf16 %v9991, %v9985
        %v10104 = vpack.c.bf16 %v10038, %v10036
        %v10105 = vpack.c.bf16 %v10039, %v10037
        %v10106 = vpack.c.bf16 %v10023, %v10017
        %v10107 = vpack.c.bf16 %v10042, %v10040
        %v10108 = vpack.c.bf16 %v10043, %v10041
        %v10109 = vpack.c.bf16 %v10035, %v10029
        %s10110 = scalar_lea.vmem %s8, 160
        %v10111 = vld [vmem:[%s10110] sm:$0xff]
        %v10112 = vld [vmem:[%s10110 + $0x8] sm:$0xff]
        %v10113 = vld [vmem:[%s10110 + $0x10] sm:$0xff]
        %v10114 = vld [vmem:[%s10110 + $0x18] sm:$0xff]
        %10116 = vset.pattern.permute.xlu0 0
        %10117 = vperm.xlu0 %10116, %v10111
        %v10118 = vpop.permute.xlu0 %10117
        %10121 = vset.pattern.permute.xlu0 0
        %10122 = vperm.xlu0 %10121, %v10112
        %v10123 = vpop.permute.xlu0 %10122
        %10126 = vset.pattern.permute.xlu0 0
        %10127 = vperm.xlu0 %10126, %v10113
        %v10128 = vpop.permute.xlu0 %10127
        %10131 = vset.pattern.permute.xlu0 0
        %10132 = vperm.xlu0 %10131, %v10114
        %v10133 = vpop.permute.xlu0 %10132
        %v10143 = vunpack.c.l.b16 %v9684
        %v10144 = vunpack.c.h.b16 %v9684
        %v10145 = vunpack.c.l.b16 %v9685
        %v10146 = vunpack.c.l.b16 %v9686
        %v10147 = vunpack.c.h.b16 %v9686
        %v10148 = vunpack.c.l.b16 %v9687
        %v10149 = vunpack.c.l.b16 %v9688
        %v10150 = vunpack.c.h.b16 %v9688
        %v10151 = vunpack.c.l.b16 %v9689
        %v10152 = vunpack.c.l.b16 %v9690
        %v10153 = vunpack.c.h.b16 %v9690
        %v10154 = vunpack.c.l.b16 %v9691
        %v10155 = vpack.c.b16 %v10146, %v10143
        %v10156 = vpack.c.b16 %v10147, %v10144
        %v10157 = vpack.c.b16 %v10148, %v10145
        %v10158 = vpack.c.b16 %v10152, %v10149
        %v10159 = vpack.c.b16 %v10153, %v10150
        %v10160 = vpack.c.b16 %v10154, %v10151
        %v10166 = vsel %vm1254, %v10157, 0
        %v10169 = vsel %vm1254, %v10160, 0
        %10171 = vmatprep.subr.bf16.mxu0 %v10057
        %10172 = vmatpush1.bf16.msra.mxu0 %v10056
        %10173 = vmatprep.subr.bf16.mxu0 %v10060
        %10174 = vmatpush1.bf16.msra.mxu0 %v10059
        %10175 = vmatprep.subr.bf16.mxu0 %v10063
        %10176 = vmatpush1.bf16.msra.mxu0 %v10062
        %10177 = vmatprep.subr.bf16.mxu0 %v10066
        %10178 = vmatpush1.bf16.msra.mxu0 %v10065
        %10179 = vmatprep.subr.bf16.mxu0 %v10069
        %10180 = vmatpush1.bf16.msra.mxu0 %v10068
        %10181 = vmatprep.subr.bf16.mxu0 %v10072
        %10182 = vmatpush1.bf16.msra.mxu0 %v10071
        %10183 = vmatprep.subr.bf16.mxu0 %v10075
        %10184 = vmatpush1.bf16.msra.mxu0 %v10074
        %10185 = vmatprep.subr.bf16.mxu0 %v10078
        %10186 = vmatpush1.bf16.msra.mxu0 %v10077
        %10187 = vmatprep.subr.bf16.mxu0 %v10081
        %10188 = vmatpush1.bf16.msra.mxu0 %v10080
        %10189 = vmatprep.subr.bf16.mxu0 %v10084
        %10190 = vmatpush1.bf16.msra.mxu0 %v10083
        %10191 = vmatprep.subr.bf16.mxu0 %v10087
        %10192 = vmatpush1.bf16.msra.mxu0 %v10086
        %10193 = vmatprep.subr.bf16.mxu0 %v10090
        %10194 = vmatpush1.bf16.msra.mxu0 %v10089
        %10195 = vmatprep.subr.bf16.mxu0 %v10093
        %10196 = vmatpush1.bf16.msra.mxu0 %v10092
        %10197 = vmatprep.subr.bf16.mxu0 %v10096
        %10198 = vmatpush1.bf16.msra.mxu0 %v10095
        %10199 = vmatprep.subr.bf16.mxu0 %v10099
        %10200 = vmatpush1.bf16.msra.mxu0 %v10098
        %10201 = vmatprep.subr.bf16.mxu0 %v10102
        %10202 = vmatpush1.bf16.msra.mxu0 %v10101
        %10203 = vmatprep.mubr.bf16.mxu0 %v10156
        %10204 = vmatmul.mubr.bf16.gmra.mrb[0].mxu0 %v10155
        %v10205 = vpop.f32.mrb[0].mxu0
        %v10206 = vadd.f32 %v10118, %v10205
        %v10207 = vpop.f32.mrb[0].mxu0
        %v10208 = vadd.f32 %v10118, %v10207
        %v10209 = vpop.f32.mrb[0].mxu0
        %v10210 = vadd.f32 %v10123, %v10209
        %v10211 = vpop.f32.mrb[0].mxu0
        %v10212 = vadd.f32 %v10123, %v10211
        %10213 = vmatprep.mubr.bf16.mxu0 %v10159
        %10214 = vmatmul.mubr.bf16.gmra.mrb[0].mxu0 %v10158
        %v10215 = vpop.f32.mrb[0].mxu0
        %v10216 = vadd.f32 %v10128, %v10215
        %v10217 = vpop.f32.mrb[0].mxu0
        %v10218 = vadd.f32 %v10128, %v10217
        %v10219 = vpop.f32.mrb[0].mxu0
        %v10220 = vadd.f32 %v10133, %v10219
        %v10221 = vpop.f32.mrb[0].mxu0
        %v10222 = vadd.f32 %v10133, %v10221
        %10223 = vdwg.mxu0
        %10224 = vmatprep.subr.bf16.mxu0 %v10105
        %10225 = vmatpush1.bf16.msra.mxu0 %v10104
        %10226 = vmatprep.subr.bf16.mxu0 %v10108
        %10227 = vmatpush1.bf16.msra.mxu0 %v10107
        %10228 = vmatprep.subr.bf16.mxu0 0
        %10229 = vmatpush1.bf16.msra.mxu0 0
        %10230 = vmatprep.subr.bf16.mxu0 0
        %10231 = vmatpush1.bf16.msra.mxu0 0
        %10232 = vmatprep.subr.bf16.mxu0 0
        %10233 = vmatpush1.bf16.msra.mxu0 0
        %10234 = vmatprep.subr.bf16.mxu0 0
        %10235 = vmatpush1.bf16.msra.mxu0 0
        %10236 = vmatprep.subr.bf16.mxu0 0
        %10237 = vmatpush1.bf16.msra.mxu0 0
        %10238 = vmatprep.subr.bf16.mxu0 0
        %10239 = vmatpush1.bf16.msra.mxu0 0
        %10240 = vmatprep.subr.bf16.mxu0 0
        %10241 = vmatpush1.bf16.msra.mxu0 0
        %10242 = vmatprep.subr.bf16.mxu0 0
        %10243 = vmatpush1.bf16.msra.mxu0 0
        %10244 = vmatprep.subr.bf16.mxu0 0
        %10245 = vmatpush1.bf16.msra.mxu0 0
        %10246 = vmatprep.subr.bf16.mxu0 0
        %10247 = vmatpush1.bf16.msra.mxu0 0
        %10248 = vmatprep.subr.bf16.mxu0 0
        %10249 = vmatpush1.bf16.msra.mxu0 0
        %10250 = vmatprep.subr.bf16.mxu0 0
        %10251 = vmatpush1.bf16.msra.mxu0 0
        %10252 = vmatprep.subr.bf16.mxu0 0
        %10253 = vmatpush1.bf16.msra.mxu0 0
        %10254 = vmatprep.subr.bf16.mxu0 0
        %10255 = vmatpush1.bf16.msra.mxu0 0
        %10256 = vmatprep.mubr.bf16.mxu0 0
        %10257 = vmatmul.mubr.bf16.gmra.mrb[0].mxu0 %v10166
        %v10258 = vpop.f32.mrb[0].mxu0
        %v10259 = vadd.f32 %v10206, %v10258
        %v10260 = vpop.f32.mrb[0].mxu0
        %v10261 = vadd.f32 %v10208, %v10260
        %v10262 = vpop.f32.mrb[0].mxu0
        %v10263 = vadd.f32 %v10210, %v10262
        %v10264 = vpop.f32.mrb[0].mxu0
        %v10265 = vadd.f32 %v10212, %v10264
        %10266 = vmatprep.mubr.bf16.mxu0 0
        %10267 = vmatmul.mubr.bf16.gmra.mrb[0].mxu0 %v10169
        %v10268 = vpop.f32.mrb[0].mxu0
        %v10269 = vadd.f32 %v10216, %v10268
        %v10270 = vpop.f32.mrb[0].mxu0
        %v10271 = vadd.f32 %v10218, %v10270
        %v10272 = vpop.f32.mrb[0].mxu0
        %v10273 = vadd.f32 %v10220, %v10272
        %v10274 = vpop.f32.mrb[0].mxu0
        %v10275 = vadd.f32 %v10222, %v10274
        %10276 = vdwg.mxu0
        %10277 = vmatprep.subr.bf16.mxu0 0
        %10278 = vmatpush1.bf16.msra.mxu0 %v10058
        %10279 = vmatprep.subr.bf16.mxu0 0
        %10280 = vmatpush1.bf16.msra.mxu0 %v10061
        %10281 = vmatprep.subr.bf16.mxu0 0
        %10282 = vmatpush1.bf16.msra.mxu0 %v10064
        %10283 = vmatprep.subr.bf16.mxu0 0
        %10284 = vmatpush1.bf16.msra.mxu0 %v10067
        %10285 = vmatprep.subr.bf16.mxu0 0
        %10286 = vmatpush1.bf16.msra.mxu0 %v10070
        %10287 = vmatprep.subr.bf16.mxu0 0
        %10288 = vmatpush1.bf16.msra.mxu0 %v10073
        %10289 = vmatprep.subr.bf16.mxu0 0
        %10290 = vmatpush1.bf16.msra.mxu0 %v10076
        %10291 = vmatprep.subr.bf16.mxu0 0
        %10292 = vmatpush1.bf16.msra.mxu0 %v10079
        %10293 = vmatprep.subr.bf16.mxu0 0
        %10294 = vmatpush1.bf16.msra.mxu0 %v10082
        %10295 = vmatprep.subr.bf16.mxu0 0
        %10296 = vmatpush1.bf16.msra.mxu0 %v10085
        %10297 = vmatprep.subr.bf16.mxu0 0
        %10298 = vmatpush1.bf16.msra.mxu0 %v10088
        %10299 = vmatprep.subr.bf16.mxu0 0
        %10300 = vmatpush1.bf16.msra.mxu0 %v10091
        %10301 = vmatprep.subr.bf16.mxu0 0
        %10302 = vmatpush1.bf16.msra.mxu0 %v10094
        %10303 = vmatprep.subr.bf16.mxu0 0
        %10304 = vmatpush1.bf16.msra.mxu0 %v10097
        %10305 = vmatprep.subr.bf16.mxu0 0
        %10306 = vmatpush1.bf16.msra.mxu0 %v10100
        %10307 = vmatprep.subr.bf16.mxu0 0
        %10308 = vmatpush1.bf16.msra.mxu0 %v10103
        %10309 = vmatprep.mubr.bf16.mxu0 %v10156
        %10310 = vmatmul.mubr.bf16.gmra.mrb[0].mxu0 %v10155
        %v10311 = vpop.f32.mrb[0].mxu0
        %v10312 = vadd.f32 %v10118, %v10311
        %v10313 = vpop.f32.mrb[0].mxu0
        %v10314 = vpop.f32.mrb[0].mxu0
        %v10315 = vadd.f32 %v10123, %v10314
        %v10316 = vpop.f32.mrb[0].mxu0
        %10317 = vmatprep.mubr.bf16.mxu0 %v10159
        %10318 = vmatmul.mubr.bf16.gmra.mrb[0].mxu0 %v10158
        %v10319 = vpop.f32.mrb[0].mxu0
        %v10320 = vadd.f32 %v10128, %v10319
        %v10321 = vpop.f32.mrb[0].mxu0
        %v10322 = vpop.f32.mrb[0].mxu0
        %v10323 = vadd.f32 %v10133, %v10322
        %v10324 = vpop.f32.mrb[0].mxu0
        %10325 = vdwg.mxu0
        %10326 = vmatprep.subr.bf16.mxu0 0
        %10327 = vmatpush1.bf16.msra.mxu0 %v10106
        %10328 = vmatprep.subr.bf16.mxu0 0
        %10329 = vmatpush1.bf16.msra.mxu0 %v10109
        %10330 = vmatprep.subr.bf16.mxu0 0
        %10331 = vmatpush1.bf16.msra.mxu0 0
        %10332 = vmatprep.subr.bf16.mxu0 0
        %10333 = vmatpush1.bf16.msra.mxu0 0
        %10334 = vmatprep.subr.bf16.mxu0 0
        %10335 = vmatpush1.bf16.msra.mxu0 0
        %10336 = vmatprep.subr.bf16.mxu0 0
        %10337 = vmatpush1.bf16.msra.mxu0 0
        %10338 = vmatprep.subr.bf16.mxu0 0
        %10339 = vmatpush1.bf16.msra.mxu0 0
        %10340 = vmatprep.subr.bf16.mxu0 0
        %10341 = vmatpush1.bf16.msra.mxu0 0
        %10342 = vmatprep.subr.bf16.mxu0 0
        %10343 = vmatpush1.bf16.msra.mxu0 0
        %10344 = vmatprep.subr.bf16.mxu0 0
        %10345 = vmatpush1.bf16.msra.mxu0 0
        %10346 = vmatprep.subr.bf16.mxu0 0
        %10347 = vmatpush1.bf16.msra.mxu0 0
        %10348 = vmatprep.subr.bf16.mxu0 0
        %10349 = vmatpush1.bf16.msra.mxu0 0
        %10350 = vmatprep.subr.bf16.mxu0 0
        %10351 = vmatpush1.bf16.msra.mxu0 0
        %10352 = vmatprep.subr.bf16.mxu0 0
        %10353 = vmatpush1.bf16.msra.mxu0 0
        %10354 = vmatprep.subr.bf16.mxu0 0
        %10355 = vmatpush1.bf16.msra.mxu0 0
        %10356 = vmatprep.subr.bf16.mxu0 0
        %10357 = vmatpush1.bf16.msra.mxu0 0
        %10358 = vmatprep.mubr.bf16.mxu0 0
        %10359 = vmatmul.mubr.bf16.gmra.mrb[0].mxu0 %v10166
        %v10360 = vpop.f32.mrb[0].mxu0
        %v10361 = vadd.f32 %v10312, %v10360
        %v10362 = vpop.f32.mrb[0].mxu0
        %v10363 = vpop.f32.mrb[0].mxu0
        %v10364 = vadd.f32 %v10315, %v10363
        %v10365 = vpop.f32.mrb[0].mxu0
        %10366 = vmatprep.mubr.bf16.mxu0 0
        %10367 = vmatmul.mubr.bf16.gmra.mrb[0].mxu0 %v10169
        %v10368 = vpop.f32.mrb[0].mxu0
        %v10369 = vadd.f32 %v10320, %v10368
        %v10370 = vpop.f32.mrb[0].mxu0
        %v10371 = vpop.f32.mrb[0].mxu0
        %v10372 = vadd.f32 %v10323, %v10371
        %v10373 = vpop.f32.mrb[0].mxu0
        %10374 = vdwg.mxu0
        %v10375 = vadd.f32 %v10259, %v9038
        %v10376 = vadd.f32 %v10261, %v9039
        %v10377 = vadd.f32 %v10361, %v9019
        %v10378 = vadd.f32 %v10263, %v9040
        %v10379 = vadd.f32 %v10265, %v9041
        %v10380 = vadd.f32 %v10364, %v9025
        %v10381 = vadd.f32 %v10269, %v9042
        %v10382 = vadd.f32 %v10271, %v9043
        %v10383 = vadd.f32 %v10369, %v9031
        %v10384 = vadd.f32 %v10273, %v9044
        %v10385 = vadd.f32 %v10275, %v9045
        %v10386 = vadd.f32 %v10372, %v9037
        %v10387 = vmul.f32 %v10375, %v667
        %v10388 = vmul.f32 %v10376, %v671
        %v10389 = vmul.f32 %v10377, %v675
        %v10390 = vmul.f32 %v10378, %v667
        %v10391 = vmul.f32 %v10379, %v671
        %v10392 = vmul.f32 %v10380, %v675
        %v10393 = vmul.f32 %v10381, %v667
        %v10394 = vmul.f32 %v10382, %v671
        %v10395 = vmul.f32 %v10383, %v675
        %v10396 = vmul.f32 %v10384, %v667
        %v10397 = vmul.f32 %v10385, %v671
        %v10398 = vmul.f32 %v10386, %v675
        %10411 = vrot.lane.b32.xlu0 %v10387, 19
        %v10412 = vpop.permute.xlu0 %10411
        %10413 = vrot.lane.b32.xlu0 %v10388, 19
        %v10414 = vpop.permute.xlu0 %10413
        %10415 = vrot.lane.b32.xlu0 %v10389, 19
        %v10416 = vpop.permute.xlu0 %10415
        %10417 = vrot.lane.b32.xlu0 %v10390, 19
        %v10418 = vpop.permute.xlu0 %10417
        %10419 = vrot.lane.b32.xlu0 %v10391, 19
        %v10420 = vpop.permute.xlu0 %10419
        %10421 = vrot.lane.b32.xlu0 %v10392, 19
        %v10422 = vpop.permute.xlu0 %10421
        %10423 = vrot.lane.b32.xlu0 %v10393, 19
        %v10424 = vpop.permute.xlu0 %10423
        %10425 = vrot.lane.b32.xlu0 %v10394, 19
        %v10426 = vpop.permute.xlu0 %10425
        %10427 = vrot.lane.b32.xlu0 %v10395, 19
        %v10428 = vpop.permute.xlu0 %10427
        %10429 = vrot.lane.b32.xlu0 %v10396, 19
        %v10430 = vpop.permute.xlu0 %10429
        %10431 = vrot.lane.b32.xlu0 %v10397, 19
        %v10432 = vpop.permute.xlu0 %10431
        %10433 = vrot.lane.b32.xlu0 %v10398, 19
        %v10434 = vpop.permute.xlu0 %10433
        %v10435 = vsel %vm727, %v10412, %v10414
        %v10436 = vsel %vm727, %v10414, %v10416
        %v10437 = vsel %vm727, %v10418, %v10420
        %v10438 = vsel %vm727, %v10420, %v10422
        %v10439 = vsel %vm727, %v10424, %v10426
        %v10440 = vsel %vm727, %v10426, %v10428
        %v10441 = vsel %vm727, %v10430, %v10432
        %v10442 = vsel %vm727, %v10432, %v10434
        %10455 = vst.msk [vmem:[#allocation2] sm:$0xff] %vm748, %v10412
        %10456 = vst [vmem:[#allocation2 + $0x8] sm:$0xff] %v10435
        %10457 = vst.msk [vmem:[#allocation2 + $0x10] sm:$0xff] %vm751, %v10436
        %10458 = vst.msk [vmem:[#allocation2 + $0x18] sm:$0xff] %vm748, %v10418
        %10459 = vst [vmem:[#allocation2 + $0x20] sm:$0xff] %v10437
        %10460 = vst.msk [vmem:[#allocation2 + $0x28] sm:$0xff] %vm751, %v10438
        %10461 = vst.msk [vmem:[#allocation2 + $0x30] sm:$0xff] %vm748, %v10424
        %10462 = vst [vmem:[#allocation2 + $0x38] sm:$0xff] %v10439
        %10463 = vst.msk [vmem:[#allocation2 + $0x40] sm:$0xff] %vm751, %v10440
        %10464 = vst.msk [vmem:[#allocation2 + $0x48] sm:$0xff] %vm748, %v10430
        %10465 = vst [vmem:[#allocation2 + $0x50] sm:$0xff] %v10441
        %10466 = vst.msk [vmem:[#allocation2 + $0x58] sm:$0xff] %vm751, %v10442
        %v10467 = vld [vmem:[#allocation2] sm:$0xff]
        %v10468 = vld [vmem:[#allocation2 + $0x8] sm:$0xff]
        %v10469 = vld [vmem:[#allocation2 + $0x10] sm:$0xff]
        %v10470 = vld [vmem:[#allocation2 + $0x18] sm:$0xff]
        %v10471 = vld [vmem:[#allocation2 + $0x20] sm:$0xff]
        %v10472 = vld [vmem:[#allocation2 + $0x28] sm:$0xff]
        %v10473 = vld [vmem:[#allocation2 + $0x30] sm:$0xff]
        %v10474 = vld [vmem:[#allocation2 + $0x38] sm:$0xff]
        %v10475 = vld [vmem:[#allocation2 + $0x40] sm:$0xff]
        %v10476 = vld [vmem:[#allocation2 + $0x48] sm:$0xff]
        %v10477 = vld [vmem:[#allocation2 + $0x50] sm:$0xff]
        %v10478 = vld [vmem:[#allocation2 + $0x58] sm:$0xff]
        %v10479 = vmax.f32 %v10467, %v10473
        %v10480 = vmax.f32 %v10470, %v10476
        %v10481 = vmax.f32 %v10479, %v10480
        %v10482 = vrot.slane %v10481, 4
        %v10483 = vmax.f32 %v10481, %v10482
        %v10484 = vrot.slane %v10483, 2
        %v10485 = vmax.f32 %v10483, %v10484
        %v10486 = vrot.slane %v10485, 1
        %v10487 = vmax.f32 %v10485, %v10486
        %v10488 = vmax.f32 %v10468, %v10474
        %v10489 = vmax.f32 %v10471, %v10477
        %v10490 = vmax.f32 %v10488, %v10489
        %v10491 = vrot.slane %v10490, 4
        %v10492 = vmax.f32 %v10490, %v10491
        %v10493 = vrot.slane %v10492, 2
        %v10494 = vmax.f32 %v10492, %v10493
        %v10495 = vrot.slane %v10494, 1
        %v10496 = vmax.f32 %v10494, %v10495
        %v10497 = vsel %vm364, %v10469, -inf
        %v10498 = vsel %vm364, %v10472, -inf
        %v10499 = vsel %vm364, %v10475, -inf
        %v10500 = vmax.f32 %v10497, %v10499
        %v10501 = vsel %vm364, %v10478, -inf
        %v10502 = vmax.f32 %v10498, %v10501
        %v10503 = vmax.f32 %v10500, %v10502
        %v10504 = vrot.slane %v10503, 4
        %v10505 = vmax.f32 %v10503, %v10504
        %v10506 = vrot.slane %v10505, 2
        %v10507 = vmax.f32 %v10505, %v10506
        %v10508 = vrot.slane %v10507, 1
        %v10509 = vmax.f32 %v10507, %v10508
        %v10510 = vadd.f32 %v10467, %v10470
        %v10511 = vadd.f32 %v10510, %v10473
        %v10512 = vadd.f32 %v10511, %v10476
        %v10513 = vrot.slane %v10512, 4
        %v10514 = vadd.f32 %v10512, %v10513
        %v10515 = vrot.slane %v10514, 2
        %v10516 = vadd.f32 %v10514, %v10515
        %v10517 = vrot.slane %v10516, 1
        %v10518 = vadd.f32 %v10516, %v10517
        %v10519 = vadd.f32 %v10468, %v10471
        %v10520 = vadd.f32 %v10519, %v10474
        %v10521 = vadd.f32 %v10520, %v10477
        %v10522 = vrot.slane %v10521, 4
        %v10523 = vadd.f32 %v10521, %v10522
        %v10524 = vrot.slane %v10523, 2
        %v10525 = vadd.f32 %v10523, %v10524
        %v10526 = vrot.slane %v10525, 1
        %v10527 = vadd.f32 %v10525, %v10526
        %v10528 = vsel %vm364, %v10469, 0.0
        %v10529 = vsel %vm364, %v10472, 0.0
        %v10530 = vadd.f32 %v10528, %v10529
        %v10531 = vsel %vm364, %v10475, 0.0
        %v10532 = vadd.f32 %v10530, %v10531
        %v10533 = vsel %vm364, %v10478, 0.0
        %v10534 = vadd.f32 %v10532, %v10533
        %v10535 = vrot.slane %v10534, 4
        %v10536 = vadd.f32 %v10534, %v10535
        %v10537 = vrot.slane %v10536, 2
        %v10538 = vadd.f32 %v10536, %v10537
        %v10539 = vrot.slane %v10538, 1
        %v10540 = vadd.f32 %v10538, %v10539
        %v10541 = vrcp.pop 32.0
        %v10542 = vmul.f32 %v10518, %v10541
        %v10543 = vmul.f32 %v10527, %v10541
        %v10544 = vmul.f32 %v10540, %v10541
        %s10545 = sld [smem:[#allocation5]]
        %v10546 = vstv %s10545
        %v10547 = vmul.f32 %v10546, %v10487
        %v10548 = vmul.f32 %v10546, %v10496
        %v10549 = vmul.f32 %v10546, %v10509
        %v10550 = vadd.f32 %v10547, 0.0
        %v10551 = vadd.f32 %v10548, 0.0
        %v10552 = vadd.f32 %v10549, 0.0
        %s10553 = sld [smem:[#allocation5 + $0x1]]
        %v10554 = vstv %s10553
        %v10555 = vmul.f32 %v10554, %v10542
        %v10556 = vmul.f32 %v10554, %v10543
        %v10557 = vmul.f32 %v10554, %v10544
        %v10558 = vadd.f32 %v10550, %v10555
        %v10559 = vadd.f32 %v10551, %v10556
        %v10560 = vadd.f32 %v10552, %v10557
        %s10561 = sld [smem:[#allocation5 + $0x80]]
        %v10562 = vstv %s10561
        %v10563 = vmul.f32 %v10562, %v10487
        %v10564 = vmul.f32 %v10562, %v10496
        %v10565 = vmul.f32 %v10562, %v10509
        %10569 = vrot.lane.b32.xlu0 %v10563, 127
        %v10570 = vpop.permute.xlu0 %10569
        %10571 = vrot.lane.b32.xlu0 %v10564, 127
        %v10572 = vpop.permute.xlu0 %10571
        %10573 = vrot.lane.b32.xlu0 %v10565, 127
        %v10574 = vpop.permute.xlu0 %10573
        %v10575 = vsel %vm391, %v10570, %v10572
        %v10576 = vsel %vm391, %v10572, %v10574
        %v10580 = vadd.f32 %v10558, %v10575
        %v10581 = vadd.f32 %v10559, %v10576
        %v10582 = vadd.f32 %v10560, %v10574
        %s10583 = sld [smem:[#allocation5 + $0x81]]
        %v10584 = vstv %s10583
        %v10585 = vmul.f32 %v10584, %v10542
        %v10586 = vmul.f32 %v10584, %v10543
        %v10587 = vmul.f32 %v10584, %v10544
        %10591 = vrot.lane.b32.xlu0 %v10585, 127
        %v10592 = vpop.permute.xlu0 %10591
        %10593 = vrot.lane.b32.xlu0 %v10586, 127
        %v10594 = vpop.permute.xlu0 %10593
        %10595 = vrot.lane.b32.xlu0 %v10587, 127
        %v10596 = vpop.permute.xlu0 %10595
        %v10597 = vsel %vm391, %v10592, %v10594
        %v10598 = vsel %vm391, %v10594, %v10596
        %v10602 = vadd.f32 %v10580, %v10597
        %v10603 = vadd.f32 %v10581, %v10598
        %v10604 = vadd.f32 %v10582, %v10596
        %s10605 = sld [smem:[#allocation5 + $0x100]]
        %v10606 = vstv %s10605
        %v10607 = vmul.f32 %v10606, %v10487
        %v10608 = vmul.f32 %v10606, %v10496
        %v10609 = vmul.f32 %v10606, %v10509
        %10613 = vrot.lane.b32.xlu0 %v10607, 126
        %v10614 = vpop.permute.xlu0 %10613
        %10615 = vrot.lane.b32.xlu0 %v10608, 126
        %v10616 = vpop.permute.xlu0 %10615
        %10617 = vrot.lane.b32.xlu0 %v10609, 126
        %v10618 = vpop.permute.xlu0 %10617
        %v10619 = vsel %vm403, %v10614, %v10616
        %v10620 = vsel %vm403, %v10616, %v10618
        %v10624 = vadd.f32 %v10602, %v10619
        %v10625 = vadd.f32 %v10603, %v10620
        %v10626 = vadd.f32 %v10604, %v10618
        %s10627 = sld [smem:[#allocation5 + $0x101]]
        %v10628 = vstv %s10627
        %v10629 = vmul.f32 %v10628, %v10542
        %v10630 = vmul.f32 %v10628, %v10543
        %v10631 = vmul.f32 %v10628, %v10544
        %10635 = vrot.lane.b32.xlu0 %v10629, 126
        %v10636 = vpop.permute.xlu0 %10635
        %10637 = vrot.lane.b32.xlu0 %v10630, 126
        %v10638 = vpop.permute.xlu0 %10637
        %10639 = vrot.lane.b32.xlu0 %v10631, 126
        %v10640 = vpop.permute.xlu0 %10639
        %v10641 = vsel %vm403, %v10636, %v10638
        %v10642 = vsel %vm403, %v10638, %v10640
        %v10646 = vadd.f32 %v10624, %v10641
        %v10647 = vadd.f32 %v10625, %v10642
        %v10648 = vadd.f32 %v10626, %v10640
        %s10649 = sld [smem:[#allocation5 + $0x180]]
        %v10650 = vstv %s10649
        %v10651 = vmul.f32 %v10650, %v10487
        %v10652 = vmul.f32 %v10650, %v10496
        %v10653 = vmul.f32 %v10650, %v10509
        %10657 = vrot.lane.b32.xlu0 %v10651, 110
        %v10658 = vpop.permute.xlu0 %10657
        %10659 = vrot.lane.b32.xlu0 %v10652, 110
        %v10660 = vpop.permute.xlu0 %10659
        %10661 = vrot.lane.b32.xlu0 %v10653, 110
        %v10662 = vpop.permute.xlu0 %10661
        %v10663 = vsel %vm415, %v10658, %v10660
        %v10664 = vsel %vm415, %v10660, %v10662
        %v10668 = vadd.f32 %v10646, %v10663
        %v10669 = vadd.f32 %v10647, %v10664
        %v10670 = vadd.f32 %v10648, %v10662
        %s10671 = sld [smem:[#allocation5 + $0x181]]
        %v10672 = vstv %s10671
        %v10673 = vmul.f32 %v10672, %v10542
        %v10674 = vmul.f32 %v10672, %v10543
        %v10675 = vmul.f32 %v10672, %v10544
        %10679 = vrot.lane.b32.xlu0 %v10673, 110
        %v10680 = vpop.permute.xlu0 %10679
        %10681 = vrot.lane.b32.xlu0 %v10674, 110
        %v10682 = vpop.permute.xlu0 %10681
        %10683 = vrot.lane.b32.xlu0 %v10675, 110
        %v10684 = vpop.permute.xlu0 %10683
        %v10685 = vsel %vm415, %v10680, %v10682
        %v10686 = vsel %vm415, %v10682, %v10684
        %v10690 = vadd.f32 %v10668, %v10685
        %v10691 = vadd.f32 %v10669, %v10686
        %v10692 = vadd.f32 %v10670, %v10684
        %s10693 = sld [smem:[#allocation5 + $0x200]]
        %v10694 = vstv %s10693
        %v10695 = vmul.f32 %v10694, %v10487
        %v10696 = vmul.f32 %v10694, %v10496
        %v10697 = vmul.f32 %v10694, %v10509
        %10701 = vrot.lane.b32.xlu0 %v10695, 109
        %v10702 = vpop.permute.xlu0 %10701
        %10703 = vrot.lane.b32.xlu0 %v10696, 109
        %v10704 = vpop.permute.xlu0 %10703
        %10705 = vrot.lane.b32.xlu0 %v10697, 109
        %v10706 = vpop.permute.xlu0 %10705
        %v10707 = vsel %vm427, %v10702, %v10704
        %v10708 = vsel %vm427, %v10704, %v10706
        %v10712 = vadd.f32 %v10690, %v10707
        %v10713 = vadd.f32 %v10691, %v10708
        %v10714 = vadd.f32 %v10692, %v10706
        %s10715 = sld [smem:[#allocation5 + $0x201]]
        %v10716 = vstv %s10715
        %v10717 = vmul.f32 %v10716, %v10542
        %v10718 = vmul.f32 %v10716, %v10543
        %v10719 = vmul.f32 %v10716, %v10544
        %10723 = vrot.lane.b32.xlu0 %v10717, 109
        %v10724 = vpop.permute.xlu0 %10723
        %10725 = vrot.lane.b32.xlu0 %v10718, 109
        %v10726 = vpop.permute.xlu0 %10725
        %10727 = vrot.lane.b32.xlu0 %v10719, 109
        %v10728 = vpop.permute.xlu0 %10727
        %v10729 = vsel %vm427, %v10724, %v10726
        %v10730 = vsel %vm427, %v10726, %v10728
        %v10734 = vadd.f32 %v10712, %v10729
        %v10735 = vadd.f32 %v10713, %v10730
        %v10736 = vadd.f32 %v10714, %v10728
        %s10737 = sld [smem:[#allocation5 + $0x280]]
        %v10738 = vstv %s10737
        %v10739 = vmul.f32 %v10738, %v10487
        %v10740 = vmul.f32 %v10738, %v10496
        %v10741 = vmul.f32 %v10738, %v10509
        %10745 = vrot.lane.b32.xlu0 %v10739, 108
        %v10746 = vpop.permute.xlu0 %10745
        %10747 = vrot.lane.b32.xlu0 %v10740, 108
        %v10748 = vpop.permute.xlu0 %10747
        %10749 = vrot.lane.b32.xlu0 %v10741, 108
        %v10750 = vpop.permute.xlu0 %10749
        %v10751 = vsel %vm439, %v10746, %v10748
        %v10752 = vsel %vm439, %v10748, %v10750
        %v10756 = vadd.f32 %v10734, %v10751
        %v10757 = vadd.f32 %v10735, %v10752
        %v10758 = vadd.f32 %v10736, %v10750
        %s10759 = sld [smem:[#allocation5 + $0x281]]
        %v10760 = vstv %s10759
        %v10761 = vmul.f32 %v10760, %v10542
        %v10762 = vmul.f32 %v10760, %v10543
        %v10763 = vmul.f32 %v10760, %v10544
        %10767 = vrot.lane.b32.xlu0 %v10761, 108
        %v10768 = vpop.permute.xlu0 %10767
        %10769 = vrot.lane.b32.xlu0 %v10762, 108
        %v10770 = vpop.permute.xlu0 %10769
        %10771 = vrot.lane.b32.xlu0 %v10763, 108
        %v10772 = vpop.permute.xlu0 %10771
        %v10773 = vsel %vm439, %v10768, %v10770
        %v10774 = vsel %vm439, %v10770, %v10772
        %v10778 = vadd.f32 %v10756, %v10773
        %v10779 = vadd.f32 %v10757, %v10774
        %v10780 = vadd.f32 %v10758, %v10772
        %s10781 = sld [smem:[#allocation5 + $0x300]]
        %v10782 = vstv %s10781
        %v10783 = vmul.f32 %v10782, %v10487
        %v10784 = vmul.f32 %v10782, %v10496
        %v10785 = vmul.f32 %v10782, %v10509
        %10789 = vrot.lane.b32.xlu0 %v10783, 92
        %v10790 = vpop.permute.xlu0 %10789
        %10791 = vrot.lane.b32.xlu0 %v10784, 92
        %v10792 = vpop.permute.xlu0 %10791
        %10793 = vrot.lane.b32.xlu0 %v10785, 92
        %v10794 = vpop.permute.xlu0 %10793
        %v10795 = vsel %vm451, %v10790, %v10792
        %v10796 = vsel %vm451, %v10792, %v10794
        %v10800 = vadd.f32 %v10778, %v10795
        %v10801 = vadd.f32 %v10779, %v10796
        %v10802 = vadd.f32 %v10780, %v10794
        %s10803 = sld [smem:[#allocation5 + $0x301]]
        %v10804 = vstv %s10803
        %v10805 = vmul.f32 %v10804, %v10542
        %v10806 = vmul.f32 %v10804, %v10543
        %v10807 = vmul.f32 %v10804, %v10544
        %10811 = vrot.lane.b32.xlu0 %v10805, 92
        %v10812 = vpop.permute.xlu0 %10811
        %10813 = vrot.lane.b32.xlu0 %v10806, 92
        %v10814 = vpop.permute.xlu0 %10813
        %10815 = vrot.lane.b32.xlu0 %v10807, 92
        %v10816 = vpop.permute.xlu0 %10815
        %v10817 = vsel %vm451, %v10812, %v10814
        %v10818 = vsel %vm451, %v10814, %v10816
        %v10822 = vadd.f32 %v10800, %v10817
        %v10823 = vadd.f32 %v10801, %v10818
        %v10824 = vadd.f32 %v10802, %v10816
        %s10825 = sld [smem:[#allocation5 + $0x380]]
        %v10826 = vstv %s10825
        %v10827 = vmul.f32 %v10826, %v10487
        %v10828 = vmul.f32 %v10826, %v10496
        %v10829 = vmul.f32 %v10826, %v10509
        %10833 = vrot.lane.b32.xlu0 %v10827, 91
        %v10834 = vpop.permute.xlu0 %10833
        %10835 = vrot.lane.b32.xlu0 %v10828, 91
        %v10836 = vpop.permute.xlu0 %10835
        %10837 = vrot.lane.b32.xlu0 %v10829, 91
        %v10838 = vpop.permute.xlu0 %10837
        %v10839 = vsel %vm463, %v10834, %v10836
        %v10840 = vsel %vm463, %v10836, %v10838
        %v10844 = vadd.f32 %v10822, %v10839
        %v10845 = vadd.f32 %v10823, %v10840
        %v10846 = vadd.f32 %v10824, %v10838
        %s10847 = sld [smem:[#allocation5 + $0x381]]
        %v10848 = vstv %s10847
        %v10849 = vmul.f32 %v10848, %v10542
        %v10850 = vmul.f32 %v10848, %v10543
        %v10851 = vmul.f32 %v10848, %v10544
        %10855 = vrot.lane.b32.xlu0 %v10849, 91
        %v10856 = vpop.permute.xlu0 %10855
        %10857 = vrot.lane.b32.xlu0 %v10850, 91
        %v10858 = vpop.permute.xlu0 %10857
        %10859 = vrot.lane.b32.xlu0 %v10851, 91
        %v10860 = vpop.permute.xlu0 %10859
        %v10861 = vsel %vm463, %v10856, %v10858
        %v10862 = vsel %vm463, %v10858, %v10860
        %v10866 = vadd.f32 %v10844, %v10861
        %v10867 = vadd.f32 %v10845, %v10862
        %v10868 = vadd.f32 %v10846, %v10860
        %s10869 = sld [smem:[#allocation5 + $0x400]]
        %v10870 = vstv %s10869
        %v10871 = vmul.f32 %v10870, %v10487
        %v10872 = vmul.f32 %v10870, %v10496
        %v10873 = vmul.f32 %v10870, %v10509
        %10877 = vrot.lane.b32.xlu0 %v10871, 90
        %v10878 = vpop.permute.xlu0 %10877
        %10879 = vrot.lane.b32.xlu0 %v10872, 90
        %v10880 = vpop.permute.xlu0 %10879
        %10881 = vrot.lane.b32.xlu0 %v10873, 90
        %v10882 = vpop.permute.xlu0 %10881
        %v10883 = vsel %vm475, %v10878, %v10880
        %v10884 = vsel %vm475, %v10880, %v10882
        %v10888 = vadd.f32 %v10866, %v10883
        %v10889 = vadd.f32 %v10867, %v10884
        %v10890 = vadd.f32 %v10868, %v10882
        %s10891 = sld [smem:[#allocation5 + $0x401]]
        %v10892 = vstv %s10891
        %v10893 = vmul.f32 %v10892, %v10542
        %v10894 = vmul.f32 %v10892, %v10543
        %v10895 = vmul.f32 %v10892, %v10544
        %10899 = vrot.lane.b32.xlu0 %v10893, 90
        %v10900 = vpop.permute.xlu0 %10899
        %10901 = vrot.lane.b32.xlu0 %v10894, 90
        %v10902 = vpop.permute.xlu0 %10901
        %10903 = vrot.lane.b32.xlu0 %v10895, 90
        %v10904 = vpop.permute.xlu0 %10903
        %v10905 = vsel %vm475, %v10900, %v10902
        %v10906 = vsel %vm475, %v10902, %v10904
        %v10910 = vadd.f32 %v10888, %v10905
        %v10911 = vadd.f32 %v10889, %v10906
        %v10912 = vadd.f32 %v10890, %v10904
        %s10913 = sld [smem:[#allocation3 + $0x7]]
        %vm10914 = vcmp.ge.f32.partialorder %v10910, 0.0
        %vm10915 = vcmp.ge.f32.partialorder %v10911, 0.0
        %vm10916 = vcmp.ge.f32.partialorder %v10912, 0.0
        %v10917 = vstv %s10913
        %v10918 = vmul.f32 %v10917, %v10910
        %v10919 = vmul.f32 %v10917, %v10911
        %v10920 = vmul.f32 %v10917, %v10912
        %v10921 = vsel %vm10914, %v10910, %v10918
        %v10922 = vsel %vm10915, %v10911, %v10919
        %v10923 = vsel %vm10916, %v10912, %v10920
        %v10924 = vxor.u32 %v10921, 2147483648
        %v10925 = vxor.u32 %v10922, 2147483648
        %v10926 = vxor.u32 %v10923, 2147483648
        %v10927 = vmul.f32 %v10924, 1.442695
        %v10928 = vpow.pop %v10927
        %v10929 = vmul.f32 %v10925, 1.442695
        %v10930 = vpow.pop %v10929
        %v10931 = vmul.f32 %v10926, 1.442695
        %v10932 = vpow.pop %v10931
        %v10933 = vadd.f32 %v10928, 1.0
        %v10934 = vadd.f32 %v10930, 1.0
        %v10935 = vadd.f32 %v10932, 1.0
        %v10936 = vrcp.pop %v10933
        %v10937 = vmul.f32 1.0, %v10936
        %v10938 = vrcp.pop %v10934
        %v10939 = vmul.f32 1.0, %v10938
        %v10940 = vrcp.pop %v10935
        %v10941 = vmul.f32 1.0, %v10940
        %v10945 = vcombine.low %v10937, %v10939
        %v10947 = vunpack.c.l.s4 1966171168
        %v10948 = vunpack.c.0.s8 %v10947
        %v10949 = vlaneseq
        %v10950 = vshrl.u32 %v10949, 7
        %v10951 = vsub.s32 %v10948, %v10950
        %v10952 = vrot.slane %v10945, %v10951
        %v10954 = vunpack.c.l.s4 1966171168
        %v10955 = vunpack.c.0.s8 %v10954
        %v10956 = vlaneseq
        %v10957 = vshrl.u32 %v10956, 7
        %v10958 = vsub.s32 %v10955, %v10957
        %v10959 = vrot.slane %v10941, %v10958
        %v10960 = vcombine.low %v10952, %v10959
        %v10962 = vunpack.c.l.s4 1966171168
        %v10963 = vunpack.c.0.s8 %v10962
        %v10964 = vlaneseq
        %v10965 = vshrl.u32 %v10964, 7
        %v10966 = vsub.s32 %v10963, %v10965
        %v10967 = vrot.slane %v10960, %v10966
        %v10969 = vlaneseq
        %vm10970 = vcmp.ge.s32.totalorder %v10969, 0
        %vm10971 = vcmp.lt.s32.totalorder %v10969, 286
        %vm10972 = vmand %vm10970, %vm10971
        %10973 = vst.msk [vmem:[%s359] sm:$0x7] %vm10972, %v10967
        %p10974 = scmp.lt.s32.totalorder %s22, 1
        %s10975 = scalar_select %p10974, %s22, 1
        %s10976 = smul.addr %s10975, 3
        %s10977 = scalar_lea.vmem %s9, %s10976
        // Predicated region
        $region65: #{att_spatial_forward.1} parent=55 // pred_check
          %p10978 = pneg %p234
        $region66: #{att_spatial_forward.1} parent=55 // pred_check_branch
          %10980 = sbr.rel (%p10978) target = $region68
        $region67: #{att_spatial_forward.1} parent=55 // pred_region
          _
        $region68: #{att_spatial_forward.1} parent=55 // pred_fallthru
          _
      $region56: #{att_spatial_forward.1} parent=5 // pred_fallthru
        _
      %p10981 = scmp.le.s32.totalorder 2, %s17
      // Predicated region
      $region69: #{att_spatial_forward.1} parent=5 // pred_check
        %p10982 = pneg %p10981
      $region70: #{att_spatial_forward.1} parent=5 // pred_check_branch
        %10984 = sbr.rel (%p10982) target = $region72
      $region71: #{att_spatial_forward.1} parent=5 // pred_region
        %s10985 = ssub.s32 %s17, 2
        // Predicated region
        $region73: #{att_spatial_forward.1} parent=71 // pred_check
          %p10986 = pneg %p240
        $region74: #{att_spatial_forward.1} parent=71 // pred_check_branch
          %10988 = sbr.rel (%p10986) target = $region76
        $region75: #{att_spatial_forward.1} parent=71 // pred_region
          %p10989 = scmp.lt.s32.totalorder %s23, 1
          %s10990 = scalar_select %p10989, %s23, 1
          %s10991 = smul.addr %s10990, 3
          %s10992 = scalar_lea.vmem %s9, %s10991
        $region76: #{att_spatial_forward.1} parent=71 // pred_fallthru
          _
      $region72: #{att_spatial_forward.1} parent=5 // pred_fallthru
        _
    $region6: #{att_spatial_forward.1} parent=1 // loop_footer
      %s21 = sadd.s32 1, %s17
    $region7: #{att_spatial_forward.1} parent=1 // loop_footer_branch
      %16 = sbr.rel target = $region3
    $region8: #{att_spatial_forward.1} parent=1 // loop_exit
      _
    %10993 = vsyncpa [#allocation4], 1
    %s10994 = scalar_lea.sflag [#allocation4], 1
    %10995 = vsyncpa %s10994, 1
    %10996 = vsyncpa [#allocation6], 1

</llo_original>
